<compile_context>
chip_gen: v5e
topology: v5e:2x2
jax: 0.10.0
libtpu: 0.0.40
codegen_flags: <defaults>
</compile_context>

<pallas_src>
import functools

import jax
import jax.numpy as jnp
from jax.experimental import pallas as pl
from jax.experimental.pallas import tpu as pltpu

_LANE = 128


def _round_up(x, m):
    return (x + m - 1) // m * m


# ----------------------------------------------------------------------------
# Fused BasicBlock Pallas kernel (one grid step == one image)
# ----------------------------------------------------------------------------
def _basic_block_kernel(*refs, H, W, has_downsample):
    if has_downsample:
        (x_ref, w1_ref, a1_ref, w2_ref, a2_ref, wd_ref, ad_ref,
         o_ref, h1p_ref, acc1_ref, acc2_ref) = refs
    else:
        (x_ref, w1_ref, a1_ref, w2_ref, a2_ref,
         o_ref, h1p_ref, acc1_ref, acc2_ref) = refs
        wd_ref = ad_ref = None

    cin_p = x_ref.shape[-1]
    cmid_p = w1_ref.shape[-1]
    cout_p = w2_ref.shape[-1]
    HW = H * W

    # ---- conv1: 3x3, pad=1, stride=1 as 9 shifted-window matmuls ----------
    # bf16 MXU operands, f32 accumulation in VMEM scratch (no im2col in HBM).
    for dh in range(3):
        for dw in range(3):
            idx = dh * 3 + dw
            xt = x_ref[pl.ds(dh, H), pl.ds(dw, W), :]
            xt = xt.reshape(HW, cin_p).astype(jnp.bfloat16)
            part = jnp.dot(xt, w1_ref[idx], preferred_element_type=jnp.float32)
            if idx == 0:
                acc1_ref[...] = part
            else:
                acc1_ref[...] += part

    # bn1 (+ folded conv1 bias) + ReLU, f32 epilogue; re-pad the intermediate
    # inside VMEM for conv2 (no HBM round trip of the intermediate).
    a1 = a1_ref[...]
    h1p_ref[...] = jnp.zeros_like(h1p_ref)
    h1p_ref[pl.ds(1, H), pl.ds(1, W), :] = jnp.maximum(
        acc1_ref[...] * a1[0:1, :] + a1[1:2, :], 0.0).reshape(H, W, cmid_p)

    # ---- conv2: 3x3, pad=1, stride=1 + bn2 ---------------------------------
    for dh in range(3):
        for dw in range(3):
            idx = dh * 3 + dw
            ht = h1p_ref[pl.ds(dh, H), pl.ds(dw, W), :]
            ht = ht.reshape(HW, cmid_p).astype(jnp.bfloat16)
            part = jnp.dot(ht, w2_ref[idx], preferred_element_type=jnp.float32)
            if idx == 0:
                acc2_ref[...] = part
            else:
                acc2_ref[...] += part

    a2 = a2_ref[...]
    out = acc2_ref[...] * a2[0:1, :] + a2[1:2, :]

    # ---- residual (identity or fused 1x1-conv + BN downsample) + ReLU -----
    if has_downsample:
        xi = x_ref[pl.ds(1, H), pl.ds(1, W), :]
        xi = xi.reshape(HW, cin_p).astype(jnp.bfloat16)
        ad = ad_ref[...]
        res = jnp.dot(xi, wd_ref[...], preferred_element_type=jnp.float32)
        res = res * ad[0:1, :] + ad[1:2, :]
    else:
        res = x_ref[pl.ds(1, H), pl.ds(1, W), :].reshape(HW, cout_p)

    o_ref[...] = jnp.maximum(out + res, 0.0).reshape(H, W, cout_p).astype(o_ref.dtype)


# ----------------------------------------------------------------------------
# Parameter prep (ALL padding / bf16 casting / bias folding hoisted here)
# ----------------------------------------------------------------------------
def prepare_block_params(raw, eps=1e-5):
    cin = raw["conv1_w"].shape[2]
    planes = raw["conv1_w"].shape[3]
    cin_p = _round_up(cin, _LANE)
    cp = _round_up(planes, _LANE)

    def fold(bn, conv_bias):
        gamma, beta, mean, var = bn
        scale = gamma * jax.lax.rsqrt(var + eps)
        shift = beta - mean * scale + conv_bias * scale
        return scale, shift

    def pack_w3x3(w, ci_p, co_p):
        kh, kw, ci, co = w.shape
        out = jnp.zeros((kh * kw, ci_p, co_p), jnp.float32)
        out = out.at[:, :ci, :co].set(w.reshape(kh * kw, ci, co))
        return out.astype(jnp.bfloat16)          # bf16 MXU operand, stored once

    def pack_affine(scale, shift, co_p):
        a = jnp.zeros((2, co_p), jnp.float32)    # padded scale/shift are 0
        return a.at[0, :scale.shape[0]].set(scale).at[1, :shift.shape[0]].set(shift)

    s1, t1 = fold(raw["bn1"], raw["conv1_b"])
    s2, t2 = fold(raw["bn2"], raw["conv2_b"])
    prep = {
        "w1": pack_w3x3(raw["conv1_w"], cin_p, cp),
        "a1": pack_affine(s1, t1, cp),
        "w2": pack_w3x3(raw["conv2_w"], cp, cp),
        "a2": pack_affine(s2, t2, cp),
    }
    if "down_w" in raw:
        wd = jnp.zeros((cin_p, cp), jnp.float32)
        wd = wd.at[:cin, :planes].set(raw["down_w"])
        sd, td = fold(raw["down_bn"], jnp.zeros((planes,), jnp.float32))
        prep["wd"] = wd.astype(jnp.bfloat16)
        prep["ad"] = pack_affine(sd, td, cp)
    return prep


# ----------------------------------------------------------------------------
# Forward wrapper (single pallas_call per BasicBlock)
# ----------------------------------------------------------------------------
@functools.partial(jax.jit, static_argnames=("planes",))
def basic_block_forward(x_nchw, prep, planes):
    B, cin, H, W = x_nchw.shape
    cin_p = prep["w1"].shape[1]
    cmid_p = prep["w1"].shape[2]
    cout_p = prep["w2"].shape[2]
    has_down = "wd" in prep
    if not has_down:
        assert cin == planes and cin_p == cout_p, "identity residual needs cin == planes"

    # NCHW -> NHWC; single fused spatial (conv pad=1) + lane pad of the input.
    x = jnp.transpose(x_nchw, (0, 2, 3, 1)).astype(jnp.float32)
    xp = jnp.pad(x, ((0, 0), (1, 1), (1, 1), (0, cin_p - cin)))

    kernel = functools.partial(_basic_block_kernel, H=H, W=W,
                               has_downsample=has_down)

    in_specs = [
        pl.BlockSpec((None, H + 2, W + 2, cin_p), lambda b: (b, 0, 0, 0)),
        pl.BlockSpec((9, cin_p, cmid_p), lambda b: (0, 0, 0)),
        pl.BlockSpec((2, cmid_p), lambda b: (0, 0)),
        pl.BlockSpec((9, cmid_p, cout_p), lambda b: (0, 0, 0)),
        pl.BlockSpec((2, cout_p), lambda b: (0, 0)),
    ]
    args = [xp, prep["w1"], prep["a1"], prep["w2"], prep["a2"]]
    if has_down:
        in_specs += [
            pl.BlockSpec((cin_p, cout_p), lambda b: (0, 0)),
            pl.BlockSpec((2, cout_p), lambda b: (0, 0)),
        ]
        args += [prep["wd"], prep["ad"]]

    out = pl.pallas_call(
        kernel,
        out_shape=jax.ShapeDtypeStruct((B, H, W, cout_p), jnp.float32),
        grid_spec=pltpu.PrefetchScalarGridSpec(
            num_scalar_prefetch=0,
            grid=(B,),
            in_specs=in_specs,
            out_specs=pl.BlockSpec((None, H, W, cout_p), lambda b: (b, 0, 0, 0)),
            scratch_shapes=[
                pltpu.VMEM((H + 2, W + 2, cmid_p), jnp.float32),  # padded conv1 out
                pltpu.VMEM((H * W, cmid_p), jnp.float32),         # conv1 f32 acc
                pltpu.VMEM((H * W, cout_p), jnp.float32),         # conv2 f32 acc
            ],
        ),
        compiler_params=pltpu.CompilerParams(
            dimension_semantics=("parallel",),           # both TCs on v7x at B>=2
            vmem_limit_bytes=32 * 1024 * 1024,
        ),
    )(*args)

    # Drop lane padding, back to NCHW.
    return jnp.transpose(out[..., :planes], (0, 3, 1, 2))


# ----------------------------------------------------------------------------
# Deterministic params + pure-JAX reference (for verification)
# ----------------------------------------------------------------------------
def init_raw_params(key, cin, planes, with_downsample):
    ks = iter(jax.random.split(key, 24))

    def conv_w(ci, co, k):
        fan_in = k * k * ci
        return jax.random.normal(next(ks), (k, k, ci, co), jnp.float32) * (2.0 / fan_in) ** 0.5

    def bn_params(c):
        gamma = 1.0 + 0.1 * jax.random.normal(next(ks), (c,), jnp.float32)
        beta = 0.1 * jax.random.normal(next(ks), (c,), jnp.float32)
        mean = 0.1 * jax.random.normal(next(ks), (c,), jnp.float32)
        var = 1.0 + 0.5 * jax.random.uniform(next(ks), (c,), jnp.float32)
        return (gamma, beta, mean, var)

    p = {
        "conv1_w": conv_w(cin, planes, 3),
        "conv1_b": 0.1 * jax.random.normal(next(ks), (planes,), jnp.float32),
        "bn1": bn_params(planes),
        "conv2_w": conv_w(planes, planes, 3),
        "conv2_b": 0.1 * jax.random.normal(next(ks), (planes,), jnp.float32),
        "bn2": bn_params(planes),
    }
    if with_downsample:
        p["down_w"] = conv_w(cin, planes, 1)[0, 0]     # (cin, planes)
        p["down_bn"] = bn_params(planes)
    return p


def basic_block_reference(x_nchw, raw, eps=1e-5):
    x = jnp.transpose(x_nchw, (0, 2, 3, 1)).astype(jnp.float32)

    def conv3x3(v, w, b):
        y = jax.lax.conv_general_dilated(
            v, w, window_strides=(1, 1), padding=((1, 1), (1, 1)),
            dimension_numbers=("NHWC", "HWIO", "NHWC"))
        return y + b

    def bn(v, p):
        gamma, beta, mean, var = p
        return (v - mean) * jax.lax.rsqrt(var + eps) * gamma + beta

    out = jax.nn.relu(bn(conv3x3(x, raw["conv1_w"], raw["conv1_b"]), raw["bn1"]))
    out = bn(conv3x3(out, raw["conv2_w"], raw["conv2_b"]), raw["bn2"])
    if "down_w" in raw:
        residual = bn(jnp.einsum("bhwc,cd->bhwd", x, raw["down_w"]), raw["down_bn"])
    else:
        residual = x
    out = jax.nn.relu(out + residual)
    return jnp.transpose(out, (0, 3, 1, 2))


def _rel_err(a, b):
    return float(jnp.linalg.norm(a - b) / (jnp.linalg.norm(b) + 1e-8))


if __name__ == "__main__":
    key = jax.random.PRNGKey(0)
    kp1, kp2, kx = jax.random.split(key, 3)

    # CIFAR-ish small input, NCHW like PyTorch.
    x = jax.random.normal(kx, (2, 4, 16, 16), jnp.float32)

    # 1) BasicBlock(inplanes=4, planes=4, stride=1, downsample=None)
    raw_id = init_raw_params(kp1, cin=4, planes=4, with_downsample=False)
    out_id = basic_block_forward(x, prepare_block_params(raw_id), planes=4)
    ref_id = basic_block_reference(x, raw_id)
    jax.block_until_ready((out_id, ref_id))
    assert out_id.shape == (2, 4, 16, 16), out_id.shape
    err_id = _rel_err(out_id, ref_id)
    assert err_id < 3e-2, f"identity-residual block mismatch: rel err {err_id}"

    # 2) BasicBlock(inplanes=4, planes=8, stride=1, downsample=conv1x1+BN)
    raw_dn = init_raw_params(kp2, cin=4, planes=8, with_downsample=True)
    out_dn = basic_block_forward(x, prepare_block_params(raw_dn), planes=8)
    ref_dn = basic_block_reference(x, raw_dn)
    jax.block_until_ready((out_dn, ref_dn))
    assert out_dn.shape == (2, 8, 16, 16), out_dn.shape
    err_dn = _rel_err(out_dn, ref_dn)
    assert err_dn < 3e-2, f"downsample block mismatch: rel err {err_dn}"

    print("KERNEL_OK")
</pallas_src>

<mosaic_0001>
module attributes {stable_mosaic.version = 11 : i64} {
  func.func @_basic_block_kernel(%arg0: i32, %arg1: memref<1x18x18x128xf32, #tpu.memory_space<vmem>>, %arg2: memref<9x128x128xbf16, #tpu.memory_space<vmem>>, %arg3: memref<2x128xf32, #tpu.memory_space<vmem>>, %arg4: memref<9x128x128xbf16, #tpu.memory_space<vmem>>, %arg5: memref<2x128xf32, #tpu.memory_space<vmem>>, %arg6: memref<1x16x16x128xf32, #tpu.memory_space<vmem>>, %arg7: memref<18x18x128xf32, #tpu.memory_space<vmem>>, %arg8: memref<256x128xf32, #tpu.memory_space<vmem>>, %arg9: memref<256x128xf32, #tpu.memory_space<vmem>>) attributes {dimension_semantics = [#tpu.dimension_semantics<parallel>], iteration_bounds = array<i64: 2>, scalar_prefetch = 0 : i64, scratch_operands = 3 : i64, tpu.core_type = #tpu.core_type<tc>, window_params = [{transform_indices = @transform_0, window_bounds = array<i64: 1, 18, 18, 128>}, {pipeline_mode = #tpu.pipeline_mode<synchronous>, transform_indices = @transform_1, window_bounds = array<i64: 9, 128, 128>}, {pipeline_mode = #tpu.pipeline_mode<synchronous>, transform_indices = @transform_2, window_bounds = array<i64: 2, 128>}, {pipeline_mode = #tpu.pipeline_mode<synchronous>, transform_indices = @transform_3, window_bounds = array<i64: 9, 128, 128>}, {pipeline_mode = #tpu.pipeline_mode<synchronous>, transform_indices = @transform_4, window_bounds = array<i64: 2, 128>}, {transform_indices = @transform_5, window_bounds = array<i64: 1, 16, 16, 128>}]} {
    %c0 = arith.constant 0 : index
    %c0_0 = arith.constant 0 : index
    %c0_1 = arith.constant 0 : index
    %c0_2 = arith.constant 0 : index
    %0 = vector.load %arg1[%c0, %c0_0, %c0_1, %c0_2] : memref<1x18x18x128xf32, #tpu.memory_space<vmem>>, vector<1x16x16x128xf32>
    %1 = vector.shape_cast %0 : vector<1x16x16x128xf32> to vector<16x16x128xf32>
    %2 = vector.shape_cast %1 : vector<16x16x128xf32> to vector<256x128xf32>
    %3 = arith.truncf %2 : vector<256x128xf32> to vector<256x128xbf16>
    %c0_3 = arith.constant 0 : index
    %c0_4 = arith.constant 0 : index
    %c0_5 = arith.constant 0 : index
    %4 = vector.load %arg2[%c0_3, %c0_4, %c0_5] : memref<9x128x128xbf16, #tpu.memory_space<vmem>>, vector<1x128x128xbf16>
    %5 = vector.shape_cast %4 : vector<1x128x128xbf16> to vector<128x128xbf16>
    %cst = arith.constant dense<0.000000e+00> : vector<256x128xf32>
    %6 = tpu.matmul %3, %5, %cst {dimension_numbers = #tpu.dot_dimension_numbers<[1], [0], [0], [1], [0, 0, 1, 1], [], []>} : vector<256x128xbf16>, vector<128x128xbf16>, vector<256x128xf32> -> vector<256x128xf32>
    %c0_6 = arith.constant 0 : index
    %c0_7 = arith.constant 0 : index
    %7 = vector.load %arg8[%c0_6, %c0_7] : memref<256x128xf32, #tpu.memory_space<vmem>>, vector<256x128xf32>
    tpu.vector_store %arg8[%c0_6, %c0_7], %6 {strides = array<i32>} : memref<256x128xf32, #tpu.memory_space<vmem>>, vector<256x128xf32>,
    %c0_8 = arith.constant 0 : index
    %c0_9 = arith.constant 0 : index
    %c1 = arith.constant 1 : index
    %c0_10 = arith.constant 0 : index
    %8 = vector.load %arg1[%c0_8, %c0_9, %c1, %c0_10] : memref<1x18x18x128xf32, #tpu.memory_space<vmem>>, vector<1x16x16x128xf32>
    %9 = vector.shape_cast %8 : vector<1x16x16x128xf32> to vector<16x16x128xf32>
    %10 = vector.shape_cast %9 : vector<16x16x128xf32> to vector<256x128xf32>
    %11 = arith.truncf %10 : vector<256x128xf32> to vector<256x128xbf16>
    %c1_11 = arith.constant 1 : index
    %c0_12 = arith.constant 0 : index
    %c0_13 = arith.constant 0 : index
    %12 = vector.load %arg2[%c1_11, %c0_12, %c0_13] : memref<9x128x128xbf16, #tpu.memory_space<vmem>>, vector<1x128x128xbf16>
    %13 = vector.shape_cast %12 : vector<1x128x128xbf16> to vector<128x128xbf16>
    %cst_14 = arith.constant dense<0.000000e+00> : vector<256x128xf32>
    %14 = tpu.matmul %11, %13, %cst_14 {dimension_numbers = #tpu.dot_dimension_numbers<[1], [0], [0], [1], [0, 0, 1, 1], [], []>} : vector<256x128xbf16>, vector<128x128xbf16>, vector<256x128xf32> -> vector<256x128xf32>
    %c0_15 = arith.constant 0 : index
    %c0_16 = arith.constant 0 : index
    %15 = vector.load %arg8[%c0_15, %c0_16] : memref<256x128xf32, #tpu.memory_space<vmem>>, vector<256x128xf32>
    %16 = arith.addf %15, %14 : vector<256x128xf32>
    %c0_17 = arith.constant 0 : index
    %c0_18 = arith.constant 0 : index
    %17 = vector.load %arg8[%c0_17, %c0_18] : memref<256x128xf32, #tpu.memory_space<vmem>>, vector<256x128xf32>
    tpu.vector_store %arg8[%c0_17, %c0_18], %16 {strides = array<i32>} : memref<256x128xf32, #tpu.memory_space<vmem>>, vector<256x128xf32>,
    %c0_19 = arith.constant 0 : index
    %c0_20 = arith.constant 0 : index
    %c2 = arith.constant 2 : index
    %c0_21 = arith.constant 0 : index
    %18 = vector.load %arg1[%c0_19, %c0_20, %c2, %c0_21] : memref<1x18x18x128xf32, #tpu.memory_space<vmem>>, vector<1x16x16x128xf32>
    %19 = vector.shape_cast %18 : vector<1x16x16x128xf32> to vector<16x16x128xf32>
    %20 = vector.shape_cast %19 : vector<16x16x128xf32> to vector<256x128xf32>
    %21 = arith.truncf %20 : vector<256x128xf32> to vector<256x128xbf16>
    %c2_22 = arith.constant 2 : index
    %c0_23 = arith.constant 0 : index
    %c0_24 = arith.constant 0 : index
    %22 = vector.load %arg2[%c2_22, %c0_23, %c0_24] : memref<9x128x128xbf16, #tpu.memory_space<vmem>>, vector<1x128x128xbf16>
    %23 = vector.shape_cast %22 : vector<1x128x128xbf16> to vector<128x128xbf16>
    %cst_25 = arith.constant dense<0.000000e+00> : vector<256x128xf32>
    %24 = tpu.matmul %21, %23, %cst_25 {dimension_numbers = #tpu.dot_dimension_numbers<[1], [0], [0], [1], [0, 0, 1, 1], [], []>} : vector<256x128xbf16>, vector<128x128xbf16>, vector<256x128xf32> -> vector<256x128xf32>
    %c0_26 = arith.constant 0 : index
    %c0_27 = arith.constant 0 : index
    %25 = vector.load %arg8[%c0_26, %c0_27] : memref<256x128xf32, #tpu.memory_space<vmem>>, vector<256x128xf32>
    %26 = arith.addf %25, %24 : vector<256x128xf32>
    %c0_28 = arith.constant 0 : index
    %c0_29 = arith.constant 0 : index
    %27 = vector.load %arg8[%c0_28, %c0_29] : memref<256x128xf32, #tpu.memory_space<vmem>>, vector<256x128xf32>
    tpu.vector_store %arg8[%c0_28, %c0_29], %26 {strides = array<i32>} : memref<256x128xf32, #tpu.memory_space<vmem>>, vector<256x128xf32>,
    %c0_30 = arith.constant 0 : index
    %c1_31 = arith.constant 1 : index
    %c0_32 = arith.constant 0 : index
    %c0_33 = arith.constant 0 : index
    %28 = vector.load %arg1[%c0_30, %c1_31, %c0_32, %c0_33] : memref<1x18x18x128xf32, #tpu.memory_space<vmem>>, vector<1x16x16x128xf32>
    %29 = vector.shape_cast %28 : vector<1x16x16x128xf32> to vector<16x16x128xf32>
    %30 = vector.shape_cast %29 : vector<16x16x128xf32> to vector<256x128xf32>
    %31 = arith.truncf %30 : vector<256x128xf32> to vector<256x128xbf16>
    %c3 = arith.constant 3 : index
    %c0_34 = arith.constant 0 : index
    %c0_35 = arith.constant 0 : index
    %32 = vector.load %arg2[%c3, %c0_34, %c0_35] : memref<9x128x128xbf16, #tpu.memory_space<vmem>>, vector<1x128x128xbf16>
    %33 = vector.shape_cast %32 : vector<1x128x128xbf16> to vector<128x128xbf16>
    %cst_36 = arith.constant dense<0.000000e+00> : vector<256x128xf32>
    %34 = tpu.matmul %31, %33, %cst_36 {dimension_numbers = #tpu.dot_dimension_numbers<[1], [0], [0], [1], [0, 0, 1, 1], [], []>} : vector<256x128xbf16>, vector<128x128xbf16>, vector<256x128xf32> -> vector<256x128xf32>
    %c0_37 = arith.constant 0 : index
    %c0_38 = arith.constant 0 : index
    %35 = vector.load %arg8[%c0_37, %c0_38] : memref<256x128xf32, #tpu.memory_space<vmem>>, vector<256x128xf32>
    %36 = arith.addf %35, %34 : vector<256x128xf32>
    %c0_39 = arith.constant 0 : index
    %c0_40 = arith.constant 0 : index
    %37 = vector.load %arg8[%c0_39, %c0_40] : memref<256x128xf32, #tpu.memory_space<vmem>>, vector<256x128xf32>
    tpu.vector_store %arg8[%c0_39, %c0_40], %36 {strides = array<i32>} : memref<256x128xf32, #tpu.memory_space<vmem>>, vector<256x128xf32>,
    %c0_41 = arith.constant 0 : index
    %c1_42 = arith.constant 1 : index
    %c1_43 = arith.constant 1 : index
    %c0_44 = arith.constant 0 : index
    %38 = vector.load %arg1[%c0_41, %c1_42, %c1_43, %c0_44] : memref<1x18x18x128xf32, #tpu.memory_space<vmem>>, vector<1x16x16x128xf32>
    %39 = vector.shape_cast %38 : vector<1x16x16x128xf32> to vector<16x16x128xf32>
    %40 = vector.shape_cast %39 : vector<16x16x128xf32> to vector<256x128xf32>
    %41 = arith.truncf %40 : vector<256x128xf32> to vector<256x128xbf16>
    %c4 = arith.constant 4 : index
    %c0_45 = arith.constant 0 : index
    %c0_46 = arith.constant 0 : index
    %42 = vector.load %arg2[%c4, %c0_45, %c0_46] : memref<9x128x128xbf16, #tpu.memory_space<vmem>>, vector<1x128x128xbf16>
    %43 = vector.shape_cast %42 : vector<1x128x128xbf16> to vector<128x128xbf16>
    %cst_47 = arith.constant dense<0.000000e+00> : vector<256x128xf32>
    %44 = tpu.matmul %41, %43, %cst_47 {dimension_numbers = #tpu.dot_dimension_numbers<[1], [0], [0], [1], [0, 0, 1, 1], [], []>} : vector<256x128xbf16>, vector<128x128xbf16>, vector<256x128xf32> -> vector<256x128xf32>
    %c0_48 = arith.constant 0 : index
    %c0_49 = arith.constant 0 : index
    %45 = vector.load %arg8[%c0_48, %c0_49] : memref<256x128xf32, #tpu.memory_space<vmem>>, vector<256x128xf32>
    %46 = arith.addf %45, %44 : vector<256x128xf32>
    %c0_50 = arith.constant 0 : index
    %c0_51 = arith.constant 0 : index
    %47 = vector.load %arg8[%c0_50, %c0_51] : memref<256x128xf32, #tpu.memory_space<vmem>>, vector<256x128xf32>
    tpu.vector_store %arg8[%c0_50, %c0_51], %46 {strides = array<i32>} : memref<256x128xf32, #tpu.memory_space<vmem>>, vector<256x128xf32>,
    %c0_52 = arith.constant 0 : index
    %c1_53 = arith.constant 1 : index
    %c2_54 = arith.constant 2 : index
    %c0_55 = arith.constant 0 : index
    %48 = vector.load %arg1[%c0_52, %c1_53, %c2_54, %c0_55] : memref<1x18x18x128xf32, #tpu.memory_space<vmem>>, vector<1x16x16x128xf32>
    %49 = vector.shape_cast %48 : vector<1x16x16x128xf32> to vector<16x16x128xf32>
    %50 = vector.shape_cast %49 : vector<16x16x128xf32> to vector<256x128xf32>
    %51 = arith.truncf %50 : vector<256x128xf32> to vector<256x128xbf16>
    %c5 = arith.constant 5 : index
    %c0_56 = arith.constant 0 : index
    %c0_57 = arith.constant 0 : index
    %52 = vector.load %arg2[%c5, %c0_56, %c0_57] : memref<9x128x128xbf16, #tpu.memory_space<vmem>>, vector<1x128x128xbf16>
    %53 = vector.shape_cast %52 : vector<1x128x128xbf16> to vector<128x128xbf16>
    %cst_58 = arith.constant dense<0.000000e+00> : vector<256x128xf32>
    %54 = tpu.matmul %51, %53, %cst_58 {dimension_numbers = #tpu.dot_dimension_numbers<[1], [0], [0], [1], [0, 0, 1, 1], [], []>} : vector<256x128xbf16>, vector<128x128xbf16>, vector<256x128xf32> -> vector<256x128xf32>
    %c0_59 = arith.constant 0 : index
    %c0_60 = arith.constant 0 : index
    %55 = vector.load %arg8[%c0_59, %c0_60] : memref<256x128xf32, #tpu.memory_space<vmem>>, vector<256x128xf32>
    %56 = arith.addf %55, %54 : vector<256x128xf32>
    %c0_61 = arith.constant 0 : index
    %c0_62 = arith.constant 0 : index
    %57 = vector.load %arg8[%c0_61, %c0_62] : memref<256x128xf32, #tpu.memory_space<vmem>>, vector<256x128xf32>
    tpu.vector_store %arg8[%c0_61, %c0_62], %56 {strides = array<i32>} : memref<256x128xf32, #tpu.memory_space<vmem>>, vector<256x128xf32>,
    %c0_63 = arith.constant 0 : index
    %c2_64 = arith.constant 2 : index
    %c0_65 = arith.constant 0 : index
    %c0_66 = arith.constant 0 : index
    %58 = vector.load %arg1[%c0_63, %c2_64, %c0_65, %c0_66] : memref<1x18x18x128xf32, #tpu.memory_space<vmem>>, vector<1x16x16x128xf32>
    %59 = vector.shape_cast %58 : vector<1x16x16x128xf32> to vector<16x16x128xf32>
    %60 = vector.shape_cast %59 : vector<16x16x128xf32> to vector<256x128xf32>
    %61 = arith.truncf %60 : vector<256x128xf32> to vector<256x128xbf16>
    %c6 = arith.constant 6 : index
    %c0_67 = arith.constant 0 : index
    %c0_68 = arith.constant 0 : index
    %62 = vector.load %arg2[%c6, %c0_67, %c0_68] : memref<9x128x128xbf16, #tpu.memory_space<vmem>>, vector<1x128x128xbf16>
    %63 = vector.shape_cast %62 : vector<1x128x128xbf16> to vector<128x128xbf16>
    %cst_69 = arith.constant dense<0.000000e+00> : vector<256x128xf32>
    %64 = tpu.matmul %61, %63, %cst_69 {dimension_numbers = #tpu.dot_dimension_numbers<[1], [0], [0], [1], [0, 0, 1, 1], [], []>} : vector<256x128xbf16>, vector<128x128xbf16>, vector<256x128xf32> -> vector<256x128xf32>
    %c0_70 = arith.constant 0 : index
    %c0_71 = arith.constant 0 : index
    %65 = vector.load %arg8[%c0_70, %c0_71] : memref<256x128xf32, #tpu.memory_space<vmem>>, vector<256x128xf32>
    %66 = arith.addf %65, %64 : vector<256x128xf32>
    %c0_72 = arith.constant 0 : index
    %c0_73 = arith.constant 0 : index
    %67 = vector.load %arg8[%c0_72, %c0_73] : memref<256x128xf32, #tpu.memory_space<vmem>>, vector<256x128xf32>
    tpu.vector_store %arg8[%c0_72, %c0_73], %66 {strides = array<i32>} : memref<256x128xf32, #tpu.memory_space<vmem>>, vector<256x128xf32>,
    %c0_74 = arith.constant 0 : index
    %c2_75 = arith.constant 2 : index
    %c1_76 = arith.constant 1 : index
    %c0_77 = arith.constant 0 : index
    %68 = vector.load %arg1[%c0_74, %c2_75, %c1_76, %c0_77] : memref<1x18x18x128xf32, #tpu.memory_space<vmem>>, vector<1x16x16x128xf32>
    %69 = vector.shape_cast %68 : vector<1x16x16x128xf32> to vector<16x16x128xf32>
    %70 = vector.shape_cast %69 : vector<16x16x128xf32> to vector<256x128xf32>
    %71 = arith.truncf %70 : vector<256x128xf32> to vector<256x128xbf16>
    %c7 = arith.constant 7 : index
    %c0_78 = arith.constant 0 : index
    %c0_79 = arith.constant 0 : index
    %72 = vector.load %arg2[%c7, %c0_78, %c0_79] : memref<9x128x128xbf16, #tpu.memory_space<vmem>>, vector<1x128x128xbf16>
    %73 = vector.shape_cast %72 : vector<1x128x128xbf16> to vector<128x128xbf16>
    %cst_80 = arith.constant dense<0.000000e+00> : vector<256x128xf32>
    %74 = tpu.matmul %71, %73, %cst_80 {dimension_numbers = #tpu.dot_dimension_numbers<[1], [0], [0], [1], [0, 0, 1, 1], [], []>} : vector<256x128xbf16>, vector<128x128xbf16>, vector<256x128xf32> -> vector<256x128xf32>
    %c0_81 = arith.constant 0 : index
    %c0_82 = arith.constant 0 : index
    %75 = vector.load %arg8[%c0_81, %c0_82] : memref<256x128xf32, #tpu.memory_space<vmem>>, vector<256x128xf32>
    %76 = arith.addf %75, %74 : vector<256x128xf32>
    %c0_83 = arith.constant 0 : index
    %c0_84 = arith.constant 0 : index
    %77 = vector.load %arg8[%c0_83, %c0_84] : memref<256x128xf32, #tpu.memory_space<vmem>>, vector<256x128xf32>
    tpu.vector_store %arg8[%c0_83, %c0_84], %76 {strides = array<i32>} : memref<256x128xf32, #tpu.memory_space<vmem>>, vector<256x128xf32>,
    %c0_85 = arith.constant 0 : index
    %c2_86 = arith.constant 2 : index
    %c2_87 = arith.constant 2 : index
    %c0_88 = arith.constant 0 : index
    %78 = vector.load %arg1[%c0_85, %c2_86, %c2_87, %c0_88] : memref<1x18x18x128xf32, #tpu.memory_space<vmem>>, vector<1x16x16x128xf32>
    %79 = vector.shape_cast %78 : vector<1x16x16x128xf32> to vector<16x16x128xf32>
    %80 = vector.shape_cast %79 : vector<16x16x128xf32> to vector<256x128xf32>
    %81 = arith.truncf %80 : vector<256x128xf32> to vector<256x128xbf16>
    %c8 = arith.constant 8 : index
    %c0_89 = arith.constant 0 : index
    %c0_90 = arith.constant 0 : index
    %82 = vector.load %arg2[%c8, %c0_89, %c0_90] : memref<9x128x128xbf16, #tpu.memory_space<vmem>>, vector<1x128x128xbf16>
    %83 = vector.shape_cast %82 : vector<1x128x128xbf16> to vector<128x128xbf16>
    %cst_91 = arith.constant dense<0.000000e+00> : vector<256x128xf32>
    %84 = tpu.matmul %81, %83, %cst_91 {dimension_numbers = #tpu.dot_dimension_numbers<[1], [0], [0], [1], [0, 0, 1, 1], [], []>} : vector<256x128xbf16>, vector<128x128xbf16>, vector<256x128xf32> -> vector<256x128xf32>
    %c0_92 = arith.constant 0 : index
    %c0_93 = arith.constant 0 : index
    %85 = vector.load %arg8[%c0_92, %c0_93] : memref<256x128xf32, #tpu.memory_space<vmem>>, vector<256x128xf32>
    %86 = arith.addf %85, %84 : vector<256x128xf32>
    %c0_94 = arith.constant 0 : index
    %c0_95 = arith.constant 0 : index
    %87 = vector.load %arg8[%c0_94, %c0_95] : memref<256x128xf32, #tpu.memory_space<vmem>>, vector<256x128xf32>
    tpu.vector_store %arg8[%c0_94, %c0_95], %86 {strides = array<i32>} : memref<256x128xf32, #tpu.memory_space<vmem>>, vector<256x128xf32>,
    %c0_96 = arith.constant 0 : index
    %c0_97 = arith.constant 0 : index
    %88 = vector.load %arg3[%c0_96, %c0_97] : memref<2x128xf32, #tpu.memory_space<vmem>>, vector<2x128xf32>
    %cst_98 = arith.constant 0.000000e+00 : f32
    %89 = vector.broadcast %cst_98 : f32 to vector<18x18x128xf32>
    %c0_99 = arith.constant 0 : index
    %c0_100 = arith.constant 0 : index
    %c0_101 = arith.constant 0 : index
    %90 = vector.load %arg7[%c0_99, %c0_100, %c0_101] : memref<18x18x128xf32, #tpu.memory_space<vmem>>, vector<18x18x128xf32>
    tpu.vector_store %arg7[%c0_99, %c0_100, %c0_101], %89 {strides = array<i32>} : memref<18x18x128xf32, #tpu.memory_space<vmem>>, vector<18x18x128xf32>,
    %c0_102 = arith.constant 0 : index
    %c0_103 = arith.constant 0 : index
    %91 = vector.load %arg8[%c0_102, %c0_103] : memref<256x128xf32, #tpu.memory_space<vmem>>, vector<256x128xf32>
    %92 = vector.extract_strided_slice %88 {offsets = [0, 0], sizes = [1, 128], strides = [1, 1]} : vector<2x128xf32> to vector<1x128xf32>
    %93 = vector.broadcast %92 : vector<1x128xf32> to vector<256x128xf32>
    %94 = arith.mulf %91, %93 : vector<256x128xf32>
    %95 = vector.extract_strided_slice %88 {offsets = [1, 0], sizes = [1, 128], strides = [1, 1]} : vector<2x128xf32> to vector<1x128xf32>
    %96 = vector.broadcast %95 : vector<1x128xf32> to vector<256x128xf32>
    %97 = arith.addf %94, %96 : vector<256x128xf32>
    %cst_104 = arith.constant 0.000000e+00 : f32
    %98 = vector.broadcast %cst_104 : f32 to vector<256x128xf32>
    %99 = arith.maximumf %97, %98 : vector<256x128xf32>
    %100 = vector.shape_cast %99 : vector<256x128xf32> to vector<16x16x128xf32>
    %c1_105 = arith.constant 1 : index
    %c1_106 = arith.constant 1 : index
    %c0_107 = arith.constant 0 : index
    %101 = vector.load %arg7[%c1_105, %c1_106, %c0_107] : memref<18x18x128xf32, #tpu.memory_space<vmem>>, vector<16x16x128xf32>
    tpu.vector_store %arg7[%c1_105, %c1_106, %c0_107], %100 {strides = array<i32>} : memref<18x18x128xf32, #tpu.memory_space<vmem>>, vector<16x16x128xf32>,
    %c0_108 = arith.constant 0 : index
    %c0_109 = arith.constant 0 : index
    %c0_110 = arith.constant 0 : index
    %102 = vector.load %arg7[%c0_108, %c0_109, %c0_110] : memref<18x18x128xf32, #tpu.memory_space<vmem>>, vector<16x16x128xf32>
    %103 = vector.shape_cast %102 : vector<16x16x128xf32> to vector<256x128xf32>
    %104 = arith.truncf %103 : vector<256x128xf32> to vector<256x128xbf16>
    %c0_111 = arith.constant 0 : index
    %c0_112 = arith.constant 0 : index
    %c0_113 = arith.constant 0 : index
    %105 = vector.load %arg4[%c0_111, %c0_112, %c0_113] : memref<9x128x128xbf16, #tpu.memory_space<vmem>>, vector<1x128x128xbf16>
    %106 = vector.shape_cast %105 : vector<1x128x128xbf16> to vector<128x128xbf16>
    %cst_114 = arith.constant dense<0.000000e+00> : vector<256x128xf32>
    %107 = tpu.matmul %104, %106, %cst_114 {dimension_numbers = #tpu.dot_dimension_numbers<[1], [0], [0], [1], [0, 0, 1, 1], [], []>} : vector<256x128xbf16>, vector<128x128xbf16>, vector<256x128xf32> -> vector<256x128xf32>
    %c0_115 = arith.constant 0 : index
    %c0_116 = arith.constant 0 : index
    %108 = vector.load %arg9[%c0_115, %c0_116] : memref<256x128xf32, #tpu.memory_space<vmem>>, vector<256x128xf32>
    tpu.vector_store %arg9[%c0_115, %c0_116], %107 {strides = array<i32>} : memref<256x128xf32, #tpu.memory_space<vmem>>, vector<256x128xf32>,
    %c0_117 = arith.constant 0 : index
    %c1_118 = arith.constant 1 : index
    %c0_119 = arith.constant 0 : index
    %109 = vector.load %arg7[%c0_117, %c1_118, %c0_119] : memref<18x18x128xf32, #tpu.memory_space<vmem>>, vector<16x16x128xf32>
    %110 = vector.shape_cast %109 : vector<16x16x128xf32> to vector<256x128xf32>
    %111 = arith.truncf %110 : vector<256x128xf32> to vector<256x128xbf16>
    %c1_120 = arith.constant 1 : index
    %c0_121 = arith.constant 0 : index
    %c0_122 = arith.constant 0 : index
    %112 = vector.load %arg4[%c1_120, %c0_121, %c0_122] : memref<9x128x128xbf16, #tpu.memory_space<vmem>>, vector<1x128x128xbf16>
    %113 = vector.shape_cast %112 : vector<1x128x128xbf16> to vector<128x128xbf16>
    %cst_123 = arith.constant dense<0.000000e+00> : vector<256x128xf32>
    %114 = tpu.matmul %111, %113, %cst_123 {dimension_numbers = #tpu.dot_dimension_numbers<[1], [0], [0], [1], [0, 0, 1, 1], [], []>} : vector<256x128xbf16>, vector<128x128xbf16>, vector<256x128xf32> -> vector<256x128xf32>
    %c0_124 = arith.constant 0 : index
    %c0_125 = arith.constant 0 : index
    %115 = vector.load %arg9[%c0_124, %c0_125] : memref<256x128xf32, #tpu.memory_space<vmem>>, vector<256x128xf32>
    %116 = arith.addf %115, %114 : vector<256x128xf32>
    %c0_126 = arith.constant 0 : index
    %c0_127 = arith.constant 0 : index
    %117 = vector.load %arg9[%c0_126, %c0_127] : memref<256x128xf32, #tpu.memory_space<vmem>>, vector<256x128xf32>
    tpu.vector_store %arg9[%c0_126, %c0_127], %116 {strides = array<i32>} : memref<256x128xf32, #tpu.memory_space<vmem>>, vector<256x128xf32>,
    %c0_128 = arith.constant 0 : index
    %c2_129 = arith.constant 2 : index
    %c0_130 = arith.constant 0 : index
    %118 = vector.load %arg7[%c0_128, %c2_129, %c0_130] : memref<18x18x128xf32, #tpu.memory_space<vmem>>, vector<16x16x128xf32>
    %119 = vector.shape_cast %118 : vector<16x16x128xf32> to vector<256x128xf32>
    %120 = arith.truncf %119 : vector<256x128xf32> to vector<256x128xbf16>
    %c2_131 = arith.constant 2 : index
    %c0_132 = arith.constant 0 : index
    %c0_133 = arith.constant 0 : index
    %121 = vector.load %arg4[%c2_131, %c0_132, %c0_133] : memref<9x128x128xbf16, #tpu.memory_space<vmem>>, vector<1x128x128xbf16>
    %122 = vector.shape_cast %121 : vector<1x128x128xbf16> to vector<128x128xbf16>
    %cst_134 = arith.constant dense<0.000000e+00> : vector<256x128xf32>
    %123 = tpu.matmul %120, %122, %cst_134 {dimension_numbers = #tpu.dot_dimension_numbers<[1], [0], [0], [1], [0, 0, 1, 1], [], []>} : vector<256x128xbf16>, vector<128x128xbf16>, vector<256x128xf32> -> vector<256x128xf32>
    %c0_135 = arith.constant 0 : index
    %c0_136 = arith.constant 0 : index
    %124 = vector.load %arg9[%c0_135, %c0_136] : memref<256x128xf32, #tpu.memory_space<vmem>>, vector<256x128xf32>
    %125 = arith.addf %124, %123 : vector<256x128xf32>
    %c0_137 = arith.constant 0 : index
    %c0_138 = arith.constant 0 : index
    %126 = vector.load %arg9[%c0_137, %c0_138] : memref<256x128xf32, #tpu.memory_space<vmem>>, vector<256x128xf32>
    tpu.vector_store %arg9[%c0_137, %c0_138], %125 {strides = array<i32>} : memref<256x128xf32, #tpu.memory_space<vmem>>, vector<256x128xf32>,
    %c1_139 = arith.constant 1 : index
    %c0_140 = arith.constant 0 : index
    %c0_141 = arith.constant 0 : index
    %127 = vector.load %arg7[%c1_139, %c0_140, %c0_141] : memref<18x18x128xf32, #tpu.memory_space<vmem>>, vector<16x16x128xf32>
    %128 = vector.shape_cast %127 : vector<16x16x128xf32> to vector<256x128xf32>
    %129 = arith.truncf %128 : vector<256x128xf32> to vector<256x128xbf16>
    %c3_142 = arith.constant 3 : index
    %c0_143 = arith.constant 0 : index
    %c0_144 = arith.constant 0 : index
    %130 = vector.load %arg4[%c3_142, %c0_143, %c0_144] : memref<9x128x128xbf16, #tpu.memory_space<vmem>>, vector<1x128x128xbf16>
    %131 = vector.shape_cast %130 : vector<1x128x128xbf16> to vector<128x128xbf16>
    %cst_145 = arith.constant dense<0.000000e+00> : vector<256x128xf32>
    %132 = tpu.matmul %129, %131, %cst_145 {dimension_numbers = #tpu.dot_dimension_numbers<[1], [0], [0], [1], [0, 0, 1, 1], [], []>} : vector<256x128xbf16>, vector<128x128xbf16>, vector<256x128xf32> -> vector<256x128xf32>
    %c0_146 = arith.constant 0 : index
    %c0_147 = arith.constant 0 : index
    %133 = vector.load %arg9[%c0_146, %c0_147] : memref<256x128xf32, #tpu.memory_space<vmem>>, vector<256x128xf32>
    %134 = arith.addf %133, %132 : vector<256x128xf32>
    %c0_148 = arith.constant 0 : index
    %c0_149 = arith.constant 0 : index
    %135 = vector.load %arg9[%c0_148, %c0_149] : memref<256x128xf32, #tpu.memory_space<vmem>>, vector<256x128xf32>
    tpu.vector_store %arg9[%c0_148, %c0_149], %134 {strides = array<i32>} : memref<256x128xf32, #tpu.memory_space<vmem>>, vector<256x128xf32>,
    %c1_150 = arith.constant 1 : index
    %c1_151 = arith.constant 1 : index
    %c0_152 = arith.constant 0 : index
    %136 = vector.load %arg7[%c1_150, %c1_151, %c0_152] : memref<18x18x128xf32, #tpu.memory_space<vmem>>, vector<16x16x128xf32>
    %137 = vector.shape_cast %136 : vector<16x16x128xf32> to vector<256x128xf32>
    %138 = arith.truncf %137 : vector<256x128xf32> to vector<256x128xbf16>
    %c4_153 = arith.constant 4 : index
    %c0_154 = arith.constant 0 : index
    %c0_155 = arith.constant 0 : index
    %139 = vector.load %arg4[%c4_153, %c0_154, %c0_155] : memref<9x128x128xbf16, #tpu.memory_space<vmem>>, vector<1x128x128xbf16>
    %140 = vector.shape_cast %139 : vector<1x128x128xbf16> to vector<128x128xbf16>
    %cst_156 = arith.constant dense<0.000000e+00> : vector<256x128xf32>
    %141 = tpu.matmul %138, %140, %cst_156 {dimension_numbers = #tpu.dot_dimension_numbers<[1], [0], [0], [1], [0, 0, 1, 1], [], []>} : vector<256x128xbf16>, vector<128x128xbf16>, vector<256x128xf32> -> vector<256x128xf32>
    %c0_157 = arith.constant 0 : index
    %c0_158 = arith.constant 0 : index
    %142 = vector.load %arg9[%c0_157, %c0_158] : memref<256x128xf32, #tpu.memory_space<vmem>>, vector<256x128xf32>
    %143 = arith.addf %142, %141 : vector<256x128xf32>
    %c0_159 = arith.constant 0 : index
    %c0_160 = arith.constant 0 : index
    %144 = vector.load %arg9[%c0_159, %c0_160] : memref<256x128xf32, #tpu.memory_space<vmem>>, vector<256x128xf32>
    tpu.vector_store %arg9[%c0_159, %c0_160], %143 {strides = array<i32>} : memref<256x128xf32, #tpu.memory_space<vmem>>, vector<256x128xf32>,
    %c1_161 = arith.constant 1 : index
    %c2_162 = arith.constant 2 : index
    %c0_163 = arith.constant 0 : index
    %145 = vector.load %arg7[%c1_161, %c2_162, %c0_163] : memref<18x18x128xf32, #tpu.memory_space<vmem>>, vector<16x16x128xf32>
    %146 = vector.shape_cast %145 : vector<16x16x128xf32> to vector<256x128xf32>
    %147 = arith.truncf %146 : vector<256x128xf32> to vector<256x128xbf16>
    %c5_164 = arith.constant 5 : index
    %c0_165 = arith.constant 0 : index
    %c0_166 = arith.constant 0 : index
    %148 = vector.load %arg4[%c5_164, %c0_165, %c0_166] : memref<9x128x128xbf16, #tpu.memory_space<vmem>>, vector<1x128x128xbf16>
    %149 = vector.shape_cast %148 : vector<1x128x128xbf16> to vector<128x128xbf16>
    %cst_167 = arith.constant dense<0.000000e+00> : vector<256x128xf32>
    %150 = tpu.matmul %147, %149, %cst_167 {dimension_numbers = #tpu.dot_dimension_numbers<[1], [0], [0], [1], [0, 0, 1, 1], [], []>} : vector<256x128xbf16>, vector<128x128xbf16>, vector<256x128xf32> -> vector<256x128xf32>
    %c0_168 = arith.constant 0 : index
    %c0_169 = arith.constant 0 : index
    %151 = vector.load %arg9[%c0_168, %c0_169] : memref<256x128xf32, #tpu.memory_space<vmem>>, vector<256x128xf32>
    %152 = arith.addf %151, %150 : vector<256x128xf32>
    %c0_170 = arith.constant 0 : index
    %c0_171 = arith.constant 0 : index
    %153 = vector.load %arg9[%c0_170, %c0_171] : memref<256x128xf32, #tpu.memory_space<vmem>>, vector<256x128xf32>
    tpu.vector_store %arg9[%c0_170, %c0_171], %152 {strides = array<i32>} : memref<256x128xf32, #tpu.memory_space<vmem>>, vector<256x128xf32>,
    %c2_172 = arith.constant 2 : index
    %c0_173 = arith.constant 0 : index
    %c0_174 = arith.constant 0 : index
    %154 = vector.load %arg7[%c2_172, %c0_173, %c0_174] : memref<18x18x128xf32, #tpu.memory_space<vmem>>, vector<16x16x128xf32>
    %155 = vector.shape_cast %154 : vector<16x16x128xf32> to vector<256x128xf32>
    %156 = arith.truncf %155 : vector<256x128xf32> to vector<256x128xbf16>
    %c6_175 = arith.constant 6 : index
    %c0_176 = arith.constant 0 : index
    %c0_177 = arith.constant 0 : index
    %157 = vector.load %arg4[%c6_175, %c0_176, %c0_177] : memref<9x128x128xbf16, #tpu.memory_space<vmem>>, vector<1x128x128xbf16>
    %158 = vector.shape_cast %157 : vector<1x128x128xbf16> to vector<128x128xbf16>
    %cst_178 = arith.constant dense<0.000000e+00> : vector<256x128xf32>
    %159 = tpu.matmul %156, %158, %cst_178 {dimension_numbers = #tpu.dot_dimension_numbers<[1], [0], [0], [1], [0, 0, 1, 1], [], []>} : vector<256x128xbf16>, vector<128x128xbf16>, vector<256x128xf32> -> vector<256x128xf32>
    %c0_179 = arith.constant 0 : index
    %c0_180 = arith.constant 0 : index
    %160 = vector.load %arg9[%c0_179, %c0_180] : memref<256x128xf32, #tpu.memory_space<vmem>>, vector<256x128xf32>
    %161 = arith.addf %160, %159 : vector<256x128xf32>
    %c0_181 = arith.constant 0 : index
    %c0_182 = arith.constant 0 : index
    %162 = vector.load %arg9[%c0_181, %c0_182] : memref<256x128xf32, #tpu.memory_space<vmem>>, vector<256x128xf32>
    tpu.vector_store %arg9[%c0_181, %c0_182], %161 {strides = array<i32>} : memref<256x128xf32, #tpu.memory_space<vmem>>, vector<256x128xf32>,
    %c2_183 = arith.constant 2 : index
    %c1_184 = arith.constant 1 : index
    %c0_185 = arith.constant 0 : index
    %163 = vector.load %arg7[%c2_183, %c1_184, %c0_185] : memref<18x18x128xf32, #tpu.memory_space<vmem>>, vector<16x16x128xf32>
    %164 = vector.shape_cast %163 : vector<16x16x128xf32> to vector<256x128xf32>
    %165 = arith.truncf %164 : vector<256x128xf32> to vector<256x128xbf16>
    %c7_186 = arith.constant 7 : index
    %c0_187 = arith.constant 0 : index
    %c0_188 = arith.constant 0 : index
    %166 = vector.load %arg4[%c7_186, %c0_187, %c0_188] : memref<9x128x128xbf16, #tpu.memory_space<vmem>>, vector<1x128x128xbf16>
    %167 = vector.shape_cast %166 : vector<1x128x128xbf16> to vector<128x128xbf16>
    %cst_189 = arith.constant dense<0.000000e+00> : vector<256x128xf32>
    %168 = tpu.matmul %165, %167, %cst_189 {dimension_numbers = #tpu.dot_dimension_numbers<[1], [0], [0], [1], [0, 0, 1, 1], [], []>} : vector<256x128xbf16>, vector<128x128xbf16>, vector<256x128xf32> -> vector<256x128xf32>
    %c0_190 = arith.constant 0 : index
    %c0_191 = arith.constant 0 : index
    %169 = vector.load %arg9[%c0_190, %c0_191] : memref<256x128xf32, #tpu.memory_space<vmem>>, vector<256x128xf32>
    %170 = arith.addf %169, %168 : vector<256x128xf32>
    %c0_192 = arith.constant 0 : index
    %c0_193 = arith.constant 0 : index
    %171 = vector.load %arg9[%c0_192, %c0_193] : memref<256x128xf32, #tpu.memory_space<vmem>>, vector<256x128xf32>
    tpu.vector_store %arg9[%c0_192, %c0_193], %170 {strides = array<i32>} : memref<256x128xf32, #tpu.memory_space<vmem>>, vector<256x128xf32>,
    %c2_194 = arith.constant 2 : index
    %c2_195 = arith.constant 2 : index
    %c0_196 = arith.constant 0 : index
    %172 = vector.load %arg7[%c2_194, %c2_195, %c0_196] : memref<18x18x128xf32, #tpu.memory_space<vmem>>, vector<16x16x128xf32>
    %173 = vector.shape_cast %172 : vector<16x16x128xf32> to vector<256x128xf32>
    %174 = arith.truncf %173 : vector<256x128xf32> to vector<256x128xbf16>
    %c8_197 = arith.constant 8 : index
    %c0_198 = arith.constant 0 : index
    %c0_199 = arith.constant 0 : index
    %175 = vector.load %arg4[%c8_197, %c0_198, %c0_199] : memref<9x128x128xbf16, #tpu.memory_space<vmem>>, vector<1x128x128xbf16>
    %176 = vector.shape_cast %175 : vector<1x128x128xbf16> to vector<128x128xbf16>
    %cst_200 = arith.constant dense<0.000000e+00> : vector<256x128xf32>
    %177 = tpu.matmul %174, %176, %cst_200 {dimension_numbers = #tpu.dot_dimension_numbers<[1], [0], [0], [1], [0, 0, 1, 1], [], []>} : vector<256x128xbf16>, vector<128x128xbf16>, vector<256x128xf32> -> vector<256x128xf32>
    %c0_201 = arith.constant 0 : index
    %c0_202 = arith.constant 0 : index
    %178 = vector.load %arg9[%c0_201, %c0_202] : memref<256x128xf32, #tpu.memory_space<vmem>>, vector<256x128xf32>
    %179 = arith.addf %178, %177 : vector<256x128xf32>
    %c0_203 = arith.constant 0 : index
    %c0_204 = arith.constant 0 : index
    %180 = vector.load %arg9[%c0_203, %c0_204] : memref<256x128xf32, #tpu.memory_space<vmem>>, vector<256x128xf32>
    tpu.vector_store %arg9[%c0_203, %c0_204], %179 {strides = array<i32>} : memref<256x128xf32, #tpu.memory_space<vmem>>, vector<256x128xf32>,
    %c0_205 = arith.constant 0 : index
    %c0_206 = arith.constant 0 : index
    %181 = vector.load %arg5[%c0_205, %c0_206] : memref<2x128xf32, #tpu.memory_space<vmem>>, vector<2x128xf32>
    %c0_207 = arith.constant 0 : index
    %c0_208 = arith.constant 0 : index
    %182 = vector.load %arg9[%c0_207, %c0_208] : memref<256x128xf32, #tpu.memory_space<vmem>>, vector<256x128xf32>
    %183 = vector.extract_strided_slice %181 {offsets = [0, 0], sizes = [1, 128], strides = [1, 1]} : vector<2x128xf32> to vector<1x128xf32>
    %184 = vector.broadcast %183 : vector<1x128xf32> to vector<256x128xf32>
    %185 = arith.mulf %182, %184 : vector<256x128xf32>
    %186 = vector.extract_strided_slice %181 {offsets = [1, 0], sizes = [1, 128], strides = [1, 1]} : vector<2x128xf32> to vector<1x128xf32>
    %187 = vector.broadcast %186 : vector<1x128xf32> to vector<256x128xf32>
    %188 = arith.addf %185, %187 : vector<256x128xf32>
    %c0_209 = arith.constant 0 : index
    %c1_210 = arith.constant 1 : index
    %c1_211 = arith.constant 1 : index
    %c0_212 = arith.constant 0 : index
    %189 = vector.load %arg1[%c0_209, %c1_210, %c1_211, %c0_212] : memref<1x18x18x128xf32, #tpu.memory_space<vmem>>, vector<1x16x16x128xf32>
    %190 = vector.shape_cast %189 : vector<1x16x16x128xf32> to vector<16x16x128xf32>
    %191 = vector.shape_cast %190 : vector<16x16x128xf32> to vector<256x128xf32>
    %192 = arith.addf %188, %191 : vector<256x128xf32>
    %cst_213 = arith.constant 0.000000e+00 : f32
    %193 = vector.broadcast %cst_213 : f32 to vector<256x128xf32>
    %194 = arith.maximumf %192, %193 : vector<256x128xf32>
    %195 = vector.shape_cast %194 : vector<256x128xf32> to vector<16x16x128xf32>
    %c0_214 = arith.constant 0 : index
    %c0_215 = arith.constant 0 : index
    %c0_216 = arith.constant 0 : index
    %c0_217 = arith.constant 0 : index
    %196 = vector.load %arg6[%c0_214, %c0_215, %c0_216, %c0_217] : memref<1x16x16x128xf32, #tpu.memory_space<vmem>>, vector<1x16x16x128xf32>
    %197 = vector.shape_cast %196 : vector<1x16x16x128xf32> to vector<16x16x128xf32>
    %198 = vector.shape_cast %195 : vector<16x16x128xf32> to vector<1x16x16x128xf32>
    tpu.vector_store %arg6[%c0_214, %c0_215, %c0_216, %c0_217], %198 {strides = array<i32>} : memref<1x16x16x128xf32, #tpu.memory_space<vmem>>, vector<1x16x16x128xf32>,
    return
  }
  func.func @transform_0(%arg0: i32) -> (i32, i32, i32, i32) {
    %c0_i32 = arith.constant 0 : i32
    %c0_i32_0 = arith.constant 0 : i32
    %c0_i32_1 = arith.constant 0 : i32
    %c0_i32_2 = arith.constant 0 : i32
    return %arg0, %c0_i32, %c0_i32_0, %c0_i32_1 : i32, i32, i32, i32
  }
  func.func @transform_1(%arg0: i32) -> (i32, i32, i32) {
    %c0_i32 = arith.constant 0 : i32
    %c0_i32_0 = arith.constant 0 : i32
    %c0_i32_1 = arith.constant 0 : i32
    %c0_i32_2 = arith.constant 0 : i32
    return %c0_i32, %c0_i32_0, %c0_i32_1 : i32, i32, i32
  }
  func.func @transform_2(%arg0: i32) -> (i32, i32) {
    %c0_i32 = arith.constant 0 : i32
    %c0_i32_0 = arith.constant 0 : i32
    %c0_i32_1 = arith.constant 0 : i32
    return %c0_i32, %c0_i32_0 : i32, i32
  }
  func.func @transform_3(%arg0: i32) -> (i32, i32, i32) {
    %c0_i32 = arith.constant 0 : i32
    %c0_i32_0 = arith.constant 0 : i32
    %c0_i32_1 = arith.constant 0 : i32
    %c0_i32_2 = arith.constant 0 : i32
    return %c0_i32, %c0_i32_0, %c0_i32_1 : i32, i32, i32
  }
  func.func @transform_4(%arg0: i32) -> (i32, i32) {
    %c0_i32 = arith.constant 0 : i32
    %c0_i32_0 = arith.constant 0 : i32
    %c0_i32_1 = arith.constant 0 : i32
    return %c0_i32, %c0_i32_0 : i32, i32
  }
  func.func @transform_5(%arg0: i32) -> (i32, i32, i32, i32) {
    %c0_i32 = arith.constant 0 : i32
    %c0_i32_0 = arith.constant 0 : i32
    %c0_i32_1 = arith.constant 0 : i32
    %c0_i32_2 = arith.constant 0 : i32
    return %arg0, %c0_i32, %c0_i32_0, %c0_i32_1 : i32, i32, i32, i32
  }
}

</mosaic_0001>

<llo_original>
// kernel: basic_block_forward.1
$region0: #{basic_block_forward.1}
  #allocation0 [shape = 'u32[]', space=smem, size = 0x4, offset = 0x4, fixed_abs, tag = 'smem constant byte address 0x4 - core index']
  #allocation1 [shape = 'u32[72,128]{1,0:T(1,128)}', space=vmem, size = 0x9000, scoped, tag = 'internal scratch']
  #allocation2 [shape = 'f32[18,18,128]{2,1,0:T(8,128)}', space=vmem, size = 0x36000, scoped, tag = 'scratch operand']
  #allocation3 [shape = 'f32[256,128]{1,0:T(8,128)}', space=vmem, size = 0x20000, scoped, tag = 'scratch operand']
  #allocation4 [shape = 'f32[256,128]{1,0:T(8,128)}', space=vmem, size = 0x20000, scoped, tag = 'scratch operand']
  %s0 = inlined_call_operand.vmem [shape: f32[2,18,18,128], index: 0, kind: input, shape index: {}]
  %s1 = inlined_call_operand.vmem [shape: bf16[9,128,128], index: 1, kind: input, shape index: {}]
  %s2 = inlined_call_operand.vmem [shape: f32[2,128], index: 2, kind: input, shape index: {}]
  %s3 = inlined_call_operand.vmem [shape: bf16[9,128,128], index: 3, kind: input, shape index: {}]
  %s4 = inlined_call_operand.vmem [shape: f32[2,128], index: 4, kind: input, shape index: {}]
  %s5 = inlined_call_operand.vmem [shape: f32[2,16,16,128], index: 5, kind: output, shape index: {}]
  %s6 = sld [smem:[#allocation0]]
  $region53: #{basic_block_forward.1} parent=0
    _
  %s8 = ssub.s32 1, %s6
  %s9 = scalar_select 0, %s8, %s6
  loop: start=0, step=1, limit=4
  $region2: #{basic_block_forward.1} parent=0 // loop_pre_header
    _
  $region3: #{basic_block_forward.1} parent=0 // loop_header
    %s11 = sphi 0, %s15
    %p12 = scmp.ge.s32.totalorder %s11, 4
    %s21 = sphi 0, %s23
    %s24 = sphi 0, %s21
    %s25 = sphi 0, %s24
    %s41 = sphi 0, %s25
    %s45 = sphi 0, %s45
    %s47 = sphi 0, %s45
    %s48 = sphi 0, %s47
    %s62 = sphi 0, %s48
    %s66 = sphi 0, %s66
    %s68 = sphi 0, %s66
    %s69 = sphi 0, %s68
    %s83 = sphi 0, %s69
    %s87 = sphi 0, %s87
    %s89 = sphi 0, %s87
    %s90 = sphi 0, %s89
    %s104 = sphi 0, %s90
    %s108 = sphi 0, %s108
    %s110 = sphi 0, %s108
    %s111 = sphi 0, %s110
    %s125 = sphi 0, %s111
    %s131 = sphi 0, %s133
    %s134 = sphi 0, %s131
    %s135 = sphi 0, %s134
    %s151 = sphi 0, %s135
  $region4: #{basic_block_forward.1} parent=0 // loop_header_branch
    %14 = sbr.rel (%p12) target = $region8
  $region5: #{basic_block_forward.1} parent=0 // loop_body
    %s16 = ssub.s32 %s11, 1
    %s17 = ssub.s32 %s11, 2
    %s18 = sadd.s32 %s11, 1
    %s19 = ssub.s32 %s11, %s18
    %p20 = scmp.eq.s32.totalorder %s19, 0
    %s22 = sadd.s32 %s21, 1
    %s23 = scalar_select %p20, %s21, %s22
    %p26 = pneg %p20
    %p27 = scmp.eq.s32.totalorder %s11, 1
    %p28 = por %p26, %p27
    %p29 = scmp.ne.s32.totalorder %s21, %s24
    %p30 = scmp.eq.s32.totalorder %s11, 0
    %p31 = por %p29, %p30
    %p32 = scmp.ne.s32.totalorder %s21, %s24
    %p33 = scmp.eq.s32.totalorder %s16, 1
    %p34 = por %p32, %p33
    %p35 = scmp.ne.s32.totalorder %s24, %s25
    %p36 = scmp.eq.s32.totalorder %s16, 0
    %p37 = por %p35, %p36
    %p38 = scmp.ne.s32.totalorder %s24, %s25
    %p39 = scmp.eq.s32.totalorder %s17, 1
    %p40 = por %p38, %p39
    %p42 = scmp.ne.s32.totalorder %s25, %s41
    %p43 = scmp.eq.s32.totalorder %s17, 0
    %p44 = por %p42, %p43
    %s46 = sadd.s32 %s45, 1
    %p49 = scmp.eq.s32.totalorder %s11, 1
    %p50 = scmp.ne.s32.totalorder %s45, %s47
    %p51 = scmp.eq.s32.totalorder %s11, 0
    %p52 = por %p50, %p51
    %p53 = scmp.ne.s32.totalorder %s45, %s47
    %p54 = scmp.eq.s32.totalorder %s16, 1
    %p55 = por %p53, %p54
    %p56 = scmp.ne.s32.totalorder %s47, %s48
    %p57 = scmp.eq.s32.totalorder %s16, 0
    %p58 = por %p56, %p57
    %p59 = scmp.ne.s32.totalorder %s47, %s48
    %p60 = scmp.eq.s32.totalorder %s17, 1
    %p61 = por %p59, %p60
    %p63 = scmp.ne.s32.totalorder %s48, %s62
    %p64 = scmp.eq.s32.totalorder %s17, 0
    %p65 = por %p63, %p64
    %s67 = sadd.s32 %s66, 1
    %p70 = scmp.eq.s32.totalorder %s11, 1
    %p71 = scmp.ne.s32.totalorder %s66, %s68
    %p72 = scmp.eq.s32.totalorder %s11, 0
    %p73 = por %p71, %p72
    %p74 = scmp.ne.s32.totalorder %s66, %s68
    %p75 = scmp.eq.s32.totalorder %s16, 1
    %p76 = por %p74, %p75
    %p77 = scmp.ne.s32.totalorder %s68, %s69
    %p78 = scmp.eq.s32.totalorder %s16, 0
    %p79 = por %p77, %p78
    %p80 = scmp.ne.s32.totalorder %s68, %s69
    %p81 = scmp.eq.s32.totalorder %s17, 1
    %p82 = por %p80, %p81
    %p84 = scmp.ne.s32.totalorder %s69, %s83
    %p85 = scmp.eq.s32.totalorder %s17, 0
    %p86 = por %p84, %p85
    %s88 = sadd.s32 %s87, 1
    %p91 = scmp.eq.s32.totalorder %s11, 1
    %p92 = scmp.ne.s32.totalorder %s87, %s89
    %p93 = scmp.eq.s32.totalorder %s11, 0
    %p94 = por %p92, %p93
    %p95 = scmp.ne.s32.totalorder %s87, %s89
    %p96 = scmp.eq.s32.totalorder %s16, 1
    %p97 = por %p95, %p96
    %p98 = scmp.ne.s32.totalorder %s89, %s90
    %p99 = scmp.eq.s32.totalorder %s16, 0
    %p100 = por %p98, %p99
    %p101 = scmp.ne.s32.totalorder %s89, %s90
    %p102 = scmp.eq.s32.totalorder %s17, 1
    %p103 = por %p101, %p102
    %p105 = scmp.ne.s32.totalorder %s90, %s104
    %p106 = scmp.eq.s32.totalorder %s17, 0
    %p107 = por %p105, %p106
    %s109 = sadd.s32 %s108, 1
    %p112 = scmp.eq.s32.totalorder %s11, 1
    %p113 = scmp.ne.s32.totalorder %s108, %s110
    %p114 = scmp.eq.s32.totalorder %s11, 0
    %p115 = por %p113, %p114
    %p116 = scmp.ne.s32.totalorder %s108, %s110
    %p117 = scmp.eq.s32.totalorder %s16, 1
    %p118 = por %p116, %p117
    %p119 = scmp.ne.s32.totalorder %s110, %s111
    %p120 = scmp.eq.s32.totalorder %s16, 0
    %p121 = por %p119, %p120
    %p122 = scmp.ne.s32.totalorder %s110, %s111
    %p123 = scmp.eq.s32.totalorder %s17, 1
    %p124 = por %p122, %p123
    %p126 = scmp.ne.s32.totalorder %s111, %s125
    %p127 = scmp.eq.s32.totalorder %s17, 0
    %p128 = por %p126, %p127
    %s129 = ssub.s32 %s11, %s18
    %p130 = scmp.eq.s32.totalorder %s129, 0
    %s132 = sadd.s32 %s131, 1
    %s133 = scalar_select %p130, %s131, %s132
    %p136 = pneg %p130
    %p137 = scmp.eq.s32.totalorder %s11, 1
    %p138 = por %p136, %p137
    %p139 = scmp.ne.s32.totalorder %s131, %s134
    %p140 = scmp.eq.s32.totalorder %s11, 0
    %p141 = por %p139, %p140
    %p142 = scmp.ne.s32.totalorder %s131, %s134
    %p143 = scmp.eq.s32.totalorder %s16, 1
    %p144 = por %p142, %p143
    %p145 = scmp.ne.s32.totalorder %s134, %s135
    %p146 = scmp.eq.s32.totalorder %s16, 0
    %p147 = por %p145, %p146
    %p148 = scmp.ne.s32.totalorder %s134, %s135
    %p149 = scmp.eq.s32.totalorder %s17, 1
    %p150 = por %p148, %p149
    %p152 = scmp.ne.s32.totalorder %s135, %s151
    %p153 = scmp.eq.s32.totalorder %s17, 0
    %p154 = por %p152, %p153
    %p155 = scmp.le.s32.totalorder 1, %s11
    %p156 = scmp.lt.s32.totalorder %s11, 3
    %p157 = pnand %p155, %p156
    %p158 = pneg %p157
    // Predicated region
    $region9: #{basic_block_forward.1} parent=5 // pred_check
      _
    $region10: #{basic_block_forward.1} parent=5 // pred_check_branch
      %160 = sbr.rel (%p157) target = $region12
    $region11: #{basic_block_forward.1} parent=5 // pred_region
      %s161 = ssub.s32 %s11, 1
      // Predicated region
      $region13: #{basic_block_forward.1} parent=11 // pred_check
        %p162 = pneg %p58
      $region14: #{basic_block_forward.1} parent=11 // pred_check_branch
        %164 = sbr.rel (%p162) target = $region16
      $region15: #{basic_block_forward.1} parent=11 // pred_region
        _
      $region16: #{basic_block_forward.1} parent=11 // pred_fallthru
        _
      // Predicated region
      $region17: #{basic_block_forward.1} parent=11 // pred_check
        %p165 = pneg %p79
      $region18: #{basic_block_forward.1} parent=11 // pred_check_branch
        %167 = sbr.rel (%p165) target = $region20
      $region19: #{basic_block_forward.1} parent=11 // pred_region
        _
      $region20: #{basic_block_forward.1} parent=11 // pred_fallthru
        _
      // Predicated region
      $region21: #{basic_block_forward.1} parent=11 // pred_check
        %p168 = pneg %p100
      $region22: #{basic_block_forward.1} parent=11 // pred_check_branch
        %170 = sbr.rel (%p168) target = $region24
      $region23: #{basic_block_forward.1} parent=11 // pred_region
        _
      $region24: #{basic_block_forward.1} parent=11 // pred_fallthru
        _
      // Predicated region
      $region25: #{basic_block_forward.1} parent=11 // pred_check
        %p171 = pneg %p121
      $region26: #{basic_block_forward.1} parent=11 // pred_check_branch
        %173 = sbr.rel (%p171) target = $region28
      $region27: #{basic_block_forward.1} parent=11 // pred_region
        _
      $region28: #{basic_block_forward.1} parent=11 // pred_fallthru
        _
    $region12: #{basic_block_forward.1} parent=5 // pred_fallthru
      _
    %p174 = scmp.lt.s32.totalorder %s11, 2
    // Predicated region
    $region29: #{basic_block_forward.1} parent=5 // pred_check
      %p175 = pneg %p174
    $region30: #{basic_block_forward.1} parent=5 // pred_check_branch
      %177 = sbr.rel (%p175) target = $region32
    $region31: #{basic_block_forward.1} parent=5 // pred_region
      // Predicated region
      $region33: #{basic_block_forward.1} parent=31 // pred_check
        %p178 = pneg %p31
      $region34: #{basic_block_forward.1} parent=31 // pred_check_branch
        %180 = sbr.rel (%p178) target = $region36
      $region35: #{basic_block_forward.1} parent=31 // pred_region
        %p181 = scmp.lt.s32.totalorder %s11, 1
        %s182 = scalar_select %p181, %s11, 1
        %s183 = smul.addr %s182, 54
        %s184 = smul.addr %s183, 8
        %s185 = scalar_lea.vmem %s0, %s184
      $region36: #{basic_block_forward.1} parent=31 // pred_fallthru
        _
    $region32: #{basic_block_forward.1} parent=5 // pred_fallthru
      _
    %p186 = scmp.le.s32.totalorder 1, %s11
    %p187 = scmp.lt.s32.totalorder %s11, 3
    %p188 = pnand %p186, %p187
    %p189 = pneg %p188
    // Predicated region
    $region37: #{basic_block_forward.1} parent=5 // pred_check
      _
    $region38: #{basic_block_forward.1} parent=5 // pred_check_branch
      %191 = sbr.rel (%p188) target = $region40
    $region39: #{basic_block_forward.1} parent=5 // pred_region
      %s192 = ssub.s32 %s11, 1
      %p193 = scmp.lt.s32.totalorder %s16, 1
      %s194 = scalar_select %p193, %s16, 1
      %s195 = smul.addr %s194, 54
      %s196 = smul.addr %s195, 8
      %s197 = scalar_lea.vmem %s0, %s196
      %p198 = pneg %p37
      %p199 = pneg %p34
      %p200 = pneg %p58
      %p201 = pneg %p55
      %p202 = pneg %p79
      %p203 = pneg %p76
      %p204 = pneg %p100
      %p205 = pneg %p97
      %p206 = pneg %p121
      %p207 = pneg %p118
      %p208 = pneg %p147
      %p209 = pneg %p144
      %p210 = scmp.lt.s32.totalorder %s16, 1
      %s211 = scalar_select %p210, %s16, 1
      %s212 = smul.addr %s211, 32
      %s213 = smul.addr %s212, 8
      %s214 = scalar_lea.vmem %s5, %s213
      %p215 = scmp.lt.s32.totalorder %s16, 1
      %s216 = scalar_select %p215, %s16, 1
      %s217 = smul.addr %s216, 54
      %s218 = smul.addr %s217, 8
      %s219 = scalar_lea.vmem %s0, %s218
      %p220 = scmp.lt.s32.totalorder %s16, 1
      %s221 = scalar_select %p220, %s16, 1
      %s222 = smul.addr %s221, 32
      %s223 = smul.addr %s222, 8
      %s224 = scalar_lea.vmem %s5, %s223
      %v225 = vld [vmem:[%s219] sm:$0xff]
      %v226 = vld [vmem:[%s219 + $0x8] sm:$0xff]
      %v227 = vld [vmem:[%s219 + $0x18] sm:$0xff]
      %v228 = vld [vmem:[%s219 + $0x20] sm:$0xff]
      %v229 = vld [vmem:[%s219 + $0x30] sm:$0xff]
      %v230 = vld [vmem:[%s219 + $0x38] sm:$0xff]
      %v231 = vld [vmem:[%s219 + $0x48] sm:$0xff]
      %v232 = vld [vmem:[%s219 + $0x50] sm:$0xff]
      %v233 = vld [vmem:[%s219 + $0x60] sm:$0xff]
      %v234 = vld [vmem:[%s219 + $0x68] sm:$0xff]
      %v235 = vld [vmem:[%s219 + $0x78] sm:$0xff]
      %v236 = vld [vmem:[%s219 + $0x80] sm:$0xff]
      %v237 = vld [vmem:[%s219 + $0x90] sm:$0xff]
      %v238 = vld [vmem:[%s219 + $0x98] sm:$0xff]
      %v239 = vld [vmem:[%s219 + $0xa8] sm:$0xff]
      %v240 = vld [vmem:[%s219 + $0xb0] sm:$0xff]
      %v241 = vld [vmem:[%s219 + $0xc0] sm:$0xff]
      %v242 = vld [vmem:[%s219 + $0xc8] sm:$0xff]
      %v243 = vld [vmem:[%s219 + $0xd8] sm:$0xff]
      %v244 = vld [vmem:[%s219 + $0xe0] sm:$0xff]
      %v245 = vld [vmem:[%s219 + $0xf0] sm:$0xff]
      %v246 = vld [vmem:[%s219 + $0xf8] sm:$0xff]
      %v247 = vld [vmem:[%s219 + $0x108] sm:$0xff]
      %v248 = vld [vmem:[%s219 + $0x110] sm:$0xff]
      %v249 = vld [vmem:[%s219 + $0x120] sm:$0xff]
      %v250 = vld [vmem:[%s219 + $0x128] sm:$0xff]
      %v251 = vld [vmem:[%s219 + $0x138] sm:$0xff]
      %v252 = vld [vmem:[%s219 + $0x140] sm:$0xff]
      %v253 = vld [vmem:[%s219 + $0x150] sm:$0xff]
      %v254 = vld [vmem:[%s219 + $0x158] sm:$0xff]
      %v255 = vld [vmem:[%s219 + $0x168] sm:$0xff]
      %v256 = vld [vmem:[%s219 + $0x170] sm:$0xff]
      %v257 = vpack.c.bf16 %v226, %v225
      %v258 = vpack.c.bf16 %v228, %v227
      %v259 = vpack.c.bf16 %v230, %v229
      %v260 = vpack.c.bf16 %v232, %v231
      %v261 = vpack.c.bf16 %v234, %v233
      %v262 = vpack.c.bf16 %v236, %v235
      %v263 = vpack.c.bf16 %v238, %v237
      %v264 = vpack.c.bf16 %v240, %v239
      %v265 = vpack.c.bf16 %v242, %v241
      %v266 = vpack.c.bf16 %v244, %v243
      %v267 = vpack.c.bf16 %v246, %v245
      %v268 = vpack.c.bf16 %v248, %v247
      %v269 = vpack.c.bf16 %v250, %v249
      %v270 = vpack.c.bf16 %v252, %v251
      %v271 = vpack.c.bf16 %v254, %v253
      %v272 = vpack.c.bf16 %v256, %v255
      %v273 = vld [vmem:[%s1] sm:$0xf]
      %v274 = vld [vmem:[%s1 + $0x4] sm:$0xf]
      %v275 = vld [vmem:[%s1 + $0x8] sm:$0xf]
      %v276 = vld [vmem:[%s1 + $0xc] sm:$0xf]
      %v277 = vld [vmem:[%s1 + $0x10] sm:$0xf]
      %v278 = vld [vmem:[%s1 + $0x14] sm:$0xf]
      %v279 = vld [vmem:[%s1 + $0x18] sm:$0xf]
      %v280 = vld [vmem:[%s1 + $0x1c] sm:$0xf]
      %v281 = vld [vmem:[%s1 + $0x20] sm:$0xf]
      %v282 = vld [vmem:[%s1 + $0x24] sm:$0xf]
      %v283 = vld [vmem:[%s1 + $0x28] sm:$0xf]
      %v284 = vld [vmem:[%s1 + $0x2c] sm:$0xf]
      %v285 = vld [vmem:[%s1 + $0x30] sm:$0xf]
      %v286 = vld [vmem:[%s1 + $0x34] sm:$0xf]
      %v287 = vld [vmem:[%s1 + $0x38] sm:$0xf]
      %v288 = vld [vmem:[%s1 + $0x3c] sm:$0xf]
      %v305 = vunpack.c.l.b16 %v273
      %v306 = vunpack.c.l.b16 %v274
      %v307 = vunpack.c.l.b16 %v275
      %v308 = vunpack.c.l.b16 %v276
      %v309 = vunpack.c.l.b16 %v277
      %v310 = vunpack.c.l.b16 %v278
      %v311 = vunpack.c.l.b16 %v279
      %v312 = vunpack.c.l.b16 %v280
      %v313 = vunpack.c.l.b16 %v281
      %v314 = vunpack.c.l.b16 %v282
      %v315 = vunpack.c.l.b16 %v283
      %v316 = vunpack.c.l.b16 %v284
      %v317 = vunpack.c.l.b16 %v285
      %v318 = vunpack.c.l.b16 %v286
      %v319 = vunpack.c.l.b16 %v287
      %v320 = vunpack.c.l.b16 %v288
      %v321 = vpack.c.b16 %v306, %v305
      %v322 = vpack.c.b16 %v308, %v307
      %v323 = vpack.c.b16 %v310, %v309
      %v324 = vpack.c.b16 %v312, %v311
      %v325 = vpack.c.b16 %v314, %v313
      %v326 = vpack.c.b16 %v316, %v315
      %v327 = vpack.c.b16 %v318, %v317
      %v328 = vpack.c.b16 %v320, %v319
      %337 = vmatpush.bf16.msra.mxu0 %v328
      %338 = vmatpush.bf16.msra.mxu0 %v327
      %339 = vmatpush.bf16.msra.mxu0 %v326
      %340 = vmatpush.bf16.msra.mxu0 %v325
      %341 = vmatpush.bf16.msra.mxu0 %v324
      %342 = vmatpush.bf16.msra.mxu0 %v323
      %343 = vmatpush.bf16.msra.mxu0 %v322
      %344 = vmatpush.bf16.msra.mxu0 %v321
      %345 = vmatmul.bf16.gmra.mxu0 %v257
      %v346 = vpop.f32.mrf.mxu0
      %v347 = vadd.f32 0.0, %v346
      %v348 = vpop.f32.mrf.mxu0
      %v349 = vadd.f32 0.0, %v348
      %350 = vmatmul.bf16.gmra.mxu0 %v258
      %v351 = vpop.f32.mrf.mxu0
      %v352 = vadd.f32 0.0, %v351
      %v353 = vpop.f32.mrf.mxu0
      %v354 = vadd.f32 0.0, %v353
      %355 = vmatmul.bf16.gmra.mxu0 %v259
      %v356 = vpop.f32.mrf.mxu0
      %v357 = vadd.f32 0.0, %v356
      %v358 = vpop.f32.mrf.mxu0
      %v359 = vadd.f32 0.0, %v358
      %360 = vmatmul.bf16.gmra.mxu0 %v260
      %v361 = vpop.f32.mrf.mxu0
      %v362 = vadd.f32 0.0, %v361
      %v363 = vpop.f32.mrf.mxu0
      %v364 = vadd.f32 0.0, %v363
      %365 = vmatmul.bf16.gmra.mxu0 %v261
      %v366 = vpop.f32.mrf.mxu0
      %v367 = vadd.f32 0.0, %v366
      %v368 = vpop.f32.mrf.mxu0
      %v369 = vadd.f32 0.0, %v368
      %370 = vmatmul.bf16.gmra.mxu0 %v262
      %v371 = vpop.f32.mrf.mxu0
      %v372 = vadd.f32 0.0, %v371
      %v373 = vpop.f32.mrf.mxu0
      %v374 = vadd.f32 0.0, %v373
      %375 = vmatmul.bf16.gmra.mxu0 %v263
      %v376 = vpop.f32.mrf.mxu0
      %v377 = vadd.f32 0.0, %v376
      %v378 = vpop.f32.mrf.mxu0
      %v379 = vadd.f32 0.0, %v378
      %380 = vmatmul.bf16.gmra.mxu0 %v264
      %v381 = vpop.f32.mrf.mxu0
      %v382 = vadd.f32 0.0, %v381
      %v383 = vpop.f32.mrf.mxu0
      %v384 = vadd.f32 0.0, %v383
      %385 = vmatmul.bf16.gmra.mxu0 %v265
      %v386 = vpop.f32.mrf.mxu0
      %v387 = vadd.f32 0.0, %v386
      %v388 = vpop.f32.mrf.mxu0
      %v389 = vadd.f32 0.0, %v388
      %390 = vmatmul.bf16.gmra.mxu0 %v266
      %v391 = vpop.f32.mrf.mxu0
      %v392 = vadd.f32 0.0, %v391
      %v393 = vpop.f32.mrf.mxu0
      %v394 = vadd.f32 0.0, %v393
      %395 = vmatmul.bf16.gmra.mxu0 %v267
      %v396 = vpop.f32.mrf.mxu0
      %v397 = vadd.f32 0.0, %v396
      %v398 = vpop.f32.mrf.mxu0
      %v399 = vadd.f32 0.0, %v398
      %400 = vmatmul.bf16.gmra.mxu0 %v268
      %v401 = vpop.f32.mrf.mxu0
      %v402 = vadd.f32 0.0, %v401
      %v403 = vpop.f32.mrf.mxu0
      %v404 = vadd.f32 0.0, %v403
      %405 = vmatmul.bf16.gmra.mxu0 %v269
      %v406 = vpop.f32.mrf.mxu0
      %v407 = vadd.f32 0.0, %v406
      %v408 = vpop.f32.mrf.mxu0
      %v409 = vadd.f32 0.0, %v408
      %410 = vmatmul.bf16.gmra.mxu0 %v270
      %v411 = vpop.f32.mrf.mxu0
      %v412 = vadd.f32 0.0, %v411
      %v413 = vpop.f32.mrf.mxu0
      %v414 = vadd.f32 0.0, %v413
      %415 = vmatmul.bf16.gmra.mxu0 %v271
      %v416 = vpop.f32.mrf.mxu0
      %v417 = vadd.f32 0.0, %v416
      %v418 = vpop.f32.mrf.mxu0
      %v419 = vadd.f32 0.0, %v418
      %420 = vmatmul.bf16.gmra.mxu0 %v272
      %v421 = vpop.f32.mrf.mxu0
      %v422 = vadd.f32 0.0, %v421
      %v423 = vpop.f32.mrf.mxu0
      %v424 = vadd.f32 0.0, %v423
      %425 = vdwg.mxu0
      %426 = vst [vmem:[#allocation3] sm:$0xff] %v347
      %427 = vst [vmem:[#allocation3 + $0x8] sm:$0xff] %v349
      %428 = vst [vmem:[#allocation3 + $0x10] sm:$0xff] %v352
      %429 = vst [vmem:[#allocation3 + $0x18] sm:$0xff] %v354
      %430 = vst [vmem:[#allocation3 + $0x20] sm:$0xff] %v357
      %431 = vst [vmem:[#allocation3 + $0x28] sm:$0xff] %v359
      %432 = vst [vmem:[#allocation3 + $0x30] sm:$0xff] %v362
      %433 = vst [vmem:[#allocation3 + $0x38] sm:$0xff] %v364
      %434 = vst [vmem:[#allocation3 + $0x40] sm:$0xff] %v367
      %435 = vst [vmem:[#allocation3 + $0x48] sm:$0xff] %v369
      %436 = vst [vmem:[#allocation3 + $0x50] sm:$0xff] %v372
      %437 = vst [vmem:[#allocation3 + $0x58] sm:$0xff] %v374
      %438 = vst [vmem:[#allocation3 + $0x60] sm:$0xff] %v377
      %439 = vst [vmem:[#allocation3 + $0x68] sm:$0xff] %v379
      %440 = vst [vmem:[#allocation3 + $0x70] sm:$0xff] %v382
      %441 = vst [vmem:[#allocation3 + $0x78] sm:$0xff] %v384
      %442 = vst [vmem:[#allocation3 + $0x80] sm:$0xff] %v387
      %443 = vst [vmem:[#allocation3 + $0x88] sm:$0xff] %v389
      %444 = vst [vmem:[#allocation3 + $0x90] sm:$0xff] %v392
      %445 = vst [vmem:[#allocation3 + $0x98] sm:$0xff] %v394
      %446 = vst [vmem:[#allocation3 + $0xa0] sm:$0xff] %v397
      %447 = vst [vmem:[#allocation3 + $0xa8] sm:$0xff] %v399
      %448 = vst [vmem:[#allocation3 + $0xb0] sm:$0xff] %v402
      %449 = vst [vmem:[#allocation3 + $0xb8] sm:$0xff] %v404
      %450 = vst [vmem:[#allocation3 + $0xc0] sm:$0xff] %v407
      %451 = vst [vmem:[#allocation3 + $0xc8] sm:$0xff] %v409
      %452 = vst [vmem:[#allocation3 + $0xd0] sm:$0xff] %v412
      %453 = vst [vmem:[#allocation3 + $0xd8] sm:$0xff] %v414
      %454 = vst [vmem:[#allocation3 + $0xe0] sm:$0xff] %v417
      %455 = vst [vmem:[#allocation3 + $0xe8] sm:$0xff] %v419
      %456 = vst [vmem:[#allocation3 + $0xf0] sm:$0xff] %v422
      %457 = vst [vmem:[#allocation3 + $0xf8] sm:$0xff] %v424
      %v458 = vld [vmem:[%s219 + $0x1] sm:$0xff]
      %v459 = vld [vmem:[%s219 + $0x9] sm:$0xff]
      %v460 = vld [vmem:[%s219 + $0x19] sm:$0xff]
      %v461 = vld [vmem:[%s219 + $0x21] sm:$0xff]
      %v462 = vld [vmem:[%s219 + $0x31] sm:$0xff]
      %v463 = vld [vmem:[%s219 + $0x39] sm:$0xff]
      %v464 = vld [vmem:[%s219 + $0x49] sm:$0xff]
      %v465 = vld [vmem:[%s219 + $0x51] sm:$0xff]
      %v466 = vld [vmem:[%s219 + $0x61] sm:$0xff]
      %v467 = vld [vmem:[%s219 + $0x69] sm:$0xff]
      %v468 = vld [vmem:[%s219 + $0x79] sm:$0xff]
      %v469 = vld [vmem:[%s219 + $0x81] sm:$0xff]
      %v470 = vld [vmem:[%s219 + $0x91] sm:$0xff]
      %v471 = vld [vmem:[%s219 + $0x99] sm:$0xff]
      %v472 = vld [vmem:[%s219 + $0xa9] sm:$0xff]
      %v473 = vld [vmem:[%s219 + $0xb1] sm:$0xff]
      %v474 = vld [vmem:[%s219 + $0xc1] sm:$0xff]
      %v475 = vld [vmem:[%s219 + $0xc9] sm:$0xff]
      %v476 = vld [vmem:[%s219 + $0xd9] sm:$0xff]
      %v477 = vld [vmem:[%s219 + $0xe1] sm:$0xff]
      %v478 = vld [vmem:[%s219 + $0xf1] sm:$0xff]
      %v479 = vld [vmem:[%s219 + $0xf9] sm:$0xff]
      %v480 = vld [vmem:[%s219 + $0x109] sm:$0xff]
      %v481 = vld [vmem:[%s219 + $0x111] sm:$0xff]
      %v482 = vld [vmem:[%s219 + $0x121] sm:$0xff]
      %v483 = vld [vmem:[%s219 + $0x129] sm:$0xff]
      %v484 = vld [vmem:[%s219 + $0x139] sm:$0xff]
      %v485 = vld [vmem:[%s219 + $0x141] sm:$0xff]
      %v486 = vld [vmem:[%s219 + $0x151] sm:$0xff]
      %v487 = vld [vmem:[%s219 + $0x159] sm:$0xff]
      %v488 = vld [vmem:[%s219 + $0x169] sm:$0xff]
      %v489 = vld [vmem:[%s219 + $0x171] sm:$0xff]
      %v490 = vpack.c.bf16 %v459, %v458
      %v491 = vpack.c.bf16 %v461, %v460
      %v492 = vpack.c.bf16 %v463, %v462
      %v493 = vpack.c.bf16 %v465, %v464
      %v494 = vpack.c.bf16 %v467, %v466
      %v495 = vpack.c.bf16 %v469, %v468
      %v496 = vpack.c.bf16 %v471, %v470
      %v497 = vpack.c.bf16 %v473, %v472
      %v498 = vpack.c.bf16 %v475, %v474
      %v499 = vpack.c.bf16 %v477, %v476
      %v500 = vpack.c.bf16 %v479, %v478
      %v501 = vpack.c.bf16 %v481, %v480
      %v502 = vpack.c.bf16 %v483, %v482
      %v503 = vpack.c.bf16 %v485, %v484
      %v504 = vpack.c.bf16 %v487, %v486
      %v505 = vpack.c.bf16 %v489, %v488
      %s506 = scalar_lea.vmem %s1, 64
      %v507 = vld [vmem:[%s506] sm:$0xf]
      %v508 = vld [vmem:[%s506 + $0x4] sm:$0xf]
      %v509 = vld [vmem:[%s506 + $0x8] sm:$0xf]
      %v510 = vld [vmem:[%s506 + $0xc] sm:$0xf]
      %v511 = vld [vmem:[%s506 + $0x10] sm:$0xf]
      %v512 = vld [vmem:[%s506 + $0x14] sm:$0xf]
      %v513 = vld [vmem:[%s506 + $0x18] sm:$0xf]
      %v514 = vld [vmem:[%s506 + $0x1c] sm:$0xf]
      %v515 = vld [vmem:[%s506 + $0x20] sm:$0xf]
      %v516 = vld [vmem:[%s506 + $0x24] sm:$0xf]
      %v517 = vld [vmem:[%s506 + $0x28] sm:$0xf]
      %v518 = vld [vmem:[%s506 + $0x2c] sm:$0xf]
      %v519 = vld [vmem:[%s506 + $0x30] sm:$0xf]
      %v520 = vld [vmem:[%s506 + $0x34] sm:$0xf]
      %v521 = vld [vmem:[%s506 + $0x38] sm:$0xf]
      %v522 = vld [vmem:[%s506 + $0x3c] sm:$0xf]
      %v539 = vunpack.c.l.b16 %v507
      %v540 = vunpack.c.l.b16 %v508
      %v541 = vunpack.c.l.b16 %v509
      %v542 = vunpack.c.l.b16 %v510
      %v543 = vunpack.c.l.b16 %v511
      %v544 = vunpack.c.l.b16 %v512
      %v545 = vunpack.c.l.b16 %v513
      %v546 = vunpack.c.l.b16 %v514
      %v547 = vunpack.c.l.b16 %v515
      %v548 = vunpack.c.l.b16 %v516
      %v549 = vunpack.c.l.b16 %v517
      %v550 = vunpack.c.l.b16 %v518
      %v551 = vunpack.c.l.b16 %v519
      %v552 = vunpack.c.l.b16 %v520
      %v553 = vunpack.c.l.b16 %v521
      %v554 = vunpack.c.l.b16 %v522
      %v555 = vpack.c.b16 %v540, %v539
      %v556 = vpack.c.b16 %v542, %v541
      %v557 = vpack.c.b16 %v544, %v543
      %v558 = vpack.c.b16 %v546, %v545
      %v559 = vpack.c.b16 %v548, %v547
      %v560 = vpack.c.b16 %v550, %v549
      %v561 = vpack.c.b16 %v552, %v551
      %v562 = vpack.c.b16 %v554, %v553
      %571 = vmatpush.bf16.msra.mxu0 %v562
      %572 = vmatpush.bf16.msra.mxu0 %v561
      %573 = vmatpush.bf16.msra.mxu0 %v560
      %574 = vmatpush.bf16.msra.mxu0 %v559
      %575 = vmatpush.bf16.msra.mxu0 %v558
      %576 = vmatpush.bf16.msra.mxu0 %v557
      %577 = vmatpush.bf16.msra.mxu0 %v556
      %578 = vmatpush.bf16.msra.mxu0 %v555
      %579 = vmatmul.bf16.gmra.mxu0 %v490
      %v580 = vpop.f32.mrf.mxu0
      %v581 = vadd.f32 0.0, %v580
      %v582 = vpop.f32.mrf.mxu0
      %v583 = vadd.f32 0.0, %v582
      %584 = vmatmul.bf16.gmra.mxu0 %v491
      %v585 = vpop.f32.mrf.mxu0
      %v586 = vadd.f32 0.0, %v585
      %v587 = vpop.f32.mrf.mxu0
      %v588 = vadd.f32 0.0, %v587
      %589 = vmatmul.bf16.gmra.mxu0 %v492
      %v590 = vpop.f32.mrf.mxu0
      %v591 = vadd.f32 0.0, %v590
      %v592 = vpop.f32.mrf.mxu0
      %v593 = vadd.f32 0.0, %v592
      %594 = vmatmul.bf16.gmra.mxu0 %v493
      %v595 = vpop.f32.mrf.mxu0
      %v596 = vadd.f32 0.0, %v595
      %v597 = vpop.f32.mrf.mxu0
      %v598 = vadd.f32 0.0, %v597
      %599 = vmatmul.bf16.gmra.mxu0 %v494
      %v600 = vpop.f32.mrf.mxu0
      %v601 = vadd.f32 0.0, %v600
      %v602 = vpop.f32.mrf.mxu0
      %v603 = vadd.f32 0.0, %v602
      %604 = vmatmul.bf16.gmra.mxu0 %v495
      %v605 = vpop.f32.mrf.mxu0
      %v606 = vadd.f32 0.0, %v605
      %v607 = vpop.f32.mrf.mxu0
      %v608 = vadd.f32 0.0, %v607
      %609 = vmatmul.bf16.gmra.mxu0 %v496
      %v610 = vpop.f32.mrf.mxu0
      %v611 = vadd.f32 0.0, %v610
      %v612 = vpop.f32.mrf.mxu0
      %v613 = vadd.f32 0.0, %v612
      %614 = vmatmul.bf16.gmra.mxu0 %v497
      %v615 = vpop.f32.mrf.mxu0
      %v616 = vadd.f32 0.0, %v615
      %v617 = vpop.f32.mrf.mxu0
      %v618 = vadd.f32 0.0, %v617
      %619 = vmatmul.bf16.gmra.mxu0 %v498
      %v620 = vpop.f32.mrf.mxu0
      %v621 = vadd.f32 0.0, %v620
      %v622 = vpop.f32.mrf.mxu0
      %v623 = vadd.f32 0.0, %v622
      %624 = vmatmul.bf16.gmra.mxu0 %v499
      %v625 = vpop.f32.mrf.mxu0
      %v626 = vadd.f32 0.0, %v625
      %v627 = vpop.f32.mrf.mxu0
      %v628 = vadd.f32 0.0, %v627
      %629 = vmatmul.bf16.gmra.mxu0 %v500
      %v630 = vpop.f32.mrf.mxu0
      %v631 = vadd.f32 0.0, %v630
      %v632 = vpop.f32.mrf.mxu0
      %v633 = vadd.f32 0.0, %v632
      %634 = vmatmul.bf16.gmra.mxu0 %v501
      %v635 = vpop.f32.mrf.mxu0
      %v636 = vadd.f32 0.0, %v635
      %v637 = vpop.f32.mrf.mxu0
      %v638 = vadd.f32 0.0, %v637
      %639 = vmatmul.bf16.gmra.mxu0 %v502
      %v640 = vpop.f32.mrf.mxu0
      %v641 = vadd.f32 0.0, %v640
      %v642 = vpop.f32.mrf.mxu0
      %v643 = vadd.f32 0.0, %v642
      %644 = vmatmul.bf16.gmra.mxu0 %v503
      %v645 = vpop.f32.mrf.mxu0
      %v646 = vadd.f32 0.0, %v645
      %v647 = vpop.f32.mrf.mxu0
      %v648 = vadd.f32 0.0, %v647
      %649 = vmatmul.bf16.gmra.mxu0 %v504
      %v650 = vpop.f32.mrf.mxu0
      %v651 = vadd.f32 0.0, %v650
      %v652 = vpop.f32.mrf.mxu0
      %v653 = vadd.f32 0.0, %v652
      %654 = vmatmul.bf16.gmra.mxu0 %v505
      %v655 = vpop.f32.mrf.mxu0
      %v656 = vadd.f32 0.0, %v655
      %v657 = vpop.f32.mrf.mxu0
      %v658 = vadd.f32 0.0, %v657
      %659 = vdwg.mxu0
      %v660 = vld [vmem:[#allocation3] sm:$0xff]
      %v661 = vld [vmem:[#allocation3 + $0x8] sm:$0xff]
      %v662 = vld [vmem:[#allocation3 + $0x10] sm:$0xff]
      %v663 = vld [vmem:[#allocation3 + $0x18] sm:$0xff]
      %v664 = vld [vmem:[#allocation3 + $0x20] sm:$0xff]
      %v665 = vld [vmem:[#allocation3 + $0x28] sm:$0xff]
      %v666 = vld [vmem:[#allocation3 + $0x30] sm:$0xff]
      %v667 = vld [vmem:[#allocation3 + $0x38] sm:$0xff]
      %v668 = vld [vmem:[#allocation3 + $0x40] sm:$0xff]
      %v669 = vld [vmem:[#allocation3 + $0x48] sm:$0xff]
      %v670 = vld [vmem:[#allocation3 + $0x50] sm:$0xff]
      %v671 = vld [vmem:[#allocation3 + $0x58] sm:$0xff]
      %v672 = vld [vmem:[#allocation3 + $0x60] sm:$0xff]
      %v673 = vld [vmem:[#allocation3 + $0x68] sm:$0xff]
      %v674 = vld [vmem:[#allocation3 + $0x70] sm:$0xff]
      %v675 = vld [vmem:[#allocation3 + $0x78] sm:$0xff]
      %v676 = vld [vmem:[#allocation3 + $0x80] sm:$0xff]
      %v677 = vld [vmem:[#allocation3 + $0x88] sm:$0xff]
      %v678 = vld [vmem:[#allocation3 + $0x90] sm:$0xff]
      %v679 = vld [vmem:[#allocation3 + $0x98] sm:$0xff]
      %v680 = vld [vmem:[#allocation3 + $0xa0] sm:$0xff]
      %v681 = vld [vmem:[#allocation3 + $0xa8] sm:$0xff]
      %v682 = vld [vmem:[#allocation3 + $0xb0] sm:$0xff]
      %v683 = vld [vmem:[#allocation3 + $0xb8] sm:$0xff]
      %v684 = vld [vmem:[#allocation3 + $0xc0] sm:$0xff]
      %v685 = vld [vmem:[#allocation3 + $0xc8] sm:$0xff]
      %v686 = vld [vmem:[#allocation3 + $0xd0] sm:$0xff]
      %v687 = vld [vmem:[#allocation3 + $0xd8] sm:$0xff]
      %v688 = vld [vmem:[#allocation3 + $0xe0] sm:$0xff]
      %v689 = vld [vmem:[#allocation3 + $0xe8] sm:$0xff]
      %v690 = vld [vmem:[#allocation3 + $0xf0] sm:$0xff]
      %v691 = vld [vmem:[#allocation3 + $0xf8] sm:$0xff]
      %v692 = vadd.f32 %v660, %v581
      %v693 = vadd.f32 %v661, %v583
      %v694 = vadd.f32 %v662, %v586
      %v695 = vadd.f32 %v663, %v588
      %v696 = vadd.f32 %v664, %v591
      %v697 = vadd.f32 %v665, %v593
      %v698 = vadd.f32 %v666, %v596
      %v699 = vadd.f32 %v667, %v598
      %v700 = vadd.f32 %v668, %v601
      %v701 = vadd.f32 %v669, %v603
      %v702 = vadd.f32 %v670, %v606
      %v703 = vadd.f32 %v671, %v608
      %v704 = vadd.f32 %v672, %v611
      %v705 = vadd.f32 %v673, %v613
      %v706 = vadd.f32 %v674, %v616
      %v707 = vadd.f32 %v675, %v618
      %v708 = vadd.f32 %v676, %v621
      %v709 = vadd.f32 %v677, %v623
      %v710 = vadd.f32 %v678, %v626
      %v711 = vadd.f32 %v679, %v628
      %v712 = vadd.f32 %v680, %v631
      %v713 = vadd.f32 %v681, %v633
      %v714 = vadd.f32 %v682, %v636
      %v715 = vadd.f32 %v683, %v638
      %v716 = vadd.f32 %v684, %v641
      %v717 = vadd.f32 %v685, %v643
      %v718 = vadd.f32 %v686, %v646
      %v719 = vadd.f32 %v687, %v648
      %v720 = vadd.f32 %v688, %v651
      %v721 = vadd.f32 %v689, %v653
      %v722 = vadd.f32 %v690, %v656
      %v723 = vadd.f32 %v691, %v658
      %724 = vst [vmem:[#allocation3] sm:$0xff] %v692
      %725 = vst [vmem:[#allocation3 + $0x8] sm:$0xff] %v693
      %726 = vst [vmem:[#allocation3 + $0x10] sm:$0xff] %v694
      %727 = vst [vmem:[#allocation3 + $0x18] sm:$0xff] %v695
      %728 = vst [vmem:[#allocation3 + $0x20] sm:$0xff] %v696
      %729 = vst [vmem:[#allocation3 + $0x28] sm:$0xff] %v697
      %730 = vst [vmem:[#allocation3 + $0x30] sm:$0xff] %v698
      %731 = vst [vmem:[#allocation3 + $0x38] sm:$0xff] %v699
      %732 = vst [vmem:[#allocation3 + $0x40] sm:$0xff] %v700
      %733 = vst [vmem:[#allocation3 + $0x48] sm:$0xff] %v701
      %734 = vst [vmem:[#allocation3 + $0x50] sm:$0xff] %v702
      %735 = vst [vmem:[#allocation3 + $0x58] sm:$0xff] %v703
      %736 = vst [vmem:[#allocation3 + $0x60] sm:$0xff] %v704
      %737 = vst [vmem:[#allocation3 + $0x68] sm:$0xff] %v705
      %738 = vst [vmem:[#allocation3 + $0x70] sm:$0xff] %v706
      %739 = vst [vmem:[#allocation3 + $0x78] sm:$0xff] %v707
      %740 = vst [vmem:[#allocation3 + $0x80] sm:$0xff] %v708
      %741 = vst [vmem:[#allocation3 + $0x88] sm:$0xff] %v709
      %742 = vst [vmem:[#allocation3 + $0x90] sm:$0xff] %v710
      %743 = vst [vmem:[#allocation3 + $0x98] sm:$0xff] %v711
      %744 = vst [vmem:[#allocation3 + $0xa0] sm:$0xff] %v712
      %745 = vst [vmem:[#allocation3 + $0xa8] sm:$0xff] %v713
      %746 = vst [vmem:[#allocation3 + $0xb0] sm:$0xff] %v714
      %747 = vst [vmem:[#allocation3 + $0xb8] sm:$0xff] %v715
      %748 = vst [vmem:[#allocation3 + $0xc0] sm:$0xff] %v716
      %749 = vst [vmem:[#allocation3 + $0xc8] sm:$0xff] %v717
      %750 = vst [vmem:[#allocation3 + $0xd0] sm:$0xff] %v718
      %751 = vst [vmem:[#allocation3 + $0xd8] sm:$0xff] %v719
      %752 = vst [vmem:[#allocation3 + $0xe0] sm:$0xff] %v720
      %753 = vst [vmem:[#allocation3 + $0xe8] sm:$0xff] %v721
      %754 = vst [vmem:[#allocation3 + $0xf0] sm:$0xff] %v722
      %755 = vst [vmem:[#allocation3 + $0xf8] sm:$0xff] %v723
      %v756 = vld [vmem:[%s219 + $0x2] sm:$0xff]
      %v757 = vld [vmem:[%s219 + $0xa] sm:$0xff]
      %v758 = vld [vmem:[%s219 + $0x1a] sm:$0xff]
      %v759 = vld [vmem:[%s219 + $0x22] sm:$0xff]
      %v760 = vld [vmem:[%s219 + $0x32] sm:$0xff]
      %v761 = vld [vmem:[%s219 + $0x3a] sm:$0xff]
      %v762 = vld [vmem:[%s219 + $0x4a] sm:$0xff]
      %v763 = vld [vmem:[%s219 + $0x52] sm:$0xff]
      %v764 = vld [vmem:[%s219 + $0x62] sm:$0xff]
      %v765 = vld [vmem:[%s219 + $0x6a] sm:$0xff]
      %v766 = vld [vmem:[%s219 + $0x7a] sm:$0xff]
      %v767 = vld [vmem:[%s219 + $0x82] sm:$0xff]
      %v768 = vld [vmem:[%s219 + $0x92] sm:$0xff]
      %v769 = vld [vmem:[%s219 + $0x9a] sm:$0xff]
      %v770 = vld [vmem:[%s219 + $0xaa] sm:$0xff]
      %v771 = vld [vmem:[%s219 + $0xb2] sm:$0xff]
      %v772 = vld [vmem:[%s219 + $0xc2] sm:$0xff]
      %v773 = vld [vmem:[%s219 + $0xca] sm:$0xff]
      %v774 = vld [vmem:[%s219 + $0xda] sm:$0xff]
      %v775 = vld [vmem:[%s219 + $0xe2] sm:$0xff]
      %v776 = vld [vmem:[%s219 + $0xf2] sm:$0xff]
      %v777 = vld [vmem:[%s219 + $0xfa] sm:$0xff]
      %v778 = vld [vmem:[%s219 + $0x10a] sm:$0xff]
      %v779 = vld [vmem:[%s219 + $0x112] sm:$0xff]
      %v780 = vld [vmem:[%s219 + $0x122] sm:$0xff]
      %v781 = vld [vmem:[%s219 + $0x12a] sm:$0xff]
      %v782 = vld [vmem:[%s219 + $0x13a] sm:$0xff]
      %v783 = vld [vmem:[%s219 + $0x142] sm:$0xff]
      %v784 = vld [vmem:[%s219 + $0x152] sm:$0xff]
      %v785 = vld [vmem:[%s219 + $0x15a] sm:$0xff]
      %v786 = vld [vmem:[%s219 + $0x16a] sm:$0xff]
      %v787 = vld [vmem:[%s219 + $0x172] sm:$0xff]
      %v788 = vpack.c.bf16 %v757, %v756
      %v789 = vpack.c.bf16 %v759, %v758
      %v790 = vpack.c.bf16 %v761, %v760
      %v791 = vpack.c.bf16 %v763, %v762
      %v792 = vpack.c.bf16 %v765, %v764
      %v793 = vpack.c.bf16 %v767, %v766
      %v794 = vpack.c.bf16 %v769, %v768
      %v795 = vpack.c.bf16 %v771, %v770
      %v796 = vpack.c.bf16 %v773, %v772
      %v797 = vpack.c.bf16 %v775, %v774
      %v798 = vpack.c.bf16 %v777, %v776
      %v799 = vpack.c.bf16 %v779, %v778
      %v800 = vpack.c.bf16 %v781, %v780
      %v801 = vpack.c.bf16 %v783, %v782
      %v802 = vpack.c.bf16 %v785, %v784
      %v803 = vpack.c.bf16 %v787, %v786
      %s804 = scalar_lea.vmem %s1, 128
      %v805 = vld [vmem:[%s804] sm:$0xf]
      %v806 = vld [vmem:[%s804 + $0x4] sm:$0xf]
      %v807 = vld [vmem:[%s804 + $0x8] sm:$0xf]
      %v808 = vld [vmem:[%s804 + $0xc] sm:$0xf]
      %v809 = vld [vmem:[%s804 + $0x10] sm:$0xf]
      %v810 = vld [vmem:[%s804 + $0x14] sm:$0xf]
      %v811 = vld [vmem:[%s804 + $0x18] sm:$0xf]
      %v812 = vld [vmem:[%s804 + $0x1c] sm:$0xf]
      %v813 = vld [vmem:[%s804 + $0x20] sm:$0xf]
      %v814 = vld [vmem:[%s804 + $0x24] sm:$0xf]
      %v815 = vld [vmem:[%s804 + $0x28] sm:$0xf]
      %v816 = vld [vmem:[%s804 + $0x2c] sm:$0xf]
      %v817 = vld [vmem:[%s804 + $0x30] sm:$0xf]
      %v818 = vld [vmem:[%s804 + $0x34] sm:$0xf]
      %v819 = vld [vmem:[%s804 + $0x38] sm:$0xf]
      %v820 = vld [vmem:[%s804 + $0x3c] sm:$0xf]
      %v837 = vunpack.c.l.b16 %v805
      %v838 = vunpack.c.l.b16 %v806
      %v839 = vunpack.c.l.b16 %v807
      %v840 = vunpack.c.l.b16 %v808
      %v841 = vunpack.c.l.b16 %v809
      %v842 = vunpack.c.l.b16 %v810
      %v843 = vunpack.c.l.b16 %v811
      %v844 = vunpack.c.l.b16 %v812
      %v845 = vunpack.c.l.b16 %v813
      %v846 = vunpack.c.l.b16 %v814
      %v847 = vunpack.c.l.b16 %v815
      %v848 = vunpack.c.l.b16 %v816
      %v849 = vunpack.c.l.b16 %v817
      %v850 = vunpack.c.l.b16 %v818
      %v851 = vunpack.c.l.b16 %v819
      %v852 = vunpack.c.l.b16 %v820
      %v853 = vpack.c.b16 %v838, %v837
      %v854 = vpack.c.b16 %v840, %v839
      %v855 = vpack.c.b16 %v842, %v841
      %v856 = vpack.c.b16 %v844, %v843
      %v857 = vpack.c.b16 %v846, %v845
      %v858 = vpack.c.b16 %v848, %v847
      %v859 = vpack.c.b16 %v850, %v849
      %v860 = vpack.c.b16 %v852, %v851
      %869 = vmatpush.bf16.msra.mxu0 %v860
      %870 = vmatpush.bf16.msra.mxu0 %v859
      %871 = vmatpush.bf16.msra.mxu0 %v858
      %872 = vmatpush.bf16.msra.mxu0 %v857
      %873 = vmatpush.bf16.msra.mxu0 %v856
      %874 = vmatpush.bf16.msra.mxu0 %v855
      %875 = vmatpush.bf16.msra.mxu0 %v854
      %876 = vmatpush.bf16.msra.mxu0 %v853
      %877 = vmatmul.bf16.gmra.mxu0 %v788
      %v878 = vpop.f32.mrf.mxu0
      %v879 = vadd.f32 0.0, %v878
      %v880 = vpop.f32.mrf.mxu0
      %v881 = vadd.f32 0.0, %v880
      %882 = vmatmul.bf16.gmra.mxu0 %v789
      %v883 = vpop.f32.mrf.mxu0
      %v884 = vadd.f32 0.0, %v883
      %v885 = vpop.f32.mrf.mxu0
      %v886 = vadd.f32 0.0, %v885
      %887 = vmatmul.bf16.gmra.mxu0 %v790
      %v888 = vpop.f32.mrf.mxu0
      %v889 = vadd.f32 0.0, %v888
      %v890 = vpop.f32.mrf.mxu0
      %v891 = vadd.f32 0.0, %v890
      %892 = vmatmul.bf16.gmra.mxu0 %v791
      %v893 = vpop.f32.mrf.mxu0
      %v894 = vadd.f32 0.0, %v893
      %v895 = vpop.f32.mrf.mxu0
      %v896 = vadd.f32 0.0, %v895
      %897 = vmatmul.bf16.gmra.mxu0 %v792
      %v898 = vpop.f32.mrf.mxu0
      %v899 = vadd.f32 0.0, %v898
      %v900 = vpop.f32.mrf.mxu0
      %v901 = vadd.f32 0.0, %v900
      %902 = vmatmul.bf16.gmra.mxu0 %v793
      %v903 = vpop.f32.mrf.mxu0
      %v904 = vadd.f32 0.0, %v903
      %v905 = vpop.f32.mrf.mxu0
      %v906 = vadd.f32 0.0, %v905
      %907 = vmatmul.bf16.gmra.mxu0 %v794
      %v908 = vpop.f32.mrf.mxu0
      %v909 = vadd.f32 0.0, %v908
      %v910 = vpop.f32.mrf.mxu0
      %v911 = vadd.f32 0.0, %v910
      %912 = vmatmul.bf16.gmra.mxu0 %v795
      %v913 = vpop.f32.mrf.mxu0
      %v914 = vadd.f32 0.0, %v913
      %v915 = vpop.f32.mrf.mxu0
      %v916 = vadd.f32 0.0, %v915
      %917 = vmatmul.bf16.gmra.mxu0 %v796
      %v918 = vpop.f32.mrf.mxu0
      %v919 = vadd.f32 0.0, %v918
      %v920 = vpop.f32.mrf.mxu0
      %v921 = vadd.f32 0.0, %v920
      %922 = vmatmul.bf16.gmra.mxu0 %v797
      %v923 = vpop.f32.mrf.mxu0
      %v924 = vadd.f32 0.0, %v923
      %v925 = vpop.f32.mrf.mxu0
      %v926 = vadd.f32 0.0, %v925
      %927 = vmatmul.bf16.gmra.mxu0 %v798
      %v928 = vpop.f32.mrf.mxu0
      %v929 = vadd.f32 0.0, %v928
      %v930 = vpop.f32.mrf.mxu0
      %v931 = vadd.f32 0.0, %v930
      %932 = vmatmul.bf16.gmra.mxu0 %v799
      %v933 = vpop.f32.mrf.mxu0
      %v934 = vadd.f32 0.0, %v933
      %v935 = vpop.f32.mrf.mxu0
      %v936 = vadd.f32 0.0, %v935
      %937 = vmatmul.bf16.gmra.mxu0 %v800
      %v938 = vpop.f32.mrf.mxu0
      %v939 = vadd.f32 0.0, %v938
      %v940 = vpop.f32.mrf.mxu0
      %v941 = vadd.f32 0.0, %v940
      %942 = vmatmul.bf16.gmra.mxu0 %v801
      %v943 = vpop.f32.mrf.mxu0
      %v944 = vadd.f32 0.0, %v943
      %v945 = vpop.f32.mrf.mxu0
      %v946 = vadd.f32 0.0, %v945
      %947 = vmatmul.bf16.gmra.mxu0 %v802
      %v948 = vpop.f32.mrf.mxu0
      %v949 = vadd.f32 0.0, %v948
      %v950 = vpop.f32.mrf.mxu0
      %v951 = vadd.f32 0.0, %v950
      %952 = vmatmul.bf16.gmra.mxu0 %v803
      %v953 = vpop.f32.mrf.mxu0
      %v954 = vadd.f32 0.0, %v953
      %v955 = vpop.f32.mrf.mxu0
      %v956 = vadd.f32 0.0, %v955
      %957 = vdwg.mxu0
      %v958 = vld [vmem:[#allocation3] sm:$0xff]
      %v959 = vld [vmem:[#allocation3 + $0x8] sm:$0xff]
      %v960 = vld [vmem:[#allocation3 + $0x10] sm:$0xff]
      %v961 = vld [vmem:[#allocation3 + $0x18] sm:$0xff]
      %v962 = vld [vmem:[#allocation3 + $0x20] sm:$0xff]
      %v963 = vld [vmem:[#allocation3 + $0x28] sm:$0xff]
      %v964 = vld [vmem:[#allocation3 + $0x30] sm:$0xff]
      %v965 = vld [vmem:[#allocation3 + $0x38] sm:$0xff]
      %v966 = vld [vmem:[#allocation3 + $0x40] sm:$0xff]
      %v967 = vld [vmem:[#allocation3 + $0x48] sm:$0xff]
      %v968 = vld [vmem:[#allocation3 + $0x50] sm:$0xff]
      %v969 = vld [vmem:[#allocation3 + $0x58] sm:$0xff]
      %v970 = vld [vmem:[#allocation3 + $0x60] sm:$0xff]
      %v971 = vld [vmem:[#allocation3 + $0x68] sm:$0xff]
      %v972 = vld [vmem:[#allocation3 + $0x70] sm:$0xff]
      %v973 = vld [vmem:[#allocation3 + $0x78] sm:$0xff]
      %v974 = vld [vmem:[#allocation3 + $0x80] sm:$0xff]
      %v975 = vld [vmem:[#allocation3 + $0x88] sm:$0xff]
      %v976 = vld [vmem:[#allocation3 + $0x90] sm:$0xff]
      %v977 = vld [vmem:[#allocation3 + $0x98] sm:$0xff]
      %v978 = vld [vmem:[#allocation3 + $0xa0] sm:$0xff]
      %v979 = vld [vmem:[#allocation3 + $0xa8] sm:$0xff]
      %v980 = vld [vmem:[#allocation3 + $0xb0] sm:$0xff]
      %v981 = vld [vmem:[#allocation3 + $0xb8] sm:$0xff]
      %v982 = vld [vmem:[#allocation3 + $0xc0] sm:$0xff]
      %v983 = vld [vmem:[#allocation3 + $0xc8] sm:$0xff]
      %v984 = vld [vmem:[#allocation3 + $0xd0] sm:$0xff]
      %v985 = vld [vmem:[#allocation3 + $0xd8] sm:$0xff]
      %v986 = vld [vmem:[#allocation3 + $0xe0] sm:$0xff]
      %v987 = vld [vmem:[#allocation3 + $0xe8] sm:$0xff]
      %v988 = vld [vmem:[#allocation3 + $0xf0] sm:$0xff]
      %v989 = vld [vmem:[#allocation3 + $0xf8] sm:$0xff]
      %v990 = vadd.f32 %v958, %v879
      %v991 = vadd.f32 %v959, %v881
      %v992 = vadd.f32 %v960, %v884
      %v993 = vadd.f32 %v961, %v886
      %v994 = vadd.f32 %v962, %v889
      %v995 = vadd.f32 %v963, %v891
      %v996 = vadd.f32 %v964, %v894
      %v997 = vadd.f32 %v965, %v896
      %v998 = vadd.f32 %v966, %v899
      %v999 = vadd.f32 %v967, %v901
      %v1000 = vadd.f32 %v968, %v904
      %v1001 = vadd.f32 %v969, %v906
      %v1002 = vadd.f32 %v970, %v909
      %v1003 = vadd.f32 %v971, %v911
      %v1004 = vadd.f32 %v972, %v914
      %v1005 = vadd.f32 %v973, %v916
      %v1006 = vadd.f32 %v974, %v919
      %v1007 = vadd.f32 %v975, %v921
      %v1008 = vadd.f32 %v976, %v924
      %v1009 = vadd.f32 %v977, %v926
      %v1010 = vadd.f32 %v978, %v929
      %v1011 = vadd.f32 %v979, %v931
      %v1012 = vadd.f32 %v980, %v934
      %v1013 = vadd.f32 %v981, %v936
      %v1014 = vadd.f32 %v982, %v939
      %v1015 = vadd.f32 %v983, %v941
      %v1016 = vadd.f32 %v984, %v944
      %v1017 = vadd.f32 %v985, %v946
      %v1018 = vadd.f32 %v986, %v949
      %v1019 = vadd.f32 %v987, %v951
      %v1020 = vadd.f32 %v988, %v954
      %v1021 = vadd.f32 %v989, %v956
      %1022 = vst [vmem:[#allocation3] sm:$0xff] %v990
      %1023 = vst [vmem:[#allocation3 + $0x8] sm:$0xff] %v991
      %1024 = vst [vmem:[#allocation3 + $0x10] sm:$0xff] %v992
      %1025 = vst [vmem:[#allocation3 + $0x18] sm:$0xff] %v993
      %1026 = vst [vmem:[#allocation3 + $0x20] sm:$0xff] %v994
      %1027 = vst [vmem:[#allocation3 + $0x28] sm:$0xff] %v995
      %1028 = vst [vmem:[#allocation3 + $0x30] sm:$0xff] %v996
      %1029 = vst [vmem:[#allocation3 + $0x38] sm:$0xff] %v997
      %1030 = vst [vmem:[#allocation3 + $0x40] sm:$0xff] %v998
      %1031 = vst [vmem:[#allocation3 + $0x48] sm:$0xff] %v999
      %1032 = vst [vmem:[#allocation3 + $0x50] sm:$0xff] %v1000
      %1033 = vst [vmem:[#allocation3 + $0x58] sm:$0xff] %v1001
      %1034 = vst [vmem:[#allocation3 + $0x60] sm:$0xff] %v1002
      %1035 = vst [vmem:[#allocation3 + $0x68] sm:$0xff] %v1003
      %1036 = vst [vmem:[#allocation3 + $0x70] sm:$0xff] %v1004
      %1037 = vst [vmem:[#allocation3 + $0x78] sm:$0xff] %v1005
      %1038 = vst [vmem:[#allocation3 + $0x80] sm:$0xff] %v1006
      %1039 = vst [vmem:[#allocation3 + $0x88] sm:$0xff] %v1007
      %1040 = vst [vmem:[#allocation3 + $0x90] sm:$0xff] %v1008
      %1041 = vst [vmem:[#allocation3 + $0x98] sm:$0xff] %v1009
      %1042 = vst [vmem:[#allocation3 + $0xa0] sm:$0xff] %v1010
      %1043 = vst [vmem:[#allocation3 + $0xa8] sm:$0xff] %v1011
      %1044 = vst [vmem:[#allocation3 + $0xb0] sm:$0xff] %v1012
      %1045 = vst [vmem:[#allocation3 + $0xb8] sm:$0xff] %v1013
      %1046 = vst [vmem:[#allocation3 + $0xc0] sm:$0xff] %v1014
      %1047 = vst [vmem:[#allocation3 + $0xc8] sm:$0xff] %v1015
      %1048 = vst [vmem:[#allocation3 + $0xd0] sm:$0xff] %v1016
      %1049 = vst [vmem:[#allocation3 + $0xd8] sm:$0xff] %v1017
      %1050 = vst [vmem:[#allocation3 + $0xe0] sm:$0xff] %v1018
      %1051 = vst [vmem:[#allocation3 + $0xe8] sm:$0xff] %v1019
      %1052 = vst [vmem:[#allocation3 + $0xf0] sm:$0xff] %v1020
      %1053 = vst [vmem:[#allocation3 + $0xf8] sm:$0xff] %v1021
      %s1054 = scalar_lea.vmem %s219, 24
      %v1055 = vld [vmem:[%s1054] sm:$0xff]
      %v1056 = vld [vmem:[%s1054 + $0x8] sm:$0xff]
      %v1057 = vld [vmem:[%s1054 + $0x18] sm:$0xff]
      %v1058 = vld [vmem:[%s1054 + $0x20] sm:$0xff]
      %v1059 = vld [vmem:[%s1054 + $0x30] sm:$0xff]
      %v1060 = vld [vmem:[%s1054 + $0x38] sm:$0xff]
      %v1061 = vld [vmem:[%s1054 + $0x48] sm:$0xff]
      %v1062 = vld [vmem:[%s1054 + $0x50] sm:$0xff]
      %v1063 = vld [vmem:[%s1054 + $0x60] sm:$0xff]
      %v1064 = vld [vmem:[%s1054 + $0x68] sm:$0xff]
      %v1065 = vld [vmem:[%s1054 + $0x78] sm:$0xff]
      %v1066 = vld [vmem:[%s1054 + $0x80] sm:$0xff]
      %v1067 = vld [vmem:[%s1054 + $0x90] sm:$0xff]
      %v1068 = vld [vmem:[%s1054 + $0x98] sm:$0xff]
      %v1069 = vld [vmem:[%s1054 + $0xa8] sm:$0xff]
      %v1070 = vld [vmem:[%s1054 + $0xb0] sm:$0xff]
      %v1071 = vld [vmem:[%s1054 + $0xc0] sm:$0xff]
      %v1072 = vld [vmem:[%s1054 + $0xc8] sm:$0xff]
      %v1073 = vld [vmem:[%s1054 + $0xd8] sm:$0xff]
      %v1074 = vld [vmem:[%s1054 + $0xe0] sm:$0xff]
      %v1075 = vld [vmem:[%s1054 + $0xf0] sm:$0xff]
      %v1076 = vld [vmem:[%s1054 + $0xf8] sm:$0xff]
      %v1077 = vld [vmem:[%s1054 + $0x108] sm:$0xff]
      %v1078 = vld [vmem:[%s1054 + $0x110] sm:$0xff]
      %v1079 = vld [vmem:[%s1054 + $0x120] sm:$0xff]
      %v1080 = vld [vmem:[%s1054 + $0x128] sm:$0xff]
      %v1081 = vld [vmem:[%s1054 + $0x138] sm:$0xff]
      %v1082 = vld [vmem:[%s1054 + $0x140] sm:$0xff]
      %v1083 = vld [vmem:[%s1054 + $0x150] sm:$0xff]
      %v1084 = vld [vmem:[%s1054 + $0x158] sm:$0xff]
      %v1085 = vld [vmem:[%s1054 + $0x168] sm:$0xff]
      %v1086 = vld [vmem:[%s1054 + $0x170] sm:$0xff]
      %v1087 = vpack.c.bf16 %v1056, %v1055
      %v1088 = vpack.c.bf16 %v1058, %v1057
      %v1089 = vpack.c.bf16 %v1060, %v1059
      %v1090 = vpack.c.bf16 %v1062, %v1061
      %v1091 = vpack.c.bf16 %v1064, %v1063
      %v1092 = vpack.c.bf16 %v1066, %v1065
      %v1093 = vpack.c.bf16 %v1068, %v1067
      %v1094 = vpack.c.bf16 %v1070, %v1069
      %v1095 = vpack.c.bf16 %v1072, %v1071
      %v1096 = vpack.c.bf16 %v1074, %v1073
      %v1097 = vpack.c.bf16 %v1076, %v1075
      %v1098 = vpack.c.bf16 %v1078, %v1077
      %v1099 = vpack.c.bf16 %v1080, %v1079
      %v1100 = vpack.c.bf16 %v1082, %v1081
      %v1101 = vpack.c.bf16 %v1084, %v1083
      %v1102 = vpack.c.bf16 %v1086, %v1085
      %s1103 = scalar_lea.vmem %s1, 192
      %v1104 = vld [vmem:[%s1103] sm:$0xf]
      %v1105 = vld [vmem:[%s1103 + $0x4] sm:$0xf]
      %v1106 = vld [vmem:[%s1103 + $0x8] sm:$0xf]
      %v1107 = vld [vmem:[%s1103 + $0xc] sm:$0xf]
      %v1108 = vld [vmem:[%s1103 + $0x10] sm:$0xf]
      %v1109 = vld [vmem:[%s1103 + $0x14] sm:$0xf]
      %v1110 = vld [vmem:[%s1103 + $0x18] sm:$0xf]
      %v1111 = vld [vmem:[%s1103 + $0x1c] sm:$0xf]
      %v1112 = vld [vmem:[%s1103 + $0x20] sm:$0xf]
      %v1113 = vld [vmem:[%s1103 + $0x24] sm:$0xf]
      %v1114 = vld [vmem:[%s1103 + $0x28] sm:$0xf]
      %v1115 = vld [vmem:[%s1103 + $0x2c] sm:$0xf]
      %v1116 = vld [vmem:[%s1103 + $0x30] sm:$0xf]
      %v1117 = vld [vmem:[%s1103 + $0x34] sm:$0xf]
      %v1118 = vld [vmem:[%s1103 + $0x38] sm:$0xf]
      %v1119 = vld [vmem:[%s1103 + $0x3c] sm:$0xf]
      %v1136 = vunpack.c.l.b16 %v1104
      %v1137 = vunpack.c.l.b16 %v1105
      %v1138 = vunpack.c.l.b16 %v1106
      %v1139 = vunpack.c.l.b16 %v1107
      %v1140 = vunpack.c.l.b16 %v1108
      %v1141 = vunpack.c.l.b16 %v1109
      %v1142 = vunpack.c.l.b16 %v1110
      %v1143 = vunpack.c.l.b16 %v1111
      %v1144 = vunpack.c.l.b16 %v1112
      %v1145 = vunpack.c.l.b16 %v1113
      %v1146 = vunpack.c.l.b16 %v1114
      %v1147 = vunpack.c.l.b16 %v1115
      %v1148 = vunpack.c.l.b16 %v1116
      %v1149 = vunpack.c.l.b16 %v1117
      %v1150 = vunpack.c.l.b16 %v1118
      %v1151 = vunpack.c.l.b16 %v1119
      %v1152 = vpack.c.b16 %v1137, %v1136
      %v1153 = vpack.c.b16 %v1139, %v1138
      %v1154 = vpack.c.b16 %v1141, %v1140
      %v1155 = vpack.c.b16 %v1143, %v1142
      %v1156 = vpack.c.b16 %v1145, %v1144
      %v1157 = vpack.c.b16 %v1147, %v1146
      %v1158 = vpack.c.b16 %v1149, %v1148
      %v1159 = vpack.c.b16 %v1151, %v1150
      %1168 = vmatpush.bf16.msra.mxu0 %v1159
      %1169 = vmatpush.bf16.msra.mxu0 %v1158
      %1170 = vmatpush.bf16.msra.mxu0 %v1157
      %1171 = vmatpush.bf16.msra.mxu0 %v1156
      %1172 = vmatpush.bf16.msra.mxu0 %v1155
      %1173 = vmatpush.bf16.msra.mxu0 %v1154
      %1174 = vmatpush.bf16.msra.mxu0 %v1153
      %1175 = vmatpush.bf16.msra.mxu0 %v1152
      %1176 = vmatmul.bf16.gmra.mxu0 %v1087
      %v1177 = vpop.f32.mrf.mxu0
      %v1178 = vadd.f32 0.0, %v1177
      %v1179 = vpop.f32.mrf.mxu0
      %v1180 = vadd.f32 0.0, %v1179
      %1181 = vmatmul.bf16.gmra.mxu0 %v1088
      %v1182 = vpop.f32.mrf.mxu0
      %v1183 = vadd.f32 0.0, %v1182
      %v1184 = vpop.f32.mrf.mxu0
      %v1185 = vadd.f32 0.0, %v1184
      %1186 = vmatmul.bf16.gmra.mxu0 %v1089
      %v1187 = vpop.f32.mrf.mxu0
      %v1188 = vadd.f32 0.0, %v1187
      %v1189 = vpop.f32.mrf.mxu0
      %v1190 = vadd.f32 0.0, %v1189
      %1191 = vmatmul.bf16.gmra.mxu0 %v1090
      %v1192 = vpop.f32.mrf.mxu0
      %v1193 = vadd.f32 0.0, %v1192
      %v1194 = vpop.f32.mrf.mxu0
      %v1195 = vadd.f32 0.0, %v1194
      %1196 = vmatmul.bf16.gmra.mxu0 %v1091
      %v1197 = vpop.f32.mrf.mxu0
      %v1198 = vadd.f32 0.0, %v1197
      %v1199 = vpop.f32.mrf.mxu0
      %v1200 = vadd.f32 0.0, %v1199
      %1201 = vmatmul.bf16.gmra.mxu0 %v1092
      %v1202 = vpop.f32.mrf.mxu0
      %v1203 = vadd.f32 0.0, %v1202
      %v1204 = vpop.f32.mrf.mxu0
      %v1205 = vadd.f32 0.0, %v1204
      %1206 = vmatmul.bf16.gmra.mxu0 %v1093
      %v1207 = vpop.f32.mrf.mxu0
      %v1208 = vadd.f32 0.0, %v1207
      %v1209 = vpop.f32.mrf.mxu0
      %v1210 = vadd.f32 0.0, %v1209
      %1211 = vmatmul.bf16.gmra.mxu0 %v1094
      %v1212 = vpop.f32.mrf.mxu0
      %v1213 = vadd.f32 0.0, %v1212
      %v1214 = vpop.f32.mrf.mxu0
      %v1215 = vadd.f32 0.0, %v1214
      %1216 = vmatmul.bf16.gmra.mxu0 %v1095
      %v1217 = vpop.f32.mrf.mxu0
      %v1218 = vadd.f32 0.0, %v1217
      %v1219 = vpop.f32.mrf.mxu0
      %v1220 = vadd.f32 0.0, %v1219
      %1221 = vmatmul.bf16.gmra.mxu0 %v1096
      %v1222 = vpop.f32.mrf.mxu0
      %v1223 = vadd.f32 0.0, %v1222
      %v1224 = vpop.f32.mrf.mxu0
      %v1225 = vadd.f32 0.0, %v1224
      %1226 = vmatmul.bf16.gmra.mxu0 %v1097
      %v1227 = vpop.f32.mrf.mxu0
      %v1228 = vadd.f32 0.0, %v1227
      %v1229 = vpop.f32.mrf.mxu0
      %v1230 = vadd.f32 0.0, %v1229
      %1231 = vmatmul.bf16.gmra.mxu0 %v1098
      %v1232 = vpop.f32.mrf.mxu0
      %v1233 = vadd.f32 0.0, %v1232
      %v1234 = vpop.f32.mrf.mxu0
      %v1235 = vadd.f32 0.0, %v1234
      %1236 = vmatmul.bf16.gmra.mxu0 %v1099
      %v1237 = vpop.f32.mrf.mxu0
      %v1238 = vadd.f32 0.0, %v1237
      %v1239 = vpop.f32.mrf.mxu0
      %v1240 = vadd.f32 0.0, %v1239
      %1241 = vmatmul.bf16.gmra.mxu0 %v1100
      %v1242 = vpop.f32.mrf.mxu0
      %v1243 = vadd.f32 0.0, %v1242
      %v1244 = vpop.f32.mrf.mxu0
      %v1245 = vadd.f32 0.0, %v1244
      %1246 = vmatmul.bf16.gmra.mxu0 %v1101
      %v1247 = vpop.f32.mrf.mxu0
      %v1248 = vadd.f32 0.0, %v1247
      %v1249 = vpop.f32.mrf.mxu0
      %v1250 = vadd.f32 0.0, %v1249
      %1251 = vmatmul.bf16.gmra.mxu0 %v1102
      %v1252 = vpop.f32.mrf.mxu0
      %v1253 = vadd.f32 0.0, %v1252
      %v1254 = vpop.f32.mrf.mxu0
      %v1255 = vadd.f32 0.0, %v1254
      %1256 = vdwg.mxu0
      %v1257 = vld [vmem:[#allocation3] sm:$0xff]
      %v1258 = vld [vmem:[#allocation3 + $0x8] sm:$0xff]
      %v1259 = vld [vmem:[#allocation3 + $0x10] sm:$0xff]
      %v1260 = vld [vmem:[#allocation3 + $0x18] sm:$0xff]
      %v1261 = vld [vmem:[#allocation3 + $0x20] sm:$0xff]
      %v1262 = vld [vmem:[#allocation3 + $0x28] sm:$0xff]
      %v1263 = vld [vmem:[#allocation3 + $0x30] sm:$0xff]
      %v1264 = vld [vmem:[#allocation3 + $0x38] sm:$0xff]
      %v1265 = vld [vmem:[#allocation3 + $0x40] sm:$0xff]
      %v1266 = vld [vmem:[#allocation3 + $0x48] sm:$0xff]
      %v1267 = vld [vmem:[#allocation3 + $0x50] sm:$0xff]
      %v1268 = vld [vmem:[#allocation3 + $0x58] sm:$0xff]
      %v1269 = vld [vmem:[#allocation3 + $0x60] sm:$0xff]
      %v1270 = vld [vmem:[#allocation3 + $0x68] sm:$0xff]
      %v1271 = vld [vmem:[#allocation3 + $0x70] sm:$0xff]
      %v1272 = vld [vmem:[#allocation3 + $0x78] sm:$0xff]
      %v1273 = vld [vmem:[#allocation3 + $0x80] sm:$0xff]
      %v1274 = vld [vmem:[#allocation3 + $0x88] sm:$0xff]
      %v1275 = vld [vmem:[#allocation3 + $0x90] sm:$0xff]
      %v1276 = vld [vmem:[#allocation3 + $0x98] sm:$0xff]
      %v1277 = vld [vmem:[#allocation3 + $0xa0] sm:$0xff]
      %v1278 = vld [vmem:[#allocation3 + $0xa8] sm:$0xff]
      %v1279 = vld [vmem:[#allocation3 + $0xb0] sm:$0xff]
      %v1280 = vld [vmem:[#allocation3 + $0xb8] sm:$0xff]
      %v1281 = vld [vmem:[#allocation3 + $0xc0] sm:$0xff]
      %v1282 = vld [vmem:[#allocation3 + $0xc8] sm:$0xff]
      %v1283 = vld [vmem:[#allocation3 + $0xd0] sm:$0xff]
      %v1284 = vld [vmem:[#allocation3 + $0xd8] sm:$0xff]
      %v1285 = vld [vmem:[#allocation3 + $0xe0] sm:$0xff]
      %v1286 = vld [vmem:[#allocation3 + $0xe8] sm:$0xff]
      %v1287 = vld [vmem:[#allocation3 + $0xf0] sm:$0xff]
      %v1288 = vld [vmem:[#allocation3 + $0xf8] sm:$0xff]
      %v1289 = vadd.f32 %v1257, %v1178
      %v1290 = vadd.f32 %v1258, %v1180
      %v1291 = vadd.f32 %v1259, %v1183
      %v1292 = vadd.f32 %v1260, %v1185
      %v1293 = vadd.f32 %v1261, %v1188
      %v1294 = vadd.f32 %v1262, %v1190
      %v1295 = vadd.f32 %v1263, %v1193
      %v1296 = vadd.f32 %v1264, %v1195
      %v1297 = vadd.f32 %v1265, %v1198
      %v1298 = vadd.f32 %v1266, %v1200
      %v1299 = vadd.f32 %v1267, %v1203
      %v1300 = vadd.f32 %v1268, %v1205
      %v1301 = vadd.f32 %v1269, %v1208
      %v1302 = vadd.f32 %v1270, %v1210
      %v1303 = vadd.f32 %v1271, %v1213
      %v1304 = vadd.f32 %v1272, %v1215
      %v1305 = vadd.f32 %v1273, %v1218
      %v1306 = vadd.f32 %v1274, %v1220
      %v1307 = vadd.f32 %v1275, %v1223
      %v1308 = vadd.f32 %v1276, %v1225
      %v1309 = vadd.f32 %v1277, %v1228
      %v1310 = vadd.f32 %v1278, %v1230
      %v1311 = vadd.f32 %v1279, %v1233
      %v1312 = vadd.f32 %v1280, %v1235
      %v1313 = vadd.f32 %v1281, %v1238
      %v1314 = vadd.f32 %v1282, %v1240
      %v1315 = vadd.f32 %v1283, %v1243
      %v1316 = vadd.f32 %v1284, %v1245
      %v1317 = vadd.f32 %v1285, %v1248
      %v1318 = vadd.f32 %v1286, %v1250
      %v1319 = vadd.f32 %v1287, %v1253
      %v1320 = vadd.f32 %v1288, %v1255
      %1321 = vst [vmem:[#allocation3] sm:$0xff] %v1289
      %1322 = vst [vmem:[#allocation3 + $0x8] sm:$0xff] %v1290
      %1323 = vst [vmem:[#allocation3 + $0x10] sm:$0xff] %v1291
      %1324 = vst [vmem:[#allocation3 + $0x18] sm:$0xff] %v1292
      %1325 = vst [vmem:[#allocation3 + $0x20] sm:$0xff] %v1293
      %1326 = vst [vmem:[#allocation3 + $0x28] sm:$0xff] %v1294
      %1327 = vst [vmem:[#allocation3 + $0x30] sm:$0xff] %v1295
      %1328 = vst [vmem:[#allocation3 + $0x38] sm:$0xff] %v1296
      %1329 = vst [vmem:[#allocation3 + $0x40] sm:$0xff] %v1297
      %1330 = vst [vmem:[#allocation3 + $0x48] sm:$0xff] %v1298
      %1331 = vst [vmem:[#allocation3 + $0x50] sm:$0xff] %v1299
      %1332 = vst [vmem:[#allocation3 + $0x58] sm:$0xff] %v1300
      %1333 = vst [vmem:[#allocation3 + $0x60] sm:$0xff] %v1301
      %1334 = vst [vmem:[#allocation3 + $0x68] sm:$0xff] %v1302
      %1335 = vst [vmem:[#allocation3 + $0x70] sm:$0xff] %v1303
      %1336 = vst [vmem:[#allocation3 + $0x78] sm:$0xff] %v1304
      %1337 = vst [vmem:[#allocation3 + $0x80] sm:$0xff] %v1305
      %1338 = vst [vmem:[#allocation3 + $0x88] sm:$0xff] %v1306
      %1339 = vst [vmem:[#allocation3 + $0x90] sm:$0xff] %v1307
      %1340 = vst [vmem:[#allocation3 + $0x98] sm:$0xff] %v1308
      %1341 = vst [vmem:[#allocation3 + $0xa0] sm:$0xff] %v1309
      %1342 = vst [vmem:[#allocation3 + $0xa8] sm:$0xff] %v1310
      %1343 = vst [vmem:[#allocation3 + $0xb0] sm:$0xff] %v1311
      %1344 = vst [vmem:[#allocation3 + $0xb8] sm:$0xff] %v1312
      %1345 = vst [vmem:[#allocation3 + $0xc0] sm:$0xff] %v1313
      %1346 = vst [vmem:[#allocation3 + $0xc8] sm:$0xff] %v1314
      %1347 = vst [vmem:[#allocation3 + $0xd0] sm:$0xff] %v1315
      %1348 = vst [vmem:[#allocation3 + $0xd8] sm:$0xff] %v1316
      %1349 = vst [vmem:[#allocation3 + $0xe0] sm:$0xff] %v1317
      %1350 = vst [vmem:[#allocation3 + $0xe8] sm:$0xff] %v1318
      %1351 = vst [vmem:[#allocation3 + $0xf0] sm:$0xff] %v1319
      %1352 = vst [vmem:[#allocation3 + $0xf8] sm:$0xff] %v1320
      %v1353 = vld [vmem:[%s1054 + $0x1] sm:$0xff]
      %v1354 = vld [vmem:[%s1054 + $0x9] sm:$0xff]
      %v1355 = vld [vmem:[%s1054 + $0x19] sm:$0xff]
      %v1356 = vld [vmem:[%s1054 + $0x21] sm:$0xff]
      %v1357 = vld [vmem:[%s1054 + $0x31] sm:$0xff]
      %v1358 = vld [vmem:[%s1054 + $0x39] sm:$0xff]
      %v1359 = vld [vmem:[%s1054 + $0x49] sm:$0xff]
      %v1360 = vld [vmem:[%s1054 + $0x51] sm:$0xff]
      %v1361 = vld [vmem:[%s1054 + $0x61] sm:$0xff]
      %v1362 = vld [vmem:[%s1054 + $0x69] sm:$0xff]
      %v1363 = vld [vmem:[%s1054 + $0x79] sm:$0xff]
      %v1364 = vld [vmem:[%s1054 + $0x81] sm:$0xff]
      %v1365 = vld [vmem:[%s1054 + $0x91] sm:$0xff]
      %v1366 = vld [vmem:[%s1054 + $0x99] sm:$0xff]
      %v1367 = vld [vmem:[%s1054 + $0xa9] sm:$0xff]
      %v1368 = vld [vmem:[%s1054 + $0xb1] sm:$0xff]
      %v1369 = vld [vmem:[%s1054 + $0xc1] sm:$0xff]
      %v1370 = vld [vmem:[%s1054 + $0xc9] sm:$0xff]
      %v1371 = vld [vmem:[%s1054 + $0xd9] sm:$0xff]
      %v1372 = vld [vmem:[%s1054 + $0xe1] sm:$0xff]
      %v1373 = vld [vmem:[%s1054 + $0xf1] sm:$0xff]
      %v1374 = vld [vmem:[%s1054 + $0xf9] sm:$0xff]
      %v1375 = vld [vmem:[%s1054 + $0x109] sm:$0xff]
      %v1376 = vld [vmem:[%s1054 + $0x111] sm:$0xff]
      %v1377 = vld [vmem:[%s1054 + $0x121] sm:$0xff]
      %v1378 = vld [vmem:[%s1054 + $0x129] sm:$0xff]
      %v1379 = vld [vmem:[%s1054 + $0x139] sm:$0xff]
      %v1380 = vld [vmem:[%s1054 + $0x141] sm:$0xff]
      %v1381 = vld [vmem:[%s1054 + $0x151] sm:$0xff]
      %v1382 = vld [vmem:[%s1054 + $0x159] sm:$0xff]
      %v1383 = vld [vmem:[%s1054 + $0x169] sm:$0xff]
      %v1384 = vld [vmem:[%s1054 + $0x171] sm:$0xff]
      %v1385 = vpack.c.bf16 %v1354, %v1353
      %v1386 = vpack.c.bf16 %v1356, %v1355
      %v1387 = vpack.c.bf16 %v1358, %v1357
      %v1388 = vpack.c.bf16 %v1360, %v1359
      %v1389 = vpack.c.bf16 %v1362, %v1361
      %v1390 = vpack.c.bf16 %v1364, %v1363
      %v1391 = vpack.c.bf16 %v1366, %v1365
      %v1392 = vpack.c.bf16 %v1368, %v1367
      %v1393 = vpack.c.bf16 %v1370, %v1369
      %v1394 = vpack.c.bf16 %v1372, %v1371
      %v1395 = vpack.c.bf16 %v1374, %v1373
      %v1396 = vpack.c.bf16 %v1376, %v1375
      %v1397 = vpack.c.bf16 %v1378, %v1377
      %v1398 = vpack.c.bf16 %v1380, %v1379
      %v1399 = vpack.c.bf16 %v1382, %v1381
      %v1400 = vpack.c.bf16 %v1384, %v1383
      %s1401 = scalar_lea.vmem %s1, 256
      %v1402 = vld [vmem:[%s1401] sm:$0xf]
      %v1403 = vld [vmem:[%s1401 + $0x4] sm:$0xf]
      %v1404 = vld [vmem:[%s1401 + $0x8] sm:$0xf]
      %v1405 = vld [vmem:[%s1401 + $0xc] sm:$0xf]
      %v1406 = vld [vmem:[%s1401 + $0x10] sm:$0xf]
      %v1407 = vld [vmem:[%s1401 + $0x14] sm:$0xf]
      %v1408 = vld [vmem:[%s1401 + $0x18] sm:$0xf]
      %v1409 = vld [vmem:[%s1401 + $0x1c] sm:$0xf]
      %v1410 = vld [vmem:[%s1401 + $0x20] sm:$0xf]
      %v1411 = vld [vmem:[%s1401 + $0x24] sm:$0xf]
      %v1412 = vld [vmem:[%s1401 + $0x28] sm:$0xf]
      %v1413 = vld [vmem:[%s1401 + $0x2c] sm:$0xf]
      %v1414 = vld [vmem:[%s1401 + $0x30] sm:$0xf]
      %v1415 = vld [vmem:[%s1401 + $0x34] sm:$0xf]
      %v1416 = vld [vmem:[%s1401 + $0x38] sm:$0xf]
      %v1417 = vld [vmem:[%s1401 + $0x3c] sm:$0xf]
      %v1434 = vunpack.c.l.b16 %v1402
      %v1435 = vunpack.c.l.b16 %v1403
      %v1436 = vunpack.c.l.b16 %v1404
      %v1437 = vunpack.c.l.b16 %v1405
      %v1438 = vunpack.c.l.b16 %v1406
      %v1439 = vunpack.c.l.b16 %v1407
      %v1440 = vunpack.c.l.b16 %v1408
      %v1441 = vunpack.c.l.b16 %v1409
      %v1442 = vunpack.c.l.b16 %v1410
      %v1443 = vunpack.c.l.b16 %v1411
      %v1444 = vunpack.c.l.b16 %v1412
      %v1445 = vunpack.c.l.b16 %v1413
      %v1446 = vunpack.c.l.b16 %v1414
      %v1447 = vunpack.c.l.b16 %v1415
      %v1448 = vunpack.c.l.b16 %v1416
      %v1449 = vunpack.c.l.b16 %v1417
      %v1450 = vpack.c.b16 %v1435, %v1434
      %v1451 = vpack.c.b16 %v1437, %v1436
      %v1452 = vpack.c.b16 %v1439, %v1438
      %v1453 = vpack.c.b16 %v1441, %v1440
      %v1454 = vpack.c.b16 %v1443, %v1442
      %v1455 = vpack.c.b16 %v1445, %v1444
      %v1456 = vpack.c.b16 %v1447, %v1446
      %v1457 = vpack.c.b16 %v1449, %v1448
      %1466 = vmatpush.bf16.msra.mxu0 %v1457
      %1467 = vmatpush.bf16.msra.mxu0 %v1456
      %1468 = vmatpush.bf16.msra.mxu0 %v1455
      %1469 = vmatpush.bf16.msra.mxu0 %v1454
      %1470 = vmatpush.bf16.msra.mxu0 %v1453
      %1471 = vmatpush.bf16.msra.mxu0 %v1452
      %1472 = vmatpush.bf16.msra.mxu0 %v1451
      %1473 = vmatpush.bf16.msra.mxu0 %v1450
      %1474 = vmatmul.bf16.gmra.mxu0 %v1385
      %v1475 = vpop.f32.mrf.mxu0
      %v1476 = vadd.f32 0.0, %v1475
      %v1477 = vpop.f32.mrf.mxu0
      %v1478 = vadd.f32 0.0, %v1477
      %1479 = vmatmul.bf16.gmra.mxu0 %v1386
      %v1480 = vpop.f32.mrf.mxu0
      %v1481 = vadd.f32 0.0, %v1480
      %v1482 = vpop.f32.mrf.mxu0
      %v1483 = vadd.f32 0.0, %v1482
      %1484 = vmatmul.bf16.gmra.mxu0 %v1387
      %v1485 = vpop.f32.mrf.mxu0
      %v1486 = vadd.f32 0.0, %v1485
      %v1487 = vpop.f32.mrf.mxu0
      %v1488 = vadd.f32 0.0, %v1487
      %1489 = vmatmul.bf16.gmra.mxu0 %v1388
      %v1490 = vpop.f32.mrf.mxu0
      %v1491 = vadd.f32 0.0, %v1490
      %v1492 = vpop.f32.mrf.mxu0
      %v1493 = vadd.f32 0.0, %v1492
      %1494 = vmatmul.bf16.gmra.mxu0 %v1389
      %v1495 = vpop.f32.mrf.mxu0
      %v1496 = vadd.f32 0.0, %v1495
      %v1497 = vpop.f32.mrf.mxu0
      %v1498 = vadd.f32 0.0, %v1497
      %1499 = vmatmul.bf16.gmra.mxu0 %v1390
      %v1500 = vpop.f32.mrf.mxu0
      %v1501 = vadd.f32 0.0, %v1500
      %v1502 = vpop.f32.mrf.mxu0
      %v1503 = vadd.f32 0.0, %v1502
      %1504 = vmatmul.bf16.gmra.mxu0 %v1391
      %v1505 = vpop.f32.mrf.mxu0
      %v1506 = vadd.f32 0.0, %v1505
      %v1507 = vpop.f32.mrf.mxu0
      %v1508 = vadd.f32 0.0, %v1507
      %1509 = vmatmul.bf16.gmra.mxu0 %v1392
      %v1510 = vpop.f32.mrf.mxu0
      %v1511 = vadd.f32 0.0, %v1510
      %v1512 = vpop.f32.mrf.mxu0
      %v1513 = vadd.f32 0.0, %v1512
      %1514 = vmatmul.bf16.gmra.mxu0 %v1393
      %v1515 = vpop.f32.mrf.mxu0
      %v1516 = vadd.f32 0.0, %v1515
      %v1517 = vpop.f32.mrf.mxu0
      %v1518 = vadd.f32 0.0, %v1517
      %1519 = vmatmul.bf16.gmra.mxu0 %v1394
      %v1520 = vpop.f32.mrf.mxu0
      %v1521 = vadd.f32 0.0, %v1520
      %v1522 = vpop.f32.mrf.mxu0
      %v1523 = vadd.f32 0.0, %v1522
      %1524 = vmatmul.bf16.gmra.mxu0 %v1395
      %v1525 = vpop.f32.mrf.mxu0
      %v1526 = vadd.f32 0.0, %v1525
      %v1527 = vpop.f32.mrf.mxu0
      %v1528 = vadd.f32 0.0, %v1527
      %1529 = vmatmul.bf16.gmra.mxu0 %v1396
      %v1530 = vpop.f32.mrf.mxu0
      %v1531 = vadd.f32 0.0, %v1530
      %v1532 = vpop.f32.mrf.mxu0
      %v1533 = vadd.f32 0.0, %v1532
      %1534 = vmatmul.bf16.gmra.mxu0 %v1397
      %v1535 = vpop.f32.mrf.mxu0
      %v1536 = vadd.f32 0.0, %v1535
      %v1537 = vpop.f32.mrf.mxu0
      %v1538 = vadd.f32 0.0, %v1537
      %1539 = vmatmul.bf16.gmra.mxu0 %v1398
      %v1540 = vpop.f32.mrf.mxu0
      %v1541 = vadd.f32 0.0, %v1540
      %v1542 = vpop.f32.mrf.mxu0
      %v1543 = vadd.f32 0.0, %v1542
      %1544 = vmatmul.bf16.gmra.mxu0 %v1399
      %v1545 = vpop.f32.mrf.mxu0
      %v1546 = vadd.f32 0.0, %v1545
      %v1547 = vpop.f32.mrf.mxu0
      %v1548 = vadd.f32 0.0, %v1547
      %1549 = vmatmul.bf16.gmra.mxu0 %v1400
      %v1550 = vpop.f32.mrf.mxu0
      %v1551 = vadd.f32 0.0, %v1550
      %v1552 = vpop.f32.mrf.mxu0
      %v1553 = vadd.f32 0.0, %v1552
      %1554 = vdwg.mxu0
      %v1555 = vld [vmem:[#allocation3] sm:$0xff]
      %v1556 = vld [vmem:[#allocation3 + $0x8] sm:$0xff]
      %v1557 = vld [vmem:[#allocation3 + $0x10] sm:$0xff]
      %v1558 = vld [vmem:[#allocation3 + $0x18] sm:$0xff]
      %v1559 = vld [vmem:[#allocation3 + $0x20] sm:$0xff]
      %v1560 = vld [vmem:[#allocation3 + $0x28] sm:$0xff]
      %v1561 = vld [vmem:[#allocation3 + $0x30] sm:$0xff]
      %v1562 = vld [vmem:[#allocation3 + $0x38] sm:$0xff]
      %v1563 = vld [vmem:[#allocation3 + $0x40] sm:$0xff]
      %v1564 = vld [vmem:[#allocation3 + $0x48] sm:$0xff]
      %v1565 = vld [vmem:[#allocation3 + $0x50] sm:$0xff]
      %v1566 = vld [vmem:[#allocation3 + $0x58] sm:$0xff]
      %v1567 = vld [vmem:[#allocation3 + $0x60] sm:$0xff]
      %v1568 = vld [vmem:[#allocation3 + $0x68] sm:$0xff]
      %v1569 = vld [vmem:[#allocation3 + $0x70] sm:$0xff]
      %v1570 = vld [vmem:[#allocation3 + $0x78] sm:$0xff]
      %v1571 = vld [vmem:[#allocation3 + $0x80] sm:$0xff]
      %v1572 = vld [vmem:[#allocation3 + $0x88] sm:$0xff]
      %v1573 = vld [vmem:[#allocation3 + $0x90] sm:$0xff]
      %v1574 = vld [vmem:[#allocation3 + $0x98] sm:$0xff]
      %v1575 = vld [vmem:[#allocation3 + $0xa0] sm:$0xff]
      %v1576 = vld [vmem:[#allocation3 + $0xa8] sm:$0xff]
      %v1577 = vld [vmem:[#allocation3 + $0xb0] sm:$0xff]
      %v1578 = vld [vmem:[#allocation3 + $0xb8] sm:$0xff]
      %v1579 = vld [vmem:[#allocation3 + $0xc0] sm:$0xff]
      %v1580 = vld [vmem:[#allocation3 + $0xc8] sm:$0xff]
      %v1581 = vld [vmem:[#allocation3 + $0xd0] sm:$0xff]
      %v1582 = vld [vmem:[#allocation3 + $0xd8] sm:$0xff]
      %v1583 = vld [vmem:[#allocation3 + $0xe0] sm:$0xff]
      %v1584 = vld [vmem:[#allocation3 + $0xe8] sm:$0xff]
      %v1585 = vld [vmem:[#allocation3 + $0xf0] sm:$0xff]
      %v1586 = vld [vmem:[#allocation3 + $0xf8] sm:$0xff]
      %v1587 = vadd.f32 %v1555, %v1476
      %v1588 = vadd.f32 %v1556, %v1478
      %v1589 = vadd.f32 %v1557, %v1481
      %v1590 = vadd.f32 %v1558, %v1483
      %v1591 = vadd.f32 %v1559, %v1486
      %v1592 = vadd.f32 %v1560, %v1488
      %v1593 = vadd.f32 %v1561, %v1491
      %v1594 = vadd.f32 %v1562, %v1493
      %v1595 = vadd.f32 %v1563, %v1496
      %v1596 = vadd.f32 %v1564, %v1498
      %v1597 = vadd.f32 %v1565, %v1501
      %v1598 = vadd.f32 %v1566, %v1503
      %v1599 = vadd.f32 %v1567, %v1506
      %v1600 = vadd.f32 %v1568, %v1508
      %v1601 = vadd.f32 %v1569, %v1511
      %v1602 = vadd.f32 %v1570, %v1513
      %v1603 = vadd.f32 %v1571, %v1516
      %v1604 = vadd.f32 %v1572, %v1518
      %v1605 = vadd.f32 %v1573, %v1521
      %v1606 = vadd.f32 %v1574, %v1523
      %v1607 = vadd.f32 %v1575, %v1526
      %v1608 = vadd.f32 %v1576, %v1528
      %v1609 = vadd.f32 %v1577, %v1531
      %v1610 = vadd.f32 %v1578, %v1533
      %v1611 = vadd.f32 %v1579, %v1536
      %v1612 = vadd.f32 %v1580, %v1538
      %v1613 = vadd.f32 %v1581, %v1541
      %v1614 = vadd.f32 %v1582, %v1543
      %v1615 = vadd.f32 %v1583, %v1546
      %v1616 = vadd.f32 %v1584, %v1548
      %v1617 = vadd.f32 %v1585, %v1551
      %v1618 = vadd.f32 %v1586, %v1553
      %1619 = vst [vmem:[#allocation3] sm:$0xff] %v1587
      %1620 = vst [vmem:[#allocation3 + $0x8] sm:$0xff] %v1588
      %1621 = vst [vmem:[#allocation3 + $0x10] sm:$0xff] %v1589
      %1622 = vst [vmem:[#allocation3 + $0x18] sm:$0xff] %v1590
      %1623 = vst [vmem:[#allocation3 + $0x20] sm:$0xff] %v1591
      %1624 = vst [vmem:[#allocation3 + $0x28] sm:$0xff] %v1592
      %1625 = vst [vmem:[#allocation3 + $0x30] sm:$0xff] %v1593
      %1626 = vst [vmem:[#allocation3 + $0x38] sm:$0xff] %v1594
      %1627 = vst [vmem:[#allocation3 + $0x40] sm:$0xff] %v1595
      %1628 = vst [vmem:[#allocation3 + $0x48] sm:$0xff] %v1596
      %1629 = vst [vmem:[#allocation3 + $0x50] sm:$0xff] %v1597
      %1630 = vst [vmem:[#allocation3 + $0x58] sm:$0xff] %v1598
      %1631 = vst [vmem:[#allocation3 + $0x60] sm:$0xff] %v1599
      %1632 = vst [vmem:[#allocation3 + $0x68] sm:$0xff] %v1600
      %1633 = vst [vmem:[#allocation3 + $0x70] sm:$0xff] %v1601
      %1634 = vst [vmem:[#allocation3 + $0x78] sm:$0xff] %v1602
      %1635 = vst [vmem:[#allocation3 + $0x80] sm:$0xff] %v1603
      %1636 = vst [vmem:[#allocation3 + $0x88] sm:$0xff] %v1604
      %1637 = vst [vmem:[#allocation3 + $0x90] sm:$0xff] %v1605
      %1638 = vst [vmem:[#allocation3 + $0x98] sm:$0xff] %v1606
      %1639 = vst [vmem:[#allocation3 + $0xa0] sm:$0xff] %v1607
      %1640 = vst [vmem:[#allocation3 + $0xa8] sm:$0xff] %v1608
      %1641 = vst [vmem:[#allocation3 + $0xb0] sm:$0xff] %v1609
      %1642 = vst [vmem:[#allocation3 + $0xb8] sm:$0xff] %v1610
      %1643 = vst [vmem:[#allocation3 + $0xc0] sm:$0xff] %v1611
      %1644 = vst [vmem:[#allocation3 + $0xc8] sm:$0xff] %v1612
      %1645 = vst [vmem:[#allocation3 + $0xd0] sm:$0xff] %v1613
      %1646 = vst [vmem:[#allocation3 + $0xd8] sm:$0xff] %v1614
      %1647 = vst [vmem:[#allocation3 + $0xe0] sm:$0xff] %v1615
      %1648 = vst [vmem:[#allocation3 + $0xe8] sm:$0xff] %v1616
      %1649 = vst [vmem:[#allocation3 + $0xf0] sm:$0xff] %v1617
      %1650 = vst [vmem:[#allocation3 + $0xf8] sm:$0xff] %v1618
      %v1651 = vld [vmem:[%s1054 + $0x2] sm:$0xff]
      %v1652 = vld [vmem:[%s1054 + $0xa] sm:$0xff]
      %v1653 = vld [vmem:[%s1054 + $0x1a] sm:$0xff]
      %v1654 = vld [vmem:[%s1054 + $0x22] sm:$0xff]
      %v1655 = vld [vmem:[%s1054 + $0x32] sm:$0xff]
      %v1656 = vld [vmem:[%s1054 + $0x3a] sm:$0xff]
      %v1657 = vld [vmem:[%s1054 + $0x4a] sm:$0xff]
      %v1658 = vld [vmem:[%s1054 + $0x52] sm:$0xff]
      %v1659 = vld [vmem:[%s1054 + $0x62] sm:$0xff]
      %v1660 = vld [vmem:[%s1054 + $0x6a] sm:$0xff]
      %v1661 = vld [vmem:[%s1054 + $0x7a] sm:$0xff]
      %v1662 = vld [vmem:[%s1054 + $0x82] sm:$0xff]
      %v1663 = vld [vmem:[%s1054 + $0x92] sm:$0xff]
      %v1664 = vld [vmem:[%s1054 + $0x9a] sm:$0xff]
      %v1665 = vld [vmem:[%s1054 + $0xaa] sm:$0xff]
      %v1666 = vld [vmem:[%s1054 + $0xb2] sm:$0xff]
      %v1667 = vld [vmem:[%s1054 + $0xc2] sm:$0xff]
      %v1668 = vld [vmem:[%s1054 + $0xca] sm:$0xff]
      %v1669 = vld [vmem:[%s1054 + $0xda] sm:$0xff]
      %v1670 = vld [vmem:[%s1054 + $0xe2] sm:$0xff]
      %v1671 = vld [vmem:[%s1054 + $0xf2] sm:$0xff]
      %v1672 = vld [vmem:[%s1054 + $0xfa] sm:$0xff]
      %v1673 = vld [vmem:[%s1054 + $0x10a] sm:$0xff]
      %v1674 = vld [vmem:[%s1054 + $0x112] sm:$0xff]
      %v1675 = vld [vmem:[%s1054 + $0x122] sm:$0xff]
      %v1676 = vld [vmem:[%s1054 + $0x12a] sm:$0xff]
      %v1677 = vld [vmem:[%s1054 + $0x13a] sm:$0xff]
      %v1678 = vld [vmem:[%s1054 + $0x142] sm:$0xff]
      %v1679 = vld [vmem:[%s1054 + $0x152] sm:$0xff]
      %v1680 = vld [vmem:[%s1054 + $0x15a] sm:$0xff]
      %v1681 = vld [vmem:[%s1054 + $0x16a] sm:$0xff]
      %v1682 = vld [vmem:[%s1054 + $0x172] sm:$0xff]
      %v1683 = vpack.c.bf16 %v1652, %v1651
      %v1684 = vpack.c.bf16 %v1654, %v1653
      %v1685 = vpack.c.bf16 %v1656, %v1655
      %v1686 = vpack.c.bf16 %v1658, %v1657
      %v1687 = vpack.c.bf16 %v1660, %v1659
      %v1688 = vpack.c.bf16 %v1662, %v1661
      %v1689 = vpack.c.bf16 %v1664, %v1663
      %v1690 = vpack.c.bf16 %v1666, %v1665
      %v1691 = vpack.c.bf16 %v1668, %v1667
      %v1692 = vpack.c.bf16 %v1670, %v1669
      %v1693 = vpack.c.bf16 %v1672, %v1671
      %v1694 = vpack.c.bf16 %v1674, %v1673
      %v1695 = vpack.c.bf16 %v1676, %v1675
      %v1696 = vpack.c.bf16 %v1678, %v1677
      %v1697 = vpack.c.bf16 %v1680, %v1679
      %v1698 = vpack.c.bf16 %v1682, %v1681
      %s1699 = scalar_lea.vmem %s1, 320
      %v1700 = vld [vmem:[%s1699] sm:$0xf]
      %v1701 = vld [vmem:[%s1699 + $0x4] sm:$0xf]
      %v1702 = vld [vmem:[%s1699 + $0x8] sm:$0xf]
      %v1703 = vld [vmem:[%s1699 + $0xc] sm:$0xf]
      %v1704 = vld [vmem:[%s1699 + $0x10] sm:$0xf]
      %v1705 = vld [vmem:[%s1699 + $0x14] sm:$0xf]
      %v1706 = vld [vmem:[%s1699 + $0x18] sm:$0xf]
      %v1707 = vld [vmem:[%s1699 + $0x1c] sm:$0xf]
      %v1708 = vld [vmem:[%s1699 + $0x20] sm:$0xf]
      %v1709 = vld [vmem:[%s1699 + $0x24] sm:$0xf]
      %v1710 = vld [vmem:[%s1699 + $0x28] sm:$0xf]
      %v1711 = vld [vmem:[%s1699 + $0x2c] sm:$0xf]
      %v1712 = vld [vmem:[%s1699 + $0x30] sm:$0xf]
      %v1713 = vld [vmem:[%s1699 + $0x34] sm:$0xf]
      %v1714 = vld [vmem:[%s1699 + $0x38] sm:$0xf]
      %v1715 = vld [vmem:[%s1699 + $0x3c] sm:$0xf]
      %v1732 = vunpack.c.l.b16 %v1700
      %v1733 = vunpack.c.l.b16 %v1701
      %v1734 = vunpack.c.l.b16 %v1702
      %v1735 = vunpack.c.l.b16 %v1703
      %v1736 = vunpack.c.l.b16 %v1704
      %v1737 = vunpack.c.l.b16 %v1705
      %v1738 = vunpack.c.l.b16 %v1706
      %v1739 = vunpack.c.l.b16 %v1707
      %v1740 = vunpack.c.l.b16 %v1708
      %v1741 = vunpack.c.l.b16 %v1709
      %v1742 = vunpack.c.l.b16 %v1710
      %v1743 = vunpack.c.l.b16 %v1711
      %v1744 = vunpack.c.l.b16 %v1712
      %v1745 = vunpack.c.l.b16 %v1713
      %v1746 = vunpack.c.l.b16 %v1714
      %v1747 = vunpack.c.l.b16 %v1715
      %v1748 = vpack.c.b16 %v1733, %v1732
      %v1749 = vpack.c.b16 %v1735, %v1734
      %v1750 = vpack.c.b16 %v1737, %v1736
      %v1751 = vpack.c.b16 %v1739, %v1738
      %v1752 = vpack.c.b16 %v1741, %v1740
      %v1753 = vpack.c.b16 %v1743, %v1742
      %v1754 = vpack.c.b16 %v1745, %v1744
      %v1755 = vpack.c.b16 %v1747, %v1746
      %1764 = vmatpush.bf16.msra.mxu0 %v1755
      %1765 = vmatpush.bf16.msra.mxu0 %v1754
      %1766 = vmatpush.bf16.msra.mxu0 %v1753
      %1767 = vmatpush.bf16.msra.mxu0 %v1752
      %1768 = vmatpush.bf16.msra.mxu0 %v1751
      %1769 = vmatpush.bf16.msra.mxu0 %v1750
      %1770 = vmatpush.bf16.msra.mxu0 %v1749
      %1771 = vmatpush.bf16.msra.mxu0 %v1748
      %1772 = vmatmul.bf16.gmra.mxu0 %v1683
      %v1773 = vpop.f32.mrf.mxu0
      %v1774 = vadd.f32 0.0, %v1773
      %v1775 = vpop.f32.mrf.mxu0
      %v1776 = vadd.f32 0.0, %v1775
      %1777 = vmatmul.bf16.gmra.mxu0 %v1684
      %v1778 = vpop.f32.mrf.mxu0
      %v1779 = vadd.f32 0.0, %v1778
      %v1780 = vpop.f32.mrf.mxu0
      %v1781 = vadd.f32 0.0, %v1780
      %1782 = vmatmul.bf16.gmra.mxu0 %v1685
      %v1783 = vpop.f32.mrf.mxu0
      %v1784 = vadd.f32 0.0, %v1783
      %v1785 = vpop.f32.mrf.mxu0
      %v1786 = vadd.f32 0.0, %v1785
      %1787 = vmatmul.bf16.gmra.mxu0 %v1686
      %v1788 = vpop.f32.mrf.mxu0
      %v1789 = vadd.f32 0.0, %v1788
      %v1790 = vpop.f32.mrf.mxu0
      %v1791 = vadd.f32 0.0, %v1790
      %1792 = vmatmul.bf16.gmra.mxu0 %v1687
      %v1793 = vpop.f32.mrf.mxu0
      %v1794 = vadd.f32 0.0, %v1793
      %v1795 = vpop.f32.mrf.mxu0
      %v1796 = vadd.f32 0.0, %v1795
      %1797 = vmatmul.bf16.gmra.mxu0 %v1688
      %v1798 = vpop.f32.mrf.mxu0
      %v1799 = vadd.f32 0.0, %v1798
      %v1800 = vpop.f32.mrf.mxu0
      %v1801 = vadd.f32 0.0, %v1800
      %1802 = vmatmul.bf16.gmra.mxu0 %v1689
      %v1803 = vpop.f32.mrf.mxu0
      %v1804 = vadd.f32 0.0, %v1803
      %v1805 = vpop.f32.mrf.mxu0
      %v1806 = vadd.f32 0.0, %v1805
      %1807 = vmatmul.bf16.gmra.mxu0 %v1690
      %v1808 = vpop.f32.mrf.mxu0
      %v1809 = vadd.f32 0.0, %v1808
      %v1810 = vpop.f32.mrf.mxu0
      %v1811 = vadd.f32 0.0, %v1810
      %1812 = vmatmul.bf16.gmra.mxu0 %v1691
      %v1813 = vpop.f32.mrf.mxu0
      %v1814 = vadd.f32 0.0, %v1813
      %v1815 = vpop.f32.mrf.mxu0
      %v1816 = vadd.f32 0.0, %v1815
      %1817 = vmatmul.bf16.gmra.mxu0 %v1692
      %v1818 = vpop.f32.mrf.mxu0
      %v1819 = vadd.f32 0.0, %v1818
      %v1820 = vpop.f32.mrf.mxu0
      %v1821 = vadd.f32 0.0, %v1820
      %1822 = vmatmul.bf16.gmra.mxu0 %v1693
      %v1823 = vpop.f32.mrf.mxu0
      %v1824 = vadd.f32 0.0, %v1823
      %v1825 = vpop.f32.mrf.mxu0
      %v1826 = vadd.f32 0.0, %v1825
      %1827 = vmatmul.bf16.gmra.mxu0 %v1694
      %v1828 = vpop.f32.mrf.mxu0
      %v1829 = vadd.f32 0.0, %v1828
      %v1830 = vpop.f32.mrf.mxu0
      %v1831 = vadd.f32 0.0, %v1830
      %1832 = vmatmul.bf16.gmra.mxu0 %v1695
      %v1833 = vpop.f32.mrf.mxu0
      %v1834 = vadd.f32 0.0, %v1833
      %v1835 = vpop.f32.mrf.mxu0
      %v1836 = vadd.f32 0.0, %v1835
      %1837 = vmatmul.bf16.gmra.mxu0 %v1696
      %v1838 = vpop.f32.mrf.mxu0
      %v1839 = vadd.f32 0.0, %v1838
      %v1840 = vpop.f32.mrf.mxu0
      %v1841 = vadd.f32 0.0, %v1840
      %1842 = vmatmul.bf16.gmra.mxu0 %v1697
      %v1843 = vpop.f32.mrf.mxu0
      %v1844 = vadd.f32 0.0, %v1843
      %v1845 = vpop.f32.mrf.mxu0
      %v1846 = vadd.f32 0.0, %v1845
      %1847 = vmatmul.bf16.gmra.mxu0 %v1698
      %v1848 = vpop.f32.mrf.mxu0
      %v1849 = vadd.f32 0.0, %v1848
      %v1850 = vpop.f32.mrf.mxu0
      %v1851 = vadd.f32 0.0, %v1850
      %1852 = vdwg.mxu0
      %v1853 = vld [vmem:[#allocation3] sm:$0xff]
      %v1854 = vld [vmem:[#allocation3 + $0x8] sm:$0xff]
      %v1855 = vld [vmem:[#allocation3 + $0x10] sm:$0xff]
      %v1856 = vld [vmem:[#allocation3 + $0x18] sm:$0xff]
      %v1857 = vld [vmem:[#allocation3 + $0x20] sm:$0xff]
      %v1858 = vld [vmem:[#allocation3 + $0x28] sm:$0xff]
      %v1859 = vld [vmem:[#allocation3 + $0x30] sm:$0xff]
      %v1860 = vld [vmem:[#allocation3 + $0x38] sm:$0xff]
      %v1861 = vld [vmem:[#allocation3 + $0x40] sm:$0xff]
      %v1862 = vld [vmem:[#allocation3 + $0x48] sm:$0xff]
      %v1863 = vld [vmem:[#allocation3 + $0x50] sm:$0xff]
      %v1864 = vld [vmem:[#allocation3 + $0x58] sm:$0xff]
      %v1865 = vld [vmem:[#allocation3 + $0x60] sm:$0xff]
      %v1866 = vld [vmem:[#allocation3 + $0x68] sm:$0xff]
      %v1867 = vld [vmem:[#allocation3 + $0x70] sm:$0xff]
      %v1868 = vld [vmem:[#allocation3 + $0x78] sm:$0xff]
      %v1869 = vld [vmem:[#allocation3 + $0x80] sm:$0xff]
      %v1870 = vld [vmem:[#allocation3 + $0x88] sm:$0xff]
      %v1871 = vld [vmem:[#allocation3 + $0x90] sm:$0xff]
      %v1872 = vld [vmem:[#allocation3 + $0x98] sm:$0xff]
      %v1873 = vld [vmem:[#allocation3 + $0xa0] sm:$0xff]
      %v1874 = vld [vmem:[#allocation3 + $0xa8] sm:$0xff]
      %v1875 = vld [vmem:[#allocation3 + $0xb0] sm:$0xff]
      %v1876 = vld [vmem:[#allocation3 + $0xb8] sm:$0xff]
      %v1877 = vld [vmem:[#allocation3 + $0xc0] sm:$0xff]
      %v1878 = vld [vmem:[#allocation3 + $0xc8] sm:$0xff]
      %v1879 = vld [vmem:[#allocation3 + $0xd0] sm:$0xff]
      %v1880 = vld [vmem:[#allocation3 + $0xd8] sm:$0xff]
      %v1881 = vld [vmem:[#allocation3 + $0xe0] sm:$0xff]
      %v1882 = vld [vmem:[#allocation3 + $0xe8] sm:$0xff]
      %v1883 = vld [vmem:[#allocation3 + $0xf0] sm:$0xff]
      %v1884 = vld [vmem:[#allocation3 + $0xf8] sm:$0xff]
      %v1885 = vadd.f32 %v1853, %v1774
      %v1886 = vadd.f32 %v1854, %v1776
      %v1887 = vadd.f32 %v1855, %v1779
      %v1888 = vadd.f32 %v1856, %v1781
      %v1889 = vadd.f32 %v1857, %v1784
      %v1890 = vadd.f32 %v1858, %v1786
      %v1891 = vadd.f32 %v1859, %v1789
      %v1892 = vadd.f32 %v1860, %v1791
      %v1893 = vadd.f32 %v1861, %v1794
      %v1894 = vadd.f32 %v1862, %v1796
      %v1895 = vadd.f32 %v1863, %v1799
      %v1896 = vadd.f32 %v1864, %v1801
      %v1897 = vadd.f32 %v1865, %v1804
      %v1898 = vadd.f32 %v1866, %v1806
      %v1899 = vadd.f32 %v1867, %v1809
      %v1900 = vadd.f32 %v1868, %v1811
      %v1901 = vadd.f32 %v1869, %v1814
      %v1902 = vadd.f32 %v1870, %v1816
      %v1903 = vadd.f32 %v1871, %v1819
      %v1904 = vadd.f32 %v1872, %v1821
      %v1905 = vadd.f32 %v1873, %v1824
      %v1906 = vadd.f32 %v1874, %v1826
      %v1907 = vadd.f32 %v1875, %v1829
      %v1908 = vadd.f32 %v1876, %v1831
      %v1909 = vadd.f32 %v1877, %v1834
      %v1910 = vadd.f32 %v1878, %v1836
      %v1911 = vadd.f32 %v1879, %v1839
      %v1912 = vadd.f32 %v1880, %v1841
      %v1913 = vadd.f32 %v1881, %v1844
      %v1914 = vadd.f32 %v1882, %v1846
      %v1915 = vadd.f32 %v1883, %v1849
      %v1916 = vadd.f32 %v1884, %v1851
      %1917 = vst [vmem:[#allocation3] sm:$0xff] %v1885
      %1918 = vst [vmem:[#allocation3 + $0x8] sm:$0xff] %v1886
      %1919 = vst [vmem:[#allocation3 + $0x10] sm:$0xff] %v1887
      %1920 = vst [vmem:[#allocation3 + $0x18] sm:$0xff] %v1888
      %1921 = vst [vmem:[#allocation3 + $0x20] sm:$0xff] %v1889
      %1922 = vst [vmem:[#allocation3 + $0x28] sm:$0xff] %v1890
      %1923 = vst [vmem:[#allocation3 + $0x30] sm:$0xff] %v1891
      %1924 = vst [vmem:[#allocation3 + $0x38] sm:$0xff] %v1892
      %1925 = vst [vmem:[#allocation3 + $0x40] sm:$0xff] %v1893
      %1926 = vst [vmem:[#allocation3 + $0x48] sm:$0xff] %v1894
      %1927 = vst [vmem:[#allocation3 + $0x50] sm:$0xff] %v1895
      %1928 = vst [vmem:[#allocation3 + $0x58] sm:$0xff] %v1896
      %1929 = vst [vmem:[#allocation3 + $0x60] sm:$0xff] %v1897
      %1930 = vst [vmem:[#allocation3 + $0x68] sm:$0xff] %v1898
      %1931 = vst [vmem:[#allocation3 + $0x70] sm:$0xff] %v1899
      %1932 = vst [vmem:[#allocation3 + $0x78] sm:$0xff] %v1900
      %1933 = vst [vmem:[#allocation3 + $0x80] sm:$0xff] %v1901
      %1934 = vst [vmem:[#allocation3 + $0x88] sm:$0xff] %v1902
      %1935 = vst [vmem:[#allocation3 + $0x90] sm:$0xff] %v1903
      %1936 = vst [vmem:[#allocation3 + $0x98] sm:$0xff] %v1904
      %1937 = vst [vmem:[#allocation3 + $0xa0] sm:$0xff] %v1905
      %1938 = vst [vmem:[#allocation3 + $0xa8] sm:$0xff] %v1906
      %1939 = vst [vmem:[#allocation3 + $0xb0] sm:$0xff] %v1907
      %1940 = vst [vmem:[#allocation3 + $0xb8] sm:$0xff] %v1908
      %1941 = vst [vmem:[#allocation3 + $0xc0] sm:$0xff] %v1909
      %1942 = vst [vmem:[#allocation3 + $0xc8] sm:$0xff] %v1910
      %1943 = vst [vmem:[#allocation3 + $0xd0] sm:$0xff] %v1911
      %1944 = vst [vmem:[#allocation3 + $0xd8] sm:$0xff] %v1912
      %1945 = vst [vmem:[#allocation3 + $0xe0] sm:$0xff] %v1913
      %1946 = vst [vmem:[#allocation3 + $0xe8] sm:$0xff] %v1914
      %1947 = vst [vmem:[#allocation3 + $0xf0] sm:$0xff] %v1915
      %1948 = vst [vmem:[#allocation3 + $0xf8] sm:$0xff] %v1916
      %s1949 = scalar_lea.vmem %s219, 48
      %v1950 = vld [vmem:[%s1949] sm:$0xff]
      %v1951 = vld [vmem:[%s1949 + $0x8] sm:$0xff]
      %v1952 = vld [vmem:[%s1949 + $0x18] sm:$0xff]
      %v1953 = vld [vmem:[%s1949 + $0x20] sm:$0xff]
      %v1954 = vld [vmem:[%s1949 + $0x30] sm:$0xff]
      %v1955 = vld [vmem:[%s1949 + $0x38] sm:$0xff]
      %v1956 = vld [vmem:[%s1949 + $0x48] sm:$0xff]
      %v1957 = vld [vmem:[%s1949 + $0x50] sm:$0xff]
      %v1958 = vld [vmem:[%s1949 + $0x60] sm:$0xff]
      %v1959 = vld [vmem:[%s1949 + $0x68] sm:$0xff]
      %v1960 = vld [vmem:[%s1949 + $0x78] sm:$0xff]
      %v1961 = vld [vmem:[%s1949 + $0x80] sm:$0xff]
      %v1962 = vld [vmem:[%s1949 + $0x90] sm:$0xff]
      %v1963 = vld [vmem:[%s1949 + $0x98] sm:$0xff]
      %v1964 = vld [vmem:[%s1949 + $0xa8] sm:$0xff]
      %v1965 = vld [vmem:[%s1949 + $0xb0] sm:$0xff]
      %v1966 = vld [vmem:[%s1949 + $0xc0] sm:$0xff]
      %v1967 = vld [vmem:[%s1949 + $0xc8] sm:$0xff]
      %v1968 = vld [vmem:[%s1949 + $0xd8] sm:$0xff]
      %v1969 = vld [vmem:[%s1949 + $0xe0] sm:$0xff]
      %v1970 = vld [vmem:[%s1949 + $0xf0] sm:$0xff]
      %v1971 = vld [vmem:[%s1949 + $0xf8] sm:$0xff]
      %v1972 = vld [vmem:[%s1949 + $0x108] sm:$0xff]
      %v1973 = vld [vmem:[%s1949 + $0x110] sm:$0xff]
      %v1974 = vld [vmem:[%s1949 + $0x120] sm:$0xff]
      %v1975 = vld [vmem:[%s1949 + $0x128] sm:$0xff]
      %v1976 = vld [vmem:[%s1949 + $0x138] sm:$0xff]
      %v1977 = vld [vmem:[%s1949 + $0x140] sm:$0xff]
      %v1978 = vld [vmem:[%s1949 + $0x150] sm:$0xff]
      %v1979 = vld [vmem:[%s1949 + $0x158] sm:$0xff]
      %v1980 = vld [vmem:[%s1949 + $0x168] sm:$0xff]
      %v1981 = vld [vmem:[%s1949 + $0x170] sm:$0xff]
      %v1982 = vpack.c.bf16 %v1951, %v1950
      %v1983 = vpack.c.bf16 %v1953, %v1952
      %v1984 = vpack.c.bf16 %v1955, %v1954
      %v1985 = vpack.c.bf16 %v1957, %v1956
      %v1986 = vpack.c.bf16 %v1959, %v1958
      %v1987 = vpack.c.bf16 %v1961, %v1960
      %v1988 = vpack.c.bf16 %v1963, %v1962
      %v1989 = vpack.c.bf16 %v1965, %v1964
      %v1990 = vpack.c.bf16 %v1967, %v1966
      %v1991 = vpack.c.bf16 %v1969, %v1968
      %v1992 = vpack.c.bf16 %v1971, %v1970
      %v1993 = vpack.c.bf16 %v1973, %v1972
      %v1994 = vpack.c.bf16 %v1975, %v1974
      %v1995 = vpack.c.bf16 %v1977, %v1976
      %v1996 = vpack.c.bf16 %v1979, %v1978
      %v1997 = vpack.c.bf16 %v1981, %v1980
      %s1998 = scalar_lea.vmem %s1, 384
      %v1999 = vld [vmem:[%s1998] sm:$0xf]
      %v2000 = vld [vmem:[%s1998 + $0x4] sm:$0xf]
      %v2001 = vld [vmem:[%s1998 + $0x8] sm:$0xf]
      %v2002 = vld [vmem:[%s1998 + $0xc] sm:$0xf]
      %v2003 = vld [vmem:[%s1998 + $0x10] sm:$0xf]
      %v2004 = vld [vmem:[%s1998 + $0x14] sm:$0xf]
      %v2005 = vld [vmem:[%s1998 + $0x18] sm:$0xf]
      %v2006 = vld [vmem:[%s1998 + $0x1c] sm:$0xf]
      %v2007 = vld [vmem:[%s1998 + $0x20] sm:$0xf]
      %v2008 = vld [vmem:[%s1998 + $0x24] sm:$0xf]
      %v2009 = vld [vmem:[%s1998 + $0x28] sm:$0xf]
      %v2010 = vld [vmem:[%s1998 + $0x2c] sm:$0xf]
      %v2011 = vld [vmem:[%s1998 + $0x30] sm:$0xf]
      %v2012 = vld [vmem:[%s1998 + $0x34] sm:$0xf]
      %v2013 = vld [vmem:[%s1998 + $0x38] sm:$0xf]
      %v2014 = vld [vmem:[%s1998 + $0x3c] sm:$0xf]
      %v2031 = vunpack.c.l.b16 %v1999
      %v2032 = vunpack.c.l.b16 %v2000
      %v2033 = vunpack.c.l.b16 %v2001
      %v2034 = vunpack.c.l.b16 %v2002
      %v2035 = vunpack.c.l.b16 %v2003
      %v2036 = vunpack.c.l.b16 %v2004
      %v2037 = vunpack.c.l.b16 %v2005
      %v2038 = vunpack.c.l.b16 %v2006
      %v2039 = vunpack.c.l.b16 %v2007
      %v2040 = vunpack.c.l.b16 %v2008
      %v2041 = vunpack.c.l.b16 %v2009
      %v2042 = vunpack.c.l.b16 %v2010
      %v2043 = vunpack.c.l.b16 %v2011
      %v2044 = vunpack.c.l.b16 %v2012
      %v2045 = vunpack.c.l.b16 %v2013
      %v2046 = vunpack.c.l.b16 %v2014
      %v2047 = vpack.c.b16 %v2032, %v2031
      %v2048 = vpack.c.b16 %v2034, %v2033
      %v2049 = vpack.c.b16 %v2036, %v2035
      %v2050 = vpack.c.b16 %v2038, %v2037
      %v2051 = vpack.c.b16 %v2040, %v2039
      %v2052 = vpack.c.b16 %v2042, %v2041
      %v2053 = vpack.c.b16 %v2044, %v2043
      %v2054 = vpack.c.b16 %v2046, %v2045
      %2063 = vmatpush.bf16.msra.mxu0 %v2054
      %2064 = vmatpush.bf16.msra.mxu0 %v2053
      %2065 = vmatpush.bf16.msra.mxu0 %v2052
      %2066 = vmatpush.bf16.msra.mxu0 %v2051
      %2067 = vmatpush.bf16.msra.mxu0 %v2050
      %2068 = vmatpush.bf16.msra.mxu0 %v2049
      %2069 = vmatpush.bf16.msra.mxu0 %v2048
      %2070 = vmatpush.bf16.msra.mxu0 %v2047
      %2071 = vmatmul.bf16.gmra.mxu0 %v1982
      %v2072 = vpop.f32.mrf.mxu0
      %v2073 = vadd.f32 0.0, %v2072
      %v2074 = vpop.f32.mrf.mxu0
      %v2075 = vadd.f32 0.0, %v2074
      %2076 = vmatmul.bf16.gmra.mxu0 %v1983
      %v2077 = vpop.f32.mrf.mxu0
      %v2078 = vadd.f32 0.0, %v2077
      %v2079 = vpop.f32.mrf.mxu0
      %v2080 = vadd.f32 0.0, %v2079
      %2081 = vmatmul.bf16.gmra.mxu0 %v1984
      %v2082 = vpop.f32.mrf.mxu0
      %v2083 = vadd.f32 0.0, %v2082
      %v2084 = vpop.f32.mrf.mxu0
      %v2085 = vadd.f32 0.0, %v2084
      %2086 = vmatmul.bf16.gmra.mxu0 %v1985
      %v2087 = vpop.f32.mrf.mxu0
      %v2088 = vadd.f32 0.0, %v2087
      %v2089 = vpop.f32.mrf.mxu0
      %v2090 = vadd.f32 0.0, %v2089
      %2091 = vmatmul.bf16.gmra.mxu0 %v1986
      %v2092 = vpop.f32.mrf.mxu0
      %v2093 = vadd.f32 0.0, %v2092
      %v2094 = vpop.f32.mrf.mxu0
      %v2095 = vadd.f32 0.0, %v2094
      %2096 = vmatmul.bf16.gmra.mxu0 %v1987
      %v2097 = vpop.f32.mrf.mxu0
      %v2098 = vadd.f32 0.0, %v2097
      %v2099 = vpop.f32.mrf.mxu0
      %v2100 = vadd.f32 0.0, %v2099
      %2101 = vmatmul.bf16.gmra.mxu0 %v1988
      %v2102 = vpop.f32.mrf.mxu0
      %v2103 = vadd.f32 0.0, %v2102
      %v2104 = vpop.f32.mrf.mxu0
      %v2105 = vadd.f32 0.0, %v2104
      %2106 = vmatmul.bf16.gmra.mxu0 %v1989
      %v2107 = vpop.f32.mrf.mxu0
      %v2108 = vadd.f32 0.0, %v2107
      %v2109 = vpop.f32.mrf.mxu0
      %v2110 = vadd.f32 0.0, %v2109
      %2111 = vmatmul.bf16.gmra.mxu0 %v1990
      %v2112 = vpop.f32.mrf.mxu0
      %v2113 = vadd.f32 0.0, %v2112
      %v2114 = vpop.f32.mrf.mxu0
      %v2115 = vadd.f32 0.0, %v2114
      %2116 = vmatmul.bf16.gmra.mxu0 %v1991
      %v2117 = vpop.f32.mrf.mxu0
      %v2118 = vadd.f32 0.0, %v2117
      %v2119 = vpop.f32.mrf.mxu0
      %v2120 = vadd.f32 0.0, %v2119
      %2121 = vmatmul.bf16.gmra.mxu0 %v1992
      %v2122 = vpop.f32.mrf.mxu0
      %v2123 = vadd.f32 0.0, %v2122
      %v2124 = vpop.f32.mrf.mxu0
      %v2125 = vadd.f32 0.0, %v2124
      %2126 = vmatmul.bf16.gmra.mxu0 %v1993
      %v2127 = vpop.f32.mrf.mxu0
      %v2128 = vadd.f32 0.0, %v2127
      %v2129 = vpop.f32.mrf.mxu0
      %v2130 = vadd.f32 0.0, %v2129
      %2131 = vmatmul.bf16.gmra.mxu0 %v1994
      %v2132 = vpop.f32.mrf.mxu0
      %v2133 = vadd.f32 0.0, %v2132
      %v2134 = vpop.f32.mrf.mxu0
      %v2135 = vadd.f32 0.0, %v2134
      %2136 = vmatmul.bf16.gmra.mxu0 %v1995
      %v2137 = vpop.f32.mrf.mxu0
      %v2138 = vadd.f32 0.0, %v2137
      %v2139 = vpop.f32.mrf.mxu0
      %v2140 = vadd.f32 0.0, %v2139
      %2141 = vmatmul.bf16.gmra.mxu0 %v1996
      %v2142 = vpop.f32.mrf.mxu0
      %v2143 = vadd.f32 0.0, %v2142
      %v2144 = vpop.f32.mrf.mxu0
      %v2145 = vadd.f32 0.0, %v2144
      %2146 = vmatmul.bf16.gmra.mxu0 %v1997
      %v2147 = vpop.f32.mrf.mxu0
      %v2148 = vadd.f32 0.0, %v2147
      %v2149 = vpop.f32.mrf.mxu0
      %v2150 = vadd.f32 0.0, %v2149
      %2151 = vdwg.mxu0
      %v2152 = vld [vmem:[#allocation3] sm:$0xff]
      %v2153 = vld [vmem:[#allocation3 + $0x8] sm:$0xff]
      %v2154 = vld [vmem:[#allocation3 + $0x10] sm:$0xff]
      %v2155 = vld [vmem:[#allocation3 + $0x18] sm:$0xff]
      %v2156 = vld [vmem:[#allocation3 + $0x20] sm:$0xff]
      %v2157 = vld [vmem:[#allocation3 + $0x28] sm:$0xff]
      %v2158 = vld [vmem:[#allocation3 + $0x30] sm:$0xff]
      %v2159 = vld [vmem:[#allocation3 + $0x38] sm:$0xff]
      %v2160 = vld [vmem:[#allocation3 + $0x40] sm:$0xff]
      %v2161 = vld [vmem:[#allocation3 + $0x48] sm:$0xff]
      %v2162 = vld [vmem:[#allocation3 + $0x50] sm:$0xff]
      %v2163 = vld [vmem:[#allocation3 + $0x58] sm:$0xff]
      %v2164 = vld [vmem:[#allocation3 + $0x60] sm:$0xff]
      %v2165 = vld [vmem:[#allocation3 + $0x68] sm:$0xff]
      %v2166 = vld [vmem:[#allocation3 + $0x70] sm:$0xff]
      %v2167 = vld [vmem:[#allocation3 + $0x78] sm:$0xff]
      %v2168 = vld [vmem:[#allocation3 + $0x80] sm:$0xff]
      %v2169 = vld [vmem:[#allocation3 + $0x88] sm:$0xff]
      %v2170 = vld [vmem:[#allocation3 + $0x90] sm:$0xff]
      %v2171 = vld [vmem:[#allocation3 + $0x98] sm:$0xff]
      %v2172 = vld [vmem:[#allocation3 + $0xa0] sm:$0xff]
      %v2173 = vld [vmem:[#allocation3 + $0xa8] sm:$0xff]
      %v2174 = vld [vmem:[#allocation3 + $0xb0] sm:$0xff]
      %v2175 = vld [vmem:[#allocation3 + $0xb8] sm:$0xff]
      %v2176 = vld [vmem:[#allocation3 + $0xc0] sm:$0xff]
      %v2177 = vld [vmem:[#allocation3 + $0xc8] sm:$0xff]
      %v2178 = vld [vmem:[#allocation3 + $0xd0] sm:$0xff]
      %v2179 = vld [vmem:[#allocation3 + $0xd8] sm:$0xff]
      %v2180 = vld [vmem:[#allocation3 + $0xe0] sm:$0xff]
      %v2181 = vld [vmem:[#allocation3 + $0xe8] sm:$0xff]
      %v2182 = vld [vmem:[#allocation3 + $0xf0] sm:$0xff]
      %v2183 = vld [vmem:[#allocation3 + $0xf8] sm:$0xff]
      %v2184 = vadd.f32 %v2152, %v2073
      %v2185 = vadd.f32 %v2153, %v2075
      %v2186 = vadd.f32 %v2154, %v2078
      %v2187 = vadd.f32 %v2155, %v2080
      %v2188 = vadd.f32 %v2156, %v2083
      %v2189 = vadd.f32 %v2157, %v2085
      %v2190 = vadd.f32 %v2158, %v2088
      %v2191 = vadd.f32 %v2159, %v2090
      %v2192 = vadd.f32 %v2160, %v2093
      %v2193 = vadd.f32 %v2161, %v2095
      %v2194 = vadd.f32 %v2162, %v2098
      %v2195 = vadd.f32 %v2163, %v2100
      %v2196 = vadd.f32 %v2164, %v2103
      %v2197 = vadd.f32 %v2165, %v2105
      %v2198 = vadd.f32 %v2166, %v2108
      %v2199 = vadd.f32 %v2167, %v2110
      %v2200 = vadd.f32 %v2168, %v2113
      %v2201 = vadd.f32 %v2169, %v2115
      %v2202 = vadd.f32 %v2170, %v2118
      %v2203 = vadd.f32 %v2171, %v2120
      %v2204 = vadd.f32 %v2172, %v2123
      %v2205 = vadd.f32 %v2173, %v2125
      %v2206 = vadd.f32 %v2174, %v2128
      %v2207 = vadd.f32 %v2175, %v2130
      %v2208 = vadd.f32 %v2176, %v2133
      %v2209 = vadd.f32 %v2177, %v2135
      %v2210 = vadd.f32 %v2178, %v2138
      %v2211 = vadd.f32 %v2179, %v2140
      %v2212 = vadd.f32 %v2180, %v2143
      %v2213 = vadd.f32 %v2181, %v2145
      %v2214 = vadd.f32 %v2182, %v2148
      %v2215 = vadd.f32 %v2183, %v2150
      %2216 = vst [vmem:[#allocation3] sm:$0xff] %v2184
      %2217 = vst [vmem:[#allocation3 + $0x8] sm:$0xff] %v2185
      %2218 = vst [vmem:[#allocation3 + $0x10] sm:$0xff] %v2186
      %2219 = vst [vmem:[#allocation3 + $0x18] sm:$0xff] %v2187
      %2220 = vst [vmem:[#allocation3 + $0x20] sm:$0xff] %v2188
      %2221 = vst [vmem:[#allocation3 + $0x28] sm:$0xff] %v2189
      %2222 = vst [vmem:[#allocation3 + $0x30] sm:$0xff] %v2190
      %2223 = vst [vmem:[#allocation3 + $0x38] sm:$0xff] %v2191
      %2224 = vst [vmem:[#allocation3 + $0x40] sm:$0xff] %v2192
      %2225 = vst [vmem:[#allocation3 + $0x48] sm:$0xff] %v2193
      %2226 = vst [vmem:[#allocation3 + $0x50] sm:$0xff] %v2194
      %2227 = vst [vmem:[#allocation3 + $0x58] sm:$0xff] %v2195
      %2228 = vst [vmem:[#allocation3 + $0x60] sm:$0xff] %v2196
      %2229 = vst [vmem:[#allocation3 + $0x68] sm:$0xff] %v2197
      %2230 = vst [vmem:[#allocation3 + $0x70] sm:$0xff] %v2198
      %2231 = vst [vmem:[#allocation3 + $0x78] sm:$0xff] %v2199
      %2232 = vst [vmem:[#allocation3 + $0x80] sm:$0xff] %v2200
      %2233 = vst [vmem:[#allocation3 + $0x88] sm:$0xff] %v2201
      %2234 = vst [vmem:[#allocation3 + $0x90] sm:$0xff] %v2202
      %2235 = vst [vmem:[#allocation3 + $0x98] sm:$0xff] %v2203
      %2236 = vst [vmem:[#allocation3 + $0xa0] sm:$0xff] %v2204
      %2237 = vst [vmem:[#allocation3 + $0xa8] sm:$0xff] %v2205
      %2238 = vst [vmem:[#allocation3 + $0xb0] sm:$0xff] %v2206
      %2239 = vst [vmem:[#allocation3 + $0xb8] sm:$0xff] %v2207
      %2240 = vst [vmem:[#allocation3 + $0xc0] sm:$0xff] %v2208
      %2241 = vst [vmem:[#allocation3 + $0xc8] sm:$0xff] %v2209
      %2242 = vst [vmem:[#allocation3 + $0xd0] sm:$0xff] %v2210
      %2243 = vst [vmem:[#allocation3 + $0xd8] sm:$0xff] %v2211
      %2244 = vst [vmem:[#allocation3 + $0xe0] sm:$0xff] %v2212
      %2245 = vst [vmem:[#allocation3 + $0xe8] sm:$0xff] %v2213
      %2246 = vst [vmem:[#allocation3 + $0xf0] sm:$0xff] %v2214
      %2247 = vst [vmem:[#allocation3 + $0xf8] sm:$0xff] %v2215
      %v2248 = vld [vmem:[%s1949 + $0x1] sm:$0xff]
      %v2249 = vld [vmem:[%s1949 + $0x9] sm:$0xff]
      %v2250 = vld [vmem:[%s1949 + $0x19] sm:$0xff]
      %v2251 = vld [vmem:[%s1949 + $0x21] sm:$0xff]
      %v2252 = vld [vmem:[%s1949 + $0x31] sm:$0xff]
      %v2253 = vld [vmem:[%s1949 + $0x39] sm:$0xff]
      %v2254 = vld [vmem:[%s1949 + $0x49] sm:$0xff]
      %v2255 = vld [vmem:[%s1949 + $0x51] sm:$0xff]
      %v2256 = vld [vmem:[%s1949 + $0x61] sm:$0xff]
      %v2257 = vld [vmem:[%s1949 + $0x69] sm:$0xff]
      %v2258 = vld [vmem:[%s1949 + $0x79] sm:$0xff]
      %v2259 = vld [vmem:[%s1949 + $0x81] sm:$0xff]
      %v2260 = vld [vmem:[%s1949 + $0x91] sm:$0xff]
      %v2261 = vld [vmem:[%s1949 + $0x99] sm:$0xff]
      %v2262 = vld [vmem:[%s1949 + $0xa9] sm:$0xff]
      %v2263 = vld [vmem:[%s1949 + $0xb1] sm:$0xff]
      %v2264 = vld [vmem:[%s1949 + $0xc1] sm:$0xff]
      %v2265 = vld [vmem:[%s1949 + $0xc9] sm:$0xff]
      %v2266 = vld [vmem:[%s1949 + $0xd9] sm:$0xff]
      %v2267 = vld [vmem:[%s1949 + $0xe1] sm:$0xff]
      %v2268 = vld [vmem:[%s1949 + $0xf1] sm:$0xff]
      %v2269 = vld [vmem:[%s1949 + $0xf9] sm:$0xff]
      %v2270 = vld [vmem:[%s1949 + $0x109] sm:$0xff]
      %v2271 = vld [vmem:[%s1949 + $0x111] sm:$0xff]
      %v2272 = vld [vmem:[%s1949 + $0x121] sm:$0xff]
      %v2273 = vld [vmem:[%s1949 + $0x129] sm:$0xff]
      %v2274 = vld [vmem:[%s1949 + $0x139] sm:$0xff]
      %v2275 = vld [vmem:[%s1949 + $0x141] sm:$0xff]
      %v2276 = vld [vmem:[%s1949 + $0x151] sm:$0xff]
      %v2277 = vld [vmem:[%s1949 + $0x159] sm:$0xff]
      %v2278 = vld [vmem:[%s1949 + $0x169] sm:$0xff]
      %v2279 = vld [vmem:[%s1949 + $0x171] sm:$0xff]
      %v2280 = vpack.c.bf16 %v2249, %v2248
      %v2281 = vpack.c.bf16 %v2251, %v2250
      %v2282 = vpack.c.bf16 %v2253, %v2252
      %v2283 = vpack.c.bf16 %v2255, %v2254
      %v2284 = vpack.c.bf16 %v2257, %v2256
      %v2285 = vpack.c.bf16 %v2259, %v2258
      %v2286 = vpack.c.bf16 %v2261, %v2260
      %v2287 = vpack.c.bf16 %v2263, %v2262
      %v2288 = vpack.c.bf16 %v2265, %v2264
      %v2289 = vpack.c.bf16 %v2267, %v2266
      %v2290 = vpack.c.bf16 %v2269, %v2268
      %v2291 = vpack.c.bf16 %v2271, %v2270
      %v2292 = vpack.c.bf16 %v2273, %v2272
      %v2293 = vpack.c.bf16 %v2275, %v2274
      %v2294 = vpack.c.bf16 %v2277, %v2276
      %v2295 = vpack.c.bf16 %v2279, %v2278
      %s2296 = scalar_lea.vmem %s1, 448
      %v2297 = vld [vmem:[%s2296] sm:$0xf]
      %v2298 = vld [vmem:[%s2296 + $0x4] sm:$0xf]
      %v2299 = vld [vmem:[%s2296 + $0x8] sm:$0xf]
      %v2300 = vld [vmem:[%s2296 + $0xc] sm:$0xf]
      %v2301 = vld [vmem:[%s2296 + $0x10] sm:$0xf]
      %v2302 = vld [vmem:[%s2296 + $0x14] sm:$0xf]
      %v2303 = vld [vmem:[%s2296 + $0x18] sm:$0xf]
      %v2304 = vld [vmem:[%s2296 + $0x1c] sm:$0xf]
      %v2305 = vld [vmem:[%s2296 + $0x20] sm:$0xf]
      %v2306 = vld [vmem:[%s2296 + $0x24] sm:$0xf]
      %v2307 = vld [vmem:[%s2296 + $0x28] sm:$0xf]
      %v2308 = vld [vmem:[%s2296 + $0x2c] sm:$0xf]
      %v2309 = vld [vmem:[%s2296 + $0x30] sm:$0xf]
      %v2310 = vld [vmem:[%s2296 + $0x34] sm:$0xf]
      %v2311 = vld [vmem:[%s2296 + $0x38] sm:$0xf]
      %v2312 = vld [vmem:[%s2296 + $0x3c] sm:$0xf]
      %v2329 = vunpack.c.l.b16 %v2297
      %v2330 = vunpack.c.l.b16 %v2298
      %v2331 = vunpack.c.l.b16 %v2299
      %v2332 = vunpack.c.l.b16 %v2300
      %v2333 = vunpack.c.l.b16 %v2301
      %v2334 = vunpack.c.l.b16 %v2302
      %v2335 = vunpack.c.l.b16 %v2303
      %v2336 = vunpack.c.l.b16 %v2304
      %v2337 = vunpack.c.l.b16 %v2305
      %v2338 = vunpack.c.l.b16 %v2306
      %v2339 = vunpack.c.l.b16 %v2307
      %v2340 = vunpack.c.l.b16 %v2308
      %v2341 = vunpack.c.l.b16 %v2309
      %v2342 = vunpack.c.l.b16 %v2310
      %v2343 = vunpack.c.l.b16 %v2311
      %v2344 = vunpack.c.l.b16 %v2312
      %v2345 = vpack.c.b16 %v2330, %v2329
      %v2346 = vpack.c.b16 %v2332, %v2331
      %v2347 = vpack.c.b16 %v2334, %v2333
      %v2348 = vpack.c.b16 %v2336, %v2335
      %v2349 = vpack.c.b16 %v2338, %v2337
      %v2350 = vpack.c.b16 %v2340, %v2339
      %v2351 = vpack.c.b16 %v2342, %v2341
      %v2352 = vpack.c.b16 %v2344, %v2343
      %2361 = vmatpush.bf16.msra.mxu0 %v2352
      %2362 = vmatpush.bf16.msra.mxu0 %v2351
      %2363 = vmatpush.bf16.msra.mxu0 %v2350
      %2364 = vmatpush.bf16.msra.mxu0 %v2349
      %2365 = vmatpush.bf16.msra.mxu0 %v2348
      %2366 = vmatpush.bf16.msra.mxu0 %v2347
      %2367 = vmatpush.bf16.msra.mxu0 %v2346
      %2368 = vmatpush.bf16.msra.mxu0 %v2345
      %2369 = vmatmul.bf16.gmra.mxu0 %v2280
      %v2370 = vpop.f32.mrf.mxu0
      %v2371 = vadd.f32 0.0, %v2370
      %v2372 = vpop.f32.mrf.mxu0
      %v2373 = vadd.f32 0.0, %v2372
      %2374 = vmatmul.bf16.gmra.mxu0 %v2281
      %v2375 = vpop.f32.mrf.mxu0
      %v2376 = vadd.f32 0.0, %v2375
      %v2377 = vpop.f32.mrf.mxu0
      %v2378 = vadd.f32 0.0, %v2377
      %2379 = vmatmul.bf16.gmra.mxu0 %v2282
      %v2380 = vpop.f32.mrf.mxu0
      %v2381 = vadd.f32 0.0, %v2380
      %v2382 = vpop.f32.mrf.mxu0
      %v2383 = vadd.f32 0.0, %v2382
      %2384 = vmatmul.bf16.gmra.mxu0 %v2283
      %v2385 = vpop.f32.mrf.mxu0
      %v2386 = vadd.f32 0.0, %v2385
      %v2387 = vpop.f32.mrf.mxu0
      %v2388 = vadd.f32 0.0, %v2387
      %2389 = vmatmul.bf16.gmra.mxu0 %v2284
      %v2390 = vpop.f32.mrf.mxu0
      %v2391 = vadd.f32 0.0, %v2390
      %v2392 = vpop.f32.mrf.mxu0
      %v2393 = vadd.f32 0.0, %v2392
      %2394 = vmatmul.bf16.gmra.mxu0 %v2285
      %v2395 = vpop.f32.mrf.mxu0
      %v2396 = vadd.f32 0.0, %v2395
      %v2397 = vpop.f32.mrf.mxu0
      %v2398 = vadd.f32 0.0, %v2397
      %2399 = vmatmul.bf16.gmra.mxu0 %v2286
      %v2400 = vpop.f32.mrf.mxu0
      %v2401 = vadd.f32 0.0, %v2400
      %v2402 = vpop.f32.mrf.mxu0
      %v2403 = vadd.f32 0.0, %v2402
      %2404 = vmatmul.bf16.gmra.mxu0 %v2287
      %v2405 = vpop.f32.mrf.mxu0
      %v2406 = vadd.f32 0.0, %v2405
      %v2407 = vpop.f32.mrf.mxu0
      %v2408 = vadd.f32 0.0, %v2407
      %2409 = vmatmul.bf16.gmra.mxu0 %v2288
      %v2410 = vpop.f32.mrf.mxu0
      %v2411 = vadd.f32 0.0, %v2410
      %v2412 = vpop.f32.mrf.mxu0
      %v2413 = vadd.f32 0.0, %v2412
      %2414 = vmatmul.bf16.gmra.mxu0 %v2289
      %v2415 = vpop.f32.mrf.mxu0
      %v2416 = vadd.f32 0.0, %v2415
      %v2417 = vpop.f32.mrf.mxu0
      %v2418 = vadd.f32 0.0, %v2417
      %2419 = vmatmul.bf16.gmra.mxu0 %v2290
      %v2420 = vpop.f32.mrf.mxu0
      %v2421 = vadd.f32 0.0, %v2420
      %v2422 = vpop.f32.mrf.mxu0
      %v2423 = vadd.f32 0.0, %v2422
      %2424 = vmatmul.bf16.gmra.mxu0 %v2291
      %v2425 = vpop.f32.mrf.mxu0
      %v2426 = vadd.f32 0.0, %v2425
      %v2427 = vpop.f32.mrf.mxu0
      %v2428 = vadd.f32 0.0, %v2427
      %2429 = vmatmul.bf16.gmra.mxu0 %v2292
      %v2430 = vpop.f32.mrf.mxu0
      %v2431 = vadd.f32 0.0, %v2430
      %v2432 = vpop.f32.mrf.mxu0
      %v2433 = vadd.f32 0.0, %v2432
      %2434 = vmatmul.bf16.gmra.mxu0 %v2293
      %v2435 = vpop.f32.mrf.mxu0
      %v2436 = vadd.f32 0.0, %v2435
      %v2437 = vpop.f32.mrf.mxu0
      %v2438 = vadd.f32 0.0, %v2437
      %2439 = vmatmul.bf16.gmra.mxu0 %v2294
      %v2440 = vpop.f32.mrf.mxu0
      %v2441 = vadd.f32 0.0, %v2440
      %v2442 = vpop.f32.mrf.mxu0
      %v2443 = vadd.f32 0.0, %v2442
      %2444 = vmatmul.bf16.gmra.mxu0 %v2295
      %v2445 = vpop.f32.mrf.mxu0
      %v2446 = vadd.f32 0.0, %v2445
      %v2447 = vpop.f32.mrf.mxu0
      %v2448 = vadd.f32 0.0, %v2447
      %2449 = vdwg.mxu0
      %v2450 = vld [vmem:[#allocation3] sm:$0xff]
      %v2451 = vld [vmem:[#allocation3 + $0x8] sm:$0xff]
      %v2452 = vld [vmem:[#allocation3 + $0x10] sm:$0xff]
      %v2453 = vld [vmem:[#allocation3 + $0x18] sm:$0xff]
      %v2454 = vld [vmem:[#allocation3 + $0x20] sm:$0xff]
      %v2455 = vld [vmem:[#allocation3 + $0x28] sm:$0xff]
      %v2456 = vld [vmem:[#allocation3 + $0x30] sm:$0xff]
      %v2457 = vld [vmem:[#allocation3 + $0x38] sm:$0xff]
      %v2458 = vld [vmem:[#allocation3 + $0x40] sm:$0xff]
      %v2459 = vld [vmem:[#allocation3 + $0x48] sm:$0xff]
      %v2460 = vld [vmem:[#allocation3 + $0x50] sm:$0xff]
      %v2461 = vld [vmem:[#allocation3 + $0x58] sm:$0xff]
      %v2462 = vld [vmem:[#allocation3 + $0x60] sm:$0xff]
      %v2463 = vld [vmem:[#allocation3 + $0x68] sm:$0xff]
      %v2464 = vld [vmem:[#allocation3 + $0x70] sm:$0xff]
      %v2465 = vld [vmem:[#allocation3 + $0x78] sm:$0xff]
      %v2466 = vld [vmem:[#allocation3 + $0x80] sm:$0xff]
      %v2467 = vld [vmem:[#allocation3 + $0x88] sm:$0xff]
      %v2468 = vld [vmem:[#allocation3 + $0x90] sm:$0xff]
      %v2469 = vld [vmem:[#allocation3 + $0x98] sm:$0xff]
      %v2470 = vld [vmem:[#allocation3 + $0xa0] sm:$0xff]
      %v2471 = vld [vmem:[#allocation3 + $0xa8] sm:$0xff]
      %v2472 = vld [vmem:[#allocation3 + $0xb0] sm:$0xff]
      %v2473 = vld [vmem:[#allocation3 + $0xb8] sm:$0xff]
      %v2474 = vld [vmem:[#allocation3 + $0xc0] sm:$0xff]
      %v2475 = vld [vmem:[#allocation3 + $0xc8] sm:$0xff]
      %v2476 = vld [vmem:[#allocation3 + $0xd0] sm:$0xff]
      %v2477 = vld [vmem:[#allocation3 + $0xd8] sm:$0xff]
      %v2478 = vld [vmem:[#allocation3 + $0xe0] sm:$0xff]
      %v2479 = vld [vmem:[#allocation3 + $0xe8] sm:$0xff]
      %v2480 = vld [vmem:[#allocation3 + $0xf0] sm:$0xff]
      %v2481 = vld [vmem:[#allocation3 + $0xf8] sm:$0xff]
      %v2482 = vadd.f32 %v2450, %v2371
      %v2483 = vadd.f32 %v2451, %v2373
      %v2484 = vadd.f32 %v2452, %v2376
      %v2485 = vadd.f32 %v2453, %v2378
      %v2486 = vadd.f32 %v2454, %v2381
      %v2487 = vadd.f32 %v2455, %v2383
      %v2488 = vadd.f32 %v2456, %v2386
      %v2489 = vadd.f32 %v2457, %v2388
      %v2490 = vadd.f32 %v2458, %v2391
      %v2491 = vadd.f32 %v2459, %v2393
      %v2492 = vadd.f32 %v2460, %v2396
      %v2493 = vadd.f32 %v2461, %v2398
      %v2494 = vadd.f32 %v2462, %v2401
      %v2495 = vadd.f32 %v2463, %v2403
      %v2496 = vadd.f32 %v2464, %v2406
      %v2497 = vadd.f32 %v2465, %v2408
      %v2498 = vadd.f32 %v2466, %v2411
      %v2499 = vadd.f32 %v2467, %v2413
      %v2500 = vadd.f32 %v2468, %v2416
      %v2501 = vadd.f32 %v2469, %v2418
      %v2502 = vadd.f32 %v2470, %v2421
      %v2503 = vadd.f32 %v2471, %v2423
      %v2504 = vadd.f32 %v2472, %v2426
      %v2505 = vadd.f32 %v2473, %v2428
      %v2506 = vadd.f32 %v2474, %v2431
      %v2507 = vadd.f32 %v2475, %v2433
      %v2508 = vadd.f32 %v2476, %v2436
      %v2509 = vadd.f32 %v2477, %v2438
      %v2510 = vadd.f32 %v2478, %v2441
      %v2511 = vadd.f32 %v2479, %v2443
      %v2512 = vadd.f32 %v2480, %v2446
      %v2513 = vadd.f32 %v2481, %v2448
      %2514 = vst [vmem:[#allocation3] sm:$0xff] %v2482
      %2515 = vst [vmem:[#allocation3 + $0x8] sm:$0xff] %v2483
      %2516 = vst [vmem:[#allocation3 + $0x10] sm:$0xff] %v2484
      %2517 = vst [vmem:[#allocation3 + $0x18] sm:$0xff] %v2485
      %2518 = vst [vmem:[#allocation3 + $0x20] sm:$0xff] %v2486
      %2519 = vst [vmem:[#allocation3 + $0x28] sm:$0xff] %v2487
      %2520 = vst [vmem:[#allocation3 + $0x30] sm:$0xff] %v2488
      %2521 = vst [vmem:[#allocation3 + $0x38] sm:$0xff] %v2489
      %2522 = vst [vmem:[#allocation3 + $0x40] sm:$0xff] %v2490
      %2523 = vst [vmem:[#allocation3 + $0x48] sm:$0xff] %v2491
      %2524 = vst [vmem:[#allocation3 + $0x50] sm:$0xff] %v2492
      %2525 = vst [vmem:[#allocation3 + $0x58] sm:$0xff] %v2493
      %2526 = vst [vmem:[#allocation3 + $0x60] sm:$0xff] %v2494
      %2527 = vst [vmem:[#allocation3 + $0x68] sm:$0xff] %v2495
      %2528 = vst [vmem:[#allocation3 + $0x70] sm:$0xff] %v2496
      %2529 = vst [vmem:[#allocation3 + $0x78] sm:$0xff] %v2497
      %2530 = vst [vmem:[#allocation3 + $0x80] sm:$0xff] %v2498
      %2531 = vst [vmem:[#allocation3 + $0x88] sm:$0xff] %v2499
      %2532 = vst [vmem:[#allocation3 + $0x90] sm:$0xff] %v2500
      %2533 = vst [vmem:[#allocation3 + $0x98] sm:$0xff] %v2501
      %2534 = vst [vmem:[#allocation3 + $0xa0] sm:$0xff] %v2502
      %2535 = vst [vmem:[#allocation3 + $0xa8] sm:$0xff] %v2503
      %2536 = vst [vmem:[#allocation3 + $0xb0] sm:$0xff] %v2504
      %2537 = vst [vmem:[#allocation3 + $0xb8] sm:$0xff] %v2505
      %2538 = vst [vmem:[#allocation3 + $0xc0] sm:$0xff] %v2506
      %2539 = vst [vmem:[#allocation3 + $0xc8] sm:$0xff] %v2507
      %2540 = vst [vmem:[#allocation3 + $0xd0] sm:$0xff] %v2508
      %2541 = vst [vmem:[#allocation3 + $0xd8] sm:$0xff] %v2509
      %2542 = vst [vmem:[#allocation3 + $0xe0] sm:$0xff] %v2510
      %2543 = vst [vmem:[#allocation3 + $0xe8] sm:$0xff] %v2511
      %2544 = vst [vmem:[#allocation3 + $0xf0] sm:$0xff] %v2512
      %2545 = vst [vmem:[#allocation3 + $0xf8] sm:$0xff] %v2513
      %v2546 = vld [vmem:[%s1949 + $0x2] sm:$0xff]
      %v2547 = vld [vmem:[%s1949 + $0xa] sm:$0xff]
      %v2548 = vld [vmem:[%s1949 + $0x1a] sm:$0xff]
      %v2549 = vld [vmem:[%s1949 + $0x22] sm:$0xff]
      %v2550 = vld [vmem:[%s1949 + $0x32] sm:$0xff]
      %v2551 = vld [vmem:[%s1949 + $0x3a] sm:$0xff]
      %v2552 = vld [vmem:[%s1949 + $0x4a] sm:$0xff]
      %v2553 = vld [vmem:[%s1949 + $0x52] sm:$0xff]
      %v2554 = vld [vmem:[%s1949 + $0x62] sm:$0xff]
      %v2555 = vld [vmem:[%s1949 + $0x6a] sm:$0xff]
      %v2556 = vld [vmem:[%s1949 + $0x7a] sm:$0xff]
      %v2557 = vld [vmem:[%s1949 + $0x82] sm:$0xff]
      %v2558 = vld [vmem:[%s1949 + $0x92] sm:$0xff]
      %v2559 = vld [vmem:[%s1949 + $0x9a] sm:$0xff]
      %v2560 = vld [vmem:[%s1949 + $0xaa] sm:$0xff]
      %v2561 = vld [vmem:[%s1949 + $0xb2] sm:$0xff]
      %v2562 = vld [vmem:[%s1949 + $0xc2] sm:$0xff]
      %v2563 = vld [vmem:[%s1949 + $0xca] sm:$0xff]
      %v2564 = vld [vmem:[%s1949 + $0xda] sm:$0xff]
      %v2565 = vld [vmem:[%s1949 + $0xe2] sm:$0xff]
      %v2566 = vld [vmem:[%s1949 + $0xf2] sm:$0xff]
      %v2567 = vld [vmem:[%s1949 + $0xfa] sm:$0xff]
      %v2568 = vld [vmem:[%s1949 + $0x10a] sm:$0xff]
      %v2569 = vld [vmem:[%s1949 + $0x112] sm:$0xff]
      %v2570 = vld [vmem:[%s1949 + $0x122] sm:$0xff]
      %v2571 = vld [vmem:[%s1949 + $0x12a] sm:$0xff]
      %v2572 = vld [vmem:[%s1949 + $0x13a] sm:$0xff]
      %v2573 = vld [vmem:[%s1949 + $0x142] sm:$0xff]
      %v2574 = vld [vmem:[%s1949 + $0x152] sm:$0xff]
      %v2575 = vld [vmem:[%s1949 + $0x15a] sm:$0xff]
      %v2576 = vld [vmem:[%s1949 + $0x16a] sm:$0xff]
      %v2577 = vld [vmem:[%s1949 + $0x172] sm:$0xff]
      %v2578 = vpack.c.bf16 %v2547, %v2546
      %v2579 = vpack.c.bf16 %v2549, %v2548
      %v2580 = vpack.c.bf16 %v2551, %v2550
      %v2581 = vpack.c.bf16 %v2553, %v2552
      %v2582 = vpack.c.bf16 %v2555, %v2554
      %v2583 = vpack.c.bf16 %v2557, %v2556
      %v2584 = vpack.c.bf16 %v2559, %v2558
      %v2585 = vpack.c.bf16 %v2561, %v2560
      %v2586 = vpack.c.bf16 %v2563, %v2562
      %v2587 = vpack.c.bf16 %v2565, %v2564
      %v2588 = vpack.c.bf16 %v2567, %v2566
      %v2589 = vpack.c.bf16 %v2569, %v2568
      %v2590 = vpack.c.bf16 %v2571, %v2570
      %v2591 = vpack.c.bf16 %v2573, %v2572
      %v2592 = vpack.c.bf16 %v2575, %v2574
      %v2593 = vpack.c.bf16 %v2577, %v2576
      %s2594 = scalar_lea.vmem %s1, 512
      %v2595 = vld [vmem:[%s2594] sm:$0xf]
      %v2596 = vld [vmem:[%s2594 + $0x4] sm:$0xf]
      %v2597 = vld [vmem:[%s2594 + $0x8] sm:$0xf]
      %v2598 = vld [vmem:[%s2594 + $0xc] sm:$0xf]
      %v2599 = vld [vmem:[%s2594 + $0x10] sm:$0xf]
      %v2600 = vld [vmem:[%s2594 + $0x14] sm:$0xf]
      %v2601 = vld [vmem:[%s2594 + $0x18] sm:$0xf]
      %v2602 = vld [vmem:[%s2594 + $0x1c] sm:$0xf]
      %v2603 = vld [vmem:[%s2594 + $0x20] sm:$0xf]
      %v2604 = vld [vmem:[%s2594 + $0x24] sm:$0xf]
      %v2605 = vld [vmem:[%s2594 + $0x28] sm:$0xf]
      %v2606 = vld [vmem:[%s2594 + $0x2c] sm:$0xf]
      %v2607 = vld [vmem:[%s2594 + $0x30] sm:$0xf]
      %v2608 = vld [vmem:[%s2594 + $0x34] sm:$0xf]
      %v2609 = vld [vmem:[%s2594 + $0x38] sm:$0xf]
      %v2610 = vld [vmem:[%s2594 + $0x3c] sm:$0xf]
      %v2627 = vunpack.c.l.b16 %v2595
      %v2628 = vunpack.c.l.b16 %v2596
      %v2629 = vunpack.c.l.b16 %v2597
      %v2630 = vunpack.c.l.b16 %v2598
      %v2631 = vunpack.c.l.b16 %v2599
      %v2632 = vunpack.c.l.b16 %v2600
      %v2633 = vunpack.c.l.b16 %v2601
      %v2634 = vunpack.c.l.b16 %v2602
      %v2635 = vunpack.c.l.b16 %v2603
      %v2636 = vunpack.c.l.b16 %v2604
      %v2637 = vunpack.c.l.b16 %v2605
      %v2638 = vunpack.c.l.b16 %v2606
      %v2639 = vunpack.c.l.b16 %v2607
      %v2640 = vunpack.c.l.b16 %v2608
      %v2641 = vunpack.c.l.b16 %v2609
      %v2642 = vunpack.c.l.b16 %v2610
      %v2643 = vpack.c.b16 %v2628, %v2627
      %v2644 = vpack.c.b16 %v2630, %v2629
      %v2645 = vpack.c.b16 %v2632, %v2631
      %v2646 = vpack.c.b16 %v2634, %v2633
      %v2647 = vpack.c.b16 %v2636, %v2635
      %v2648 = vpack.c.b16 %v2638, %v2637
      %v2649 = vpack.c.b16 %v2640, %v2639
      %v2650 = vpack.c.b16 %v2642, %v2641
      %2659 = vmatpush.bf16.msra.mxu0 %v2650
      %2660 = vmatpush.bf16.msra.mxu0 %v2649
      %2661 = vmatpush.bf16.msra.mxu0 %v2648
      %2662 = vmatpush.bf16.msra.mxu0 %v2647
      %2663 = vmatpush.bf16.msra.mxu0 %v2646
      %2664 = vmatpush.bf16.msra.mxu0 %v2645
      %2665 = vmatpush.bf16.msra.mxu0 %v2644
      %2666 = vmatpush.bf16.msra.mxu0 %v2643
      %2667 = vmatmul.bf16.gmra.mxu0 %v2578
      %v2668 = vpop.f32.mrf.mxu0
      %v2669 = vadd.f32 0.0, %v2668
      %v2670 = vpop.f32.mrf.mxu0
      %v2671 = vadd.f32 0.0, %v2670
      %2672 = vmatmul.bf16.gmra.mxu0 %v2579
      %v2673 = vpop.f32.mrf.mxu0
      %v2674 = vadd.f32 0.0, %v2673
      %v2675 = vpop.f32.mrf.mxu0
      %v2676 = vadd.f32 0.0, %v2675
      %2677 = vmatmul.bf16.gmra.mxu0 %v2580
      %v2678 = vpop.f32.mrf.mxu0
      %v2679 = vadd.f32 0.0, %v2678
      %v2680 = vpop.f32.mrf.mxu0
      %v2681 = vadd.f32 0.0, %v2680
      %2682 = vmatmul.bf16.gmra.mxu0 %v2581
      %v2683 = vpop.f32.mrf.mxu0
      %v2684 = vadd.f32 0.0, %v2683
      %v2685 = vpop.f32.mrf.mxu0
      %v2686 = vadd.f32 0.0, %v2685
      %2687 = vmatmul.bf16.gmra.mxu0 %v2582
      %v2688 = vpop.f32.mrf.mxu0
      %v2689 = vadd.f32 0.0, %v2688
      %v2690 = vpop.f32.mrf.mxu0
      %v2691 = vadd.f32 0.0, %v2690
      %2692 = vmatmul.bf16.gmra.mxu0 %v2583
      %v2693 = vpop.f32.mrf.mxu0
      %v2694 = vadd.f32 0.0, %v2693
      %v2695 = vpop.f32.mrf.mxu0
      %v2696 = vadd.f32 0.0, %v2695
      %2697 = vmatmul.bf16.gmra.mxu0 %v2584
      %v2698 = vpop.f32.mrf.mxu0
      %v2699 = vadd.f32 0.0, %v2698
      %v2700 = vpop.f32.mrf.mxu0
      %v2701 = vadd.f32 0.0, %v2700
      %2702 = vmatmul.bf16.gmra.mxu0 %v2585
      %v2703 = vpop.f32.mrf.mxu0
      %v2704 = vadd.f32 0.0, %v2703
      %v2705 = vpop.f32.mrf.mxu0
      %v2706 = vadd.f32 0.0, %v2705
      %2707 = vmatmul.bf16.gmra.mxu0 %v2586
      %v2708 = vpop.f32.mrf.mxu0
      %v2709 = vadd.f32 0.0, %v2708
      %v2710 = vpop.f32.mrf.mxu0
      %v2711 = vadd.f32 0.0, %v2710
      %2712 = vmatmul.bf16.gmra.mxu0 %v2587
      %v2713 = vpop.f32.mrf.mxu0
      %v2714 = vadd.f32 0.0, %v2713
      %v2715 = vpop.f32.mrf.mxu0
      %v2716 = vadd.f32 0.0, %v2715
      %2717 = vmatmul.bf16.gmra.mxu0 %v2588
      %v2718 = vpop.f32.mrf.mxu0
      %v2719 = vadd.f32 0.0, %v2718
      %v2720 = vpop.f32.mrf.mxu0
      %v2721 = vadd.f32 0.0, %v2720
      %2722 = vmatmul.bf16.gmra.mxu0 %v2589
      %v2723 = vpop.f32.mrf.mxu0
      %v2724 = vadd.f32 0.0, %v2723
      %v2725 = vpop.f32.mrf.mxu0
      %v2726 = vadd.f32 0.0, %v2725
      %2727 = vmatmul.bf16.gmra.mxu0 %v2590
      %v2728 = vpop.f32.mrf.mxu0
      %v2729 = vadd.f32 0.0, %v2728
      %v2730 = vpop.f32.mrf.mxu0
      %v2731 = vadd.f32 0.0, %v2730
      %2732 = vmatmul.bf16.gmra.mxu0 %v2591
      %v2733 = vpop.f32.mrf.mxu0
      %v2734 = vadd.f32 0.0, %v2733
      %v2735 = vpop.f32.mrf.mxu0
      %v2736 = vadd.f32 0.0, %v2735
      %2737 = vmatmul.bf16.gmra.mxu0 %v2592
      %v2738 = vpop.f32.mrf.mxu0
      %v2739 = vadd.f32 0.0, %v2738
      %v2740 = vpop.f32.mrf.mxu0
      %v2741 = vadd.f32 0.0, %v2740
      %2742 = vmatmul.bf16.gmra.mxu0 %v2593
      %v2743 = vpop.f32.mrf.mxu0
      %v2744 = vadd.f32 0.0, %v2743
      %v2745 = vpop.f32.mrf.mxu0
      %v2746 = vadd.f32 0.0, %v2745
      %2747 = vdwg.mxu0
      %v2748 = vld [vmem:[#allocation3] sm:$0xff]
      %v2749 = vld [vmem:[#allocation3 + $0x8] sm:$0xff]
      %v2750 = vld [vmem:[#allocation3 + $0x10] sm:$0xff]
      %v2751 = vld [vmem:[#allocation3 + $0x18] sm:$0xff]
      %v2752 = vld [vmem:[#allocation3 + $0x20] sm:$0xff]
      %v2753 = vld [vmem:[#allocation3 + $0x28] sm:$0xff]
      %v2754 = vld [vmem:[#allocation3 + $0x30] sm:$0xff]
      %v2755 = vld [vmem:[#allocation3 + $0x38] sm:$0xff]
      %v2756 = vld [vmem:[#allocation3 + $0x40] sm:$0xff]
      %v2757 = vld [vmem:[#allocation3 + $0x48] sm:$0xff]
      %v2758 = vld [vmem:[#allocation3 + $0x50] sm:$0xff]
      %v2759 = vld [vmem:[#allocation3 + $0x58] sm:$0xff]
      %v2760 = vld [vmem:[#allocation3 + $0x60] sm:$0xff]
      %v2761 = vld [vmem:[#allocation3 + $0x68] sm:$0xff]
      %v2762 = vld [vmem:[#allocation3 + $0x70] sm:$0xff]
      %v2763 = vld [vmem:[#allocation3 + $0x78] sm:$0xff]
      %v2764 = vld [vmem:[#allocation3 + $0x80] sm:$0xff]
      %v2765 = vld [vmem:[#allocation3 + $0x88] sm:$0xff]
      %v2766 = vld [vmem:[#allocation3 + $0x90] sm:$0xff]
      %v2767 = vld [vmem:[#allocation3 + $0x98] sm:$0xff]
      %v2768 = vld [vmem:[#allocation3 + $0xa0] sm:$0xff]
      %v2769 = vld [vmem:[#allocation3 + $0xa8] sm:$0xff]
      %v2770 = vld [vmem:[#allocation3 + $0xb0] sm:$0xff]
      %v2771 = vld [vmem:[#allocation3 + $0xb8] sm:$0xff]
      %v2772 = vld [vmem:[#allocation3 + $0xc0] sm:$0xff]
      %v2773 = vld [vmem:[#allocation3 + $0xc8] sm:$0xff]
      %v2774 = vld [vmem:[#allocation3 + $0xd0] sm:$0xff]
      %v2775 = vld [vmem:[#allocation3 + $0xd8] sm:$0xff]
      %v2776 = vld [vmem:[#allocation3 + $0xe0] sm:$0xff]
      %v2777 = vld [vmem:[#allocation3 + $0xe8] sm:$0xff]
      %v2778 = vld [vmem:[#allocation3 + $0xf0] sm:$0xff]
      %v2779 = vld [vmem:[#allocation3 + $0xf8] sm:$0xff]
      %v2780 = vadd.f32 %v2748, %v2669
      %v2781 = vadd.f32 %v2749, %v2671
      %v2782 = vadd.f32 %v2750, %v2674
      %v2783 = vadd.f32 %v2751, %v2676
      %v2784 = vadd.f32 %v2752, %v2679
      %v2785 = vadd.f32 %v2753, %v2681
      %v2786 = vadd.f32 %v2754, %v2684
      %v2787 = vadd.f32 %v2755, %v2686
      %v2788 = vadd.f32 %v2756, %v2689
      %v2789 = vadd.f32 %v2757, %v2691
      %v2790 = vadd.f32 %v2758, %v2694
      %v2791 = vadd.f32 %v2759, %v2696
      %v2792 = vadd.f32 %v2760, %v2699
      %v2793 = vadd.f32 %v2761, %v2701
      %v2794 = vadd.f32 %v2762, %v2704
      %v2795 = vadd.f32 %v2763, %v2706
      %v2796 = vadd.f32 %v2764, %v2709
      %v2797 = vadd.f32 %v2765, %v2711
      %v2798 = vadd.f32 %v2766, %v2714
      %v2799 = vadd.f32 %v2767, %v2716
      %v2800 = vadd.f32 %v2768, %v2719
      %v2801 = vadd.f32 %v2769, %v2721
      %v2802 = vadd.f32 %v2770, %v2724
      %v2803 = vadd.f32 %v2771, %v2726
      %v2804 = vadd.f32 %v2772, %v2729
      %v2805 = vadd.f32 %v2773, %v2731
      %v2806 = vadd.f32 %v2774, %v2734
      %v2807 = vadd.f32 %v2775, %v2736
      %v2808 = vadd.f32 %v2776, %v2739
      %v2809 = vadd.f32 %v2777, %v2741
      %v2810 = vadd.f32 %v2778, %v2744
      %v2811 = vadd.f32 %v2779, %v2746
      %2812 = vst [vmem:[#allocation3] sm:$0xff] %v2780
      %2813 = vst [vmem:[#allocation3 + $0x8] sm:$0xff] %v2781
      %2814 = vst [vmem:[#allocation3 + $0x10] sm:$0xff] %v2782
      %2815 = vst [vmem:[#allocation3 + $0x18] sm:$0xff] %v2783
      %2816 = vst [vmem:[#allocation3 + $0x20] sm:$0xff] %v2784
      %2817 = vst [vmem:[#allocation3 + $0x28] sm:$0xff] %v2785
      %2818 = vst [vmem:[#allocation3 + $0x30] sm:$0xff] %v2786
      %2819 = vst [vmem:[#allocation3 + $0x38] sm:$0xff] %v2787
      %2820 = vst [vmem:[#allocation3 + $0x40] sm:$0xff] %v2788
      %2821 = vst [vmem:[#allocation3 + $0x48] sm:$0xff] %v2789
      %2822 = vst [vmem:[#allocation3 + $0x50] sm:$0xff] %v2790
      %2823 = vst [vmem:[#allocation3 + $0x58] sm:$0xff] %v2791
      %2824 = vst [vmem:[#allocation3 + $0x60] sm:$0xff] %v2792
      %2825 = vst [vmem:[#allocation3 + $0x68] sm:$0xff] %v2793
      %2826 = vst [vmem:[#allocation3 + $0x70] sm:$0xff] %v2794
      %2827 = vst [vmem:[#allocation3 + $0x78] sm:$0xff] %v2795
      %2828 = vst [vmem:[#allocation3 + $0x80] sm:$0xff] %v2796
      %2829 = vst [vmem:[#allocation3 + $0x88] sm:$0xff] %v2797
      %2830 = vst [vmem:[#allocation3 + $0x90] sm:$0xff] %v2798
      %2831 = vst [vmem:[#allocation3 + $0x98] sm:$0xff] %v2799
      %2832 = vst [vmem:[#allocation3 + $0xa0] sm:$0xff] %v2800
      %2833 = vst [vmem:[#allocation3 + $0xa8] sm:$0xff] %v2801
      %2834 = vst [vmem:[#allocation3 + $0xb0] sm:$0xff] %v2802
      %2835 = vst [vmem:[#allocation3 + $0xb8] sm:$0xff] %v2803
      %2836 = vst [vmem:[#allocation3 + $0xc0] sm:$0xff] %v2804
      %2837 = vst [vmem:[#allocation3 + $0xc8] sm:$0xff] %v2805
      %2838 = vst [vmem:[#allocation3 + $0xd0] sm:$0xff] %v2806
      %2839 = vst [vmem:[#allocation3 + $0xd8] sm:$0xff] %v2807
      %2840 = vst [vmem:[#allocation3 + $0xe0] sm:$0xff] %v2808
      %2841 = vst [vmem:[#allocation3 + $0xe8] sm:$0xff] %v2809
      %2842 = vst [vmem:[#allocation3 + $0xf0] sm:$0xff] %v2810
      %2843 = vst [vmem:[#allocation3 + $0xf8] sm:$0xff] %v2811
      %v2844 = vld [vmem:[%s2] sm:$0x3]
      %2845 = vst [vmem:[#allocation2] sm:$0xff] 0.0
      %2846 = vst [vmem:[#allocation2 + $0x8] sm:$0xff] 0.0
      %2847 = vst [vmem:[#allocation2 + $0x10] sm:$0x3] 0.0
      %2848 = vst [vmem:[#allocation2 + $0x18] sm:$0xff] 0.0
      %2849 = vst [vmem:[#allocation2 + $0x20] sm:$0xff] 0.0
      %2850 = vst [vmem:[#allocation2 + $0x28] sm:$0x3] 0.0
      %2851 = vst [vmem:[#allocation2 + $0x30] sm:$0xff] 0.0
      %2852 = vst [vmem:[#allocation2 + $0x38] sm:$0xff] 0.0
      %2853 = vst [vmem:[#allocation2 + $0x40] sm:$0x3] 0.0
      %2854 = vst [vmem:[#allocation2 + $0x48] sm:$0xff] 0.0
      %2855 = vst [vmem:[#allocation2 + $0x50] sm:$0xff] 0.0
      %2856 = vst [vmem:[#allocation2 + $0x58] sm:$0x3] 0.0
      %2857 = vst [vmem:[#allocation2 + $0x60] sm:$0xff] 0.0
      %2858 = vst [vmem:[#allocation2 + $0x68] sm:$0xff] 0.0
      %2859 = vst [vmem:[#allocation2 + $0x70] sm:$0x3] 0.0
      %2860 = vst [vmem:[#allocation2 + $0x78] sm:$0xff] 0.0
      %2861 = vst [vmem:[#allocation2 + $0x80] sm:$0xff] 0.0
      %2862 = vst [vmem:[#allocation2 + $0x88] sm:$0x3] 0.0
      %2863 = vst [vmem:[#allocation2 + $0x90] sm:$0xff] 0.0
      %2864 = vst [vmem:[#allocation2 + $0x98] sm:$0xff] 0.0
      %2865 = vst [vmem:[#allocation2 + $0xa0] sm:$0x3] 0.0
      %2866 = vst [vmem:[#allocation2 + $0xa8] sm:$0xff] 0.0
      %2867 = vst [vmem:[#allocation2 + $0xb0] sm:$0xff] 0.0
      %2868 = vst [vmem:[#allocation2 + $0xb8] sm:$0x3] 0.0
      %2869 = vst [vmem:[#allocation2 + $0xc0] sm:$0xff] 0.0
      %2870 = vst [vmem:[#allocation2 + $0xc8] sm:$0xff] 0.0
      %2871 = vst [vmem:[#allocation2 + $0xd0] sm:$0x3] 0.0
      %2872 = vst [vmem:[#allocation2 + $0xd8] sm:$0xff] 0.0
      %2873 = vst [vmem:[#allocation2 + $0xe0] sm:$0xff] 0.0
      %2874 = vst [vmem:[#allocation2 + $0xe8] sm:$0x3] 0.0
      %2875 = vst [vmem:[#allocation2 + $0xf0] sm:$0xff] 0.0
      %2876 = vst [vmem:[#allocation2 + $0xf8] sm:$0xff] 0.0
      %2877 = vst [vmem:[#allocation2 + $0x100] sm:$0x3] 0.0
      %2878 = vst [vmem:[#allocation2 + $0x108] sm:$0xff] 0.0
      %2879 = vst [vmem:[#allocation2 + $0x110] sm:$0xff] 0.0
      %2880 = vst [vmem:[#allocation2 + $0x118] sm:$0x3] 0.0
      %2881 = vst [vmem:[#allocation2 + $0x120] sm:$0xff] 0.0
      %2882 = vst [vmem:[#allocation2 + $0x128] sm:$0xff] 0.0
      %2883 = vst [vmem:[#allocation2 + $0x130] sm:$0x3] 0.0
      %2884 = vst [vmem:[#allocation2 + $0x138] sm:$0xff] 0.0
      %2885 = vst [vmem:[#allocation2 + $0x140] sm:$0xff] 0.0
      %2886 = vst [vmem:[#allocation2 + $0x148] sm:$0x3] 0.0
      %2887 = vst [vmem:[#allocation2 + $0x150] sm:$0xff] 0.0
      %2888 = vst [vmem:[#allocation2 + $0x158] sm:$0xff] 0.0
      %2889 = vst [vmem:[#allocation2 + $0x160] sm:$0x3] 0.0
      %2890 = vst [vmem:[#allocation2 + $0x168] sm:$0xff] 0.0
      %2891 = vst [vmem:[#allocation2 + $0x170] sm:$0xff] 0.0
      %2892 = vst [vmem:[#allocation2 + $0x178] sm:$0x3] 0.0
      %2893 = vst [vmem:[#allocation2 + $0x180] sm:$0xff] 0.0
      %2894 = vst [vmem:[#allocation2 + $0x188] sm:$0xff] 0.0
      %2895 = vst [vmem:[#allocation2 + $0x190] sm:$0x3] 0.0
      %2896 = vst [vmem:[#allocation2 + $0x198] sm:$0xff] 0.0
      %2897 = vst [vmem:[#allocation2 + $0x1a0] sm:$0xff] 0.0
      %2898 = vst [vmem:[#allocation2 + $0x1a8] sm:$0x3] 0.0
      %v2899 = vld [vmem:[#allocation3] sm:$0xff]
      %v2900 = vld [vmem:[#allocation3 + $0x8] sm:$0xff]
      %v2901 = vld [vmem:[#allocation3 + $0x10] sm:$0xff]
      %v2902 = vld [vmem:[#allocation3 + $0x18] sm:$0xff]
      %v2903 = vld [vmem:[#allocation3 + $0x20] sm:$0xff]
      %v2904 = vld [vmem:[#allocation3 + $0x28] sm:$0xff]
      %v2905 = vld [vmem:[#allocation3 + $0x30] sm:$0xff]
      %v2906 = vld [vmem:[#allocation3 + $0x38] sm:$0xff]
      %v2907 = vld [vmem:[#allocation3 + $0x40] sm:$0xff]
      %v2908 = vld [vmem:[#allocation3 + $0x48] sm:$0xff]
      %v2909 = vld [vmem:[#allocation3 + $0x50] sm:$0xff]
      %v2910 = vld [vmem:[#allocation3 + $0x58] sm:$0xff]
      %v2911 = vld [vmem:[#allocation3 + $0x60] sm:$0xff]
      %v2912 = vld [vmem:[#allocation3 + $0x68] sm:$0xff]
      %v2913 = vld [vmem:[#allocation3 + $0x70] sm:$0xff]
      %v2914 = vld [vmem:[#allocation3 + $0x78] sm:$0xff]
      %v2915 = vld [vmem:[#allocation3 + $0x80] sm:$0xff]
      %v2916 = vld [vmem:[#allocation3 + $0x88] sm:$0xff]
      %v2917 = vld [vmem:[#allocation3 + $0x90] sm:$0xff]
      %v2918 = vld [vmem:[#allocation3 + $0x98] sm:$0xff]
      %v2919 = vld [vmem:[#allocation3 + $0xa0] sm:$0xff]
      %v2920 = vld [vmem:[#allocation3 + $0xa8] sm:$0xff]
      %v2921 = vld [vmem:[#allocation3 + $0xb0] sm:$0xff]
      %v2922 = vld [vmem:[#allocation3 + $0xb8] sm:$0xff]
      %v2923 = vld [vmem:[#allocation3 + $0xc0] sm:$0xff]
      %v2924 = vld [vmem:[#allocation3 + $0xc8] sm:$0xff]
      %v2925 = vld [vmem:[#allocation3 + $0xd0] sm:$0xff]
      %v2926 = vld [vmem:[#allocation3 + $0xd8] sm:$0xff]
      %v2927 = vld [vmem:[#allocation3 + $0xe0] sm:$0xff]
      %v2928 = vld [vmem:[#allocation3 + $0xe8] sm:$0xff]
      %v2929 = vld [vmem:[#allocation3 + $0xf0] sm:$0xff]
      %v2930 = vld [vmem:[#allocation3 + $0xf8] sm:$0xff]
      %v2931 = vperm.slane %v2844, 0
      %v2932 = vmul.f32 %v2899, %v2931
      %v2933 = vmul.f32 %v2900, %v2931
      %v2934 = vmul.f32 %v2901, %v2931
      %v2935 = vmul.f32 %v2902, %v2931
      %v2936 = vmul.f32 %v2903, %v2931
      %v2937 = vmul.f32 %v2904, %v2931
      %v2938 = vmul.f32 %v2905, %v2931
      %v2939 = vmul.f32 %v2906, %v2931
      %v2940 = vmul.f32 %v2907, %v2931
      %v2941 = vmul.f32 %v2908, %v2931
      %v2942 = vmul.f32 %v2909, %v2931
      %v2943 = vmul.f32 %v2910, %v2931
      %v2944 = vmul.f32 %v2911, %v2931
      %v2945 = vmul.f32 %v2912, %v2931
      %v2946 = vmul.f32 %v2913, %v2931
      %v2947 = vmul.f32 %v2914, %v2931
      %v2948 = vmul.f32 %v2915, %v2931
      %v2949 = vmul.f32 %v2916, %v2931
      %v2950 = vmul.f32 %v2917, %v2931
      %v2951 = vmul.f32 %v2918, %v2931
      %v2952 = vmul.f32 %v2919, %v2931
      %v2953 = vmul.f32 %v2920, %v2931
      %v2954 = vmul.f32 %v2921, %v2931
      %v2955 = vmul.f32 %v2922, %v2931
      %v2956 = vmul.f32 %v2923, %v2931
      %v2957 = vmul.f32 %v2924, %v2931
      %v2958 = vmul.f32 %v2925, %v2931
      %v2959 = vmul.f32 %v2926, %v2931
      %v2960 = vmul.f32 %v2927, %v2931
      %v2961 = vmul.f32 %v2928, %v2931
      %v2962 = vmul.f32 %v2929, %v2931
      %v2963 = vmul.f32 %v2930, %v2931
      %v2964 = vperm.slane %v2844, 1
      %v2965 = vadd.f32 %v2932, %v2964
      %v2966 = vadd.f32 %v2933, %v2964
      %v2967 = vadd.f32 %v2934, %v2964
      %v2968 = vadd.f32 %v2935, %v2964
      %v2969 = vadd.f32 %v2936, %v2964
      %v2970 = vadd.f32 %v2937, %v2964
      %v2971 = vadd.f32 %v2938, %v2964
      %v2972 = vadd.f32 %v2939, %v2964
      %v2973 = vadd.f32 %v2940, %v2964
      %v2974 = vadd.f32 %v2941, %v2964
      %v2975 = vadd.f32 %v2942, %v2964
      %v2976 = vadd.f32 %v2943, %v2964
      %v2977 = vadd.f32 %v2944, %v2964
      %v2978 = vadd.f32 %v2945, %v2964
      %v2979 = vadd.f32 %v2946, %v2964
      %v2980 = vadd.f32 %v2947, %v2964
      %v2981 = vadd.f32 %v2948, %v2964
      %v2982 = vadd.f32 %v2949, %v2964
      %v2983 = vadd.f32 %v2950, %v2964
      %v2984 = vadd.f32 %v2951, %v2964
      %v2985 = vadd.f32 %v2952, %v2964
      %v2986 = vadd.f32 %v2953, %v2964
      %v2987 = vadd.f32 %v2954, %v2964
      %v2988 = vadd.f32 %v2955, %v2964
      %v2989 = vadd.f32 %v2956, %v2964
      %v2990 = vadd.f32 %v2957, %v2964
      %v2991 = vadd.f32 %v2958, %v2964
      %v2992 = vadd.f32 %v2959, %v2964
      %v2993 = vadd.f32 %v2960, %v2964
      %v2994 = vadd.f32 %v2961, %v2964
      %v2995 = vadd.f32 %v2962, %v2964
      %v2996 = vadd.f32 %v2963, %v2964
      %v2997 = vmax.f32 %v2965, 0.0
      %v2998 = vmax.f32 %v2966, 0.0
      %v2999 = vmax.f32 %v2967, 0.0
      %v3000 = vmax.f32 %v2968, 0.0
      %v3001 = vmax.f32 %v2969, 0.0
      %v3002 = vmax.f32 %v2970, 0.0
      %v3003 = vmax.f32 %v2971, 0.0
      %v3004 = vmax.f32 %v2972, 0.0
      %v3005 = vmax.f32 %v2973, 0.0
      %v3006 = vmax.f32 %v2974, 0.0
      %v3007 = vmax.f32 %v2975, 0.0
      %v3008 = vmax.f32 %v2976, 0.0
      %v3009 = vmax.f32 %v2977, 0.0
      %v3010 = vmax.f32 %v2978, 0.0
      %v3011 = vmax.f32 %v2979, 0.0
      %v3012 = vmax.f32 %v2980, 0.0
      %v3013 = vmax.f32 %v2981, 0.0
      %v3014 = vmax.f32 %v2982, 0.0
      %v3015 = vmax.f32 %v2983, 0.0
      %v3016 = vmax.f32 %v2984, 0.0
      %v3017 = vmax.f32 %v2985, 0.0
      %v3018 = vmax.f32 %v2986, 0.0
      %v3019 = vmax.f32 %v2987, 0.0
      %v3020 = vmax.f32 %v2988, 0.0
      %v3021 = vmax.f32 %v2989, 0.0
      %v3022 = vmax.f32 %v2990, 0.0
      %v3023 = vmax.f32 %v2991, 0.0
      %v3024 = vmax.f32 %v2992, 0.0
      %v3025 = vmax.f32 %v2993, 0.0
      %v3026 = vmax.f32 %v2994, 0.0
      %v3027 = vmax.f32 %v2995, 0.0
      %v3028 = vmax.f32 %v2996, 0.0
      %s3029 = scalar_lea.vmem [#allocation2], 24
      %3030 = vst [vmem:[%s3029 + $0x1] sm:$0xff] %v2997
      %3031 = vst [vmem:[%s3029 + $0x9] sm:$0xff] %v2998
      %3032 = vst [vmem:[%s3029 + $0x19] sm:$0xff] %v2999
      %3033 = vst [vmem:[%s3029 + $0x21] sm:$0xff] %v3000
      %3034 = vst [vmem:[%s3029 + $0x31] sm:$0xff] %v3001
      %3035 = vst [vmem:[%s3029 + $0x39] sm:$0xff] %v3002
      %3036 = vst [vmem:[%s3029 + $0x49] sm:$0xff] %v3003
      %3037 = vst [vmem:[%s3029 + $0x51] sm:$0xff] %v3004
      %3038 = vst [vmem:[%s3029 + $0x61] sm:$0xff] %v3005
      %3039 = vst [vmem:[%s3029 + $0x69] sm:$0xff] %v3006
      %3040 = vst [vmem:[%s3029 + $0x79] sm:$0xff] %v3007
      %3041 = vst [vmem:[%s3029 + $0x81] sm:$0xff] %v3008
      %3042 = vst [vmem:[%s3029 + $0x91] sm:$0xff] %v3009
      %3043 = vst [vmem:[%s3029 + $0x99] sm:$0xff] %v3010
      %3044 = vst [vmem:[%s3029 + $0xa9] sm:$0xff] %v3011
      %3045 = vst [vmem:[%s3029 + $0xb1] sm:$0xff] %v3012
      %3046 = vst [vmem:[%s3029 + $0xc1] sm:$0xff] %v3013
      %3047 = vst [vmem:[%s3029 + $0xc9] sm:$0xff] %v3014
      %3048 = vst [vmem:[%s3029 + $0xd9] sm:$0xff] %v3015
      %3049 = vst [vmem:[%s3029 + $0xe1] sm:$0xff] %v3016
      %3050 = vst [vmem:[%s3029 + $0xf1] sm:$0xff] %v3017
      %3051 = vst [vmem:[%s3029 + $0xf9] sm:$0xff] %v3018
      %3052 = vst [vmem:[%s3029 + $0x109] sm:$0xff] %v3019
      %3053 = vst [vmem:[%s3029 + $0x111] sm:$0xff] %v3020
      %3054 = vst [vmem:[%s3029 + $0x121] sm:$0xff] %v3021
      %3055 = vst [vmem:[%s3029 + $0x129] sm:$0xff] %v3022
      %3056 = vst [vmem:[%s3029 + $0x139] sm:$0xff] %v3023
      %3057 = vst [vmem:[%s3029 + $0x141] sm:$0xff] %v3024
      %3058 = vst [vmem:[%s3029 + $0x151] sm:$0xff] %v3025
      %3059 = vst [vmem:[%s3029 + $0x159] sm:$0xff] %v3026
      %3060 = vst [vmem:[%s3029 + $0x169] sm:$0xff] %v3027
      %3061 = vst [vmem:[%s3029 + $0x171] sm:$0xff] %v3028
      %v3062 = vld [vmem:[#allocation2] sm:$0xff]
      %v3063 = vld [vmem:[#allocation2 + $0x8] sm:$0xff]
      %v3064 = vld [vmem:[#allocation2 + $0x18] sm:$0xff]
      %v3065 = vld [vmem:[#allocation2 + $0x20] sm:$0xff]
      %v3066 = vld [vmem:[#allocation2 + $0x30] sm:$0xff]
      %v3067 = vld [vmem:[#allocation2 + $0x38] sm:$0xff]
      %v3068 = vld [vmem:[#allocation2 + $0x48] sm:$0xff]
      %v3069 = vld [vmem:[#allocation2 + $0x50] sm:$0xff]
      %v3070 = vld [vmem:[#allocation2 + $0x60] sm:$0xff]
      %v3071 = vld [vmem:[#allocation2 + $0x68] sm:$0xff]
      %v3072 = vld [vmem:[#allocation2 + $0x78] sm:$0xff]
      %v3073 = vld [vmem:[#allocation2 + $0x80] sm:$0xff]
      %v3074 = vld [vmem:[#allocation2 + $0x90] sm:$0xff]
      %v3075 = vld [vmem:[#allocation2 + $0x98] sm:$0xff]
      %v3076 = vld [vmem:[#allocation2 + $0xa8] sm:$0xff]
      %v3077 = vld [vmem:[#allocation2 + $0xb0] sm:$0xff]
      %v3078 = vld [vmem:[#allocation2 + $0xc0] sm:$0xff]
      %v3079 = vld [vmem:[#allocation2 + $0xc8] sm:$0xff]
      %v3080 = vld [vmem:[#allocation2 + $0xd8] sm:$0xff]
      %v3081 = vld [vmem:[#allocation2 + $0xe0] sm:$0xff]
      %v3082 = vld [vmem:[#allocation2 + $0xf0] sm:$0xff]
      %v3083 = vld [vmem:[#allocation2 + $0xf8] sm:$0xff]
      %v3084 = vld [vmem:[#allocation2 + $0x108] sm:$0xff]
      %v3085 = vld [vmem:[#allocation2 + $0x110] sm:$0xff]
      %v3086 = vld [vmem:[#allocation2 + $0x120] sm:$0xff]
      %v3087 = vld [vmem:[#allocation2 + $0x128] sm:$0xff]
      %v3088 = vld [vmem:[#allocation2 + $0x138] sm:$0xff]
      %v3089 = vld [vmem:[#allocation2 + $0x140] sm:$0xff]
      %v3090 = vld [vmem:[#allocation2 + $0x150] sm:$0xff]
      %v3091 = vld [vmem:[#allocation2 + $0x158] sm:$0xff]
      %v3092 = vld [vmem:[#allocation2 + $0x168] sm:$0xff]
      %v3093 = vld [vmem:[#allocation2 + $0x170] sm:$0xff]
      %v3094 = vpack.c.bf16 %v3063, %v3062
      %v3095 = vpack.c.bf16 %v3065, %v3064
      %v3096 = vpack.c.bf16 %v3067, %v3066
      %v3097 = vpack.c.bf16 %v3069, %v3068
      %v3098 = vpack.c.bf16 %v3071, %v3070
      %v3099 = vpack.c.bf16 %v3073, %v3072
      %v3100 = vpack.c.bf16 %v3075, %v3074
      %v3101 = vpack.c.bf16 %v3077, %v3076
      %v3102 = vpack.c.bf16 %v3079, %v3078
      %v3103 = vpack.c.bf16 %v3081, %v3080
      %v3104 = vpack.c.bf16 %v3083, %v3082
      %v3105 = vpack.c.bf16 %v3085, %v3084
      %v3106 = vpack.c.bf16 %v3087, %v3086
      %v3107 = vpack.c.bf16 %v3089, %v3088
      %v3108 = vpack.c.bf16 %v3091, %v3090
      %v3109 = vpack.c.bf16 %v3093, %v3092
      %v3110 = vld [vmem:[%s3] sm:$0xf]
      %v3111 = vld [vmem:[%s3 + $0x4] sm:$0xf]
      %v3112 = vld [vmem:[%s3 + $0x8] sm:$0xf]
      %v3113 = vld [vmem:[%s3 + $0xc] sm:$0xf]
      %v3114 = vld [vmem:[%s3 + $0x10] sm:$0xf]
      %v3115 = vld [vmem:[%s3 + $0x14] sm:$0xf]
      %v3116 = vld [vmem:[%s3 + $0x18] sm:$0xf]
      %v3117 = vld [vmem:[%s3 + $0x1c] sm:$0xf]
      %v3118 = vld [vmem:[%s3 + $0x20] sm:$0xf]
      %v3119 = vld [vmem:[%s3 + $0x24] sm:$0xf]
      %v3120 = vld [vmem:[%s3 + $0x28] sm:$0xf]
      %v3121 = vld [vmem:[%s3 + $0x2c] sm:$0xf]
      %v3122 = vld [vmem:[%s3 + $0x30] sm:$0xf]
      %v3123 = vld [vmem:[%s3 + $0x34] sm:$0xf]
      %v3124 = vld [vmem:[%s3 + $0x38] sm:$0xf]
      %v3125 = vld [vmem:[%s3 + $0x3c] sm:$0xf]
      %v3142 = vunpack.c.l.b16 %v3110
      %v3143 = vunpack.c.l.b16 %v3111
      %v3144 = vunpack.c.l.b16 %v3112
      %v3145 = vunpack.c.l.b16 %v3113
      %v3146 = vunpack.c.l.b16 %v3114
      %v3147 = vunpack.c.l.b16 %v3115
      %v3148 = vunpack.c.l.b16 %v3116
      %v3149 = vunpack.c.l.b16 %v3117
      %v3150 = vunpack.c.l.b16 %v3118
      %v3151 = vunpack.c.l.b16 %v3119
      %v3152 = vunpack.c.l.b16 %v3120
      %v3153 = vunpack.c.l.b16 %v3121
      %v3154 = vunpack.c.l.b16 %v3122
      %v3155 = vunpack.c.l.b16 %v3123
      %v3156 = vunpack.c.l.b16 %v3124
      %v3157 = vunpack.c.l.b16 %v3125
      %v3158 = vpack.c.b16 %v3143, %v3142
      %v3159 = vpack.c.b16 %v3145, %v3144
      %v3160 = vpack.c.b16 %v3147, %v3146
      %v3161 = vpack.c.b16 %v3149, %v3148
      %v3162 = vpack.c.b16 %v3151, %v3150
      %v3163 = vpack.c.b16 %v3153, %v3152
      %v3164 = vpack.c.b16 %v3155, %v3154
      %v3165 = vpack.c.b16 %v3157, %v3156
      %3174 = vmatpush.bf16.msra.mxu0 %v3165
      %3175 = vmatpush.bf16.msra.mxu0 %v3164
      %3176 = vmatpush.bf16.msra.mxu0 %v3163
      %3177 = vmatpush.bf16.msra.mxu0 %v3162
      %3178 = vmatpush.bf16.msra.mxu0 %v3161
      %3179 = vmatpush.bf16.msra.mxu0 %v3160
      %3180 = vmatpush.bf16.msra.mxu0 %v3159
      %3181 = vmatpush.bf16.msra.mxu0 %v3158
      %3182 = vmatmul.bf16.gmra.mxu0 %v3094
      %v3183 = vpop.f32.mrf.mxu0
      %v3184 = vadd.f32 0.0, %v3183
      %v3185 = vpop.f32.mrf.mxu0
      %v3186 = vadd.f32 0.0, %v3185
      %3187 = vmatmul.bf16.gmra.mxu0 %v3095
      %v3188 = vpop.f32.mrf.mxu0
      %v3189 = vadd.f32 0.0, %v3188
      %v3190 = vpop.f32.mrf.mxu0
      %v3191 = vadd.f32 0.0, %v3190
      %3192 = vmatmul.bf16.gmra.mxu0 %v3096
      %v3193 = vpop.f32.mrf.mxu0
      %v3194 = vadd.f32 0.0, %v3193
      %v3195 = vpop.f32.mrf.mxu0
      %v3196 = vadd.f32 0.0, %v3195
      %3197 = vmatmul.bf16.gmra.mxu0 %v3097
      %v3198 = vpop.f32.mrf.mxu0
      %v3199 = vadd.f32 0.0, %v3198
      %v3200 = vpop.f32.mrf.mxu0
      %v3201 = vadd.f32 0.0, %v3200
      %3202 = vmatmul.bf16.gmra.mxu0 %v3098
      %v3203 = vpop.f32.mrf.mxu0
      %v3204 = vadd.f32 0.0, %v3203
      %v3205 = vpop.f32.mrf.mxu0
      %v3206 = vadd.f32 0.0, %v3205
      %3207 = vmatmul.bf16.gmra.mxu0 %v3099
      %v3208 = vpop.f32.mrf.mxu0
      %v3209 = vadd.f32 0.0, %v3208
      %v3210 = vpop.f32.mrf.mxu0
      %v3211 = vadd.f32 0.0, %v3210
      %3212 = vmatmul.bf16.gmra.mxu0 %v3100
      %v3213 = vpop.f32.mrf.mxu0
      %v3214 = vadd.f32 0.0, %v3213
      %v3215 = vpop.f32.mrf.mxu0
      %v3216 = vadd.f32 0.0, %v3215
      %3217 = vmatmul.bf16.gmra.mxu0 %v3101
      %v3218 = vpop.f32.mrf.mxu0
      %v3219 = vadd.f32 0.0, %v3218
      %v3220 = vpop.f32.mrf.mxu0
      %v3221 = vadd.f32 0.0, %v3220
      %3222 = vmatmul.bf16.gmra.mxu0 %v3102
      %v3223 = vpop.f32.mrf.mxu0
      %v3224 = vadd.f32 0.0, %v3223
      %v3225 = vpop.f32.mrf.mxu0
      %v3226 = vadd.f32 0.0, %v3225
      %3227 = vmatmul.bf16.gmra.mxu0 %v3103
      %v3228 = vpop.f32.mrf.mxu0
      %v3229 = vadd.f32 0.0, %v3228
      %v3230 = vpop.f32.mrf.mxu0
      %v3231 = vadd.f32 0.0, %v3230
      %3232 = vmatmul.bf16.gmra.mxu0 %v3104
      %v3233 = vpop.f32.mrf.mxu0
      %v3234 = vadd.f32 0.0, %v3233
      %v3235 = vpop.f32.mrf.mxu0
      %v3236 = vadd.f32 0.0, %v3235
      %3237 = vmatmul.bf16.gmra.mxu0 %v3105
      %v3238 = vpop.f32.mrf.mxu0
      %v3239 = vadd.f32 0.0, %v3238
      %v3240 = vpop.f32.mrf.mxu0
      %v3241 = vadd.f32 0.0, %v3240
      %3242 = vmatmul.bf16.gmra.mxu0 %v3106
      %v3243 = vpop.f32.mrf.mxu0
      %v3244 = vadd.f32 0.0, %v3243
      %v3245 = vpop.f32.mrf.mxu0
      %v3246 = vadd.f32 0.0, %v3245
      %3247 = vmatmul.bf16.gmra.mxu0 %v3107
      %v3248 = vpop.f32.mrf.mxu0
      %v3249 = vadd.f32 0.0, %v3248
      %v3250 = vpop.f32.mrf.mxu0
      %v3251 = vadd.f32 0.0, %v3250
      %3252 = vmatmul.bf16.gmra.mxu0 %v3108
      %v3253 = vpop.f32.mrf.mxu0
      %v3254 = vadd.f32 0.0, %v3253
      %v3255 = vpop.f32.mrf.mxu0
      %v3256 = vadd.f32 0.0, %v3255
      %3257 = vmatmul.bf16.gmra.mxu0 %v3109
      %v3258 = vpop.f32.mrf.mxu0
      %v3259 = vadd.f32 0.0, %v3258
      %v3260 = vpop.f32.mrf.mxu0
      %v3261 = vadd.f32 0.0, %v3260
      %3262 = vdwg.mxu0
      %3263 = vst [vmem:[#allocation4] sm:$0xff] %v3184
      %3264 = vst [vmem:[#allocation4 + $0x8] sm:$0xff] %v3186
      %3265 = vst [vmem:[#allocation4 + $0x10] sm:$0xff] %v3189
      %3266 = vst [vmem:[#allocation4 + $0x18] sm:$0xff] %v3191
      %3267 = vst [vmem:[#allocation4 + $0x20] sm:$0xff] %v3194
      %3268 = vst [vmem:[#allocation4 + $0x28] sm:$0xff] %v3196
      %3269 = vst [vmem:[#allocation4 + $0x30] sm:$0xff] %v3199
      %3270 = vst [vmem:[#allocation4 + $0x38] sm:$0xff] %v3201
      %3271 = vst [vmem:[#allocation4 + $0x40] sm:$0xff] %v3204
      %3272 = vst [vmem:[#allocation4 + $0x48] sm:$0xff] %v3206
      %3273 = vst [vmem:[#allocation4 + $0x50] sm:$0xff] %v3209
      %3274 = vst [vmem:[#allocation4 + $0x58] sm:$0xff] %v3211
      %3275 = vst [vmem:[#allocation4 + $0x60] sm:$0xff] %v3214
      %3276 = vst [vmem:[#allocation4 + $0x68] sm:$0xff] %v3216
      %3277 = vst [vmem:[#allocation4 + $0x70] sm:$0xff] %v3219
      %3278 = vst [vmem:[#allocation4 + $0x78] sm:$0xff] %v3221
      %3279 = vst [vmem:[#allocation4 + $0x80] sm:$0xff] %v3224
      %3280 = vst [vmem:[#allocation4 + $0x88] sm:$0xff] %v3226
      %3281 = vst [vmem:[#allocation4 + $0x90] sm:$0xff] %v3229
      %3282 = vst [vmem:[#allocation4 + $0x98] sm:$0xff] %v3231
      %3283 = vst [vmem:[#allocation4 + $0xa0] sm:$0xff] %v3234
      %3284 = vst [vmem:[#allocation4 + $0xa8] sm:$0xff] %v3236
      %3285 = vst [vmem:[#allocation4 + $0xb0] sm:$0xff] %v3239
      %3286 = vst [vmem:[#allocation4 + $0xb8] sm:$0xff] %v3241
      %3287 = vst [vmem:[#allocation4 + $0xc0] sm:$0xff] %v3244
      %3288 = vst [vmem:[#allocation4 + $0xc8] sm:$0xff] %v3246
      %3289 = vst [vmem:[#allocation4 + $0xd0] sm:$0xff] %v3249
      %3290 = vst [vmem:[#allocation4 + $0xd8] sm:$0xff] %v3251
      %3291 = vst [vmem:[#allocation4 + $0xe0] sm:$0xff] %v3254
      %3292 = vst [vmem:[#allocation4 + $0xe8] sm:$0xff] %v3256
      %3293 = vst [vmem:[#allocation4 + $0xf0] sm:$0xff] %v3259
      %3294 = vst [vmem:[#allocation4 + $0xf8] sm:$0xff] %v3261
      %v3295 = vld [vmem:[#allocation2 + $0x1] sm:$0xff]
      %v3296 = vld [vmem:[#allocation2 + $0x9] sm:$0xff]
      %v3297 = vld [vmem:[#allocation2 + $0x19] sm:$0xff]
      %v3298 = vld [vmem:[#allocation2 + $0x21] sm:$0xff]
      %v3299 = vld [vmem:[#allocation2 + $0x31] sm:$0xff]
      %v3300 = vld [vmem:[#allocation2 + $0x39] sm:$0xff]
      %v3301 = vld [vmem:[#allocation2 + $0x49] sm:$0xff]
      %v3302 = vld [vmem:[#allocation2 + $0x51] sm:$0xff]
      %v3303 = vld [vmem:[#allocation2 + $0x61] sm:$0xff]
      %v3304 = vld [vmem:[#allocation2 + $0x69] sm:$0xff]
      %v3305 = vld [vmem:[#allocation2 + $0x79] sm:$0xff]
      %v3306 = vld [vmem:[#allocation2 + $0x81] sm:$0xff]
      %v3307 = vld [vmem:[#allocation2 + $0x91] sm:$0xff]
      %v3308 = vld [vmem:[#allocation2 + $0x99] sm:$0xff]
      %v3309 = vld [vmem:[#allocation2 + $0xa9] sm:$0xff]
      %v3310 = vld [vmem:[#allocation2 + $0xb1] sm:$0xff]
      %v3311 = vld [vmem:[#allocation2 + $0xc1] sm:$0xff]
      %v3312 = vld [vmem:[#allocation2 + $0xc9] sm:$0xff]
      %v3313 = vld [vmem:[#allocation2 + $0xd9] sm:$0xff]
      %v3314 = vld [vmem:[#allocation2 + $0xe1] sm:$0xff]
      %v3315 = vld [vmem:[#allocation2 + $0xf1] sm:$0xff]
      %v3316 = vld [vmem:[#allocation2 + $0xf9] sm:$0xff]
      %v3317 = vld [vmem:[#allocation2 + $0x109] sm:$0xff]
      %v3318 = vld [vmem:[#allocation2 + $0x111] sm:$0xff]
      %v3319 = vld [vmem:[#allocation2 + $0x121] sm:$0xff]
      %v3320 = vld [vmem:[#allocation2 + $0x129] sm:$0xff]
      %v3321 = vld [vmem:[#allocation2 + $0x139] sm:$0xff]
      %v3322 = vld [vmem:[#allocation2 + $0x141] sm:$0xff]
      %v3323 = vld [vmem:[#allocation2 + $0x151] sm:$0xff]
      %v3324 = vld [vmem:[#allocation2 + $0x159] sm:$0xff]
      %v3325 = vld [vmem:[#allocation2 + $0x169] sm:$0xff]
      %v3326 = vld [vmem:[#allocation2 + $0x171] sm:$0xff]
      %v3327 = vpack.c.bf16 %v3296, %v3295
      %v3328 = vpack.c.bf16 %v3298, %v3297
      %v3329 = vpack.c.bf16 %v3300, %v3299
      %v3330 = vpack.c.bf16 %v3302, %v3301
      %v3331 = vpack.c.bf16 %v3304, %v3303
      %v3332 = vpack.c.bf16 %v3306, %v3305
      %v3333 = vpack.c.bf16 %v3308, %v3307
      %v3334 = vpack.c.bf16 %v3310, %v3309
      %v3335 = vpack.c.bf16 %v3312, %v3311
      %v3336 = vpack.c.bf16 %v3314, %v3313
      %v3337 = vpack.c.bf16 %v3316, %v3315
      %v3338 = vpack.c.bf16 %v3318, %v3317
      %v3339 = vpack.c.bf16 %v3320, %v3319
      %v3340 = vpack.c.bf16 %v3322, %v3321
      %v3341 = vpack.c.bf16 %v3324, %v3323
      %v3342 = vpack.c.bf16 %v3326, %v3325
      %s3343 = scalar_lea.vmem %s3, 64
      %v3344 = vld [vmem:[%s3343] sm:$0xf]
      %v3345 = vld [vmem:[%s3343 + $0x4] sm:$0xf]
      %v3346 = vld [vmem:[%s3343 + $0x8] sm:$0xf]
      %v3347 = vld [vmem:[%s3343 + $0xc] sm:$0xf]
      %v3348 = vld [vmem:[%s3343 + $0x10] sm:$0xf]
      %v3349 = vld [vmem:[%s3343 + $0x14] sm:$0xf]
      %v3350 = vld [vmem:[%s3343 + $0x18] sm:$0xf]
      %v3351 = vld [vmem:[%s3343 + $0x1c] sm:$0xf]
      %v3352 = vld [vmem:[%s3343 + $0x20] sm:$0xf]
      %v3353 = vld [vmem:[%s3343 + $0x24] sm:$0xf]
      %v3354 = vld [vmem:[%s3343 + $0x28] sm:$0xf]
      %v3355 = vld [vmem:[%s3343 + $0x2c] sm:$0xf]
      %v3356 = vld [vmem:[%s3343 + $0x30] sm:$0xf]
      %v3357 = vld [vmem:[%s3343 + $0x34] sm:$0xf]
      %v3358 = vld [vmem:[%s3343 + $0x38] sm:$0xf]
      %v3359 = vld [vmem:[%s3343 + $0x3c] sm:$0xf]
      %v3376 = vunpack.c.l.b16 %v3344
      %v3377 = vunpack.c.l.b16 %v3345
      %v3378 = vunpack.c.l.b16 %v3346
      %v3379 = vunpack.c.l.b16 %v3347
      %v3380 = vunpack.c.l.b16 %v3348
      %v3381 = vunpack.c.l.b16 %v3349
      %v3382 = vunpack.c.l.b16 %v3350
      %v3383 = vunpack.c.l.b16 %v3351
      %v3384 = vunpack.c.l.b16 %v3352
      %v3385 = vunpack.c.l.b16 %v3353
      %v3386 = vunpack.c.l.b16 %v3354
      %v3387 = vunpack.c.l.b16 %v3355
      %v3388 = vunpack.c.l.b16 %v3356
      %v3389 = vunpack.c.l.b16 %v3357
      %v3390 = vunpack.c.l.b16 %v3358
      %v3391 = vunpack.c.l.b16 %v3359
      %v3392 = vpack.c.b16 %v3377, %v3376
      %v3393 = vpack.c.b16 %v3379, %v3378
      %v3394 = vpack.c.b16 %v3381, %v3380
      %v3395 = vpack.c.b16 %v3383, %v3382
      %v3396 = vpack.c.b16 %v3385, %v3384
      %v3397 = vpack.c.b16 %v3387, %v3386
      %v3398 = vpack.c.b16 %v3389, %v3388
      %v3399 = vpack.c.b16 %v3391, %v3390
      %3408 = vmatpush.bf16.msra.mxu0 %v3399
      %3409 = vmatpush.bf16.msra.mxu0 %v3398
      %3410 = vmatpush.bf16.msra.mxu0 %v3397
      %3411 = vmatpush.bf16.msra.mxu0 %v3396
      %3412 = vmatpush.bf16.msra.mxu0 %v3395
      %3413 = vmatpush.bf16.msra.mxu0 %v3394
      %3414 = vmatpush.bf16.msra.mxu0 %v3393
      %3415 = vmatpush.bf16.msra.mxu0 %v3392
      %3416 = vmatmul.bf16.gmra.mxu0 %v3327
      %v3417 = vpop.f32.mrf.mxu0
      %v3418 = vadd.f32 0.0, %v3417
      %v3419 = vpop.f32.mrf.mxu0
      %v3420 = vadd.f32 0.0, %v3419
      %3421 = vmatmul.bf16.gmra.mxu0 %v3328
      %v3422 = vpop.f32.mrf.mxu0
      %v3423 = vadd.f32 0.0, %v3422
      %v3424 = vpop.f32.mrf.mxu0
      %v3425 = vadd.f32 0.0, %v3424
      %3426 = vmatmul.bf16.gmra.mxu0 %v3329
      %v3427 = vpop.f32.mrf.mxu0
      %v3428 = vadd.f32 0.0, %v3427
      %v3429 = vpop.f32.mrf.mxu0
      %v3430 = vadd.f32 0.0, %v3429
      %3431 = vmatmul.bf16.gmra.mxu0 %v3330
      %v3432 = vpop.f32.mrf.mxu0
      %v3433 = vadd.f32 0.0, %v3432
      %v3434 = vpop.f32.mrf.mxu0
      %v3435 = vadd.f32 0.0, %v3434
      %3436 = vmatmul.bf16.gmra.mxu0 %v3331
      %v3437 = vpop.f32.mrf.mxu0
      %v3438 = vadd.f32 0.0, %v3437
      %v3439 = vpop.f32.mrf.mxu0
      %v3440 = vadd.f32 0.0, %v3439
      %3441 = vmatmul.bf16.gmra.mxu0 %v3332
      %v3442 = vpop.f32.mrf.mxu0
      %v3443 = vadd.f32 0.0, %v3442
      %v3444 = vpop.f32.mrf.mxu0
      %v3445 = vadd.f32 0.0, %v3444
      %3446 = vmatmul.bf16.gmra.mxu0 %v3333
      %v3447 = vpop.f32.mrf.mxu0
      %v3448 = vadd.f32 0.0, %v3447
      %v3449 = vpop.f32.mrf.mxu0
      %v3450 = vadd.f32 0.0, %v3449
      %3451 = vmatmul.bf16.gmra.mxu0 %v3334
      %v3452 = vpop.f32.mrf.mxu0
      %v3453 = vadd.f32 0.0, %v3452
      %v3454 = vpop.f32.mrf.mxu0
      %v3455 = vadd.f32 0.0, %v3454
      %3456 = vmatmul.bf16.gmra.mxu0 %v3335
      %v3457 = vpop.f32.mrf.mxu0
      %v3458 = vadd.f32 0.0, %v3457
      %v3459 = vpop.f32.mrf.mxu0
      %v3460 = vadd.f32 0.0, %v3459
      %3461 = vmatmul.bf16.gmra.mxu0 %v3336
      %v3462 = vpop.f32.mrf.mxu0
      %v3463 = vadd.f32 0.0, %v3462
      %v3464 = vpop.f32.mrf.mxu0
      %v3465 = vadd.f32 0.0, %v3464
      %3466 = vmatmul.bf16.gmra.mxu0 %v3337
      %v3467 = vpop.f32.mrf.mxu0
      %v3468 = vadd.f32 0.0, %v3467
      %v3469 = vpop.f32.mrf.mxu0
      %v3470 = vadd.f32 0.0, %v3469
      %3471 = vmatmul.bf16.gmra.mxu0 %v3338
      %v3472 = vpop.f32.mrf.mxu0
      %v3473 = vadd.f32 0.0, %v3472
      %v3474 = vpop.f32.mrf.mxu0
      %v3475 = vadd.f32 0.0, %v3474
      %3476 = vmatmul.bf16.gmra.mxu0 %v3339
      %v3477 = vpop.f32.mrf.mxu0
      %v3478 = vadd.f32 0.0, %v3477
      %v3479 = vpop.f32.mrf.mxu0
      %v3480 = vadd.f32 0.0, %v3479
      %3481 = vmatmul.bf16.gmra.mxu0 %v3340
      %v3482 = vpop.f32.mrf.mxu0
      %v3483 = vadd.f32 0.0, %v3482
      %v3484 = vpop.f32.mrf.mxu0
      %v3485 = vadd.f32 0.0, %v3484
      %3486 = vmatmul.bf16.gmra.mxu0 %v3341
      %v3487 = vpop.f32.mrf.mxu0
      %v3488 = vadd.f32 0.0, %v3487
      %v3489 = vpop.f32.mrf.mxu0
      %v3490 = vadd.f32 0.0, %v3489
      %3491 = vmatmul.bf16.gmra.mxu0 %v3342
      %v3492 = vpop.f32.mrf.mxu0
      %v3493 = vadd.f32 0.0, %v3492
      %v3494 = vpop.f32.mrf.mxu0
      %v3495 = vadd.f32 0.0, %v3494
      %3496 = vdwg.mxu0
      %v3497 = vld [vmem:[#allocation4] sm:$0xff]
      %v3498 = vld [vmem:[#allocation4 + $0x8] sm:$0xff]
      %v3499 = vld [vmem:[#allocation4 + $0x10] sm:$0xff]
      %v3500 = vld [vmem:[#allocation4 + $0x18] sm:$0xff]
      %v3501 = vld [vmem:[#allocation4 + $0x20] sm:$0xff]
      %v3502 = vld [vmem:[#allocation4 + $0x28] sm:$0xff]
      %v3503 = vld [vmem:[#allocation4 + $0x30] sm:$0xff]
      %v3504 = vld [vmem:[#allocation4 + $0x38] sm:$0xff]
      %v3505 = vld [vmem:[#allocation4 + $0x40] sm:$0xff]
      %v3506 = vld [vmem:[#allocation4 + $0x48] sm:$0xff]
      %v3507 = vld [vmem:[#allocation4 + $0x50] sm:$0xff]
      %v3508 = vld [vmem:[#allocation4 + $0x58] sm:$0xff]
      %v3509 = vld [vmem:[#allocation4 + $0x60] sm:$0xff]
      %v3510 = vld [vmem:[#allocation4 + $0x68] sm:$0xff]
      %v3511 = vld [vmem:[#allocation4 + $0x70] sm:$0xff]
      %v3512 = vld [vmem:[#allocation4 + $0x78] sm:$0xff]
      %v3513 = vld [vmem:[#allocation4 + $0x80] sm:$0xff]
      %v3514 = vld [vmem:[#allocation4 + $0x88] sm:$0xff]
      %v3515 = vld [vmem:[#allocation4 + $0x90] sm:$0xff]
      %v3516 = vld [vmem:[#allocation4 + $0x98] sm:$0xff]
      %v3517 = vld [vmem:[#allocation4 + $0xa0] sm:$0xff]
      %v3518 = vld [vmem:[#allocation4 + $0xa8] sm:$0xff]
      %v3519 = vld [vmem:[#allocation4 + $0xb0] sm:$0xff]
      %v3520 = vld [vmem:[#allocation4 + $0xb8] sm:$0xff]
      %v3521 = vld [vmem:[#allocation4 + $0xc0] sm:$0xff]
      %v3522 = vld [vmem:[#allocation4 + $0xc8] sm:$0xff]
      %v3523 = vld [vmem:[#allocation4 + $0xd0] sm:$0xff]
      %v3524 = vld [vmem:[#allocation4 + $0xd8] sm:$0xff]
      %v3525 = vld [vmem:[#allocation4 + $0xe0] sm:$0xff]
      %v3526 = vld [vmem:[#allocation4 + $0xe8] sm:$0xff]
      %v3527 = vld [vmem:[#allocation4 + $0xf0] sm:$0xff]
      %v3528 = vld [vmem:[#allocation4 + $0xf8] sm:$0xff]
      %v3529 = vadd.f32 %v3497, %v3418
      %v3530 = vadd.f32 %v3498, %v3420
      %v3531 = vadd.f32 %v3499, %v3423
      %v3532 = vadd.f32 %v3500, %v3425
      %v3533 = vadd.f32 %v3501, %v3428
      %v3534 = vadd.f32 %v3502, %v3430
      %v3535 = vadd.f32 %v3503, %v3433
      %v3536 = vadd.f32 %v3504, %v3435
      %v3537 = vadd.f32 %v3505, %v3438
      %v3538 = vadd.f32 %v3506, %v3440
      %v3539 = vadd.f32 %v3507, %v3443
      %v3540 = vadd.f32 %v3508, %v3445
      %v3541 = vadd.f32 %v3509, %v3448
      %v3542 = vadd.f32 %v3510, %v3450
      %v3543 = vadd.f32 %v3511, %v3453
      %v3544 = vadd.f32 %v3512, %v3455
      %v3545 = vadd.f32 %v3513, %v3458
      %v3546 = vadd.f32 %v3514, %v3460
      %v3547 = vadd.f32 %v3515, %v3463
      %v3548 = vadd.f32 %v3516, %v3465
      %v3549 = vadd.f32 %v3517, %v3468
      %v3550 = vadd.f32 %v3518, %v3470
      %v3551 = vadd.f32 %v3519, %v3473
      %v3552 = vadd.f32 %v3520, %v3475
      %v3553 = vadd.f32 %v3521, %v3478
      %v3554 = vadd.f32 %v3522, %v3480
      %v3555 = vadd.f32 %v3523, %v3483
      %v3556 = vadd.f32 %v3524, %v3485
      %v3557 = vadd.f32 %v3525, %v3488
      %v3558 = vadd.f32 %v3526, %v3490
      %v3559 = vadd.f32 %v3527, %v3493
      %v3560 = vadd.f32 %v3528, %v3495
      %3561 = vst [vmem:[#allocation4] sm:$0xff] %v3529
      %3562 = vst [vmem:[#allocation4 + $0x8] sm:$0xff] %v3530
      %3563 = vst [vmem:[#allocation4 + $0x10] sm:$0xff] %v3531
      %3564 = vst [vmem:[#allocation4 + $0x18] sm:$0xff] %v3532
      %3565 = vst [vmem:[#allocation4 + $0x20] sm:$0xff] %v3533
      %3566 = vst [vmem:[#allocation4 + $0x28] sm:$0xff] %v3534
      %3567 = vst [vmem:[#allocation4 + $0x30] sm:$0xff] %v3535
      %3568 = vst [vmem:[#allocation4 + $0x38] sm:$0xff] %v3536
      %3569 = vst [vmem:[#allocation4 + $0x40] sm:$0xff] %v3537
      %3570 = vst [vmem:[#allocation4 + $0x48] sm:$0xff] %v3538
      %3571 = vst [vmem:[#allocation4 + $0x50] sm:$0xff] %v3539
      %3572 = vst [vmem:[#allocation4 + $0x58] sm:$0xff] %v3540
      %3573 = vst [vmem:[#allocation4 + $0x60] sm:$0xff] %v3541
      %3574 = vst [vmem:[#allocation4 + $0x68] sm:$0xff] %v3542
      %3575 = vst [vmem:[#allocation4 + $0x70] sm:$0xff] %v3543
      %3576 = vst [vmem:[#allocation4 + $0x78] sm:$0xff] %v3544
      %3577 = vst [vmem:[#allocation4 + $0x80] sm:$0xff] %v3545
      %3578 = vst [vmem:[#allocation4 + $0x88] sm:$0xff] %v3546
      %3579 = vst [vmem:[#allocation4 + $0x90] sm:$0xff] %v3547
      %3580 = vst [vmem:[#allocation4 + $0x98] sm:$0xff] %v3548
      %3581 = vst [vmem:[#allocation4 + $0xa0] sm:$0xff] %v3549
      %3582 = vst [vmem:[#allocation4 + $0xa8] sm:$0xff] %v3550
      %3583 = vst [vmem:[#allocation4 + $0xb0] sm:$0xff] %v3551
      %3584 = vst [vmem:[#allocation4 + $0xb8] sm:$0xff] %v3552
      %3585 = vst [vmem:[#allocation4 + $0xc0] sm:$0xff] %v3553
      %3586 = vst [vmem:[#allocation4 + $0xc8] sm:$0xff] %v3554
      %3587 = vst [vmem:[#allocation4 + $0xd0] sm:$0xff] %v3555
      %3588 = vst [vmem:[#allocation4 + $0xd8] sm:$0xff] %v3556
      %3589 = vst [vmem:[#allocation4 + $0xe0] sm:$0xff] %v3557
      %3590 = vst [vmem:[#allocation4 + $0xe8] sm:$0xff] %v3558
      %3591 = vst [vmem:[#allocation4 + $0xf0] sm:$0xff] %v3559
      %3592 = vst [vmem:[#allocation4 + $0xf8] sm:$0xff] %v3560
      %v3593 = vld [vmem:[#allocation2 + $0x2] sm:$0xff]
      %v3594 = vld [vmem:[#allocation2 + $0xa] sm:$0xff]
      %v3595 = vld [vmem:[#allocation2 + $0x1a] sm:$0xff]
      %v3596 = vld [vmem:[#allocation2 + $0x22] sm:$0xff]
      %v3597 = vld [vmem:[#allocation2 + $0x32] sm:$0xff]
      %v3598 = vld [vmem:[#allocation2 + $0x3a] sm:$0xff]
      %v3599 = vld [vmem:[#allocation2 + $0x4a] sm:$0xff]
      %v3600 = vld [vmem:[#allocation2 + $0x52] sm:$0xff]
      %v3601 = vld [vmem:[#allocation2 + $0x62] sm:$0xff]
      %v3602 = vld [vmem:[#allocation2 + $0x6a] sm:$0xff]
      %v3603 = vld [vmem:[#allocation2 + $0x7a] sm:$0xff]
      %v3604 = vld [vmem:[#allocation2 + $0x82] sm:$0xff]
      %v3605 = vld [vmem:[#allocation2 + $0x92] sm:$0xff]
      %v3606 = vld [vmem:[#allocation2 + $0x9a] sm:$0xff]
      %v3607 = vld [vmem:[#allocation2 + $0xaa] sm:$0xff]
      %v3608 = vld [vmem:[#allocation2 + $0xb2] sm:$0xff]
      %v3609 = vld [vmem:[#allocation2 + $0xc2] sm:$0xff]
      %v3610 = vld [vmem:[#allocation2 + $0xca] sm:$0xff]
      %v3611 = vld [vmem:[#allocation2 + $0xda] sm:$0xff]
      %v3612 = vld [vmem:[#allocation2 + $0xe2] sm:$0xff]
      %v3613 = vld [vmem:[#allocation2 + $0xf2] sm:$0xff]
      %v3614 = vld [vmem:[#allocation2 + $0xfa] sm:$0xff]
      %v3615 = vld [vmem:[#allocation2 + $0x10a] sm:$0xff]
      %v3616 = vld [vmem:[#allocation2 + $0x112] sm:$0xff]
      %v3617 = vld [vmem:[#allocation2 + $0x122] sm:$0xff]
      %v3618 = vld [vmem:[#allocation2 + $0x12a] sm:$0xff]
      %v3619 = vld [vmem:[#allocation2 + $0x13a] sm:$0xff]
      %v3620 = vld [vmem:[#allocation2 + $0x142] sm:$0xff]
      %v3621 = vld [vmem:[#allocation2 + $0x152] sm:$0xff]
      %v3622 = vld [vmem:[#allocation2 + $0x15a] sm:$0xff]
      %v3623 = vld [vmem:[#allocation2 + $0x16a] sm:$0xff]
      %v3624 = vld [vmem:[#allocation2 + $0x172] sm:$0xff]
      %v3625 = vpack.c.bf16 %v3594, %v3593
      %v3626 = vpack.c.bf16 %v3596, %v3595
      %v3627 = vpack.c.bf16 %v3598, %v3597
      %v3628 = vpack.c.bf16 %v3600, %v3599
      %v3629 = vpack.c.bf16 %v3602, %v3601
      %v3630 = vpack.c.bf16 %v3604, %v3603
      %v3631 = vpack.c.bf16 %v3606, %v3605
      %v3632 = vpack.c.bf16 %v3608, %v3607
      %v3633 = vpack.c.bf16 %v3610, %v3609
      %v3634 = vpack.c.bf16 %v3612, %v3611
      %v3635 = vpack.c.bf16 %v3614, %v3613
      %v3636 = vpack.c.bf16 %v3616, %v3615
      %v3637 = vpack.c.bf16 %v3618, %v3617
      %v3638 = vpack.c.bf16 %v3620, %v3619
      %v3639 = vpack.c.bf16 %v3622, %v3621
      %v3640 = vpack.c.bf16 %v3624, %v3623
      %s3641 = scalar_lea.vmem %s3, 128
      %v3642 = vld [vmem:[%s3641] sm:$0xf]
      %v3643 = vld [vmem:[%s3641 + $0x4] sm:$0xf]
      %v3644 = vld [vmem:[%s3641 + $0x8] sm:$0xf]
      %v3645 = vld [vmem:[%s3641 + $0xc] sm:$0xf]
      %v3646 = vld [vmem:[%s3641 + $0x10] sm:$0xf]
      %v3647 = vld [vmem:[%s3641 + $0x14] sm:$0xf]
      %v3648 = vld [vmem:[%s3641 + $0x18] sm:$0xf]
      %v3649 = vld [vmem:[%s3641 + $0x1c] sm:$0xf]
      %v3650 = vld [vmem:[%s3641 + $0x20] sm:$0xf]
      %v3651 = vld [vmem:[%s3641 + $0x24] sm:$0xf]
      %v3652 = vld [vmem:[%s3641 + $0x28] sm:$0xf]
      %v3653 = vld [vmem:[%s3641 + $0x2c] sm:$0xf]
      %v3654 = vld [vmem:[%s3641 + $0x30] sm:$0xf]
      %v3655 = vld [vmem:[%s3641 + $0x34] sm:$0xf]
      %v3656 = vld [vmem:[%s3641 + $0x38] sm:$0xf]
      %v3657 = vld [vmem:[%s3641 + $0x3c] sm:$0xf]
      %v3674 = vunpack.c.l.b16 %v3642
      %v3675 = vunpack.c.l.b16 %v3643
      %v3676 = vunpack.c.l.b16 %v3644
      %v3677 = vunpack.c.l.b16 %v3645
      %v3678 = vunpack.c.l.b16 %v3646
      %v3679 = vunpack.c.l.b16 %v3647
      %v3680 = vunpack.c.l.b16 %v3648
      %v3681 = vunpack.c.l.b16 %v3649
      %v3682 = vunpack.c.l.b16 %v3650
      %v3683 = vunpack.c.l.b16 %v3651
      %v3684 = vunpack.c.l.b16 %v3652
      %v3685 = vunpack.c.l.b16 %v3653
      %v3686 = vunpack.c.l.b16 %v3654
      %v3687 = vunpack.c.l.b16 %v3655
      %v3688 = vunpack.c.l.b16 %v3656
      %v3689 = vunpack.c.l.b16 %v3657
      %v3690 = vpack.c.b16 %v3675, %v3674
      %v3691 = vpack.c.b16 %v3677, %v3676
      %v3692 = vpack.c.b16 %v3679, %v3678
      %v3693 = vpack.c.b16 %v3681, %v3680
      %v3694 = vpack.c.b16 %v3683, %v3682
      %v3695 = vpack.c.b16 %v3685, %v3684
      %v3696 = vpack.c.b16 %v3687, %v3686
      %v3697 = vpack.c.b16 %v3689, %v3688
      %3706 = vmatpush.bf16.msra.mxu0 %v3697
      %3707 = vmatpush.bf16.msra.mxu0 %v3696
      %3708 = vmatpush.bf16.msra.mxu0 %v3695
      %3709 = vmatpush.bf16.msra.mxu0 %v3694
      %3710 = vmatpush.bf16.msra.mxu0 %v3693
      %3711 = vmatpush.bf16.msra.mxu0 %v3692
      %3712 = vmatpush.bf16.msra.mxu0 %v3691
      %3713 = vmatpush.bf16.msra.mxu0 %v3690
      %3714 = vmatmul.bf16.gmra.mxu0 %v3625
      %v3715 = vpop.f32.mrf.mxu0
      %v3716 = vadd.f32 0.0, %v3715
      %v3717 = vpop.f32.mrf.mxu0
      %v3718 = vadd.f32 0.0, %v3717
      %3719 = vmatmul.bf16.gmra.mxu0 %v3626
      %v3720 = vpop.f32.mrf.mxu0
      %v3721 = vadd.f32 0.0, %v3720
      %v3722 = vpop.f32.mrf.mxu0
      %v3723 = vadd.f32 0.0, %v3722
      %3724 = vmatmul.bf16.gmra.mxu0 %v3627
      %v3725 = vpop.f32.mrf.mxu0
      %v3726 = vadd.f32 0.0, %v3725
      %v3727 = vpop.f32.mrf.mxu0
      %v3728 = vadd.f32 0.0, %v3727
      %3729 = vmatmul.bf16.gmra.mxu0 %v3628
      %v3730 = vpop.f32.mrf.mxu0
      %v3731 = vadd.f32 0.0, %v3730
      %v3732 = vpop.f32.mrf.mxu0
      %v3733 = vadd.f32 0.0, %v3732
      %3734 = vmatmul.bf16.gmra.mxu0 %v3629
      %v3735 = vpop.f32.mrf.mxu0
      %v3736 = vadd.f32 0.0, %v3735
      %v3737 = vpop.f32.mrf.mxu0
      %v3738 = vadd.f32 0.0, %v3737
      %3739 = vmatmul.bf16.gmra.mxu0 %v3630
      %v3740 = vpop.f32.mrf.mxu0
      %v3741 = vadd.f32 0.0, %v3740
      %v3742 = vpop.f32.mrf.mxu0
      %v3743 = vadd.f32 0.0, %v3742
      %3744 = vmatmul.bf16.gmra.mxu0 %v3631
      %v3745 = vpop.f32.mrf.mxu0
      %v3746 = vadd.f32 0.0, %v3745
      %v3747 = vpop.f32.mrf.mxu0
      %v3748 = vadd.f32 0.0, %v3747
      %3749 = vmatmul.bf16.gmra.mxu0 %v3632
      %v3750 = vpop.f32.mrf.mxu0
      %v3751 = vadd.f32 0.0, %v3750
      %v3752 = vpop.f32.mrf.mxu0
      %v3753 = vadd.f32 0.0, %v3752
      %3754 = vmatmul.bf16.gmra.mxu0 %v3633
      %v3755 = vpop.f32.mrf.mxu0
      %v3756 = vadd.f32 0.0, %v3755
      %v3757 = vpop.f32.mrf.mxu0
      %v3758 = vadd.f32 0.0, %v3757
      %3759 = vmatmul.bf16.gmra.mxu0 %v3634
      %v3760 = vpop.f32.mrf.mxu0
      %v3761 = vadd.f32 0.0, %v3760
      %v3762 = vpop.f32.mrf.mxu0
      %v3763 = vadd.f32 0.0, %v3762
      %3764 = vmatmul.bf16.gmra.mxu0 %v3635
      %v3765 = vpop.f32.mrf.mxu0
      %v3766 = vadd.f32 0.0, %v3765
      %v3767 = vpop.f32.mrf.mxu0
      %v3768 = vadd.f32 0.0, %v3767
      %3769 = vmatmul.bf16.gmra.mxu0 %v3636
      %v3770 = vpop.f32.mrf.mxu0
      %v3771 = vadd.f32 0.0, %v3770
      %v3772 = vpop.f32.mrf.mxu0
      %v3773 = vadd.f32 0.0, %v3772
      %3774 = vmatmul.bf16.gmra.mxu0 %v3637
      %v3775 = vpop.f32.mrf.mxu0
      %v3776 = vadd.f32 0.0, %v3775
      %v3777 = vpop.f32.mrf.mxu0
      %v3778 = vadd.f32 0.0, %v3777
      %3779 = vmatmul.bf16.gmra.mxu0 %v3638
      %v3780 = vpop.f32.mrf.mxu0
      %v3781 = vadd.f32 0.0, %v3780
      %v3782 = vpop.f32.mrf.mxu0
      %v3783 = vadd.f32 0.0, %v3782
      %3784 = vmatmul.bf16.gmra.mxu0 %v3639
      %v3785 = vpop.f32.mrf.mxu0
      %v3786 = vadd.f32 0.0, %v3785
      %v3787 = vpop.f32.mrf.mxu0
      %v3788 = vadd.f32 0.0, %v3787
      %3789 = vmatmul.bf16.gmra.mxu0 %v3640
      %v3790 = vpop.f32.mrf.mxu0
      %v3791 = vadd.f32 0.0, %v3790
      %v3792 = vpop.f32.mrf.mxu0
      %v3793 = vadd.f32 0.0, %v3792
      %3794 = vdwg.mxu0
      %v3795 = vld [vmem:[#allocation4] sm:$0xff]
      %v3796 = vld [vmem:[#allocation4 + $0x8] sm:$0xff]
      %v3797 = vld [vmem:[#allocation4 + $0x10] sm:$0xff]
      %v3798 = vld [vmem:[#allocation4 + $0x18] sm:$0xff]
      %v3799 = vld [vmem:[#allocation4 + $0x20] sm:$0xff]
      %v3800 = vld [vmem:[#allocation4 + $0x28] sm:$0xff]
      %v3801 = vld [vmem:[#allocation4 + $0x30] sm:$0xff]
      %v3802 = vld [vmem:[#allocation4 + $0x38] sm:$0xff]
      %v3803 = vld [vmem:[#allocation4 + $0x40] sm:$0xff]
      %v3804 = vld [vmem:[#allocation4 + $0x48] sm:$0xff]
      %v3805 = vld [vmem:[#allocation4 + $0x50] sm:$0xff]
      %v3806 = vld [vmem:[#allocation4 + $0x58] sm:$0xff]
      %v3807 = vld [vmem:[#allocation4 + $0x60] sm:$0xff]
      %v3808 = vld [vmem:[#allocation4 + $0x68] sm:$0xff]
      %v3809 = vld [vmem:[#allocation4 + $0x70] sm:$0xff]
      %v3810 = vld [vmem:[#allocation4 + $0x78] sm:$0xff]
      %v3811 = vld [vmem:[#allocation4 + $0x80] sm:$0xff]
      %v3812 = vld [vmem:[#allocation4 + $0x88] sm:$0xff]
      %v3813 = vld [vmem:[#allocation4 + $0x90] sm:$0xff]
      %v3814 = vld [vmem:[#allocation4 + $0x98] sm:$0xff]
      %v3815 = vld [vmem:[#allocation4 + $0xa0] sm:$0xff]
      %v3816 = vld [vmem:[#allocation4 + $0xa8] sm:$0xff]
      %v3817 = vld [vmem:[#allocation4 + $0xb0] sm:$0xff]
      %v3818 = vld [vmem:[#allocation4 + $0xb8] sm:$0xff]
      %v3819 = vld [vmem:[#allocation4 + $0xc0] sm:$0xff]
      %v3820 = vld [vmem:[#allocation4 + $0xc8] sm:$0xff]
      %v3821 = vld [vmem:[#allocation4 + $0xd0] sm:$0xff]
      %v3822 = vld [vmem:[#allocation4 + $0xd8] sm:$0xff]
      %v3823 = vld [vmem:[#allocation4 + $0xe0] sm:$0xff]
      %v3824 = vld [vmem:[#allocation4 + $0xe8] sm:$0xff]
      %v3825 = vld [vmem:[#allocation4 + $0xf0] sm:$0xff]
      %v3826 = vld [vmem:[#allocation4 + $0xf8] sm:$0xff]
      %v3827 = vadd.f32 %v3795, %v3716
      %v3828 = vadd.f32 %v3796, %v3718
      %v3829 = vadd.f32 %v3797, %v3721
      %v3830 = vadd.f32 %v3798, %v3723
      %v3831 = vadd.f32 %v3799, %v3726
      %v3832 = vadd.f32 %v3800, %v3728
      %v3833 = vadd.f32 %v3801, %v3731
      %v3834 = vadd.f32 %v3802, %v3733
      %v3835 = vadd.f32 %v3803, %v3736
      %v3836 = vadd.f32 %v3804, %v3738
      %v3837 = vadd.f32 %v3805, %v3741
      %v3838 = vadd.f32 %v3806, %v3743
      %v3839 = vadd.f32 %v3807, %v3746
      %v3840 = vadd.f32 %v3808, %v3748
      %v3841 = vadd.f32 %v3809, %v3751
      %v3842 = vadd.f32 %v3810, %v3753
      %v3843 = vadd.f32 %v3811, %v3756
      %v3844 = vadd.f32 %v3812, %v3758
      %v3845 = vadd.f32 %v3813, %v3761
      %v3846 = vadd.f32 %v3814, %v3763
      %v3847 = vadd.f32 %v3815, %v3766
      %v3848 = vadd.f32 %v3816, %v3768
      %v3849 = vadd.f32 %v3817, %v3771
      %v3850 = vadd.f32 %v3818, %v3773
      %v3851 = vadd.f32 %v3819, %v3776
      %v3852 = vadd.f32 %v3820, %v3778
      %v3853 = vadd.f32 %v3821, %v3781
      %v3854 = vadd.f32 %v3822, %v3783
      %v3855 = vadd.f32 %v3823, %v3786
      %v3856 = vadd.f32 %v3824, %v3788
      %v3857 = vadd.f32 %v3825, %v3791
      %v3858 = vadd.f32 %v3826, %v3793
      %3859 = vst [vmem:[#allocation4] sm:$0xff] %v3827
      %3860 = vst [vmem:[#allocation4 + $0x8] sm:$0xff] %v3828
      %3861 = vst [vmem:[#allocation4 + $0x10] sm:$0xff] %v3829
      %3862 = vst [vmem:[#allocation4 + $0x18] sm:$0xff] %v3830
      %3863 = vst [vmem:[#allocation4 + $0x20] sm:$0xff] %v3831
      %3864 = vst [vmem:[#allocation4 + $0x28] sm:$0xff] %v3832
      %3865 = vst [vmem:[#allocation4 + $0x30] sm:$0xff] %v3833
      %3866 = vst [vmem:[#allocation4 + $0x38] sm:$0xff] %v3834
      %3867 = vst [vmem:[#allocation4 + $0x40] sm:$0xff] %v3835
      %3868 = vst [vmem:[#allocation4 + $0x48] sm:$0xff] %v3836
      %3869 = vst [vmem:[#allocation4 + $0x50] sm:$0xff] %v3837
      %3870 = vst [vmem:[#allocation4 + $0x58] sm:$0xff] %v3838
      %3871 = vst [vmem:[#allocation4 + $0x60] sm:$0xff] %v3839
      %3872 = vst [vmem:[#allocation4 + $0x68] sm:$0xff] %v3840
      %3873 = vst [vmem:[#allocation4 + $0x70] sm:$0xff] %v3841
      %3874 = vst [vmem:[#allocation4 + $0x78] sm:$0xff] %v3842
      %3875 = vst [vmem:[#allocation4 + $0x80] sm:$0xff] %v3843
      %3876 = vst [vmem:[#allocation4 + $0x88] sm:$0xff] %v3844
      %3877 = vst [vmem:[#allocation4 + $0x90] sm:$0xff] %v3845
      %3878 = vst [vmem:[#allocation4 + $0x98] sm:$0xff] %v3846
      %3879 = vst [vmem:[#allocation4 + $0xa0] sm:$0xff] %v3847
      %3880 = vst [vmem:[#allocation4 + $0xa8] sm:$0xff] %v3848
      %3881 = vst [vmem:[#allocation4 + $0xb0] sm:$0xff] %v3849
      %3882 = vst [vmem:[#allocation4 + $0xb8] sm:$0xff] %v3850
      %3883 = vst [vmem:[#allocation4 + $0xc0] sm:$0xff] %v3851
      %3884 = vst [vmem:[#allocation4 + $0xc8] sm:$0xff] %v3852
      %3885 = vst [vmem:[#allocation4 + $0xd0] sm:$0xff] %v3853
      %3886 = vst [vmem:[#allocation4 + $0xd8] sm:$0xff] %v3854
      %3887 = vst [vmem:[#allocation4 + $0xe0] sm:$0xff] %v3855
      %3888 = vst [vmem:[#allocation4 + $0xe8] sm:$0xff] %v3856
      %3889 = vst [vmem:[#allocation4 + $0xf0] sm:$0xff] %v3857
      %3890 = vst [vmem:[#allocation4 + $0xf8] sm:$0xff] %v3858
      %v3891 = vld [vmem:[%s3029] sm:$0xff]
      %v3892 = vld [vmem:[%s3029 + $0x8] sm:$0xff]
      %v3893 = vld [vmem:[%s3029 + $0x18] sm:$0xff]
      %v3894 = vld [vmem:[%s3029 + $0x20] sm:$0xff]
      %v3895 = vld [vmem:[%s3029 + $0x30] sm:$0xff]
      %v3896 = vld [vmem:[%s3029 + $0x38] sm:$0xff]
      %v3897 = vld [vmem:[%s3029 + $0x48] sm:$0xff]
      %v3898 = vld [vmem:[%s3029 + $0x50] sm:$0xff]
      %v3899 = vld [vmem:[%s3029 + $0x60] sm:$0xff]
      %v3900 = vld [vmem:[%s3029 + $0x68] sm:$0xff]
      %v3901 = vld [vmem:[%s3029 + $0x78] sm:$0xff]
      %v3902 = vld [vmem:[%s3029 + $0x80] sm:$0xff]
      %v3903 = vld [vmem:[%s3029 + $0x90] sm:$0xff]
      %v3904 = vld [vmem:[%s3029 + $0x98] sm:$0xff]
      %v3905 = vld [vmem:[%s3029 + $0xa8] sm:$0xff]
      %v3906 = vld [vmem:[%s3029 + $0xb0] sm:$0xff]
      %v3907 = vld [vmem:[%s3029 + $0xc0] sm:$0xff]
      %v3908 = vld [vmem:[%s3029 + $0xc8] sm:$0xff]
      %v3909 = vld [vmem:[%s3029 + $0xd8] sm:$0xff]
      %v3910 = vld [vmem:[%s3029 + $0xe0] sm:$0xff]
      %v3911 = vld [vmem:[%s3029 + $0xf0] sm:$0xff]
      %v3912 = vld [vmem:[%s3029 + $0xf8] sm:$0xff]
      %v3913 = vld [vmem:[%s3029 + $0x108] sm:$0xff]
      %v3914 = vld [vmem:[%s3029 + $0x110] sm:$0xff]
      %v3915 = vld [vmem:[%s3029 + $0x120] sm:$0xff]
      %v3916 = vld [vmem:[%s3029 + $0x128] sm:$0xff]
      %v3917 = vld [vmem:[%s3029 + $0x138] sm:$0xff]
      %v3918 = vld [vmem:[%s3029 + $0x140] sm:$0xff]
      %v3919 = vld [vmem:[%s3029 + $0x150] sm:$0xff]
      %v3920 = vld [vmem:[%s3029 + $0x158] sm:$0xff]
      %v3921 = vld [vmem:[%s3029 + $0x168] sm:$0xff]
      %v3922 = vld [vmem:[%s3029 + $0x170] sm:$0xff]
      %v3923 = vpack.c.bf16 %v3892, %v3891
      %v3924 = vpack.c.bf16 %v3894, %v3893
      %v3925 = vpack.c.bf16 %v3896, %v3895
      %v3926 = vpack.c.bf16 %v3898, %v3897
      %v3927 = vpack.c.bf16 %v3900, %v3899
      %v3928 = vpack.c.bf16 %v3902, %v3901
      %v3929 = vpack.c.bf16 %v3904, %v3903
      %v3930 = vpack.c.bf16 %v3906, %v3905
      %v3931 = vpack.c.bf16 %v3908, %v3907
      %v3932 = vpack.c.bf16 %v3910, %v3909
      %v3933 = vpack.c.bf16 %v3912, %v3911
      %v3934 = vpack.c.bf16 %v3914, %v3913
      %v3935 = vpack.c.bf16 %v3916, %v3915
      %v3936 = vpack.c.bf16 %v3918, %v3917
      %v3937 = vpack.c.bf16 %v3920, %v3919
      %v3938 = vpack.c.bf16 %v3922, %v3921
      %s3939 = scalar_lea.vmem %s3, 192
      %v3940 = vld [vmem:[%s3939] sm:$0xf]
      %v3941 = vld [vmem:[%s3939 + $0x4] sm:$0xf]
      %v3942 = vld [vmem:[%s3939 + $0x8] sm:$0xf]
      %v3943 = vld [vmem:[%s3939 + $0xc] sm:$0xf]
      %v3944 = vld [vmem:[%s3939 + $0x10] sm:$0xf]
      %v3945 = vld [vmem:[%s3939 + $0x14] sm:$0xf]
      %v3946 = vld [vmem:[%s3939 + $0x18] sm:$0xf]
      %v3947 = vld [vmem:[%s3939 + $0x1c] sm:$0xf]
      %v3948 = vld [vmem:[%s3939 + $0x20] sm:$0xf]
      %v3949 = vld [vmem:[%s3939 + $0x24] sm:$0xf]
      %v3950 = vld [vmem:[%s3939 + $0x28] sm:$0xf]
      %v3951 = vld [vmem:[%s3939 + $0x2c] sm:$0xf]
      %v3952 = vld [vmem:[%s3939 + $0x30] sm:$0xf]
      %v3953 = vld [vmem:[%s3939 + $0x34] sm:$0xf]
      %v3954 = vld [vmem:[%s3939 + $0x38] sm:$0xf]
      %v3955 = vld [vmem:[%s3939 + $0x3c] sm:$0xf]
      %v3972 = vunpack.c.l.b16 %v3940
      %v3973 = vunpack.c.l.b16 %v3941
      %v3974 = vunpack.c.l.b16 %v3942
      %v3975 = vunpack.c.l.b16 %v3943
      %v3976 = vunpack.c.l.b16 %v3944
      %v3977 = vunpack.c.l.b16 %v3945
      %v3978 = vunpack.c.l.b16 %v3946
      %v3979 = vunpack.c.l.b16 %v3947
      %v3980 = vunpack.c.l.b16 %v3948
      %v3981 = vunpack.c.l.b16 %v3949
      %v3982 = vunpack.c.l.b16 %v3950
      %v3983 = vunpack.c.l.b16 %v3951
      %v3984 = vunpack.c.l.b16 %v3952
      %v3985 = vunpack.c.l.b16 %v3953
      %v3986 = vunpack.c.l.b16 %v3954
      %v3987 = vunpack.c.l.b16 %v3955
      %v3988 = vpack.c.b16 %v3973, %v3972
      %v3989 = vpack.c.b16 %v3975, %v3974
      %v3990 = vpack.c.b16 %v3977, %v3976
      %v3991 = vpack.c.b16 %v3979, %v3978
      %v3992 = vpack.c.b16 %v3981, %v3980
      %v3993 = vpack.c.b16 %v3983, %v3982
      %v3994 = vpack.c.b16 %v3985, %v3984
      %v3995 = vpack.c.b16 %v3987, %v3986
      %4004 = vmatpush.bf16.msra.mxu0 %v3995
      %4005 = vmatpush.bf16.msra.mxu0 %v3994
      %4006 = vmatpush.bf16.msra.mxu0 %v3993
      %4007 = vmatpush.bf16.msra.mxu0 %v3992
      %4008 = vmatpush.bf16.msra.mxu0 %v3991
      %4009 = vmatpush.bf16.msra.mxu0 %v3990
      %4010 = vmatpush.bf16.msra.mxu0 %v3989
      %4011 = vmatpush.bf16.msra.mxu0 %v3988
      %4012 = vmatmul.bf16.gmra.mxu0 %v3923
      %v4013 = vpop.f32.mrf.mxu0
      %v4014 = vadd.f32 0.0, %v4013
      %v4015 = vpop.f32.mrf.mxu0
      %v4016 = vadd.f32 0.0, %v4015
      %4017 = vmatmul.bf16.gmra.mxu0 %v3924
      %v4018 = vpop.f32.mrf.mxu0
      %v4019 = vadd.f32 0.0, %v4018
      %v4020 = vpop.f32.mrf.mxu0
      %v4021 = vadd.f32 0.0, %v4020
      %4022 = vmatmul.bf16.gmra.mxu0 %v3925
      %v4023 = vpop.f32.mrf.mxu0
      %v4024 = vadd.f32 0.0, %v4023
      %v4025 = vpop.f32.mrf.mxu0
      %v4026 = vadd.f32 0.0, %v4025
      %4027 = vmatmul.bf16.gmra.mxu0 %v3926
      %v4028 = vpop.f32.mrf.mxu0
      %v4029 = vadd.f32 0.0, %v4028
      %v4030 = vpop.f32.mrf.mxu0
      %v4031 = vadd.f32 0.0, %v4030
      %4032 = vmatmul.bf16.gmra.mxu0 %v3927
      %v4033 = vpop.f32.mrf.mxu0
      %v4034 = vadd.f32 0.0, %v4033
      %v4035 = vpop.f32.mrf.mxu0
      %v4036 = vadd.f32 0.0, %v4035
      %4037 = vmatmul.bf16.gmra.mxu0 %v3928
      %v4038 = vpop.f32.mrf.mxu0
      %v4039 = vadd.f32 0.0, %v4038
      %v4040 = vpop.f32.mrf.mxu0
      %v4041 = vadd.f32 0.0, %v4040
      %4042 = vmatmul.bf16.gmra.mxu0 %v3929
      %v4043 = vpop.f32.mrf.mxu0
      %v4044 = vadd.f32 0.0, %v4043
      %v4045 = vpop.f32.mrf.mxu0
      %v4046 = vadd.f32 0.0, %v4045
      %4047 = vmatmul.bf16.gmra.mxu0 %v3930
      %v4048 = vpop.f32.mrf.mxu0
      %v4049 = vadd.f32 0.0, %v4048
      %v4050 = vpop.f32.mrf.mxu0
      %v4051 = vadd.f32 0.0, %v4050
      %4052 = vmatmul.bf16.gmra.mxu0 %v3931
      %v4053 = vpop.f32.mrf.mxu0
      %v4054 = vadd.f32 0.0, %v4053
      %v4055 = vpop.f32.mrf.mxu0
      %v4056 = vadd.f32 0.0, %v4055
      %4057 = vmatmul.bf16.gmra.mxu0 %v3932
      %v4058 = vpop.f32.mrf.mxu0
      %v4059 = vadd.f32 0.0, %v4058
      %v4060 = vpop.f32.mrf.mxu0
      %v4061 = vadd.f32 0.0, %v4060
      %4062 = vmatmul.bf16.gmra.mxu0 %v3933
      %v4063 = vpop.f32.mrf.mxu0
      %v4064 = vadd.f32 0.0, %v4063
      %v4065 = vpop.f32.mrf.mxu0
      %v4066 = vadd.f32 0.0, %v4065
      %4067 = vmatmul.bf16.gmra.mxu0 %v3934
      %v4068 = vpop.f32.mrf.mxu0
      %v4069 = vadd.f32 0.0, %v4068
      %v4070 = vpop.f32.mrf.mxu0
      %v4071 = vadd.f32 0.0, %v4070
      %4072 = vmatmul.bf16.gmra.mxu0 %v3935
      %v4073 = vpop.f32.mrf.mxu0
      %v4074 = vadd.f32 0.0, %v4073
      %v4075 = vpop.f32.mrf.mxu0
      %v4076 = vadd.f32 0.0, %v4075
      %4077 = vmatmul.bf16.gmra.mxu0 %v3936
      %v4078 = vpop.f32.mrf.mxu0
      %v4079 = vadd.f32 0.0, %v4078
      %v4080 = vpop.f32.mrf.mxu0
      %v4081 = vadd.f32 0.0, %v4080
      %4082 = vmatmul.bf16.gmra.mxu0 %v3937
      %v4083 = vpop.f32.mrf.mxu0
      %v4084 = vadd.f32 0.0, %v4083
      %v4085 = vpop.f32.mrf.mxu0
      %v4086 = vadd.f32 0.0, %v4085
      %4087 = vmatmul.bf16.gmra.mxu0 %v3938
      %v4088 = vpop.f32.mrf.mxu0
      %v4089 = vadd.f32 0.0, %v4088
      %v4090 = vpop.f32.mrf.mxu0
      %v4091 = vadd.f32 0.0, %v4090
      %4092 = vdwg.mxu0
      %v4093 = vld [vmem:[#allocation4] sm:$0xff]
      %v4094 = vld [vmem:[#allocation4 + $0x8] sm:$0xff]
      %v4095 = vld [vmem:[#allocation4 + $0x10] sm:$0xff]
      %v4096 = vld [vmem:[#allocation4 + $0x18] sm:$0xff]
      %v4097 = vld [vmem:[#allocation4 + $0x20] sm:$0xff]
      %v4098 = vld [vmem:[#allocation4 + $0x28] sm:$0xff]
      %v4099 = vld [vmem:[#allocation4 + $0x30] sm:$0xff]
      %v4100 = vld [vmem:[#allocation4 + $0x38] sm:$0xff]
      %v4101 = vld [vmem:[#allocation4 + $0x40] sm:$0xff]
      %v4102 = vld [vmem:[#allocation4 + $0x48] sm:$0xff]
      %v4103 = vld [vmem:[#allocation4 + $0x50] sm:$0xff]
      %v4104 = vld [vmem:[#allocation4 + $0x58] sm:$0xff]
      %v4105 = vld [vmem:[#allocation4 + $0x60] sm:$0xff]
      %v4106 = vld [vmem:[#allocation4 + $0x68] sm:$0xff]
      %v4107 = vld [vmem:[#allocation4 + $0x70] sm:$0xff]
      %v4108 = vld [vmem:[#allocation4 + $0x78] sm:$0xff]
      %v4109 = vld [vmem:[#allocation4 + $0x80] sm:$0xff]
      %v4110 = vld [vmem:[#allocation4 + $0x88] sm:$0xff]
      %v4111 = vld [vmem:[#allocation4 + $0x90] sm:$0xff]
      %v4112 = vld [vmem:[#allocation4 + $0x98] sm:$0xff]
      %v4113 = vld [vmem:[#allocation4 + $0xa0] sm:$0xff]
      %v4114 = vld [vmem:[#allocation4 + $0xa8] sm:$0xff]
      %v4115 = vld [vmem:[#allocation4 + $0xb0] sm:$0xff]
      %v4116 = vld [vmem:[#allocation4 + $0xb8] sm:$0xff]
      %v4117 = vld [vmem:[#allocation4 + $0xc0] sm:$0xff]
      %v4118 = vld [vmem:[#allocation4 + $0xc8] sm:$0xff]
      %v4119 = vld [vmem:[#allocation4 + $0xd0] sm:$0xff]
      %v4120 = vld [vmem:[#allocation4 + $0xd8] sm:$0xff]
      %v4121 = vld [vmem:[#allocation4 + $0xe0] sm:$0xff]
      %v4122 = vld [vmem:[#allocation4 + $0xe8] sm:$0xff]
      %v4123 = vld [vmem:[#allocation4 + $0xf0] sm:$0xff]
      %v4124 = vld [vmem:[#allocation4 + $0xf8] sm:$0xff]
      %v4125 = vadd.f32 %v4093, %v4014
      %v4126 = vadd.f32 %v4094, %v4016
      %v4127 = vadd.f32 %v4095, %v4019
      %v4128 = vadd.f32 %v4096, %v4021
      %v4129 = vadd.f32 %v4097, %v4024
      %v4130 = vadd.f32 %v4098, %v4026
      %v4131 = vadd.f32 %v4099, %v4029
      %v4132 = vadd.f32 %v4100, %v4031
      %v4133 = vadd.f32 %v4101, %v4034
      %v4134 = vadd.f32 %v4102, %v4036
      %v4135 = vadd.f32 %v4103, %v4039
      %v4136 = vadd.f32 %v4104, %v4041
      %v4137 = vadd.f32 %v4105, %v4044
      %v4138 = vadd.f32 %v4106, %v4046
      %v4139 = vadd.f32 %v4107, %v4049
      %v4140 = vadd.f32 %v4108, %v4051
      %v4141 = vadd.f32 %v4109, %v4054
      %v4142 = vadd.f32 %v4110, %v4056
      %v4143 = vadd.f32 %v4111, %v4059
      %v4144 = vadd.f32 %v4112, %v4061
      %v4145 = vadd.f32 %v4113, %v4064
      %v4146 = vadd.f32 %v4114, %v4066
      %v4147 = vadd.f32 %v4115, %v4069
      %v4148 = vadd.f32 %v4116, %v4071
      %v4149 = vadd.f32 %v4117, %v4074
      %v4150 = vadd.f32 %v4118, %v4076
      %v4151 = vadd.f32 %v4119, %v4079
      %v4152 = vadd.f32 %v4120, %v4081
      %v4153 = vadd.f32 %v4121, %v4084
      %v4154 = vadd.f32 %v4122, %v4086
      %v4155 = vadd.f32 %v4123, %v4089
      %v4156 = vadd.f32 %v4124, %v4091
      %4157 = vst [vmem:[#allocation4] sm:$0xff] %v4125
      %4158 = vst [vmem:[#allocation4 + $0x8] sm:$0xff] %v4126
      %4159 = vst [vmem:[#allocation4 + $0x10] sm:$0xff] %v4127
      %4160 = vst [vmem:[#allocation4 + $0x18] sm:$0xff] %v4128
      %4161 = vst [vmem:[#allocation4 + $0x20] sm:$0xff] %v4129
      %4162 = vst [vmem:[#allocation4 + $0x28] sm:$0xff] %v4130
      %4163 = vst [vmem:[#allocation4 + $0x30] sm:$0xff] %v4131
      %4164 = vst [vmem:[#allocation4 + $0x38] sm:$0xff] %v4132
      %4165 = vst [vmem:[#allocation4 + $0x40] sm:$0xff] %v4133
      %4166 = vst [vmem:[#allocation4 + $0x48] sm:$0xff] %v4134
      %4167 = vst [vmem:[#allocation4 + $0x50] sm:$0xff] %v4135
      %4168 = vst [vmem:[#allocation4 + $0x58] sm:$0xff] %v4136
      %4169 = vst [vmem:[#allocation4 + $0x60] sm:$0xff] %v4137
      %4170 = vst [vmem:[#allocation4 + $0x68] sm:$0xff] %v4138
      %4171 = vst [vmem:[#allocation4 + $0x70] sm:$0xff] %v4139
      %4172 = vst [vmem:[#allocation4 + $0x78] sm:$0xff] %v4140
      %4173 = vst [vmem:[#allocation4 + $0x80] sm:$0xff] %v4141
      %4174 = vst [vmem:[#allocation4 + $0x88] sm:$0xff] %v4142
      %4175 = vst [vmem:[#allocation4 + $0x90] sm:$0xff] %v4143
      %4176 = vst [vmem:[#allocation4 + $0x98] sm:$0xff] %v4144
      %4177 = vst [vmem:[#allocation4 + $0xa0] sm:$0xff] %v4145
      %4178 = vst [vmem:[#allocation4 + $0xa8] sm:$0xff] %v4146
      %4179 = vst [vmem:[#allocation4 + $0xb0] sm:$0xff] %v4147
      %4180 = vst [vmem:[#allocation4 + $0xb8] sm:$0xff] %v4148
      %4181 = vst [vmem:[#allocation4 + $0xc0] sm:$0xff] %v4149
      %4182 = vst [vmem:[#allocation4 + $0xc8] sm:$0xff] %v4150
      %4183 = vst [vmem:[#allocation4 + $0xd0] sm:$0xff] %v4151
      %4184 = vst [vmem:[#allocation4 + $0xd8] sm:$0xff] %v4152
      %4185 = vst [vmem:[#allocation4 + $0xe0] sm:$0xff] %v4153
      %4186 = vst [vmem:[#allocation4 + $0xe8] sm:$0xff] %v4154
      %4187 = vst [vmem:[#allocation4 + $0xf0] sm:$0xff] %v4155
      %4188 = vst [vmem:[#allocation4 + $0xf8] sm:$0xff] %v4156
      %v4189 = vld [vmem:[%s3029 + $0x1] sm:$0xff]
      %v4190 = vld [vmem:[%s3029 + $0x9] sm:$0xff]
      %v4191 = vld [vmem:[%s3029 + $0x19] sm:$0xff]
      %v4192 = vld [vmem:[%s3029 + $0x21] sm:$0xff]
      %v4193 = vld [vmem:[%s3029 + $0x31] sm:$0xff]
      %v4194 = vld [vmem:[%s3029 + $0x39] sm:$0xff]
      %v4195 = vld [vmem:[%s3029 + $0x49] sm:$0xff]
      %v4196 = vld [vmem:[%s3029 + $0x51] sm:$0xff]
      %v4197 = vld [vmem:[%s3029 + $0x61] sm:$0xff]
      %v4198 = vld [vmem:[%s3029 + $0x69] sm:$0xff]
      %v4199 = vld [vmem:[%s3029 + $0x79] sm:$0xff]
      %v4200 = vld [vmem:[%s3029 + $0x81] sm:$0xff]
      %v4201 = vld [vmem:[%s3029 + $0x91] sm:$0xff]
      %v4202 = vld [vmem:[%s3029 + $0x99] sm:$0xff]
      %v4203 = vld [vmem:[%s3029 + $0xa9] sm:$0xff]
      %v4204 = vld [vmem:[%s3029 + $0xb1] sm:$0xff]
      %v4205 = vld [vmem:[%s3029 + $0xc1] sm:$0xff]
      %v4206 = vld [vmem:[%s3029 + $0xc9] sm:$0xff]
      %v4207 = vld [vmem:[%s3029 + $0xd9] sm:$0xff]
      %v4208 = vld [vmem:[%s3029 + $0xe1] sm:$0xff]
      %v4209 = vld [vmem:[%s3029 + $0xf1] sm:$0xff]
      %v4210 = vld [vmem:[%s3029 + $0xf9] sm:$0xff]
      %v4211 = vld [vmem:[%s3029 + $0x109] sm:$0xff]
      %v4212 = vld [vmem:[%s3029 + $0x111] sm:$0xff]
      %v4213 = vld [vmem:[%s3029 + $0x121] sm:$0xff]
      %v4214 = vld [vmem:[%s3029 + $0x129] sm:$0xff]
      %v4215 = vld [vmem:[%s3029 + $0x139] sm:$0xff]
      %v4216 = vld [vmem:[%s3029 + $0x141] sm:$0xff]
      %v4217 = vld [vmem:[%s3029 + $0x151] sm:$0xff]
      %v4218 = vld [vmem:[%s3029 + $0x159] sm:$0xff]
      %v4219 = vld [vmem:[%s3029 + $0x169] sm:$0xff]
      %v4220 = vld [vmem:[%s3029 + $0x171] sm:$0xff]
      %v4221 = vpack.c.bf16 %v4190, %v4189
      %v4222 = vpack.c.bf16 %v4192, %v4191
      %v4223 = vpack.c.bf16 %v4194, %v4193
      %v4224 = vpack.c.bf16 %v4196, %v4195
      %v4225 = vpack.c.bf16 %v4198, %v4197
      %v4226 = vpack.c.bf16 %v4200, %v4199
      %v4227 = vpack.c.bf16 %v4202, %v4201
      %v4228 = vpack.c.bf16 %v4204, %v4203
      %v4229 = vpack.c.bf16 %v4206, %v4205
      %v4230 = vpack.c.bf16 %v4208, %v4207
      %v4231 = vpack.c.bf16 %v4210, %v4209
      %v4232 = vpack.c.bf16 %v4212, %v4211
      %v4233 = vpack.c.bf16 %v4214, %v4213
      %v4234 = vpack.c.bf16 %v4216, %v4215
      %v4235 = vpack.c.bf16 %v4218, %v4217
      %v4236 = vpack.c.bf16 %v4220, %v4219
      %s4237 = scalar_lea.vmem %s3, 256
      %v4238 = vld [vmem:[%s4237] sm:$0xf]
      %v4239 = vld [vmem:[%s4237 + $0x4] sm:$0xf]
      %v4240 = vld [vmem:[%s4237 + $0x8] sm:$0xf]
      %v4241 = vld [vmem:[%s4237 + $0xc] sm:$0xf]
      %v4242 = vld [vmem:[%s4237 + $0x10] sm:$0xf]
      %v4243 = vld [vmem:[%s4237 + $0x14] sm:$0xf]
      %v4244 = vld [vmem:[%s4237 + $0x18] sm:$0xf]
      %v4245 = vld [vmem:[%s4237 + $0x1c] sm:$0xf]
      %v4246 = vld [vmem:[%s4237 + $0x20] sm:$0xf]
      %v4247 = vld [vmem:[%s4237 + $0x24] sm:$0xf]
      %v4248 = vld [vmem:[%s4237 + $0x28] sm:$0xf]
      %v4249 = vld [vmem:[%s4237 + $0x2c] sm:$0xf]
      %v4250 = vld [vmem:[%s4237 + $0x30] sm:$0xf]
      %v4251 = vld [vmem:[%s4237 + $0x34] sm:$0xf]
      %v4252 = vld [vmem:[%s4237 + $0x38] sm:$0xf]
      %v4253 = vld [vmem:[%s4237 + $0x3c] sm:$0xf]
      %v4270 = vunpack.c.l.b16 %v4238
      %v4271 = vunpack.c.l.b16 %v4239
      %v4272 = vunpack.c.l.b16 %v4240
      %v4273 = vunpack.c.l.b16 %v4241
      %v4274 = vunpack.c.l.b16 %v4242
      %v4275 = vunpack.c.l.b16 %v4243
      %v4276 = vunpack.c.l.b16 %v4244
      %v4277 = vunpack.c.l.b16 %v4245
      %v4278 = vunpack.c.l.b16 %v4246
      %v4279 = vunpack.c.l.b16 %v4247
      %v4280 = vunpack.c.l.b16 %v4248
      %v4281 = vunpack.c.l.b16 %v4249
      %v4282 = vunpack.c.l.b16 %v4250
      %v4283 = vunpack.c.l.b16 %v4251
      %v4284 = vunpack.c.l.b16 %v4252
      %v4285 = vunpack.c.l.b16 %v4253
      %v4286 = vpack.c.b16 %v4271, %v4270
      %v4287 = vpack.c.b16 %v4273, %v4272
      %v4288 = vpack.c.b16 %v4275, %v4274
      %v4289 = vpack.c.b16 %v4277, %v4276
      %v4290 = vpack.c.b16 %v4279, %v4278
      %v4291 = vpack.c.b16 %v4281, %v4280
      %v4292 = vpack.c.b16 %v4283, %v4282
      %v4293 = vpack.c.b16 %v4285, %v4284
      %4302 = vmatpush.bf16.msra.mxu0 %v4293
      %4303 = vmatpush.bf16.msra.mxu0 %v4292
      %4304 = vmatpush.bf16.msra.mxu0 %v4291
      %4305 = vmatpush.bf16.msra.mxu0 %v4290
      %4306 = vmatpush.bf16.msra.mxu0 %v4289
      %4307 = vmatpush.bf16.msra.mxu0 %v4288
      %4308 = vmatpush.bf16.msra.mxu0 %v4287
      %4309 = vmatpush.bf16.msra.mxu0 %v4286
      %4310 = vmatmul.bf16.gmra.mxu0 %v4221
      %v4311 = vpop.f32.mrf.mxu0
      %v4312 = vadd.f32 0.0, %v4311
      %v4313 = vpop.f32.mrf.mxu0
      %v4314 = vadd.f32 0.0, %v4313
      %4315 = vmatmul.bf16.gmra.mxu0 %v4222
      %v4316 = vpop.f32.mrf.mxu0
      %v4317 = vadd.f32 0.0, %v4316
      %v4318 = vpop.f32.mrf.mxu0
      %v4319 = vadd.f32 0.0, %v4318
      %4320 = vmatmul.bf16.gmra.mxu0 %v4223
      %v4321 = vpop.f32.mrf.mxu0
      %v4322 = vadd.f32 0.0, %v4321
      %v4323 = vpop.f32.mrf.mxu0
      %v4324 = vadd.f32 0.0, %v4323
      %4325 = vmatmul.bf16.gmra.mxu0 %v4224
      %v4326 = vpop.f32.mrf.mxu0
      %v4327 = vadd.f32 0.0, %v4326
      %v4328 = vpop.f32.mrf.mxu0
      %v4329 = vadd.f32 0.0, %v4328
      %4330 = vmatmul.bf16.gmra.mxu0 %v4225
      %v4331 = vpop.f32.mrf.mxu0
      %v4332 = vadd.f32 0.0, %v4331
      %v4333 = vpop.f32.mrf.mxu0
      %v4334 = vadd.f32 0.0, %v4333
      %4335 = vmatmul.bf16.gmra.mxu0 %v4226
      %v4336 = vpop.f32.mrf.mxu0
      %v4337 = vadd.f32 0.0, %v4336
      %v4338 = vpop.f32.mrf.mxu0
      %v4339 = vadd.f32 0.0, %v4338
      %4340 = vmatmul.bf16.gmra.mxu0 %v4227
      %v4341 = vpop.f32.mrf.mxu0
      %v4342 = vadd.f32 0.0, %v4341
      %v4343 = vpop.f32.mrf.mxu0
      %v4344 = vadd.f32 0.0, %v4343
      %4345 = vmatmul.bf16.gmra.mxu0 %v4228
      %v4346 = vpop.f32.mrf.mxu0
      %v4347 = vadd.f32 0.0, %v4346
      %v4348 = vpop.f32.mrf.mxu0
      %v4349 = vadd.f32 0.0, %v4348
      %4350 = vmatmul.bf16.gmra.mxu0 %v4229
      %v4351 = vpop.f32.mrf.mxu0
      %v4352 = vadd.f32 0.0, %v4351
      %v4353 = vpop.f32.mrf.mxu0
      %v4354 = vadd.f32 0.0, %v4353
      %4355 = vmatmul.bf16.gmra.mxu0 %v4230
      %v4356 = vpop.f32.mrf.mxu0
      %v4357 = vadd.f32 0.0, %v4356
      %v4358 = vpop.f32.mrf.mxu0
      %v4359 = vadd.f32 0.0, %v4358
      %4360 = vmatmul.bf16.gmra.mxu0 %v4231
      %v4361 = vpop.f32.mrf.mxu0
      %v4362 = vadd.f32 0.0, %v4361
      %v4363 = vpop.f32.mrf.mxu0
      %v4364 = vadd.f32 0.0, %v4363
      %4365 = vmatmul.bf16.gmra.mxu0 %v4232
      %v4366 = vpop.f32.mrf.mxu0
      %v4367 = vadd.f32 0.0, %v4366
      %v4368 = vpop.f32.mrf.mxu0
      %v4369 = vadd.f32 0.0, %v4368
      %4370 = vmatmul.bf16.gmra.mxu0 %v4233
      %v4371 = vpop.f32.mrf.mxu0
      %v4372 = vadd.f32 0.0, %v4371
      %v4373 = vpop.f32.mrf.mxu0
      %v4374 = vadd.f32 0.0, %v4373
      %4375 = vmatmul.bf16.gmra.mxu0 %v4234
      %v4376 = vpop.f32.mrf.mxu0
      %v4377 = vadd.f32 0.0, %v4376
      %v4378 = vpop.f32.mrf.mxu0
      %v4379 = vadd.f32 0.0, %v4378
      %4380 = vmatmul.bf16.gmra.mxu0 %v4235
      %v4381 = vpop.f32.mrf.mxu0
      %v4382 = vadd.f32 0.0, %v4381
      %v4383 = vpop.f32.mrf.mxu0
      %v4384 = vadd.f32 0.0, %v4383
      %4385 = vmatmul.bf16.gmra.mxu0 %v4236
      %v4386 = vpop.f32.mrf.mxu0
      %v4387 = vadd.f32 0.0, %v4386
      %v4388 = vpop.f32.mrf.mxu0
      %v4389 = vadd.f32 0.0, %v4388
      %4390 = vdwg.mxu0
      %v4391 = vld [vmem:[#allocation4] sm:$0xff]
      %v4392 = vld [vmem:[#allocation4 + $0x8] sm:$0xff]
      %v4393 = vld [vmem:[#allocation4 + $0x10] sm:$0xff]
      %v4394 = vld [vmem:[#allocation4 + $0x18] sm:$0xff]
      %v4395 = vld [vmem:[#allocation4 + $0x20] sm:$0xff]
      %v4396 = vld [vmem:[#allocation4 + $0x28] sm:$0xff]
      %v4397 = vld [vmem:[#allocation4 + $0x30] sm:$0xff]
      %v4398 = vld [vmem:[#allocation4 + $0x38] sm:$0xff]
      %v4399 = vld [vmem:[#allocation4 + $0x40] sm:$0xff]
      %v4400 = vld [vmem:[#allocation4 + $0x48] sm:$0xff]
      %v4401 = vld [vmem:[#allocation4 + $0x50] sm:$0xff]
      %v4402 = vld [vmem:[#allocation4 + $0x58] sm:$0xff]
      %v4403 = vld [vmem:[#allocation4 + $0x60] sm:$0xff]
      %v4404 = vld [vmem:[#allocation4 + $0x68] sm:$0xff]
      %v4405 = vld [vmem:[#allocation4 + $0x70] sm:$0xff]
      %v4406 = vld [vmem:[#allocation4 + $0x78] sm:$0xff]
      %v4407 = vld [vmem:[#allocation4 + $0x80] sm:$0xff]
      %v4408 = vld [vmem:[#allocation4 + $0x88] sm:$0xff]
      %v4409 = vld [vmem:[#allocation4 + $0x90] sm:$0xff]
      %v4410 = vld [vmem:[#allocation4 + $0x98] sm:$0xff]
      %v4411 = vld [vmem:[#allocation4 + $0xa0] sm:$0xff]
      %v4412 = vld [vmem:[#allocation4 + $0xa8] sm:$0xff]
      %v4413 = vld [vmem:[#allocation4 + $0xb0] sm:$0xff]
      %v4414 = vld [vmem:[#allocation4 + $0xb8] sm:$0xff]
      %v4415 = vld [vmem:[#allocation4 + $0xc0] sm:$0xff]
      %v4416 = vld [vmem:[#allocation4 + $0xc8] sm:$0xff]
      %v4417 = vld [vmem:[#allocation4 + $0xd0] sm:$0xff]
      %v4418 = vld [vmem:[#allocation4 + $0xd8] sm:$0xff]
      %v4419 = vld [vmem:[#allocation4 + $0xe0] sm:$0xff]
      %v4420 = vld [vmem:[#allocation4 + $0xe8] sm:$0xff]
      %v4421 = vld [vmem:[#allocation4 + $0xf0] sm:$0xff]
      %v4422 = vld [vmem:[#allocation4 + $0xf8] sm:$0xff]
      %v4423 = vadd.f32 %v4391, %v4312
      %v4424 = vadd.f32 %v4392, %v4314
      %v4425 = vadd.f32 %v4393, %v4317
      %v4426 = vadd.f32 %v4394, %v4319
      %v4427 = vadd.f32 %v4395, %v4322
      %v4428 = vadd.f32 %v4396, %v4324
      %v4429 = vadd.f32 %v4397, %v4327
      %v4430 = vadd.f32 %v4398, %v4329
      %v4431 = vadd.f32 %v4399, %v4332
      %v4432 = vadd.f32 %v4400, %v4334
      %v4433 = vadd.f32 %v4401, %v4337
      %v4434 = vadd.f32 %v4402, %v4339
      %v4435 = vadd.f32 %v4403, %v4342
      %v4436 = vadd.f32 %v4404, %v4344
      %v4437 = vadd.f32 %v4405, %v4347
      %v4438 = vadd.f32 %v4406, %v4349
      %v4439 = vadd.f32 %v4407, %v4352
      %v4440 = vadd.f32 %v4408, %v4354
      %v4441 = vadd.f32 %v4409, %v4357
      %v4442 = vadd.f32 %v4410, %v4359
      %v4443 = vadd.f32 %v4411, %v4362
      %v4444 = vadd.f32 %v4412, %v4364
      %v4445 = vadd.f32 %v4413, %v4367
      %v4446 = vadd.f32 %v4414, %v4369
      %v4447 = vadd.f32 %v4415, %v4372
      %v4448 = vadd.f32 %v4416, %v4374
      %v4449 = vadd.f32 %v4417, %v4377
      %v4450 = vadd.f32 %v4418, %v4379
      %v4451 = vadd.f32 %v4419, %v4382
      %v4452 = vadd.f32 %v4420, %v4384
      %v4453 = vadd.f32 %v4421, %v4387
      %v4454 = vadd.f32 %v4422, %v4389
      %4455 = vst [vmem:[#allocation4] sm:$0xff] %v4423
      %4456 = vst [vmem:[#allocation4 + $0x8] sm:$0xff] %v4424
      %4457 = vst [vmem:[#allocation4 + $0x10] sm:$0xff] %v4425
      %4458 = vst [vmem:[#allocation4 + $0x18] sm:$0xff] %v4426
      %4459 = vst [vmem:[#allocation4 + $0x20] sm:$0xff] %v4427
      %4460 = vst [vmem:[#allocation4 + $0x28] sm:$0xff] %v4428
      %4461 = vst [vmem:[#allocation4 + $0x30] sm:$0xff] %v4429
      %4462 = vst [vmem:[#allocation4 + $0x38] sm:$0xff] %v4430
      %4463 = vst [vmem:[#allocation4 + $0x40] sm:$0xff] %v4431
      %4464 = vst [vmem:[#allocation4 + $0x48] sm:$0xff] %v4432
      %4465 = vst [vmem:[#allocation4 + $0x50] sm:$0xff] %v4433
      %4466 = vst [vmem:[#allocation4 + $0x58] sm:$0xff] %v4434
      %4467 = vst [vmem:[#allocation4 + $0x60] sm:$0xff] %v4435
      %4468 = vst [vmem:[#allocation4 + $0x68] sm:$0xff] %v4436
      %4469 = vst [vmem:[#allocation4 + $0x70] sm:$0xff] %v4437
      %4470 = vst [vmem:[#allocation4 + $0x78] sm:$0xff] %v4438
      %4471 = vst [vmem:[#allocation4 + $0x80] sm:$0xff] %v4439
      %4472 = vst [vmem:[#allocation4 + $0x88] sm:$0xff] %v4440
      %4473 = vst [vmem:[#allocation4 + $0x90] sm:$0xff] %v4441
      %4474 = vst [vmem:[#allocation4 + $0x98] sm:$0xff] %v4442
      %4475 = vst [vmem:[#allocation4 + $0xa0] sm:$0xff] %v4443
      %4476 = vst [vmem:[#allocation4 + $0xa8] sm:$0xff] %v4444
      %4477 = vst [vmem:[#allocation4 + $0xb0] sm:$0xff] %v4445
      %4478 = vst [vmem:[#allocation4 + $0xb8] sm:$0xff] %v4446
      %4479 = vst [vmem:[#allocation4 + $0xc0] sm:$0xff] %v4447
      %4480 = vst [vmem:[#allocation4 + $0xc8] sm:$0xff] %v4448
      %4481 = vst [vmem:[#allocation4 + $0xd0] sm:$0xff] %v4449
      %4482 = vst [vmem:[#allocation4 + $0xd8] sm:$0xff] %v4450
      %4483 = vst [vmem:[#allocation4 + $0xe0] sm:$0xff] %v4451
      %4484 = vst [vmem:[#allocation4 + $0xe8] sm:$0xff] %v4452
      %4485 = vst [vmem:[#allocation4 + $0xf0] sm:$0xff] %v4453
      %4486 = vst [vmem:[#allocation4 + $0xf8] sm:$0xff] %v4454
      %v4487 = vld [vmem:[%s3029 + $0x2] sm:$0xff]
      %v4488 = vld [vmem:[%s3029 + $0xa] sm:$0xff]
      %v4489 = vld [vmem:[%s3029 + $0x1a] sm:$0xff]
      %v4490 = vld [vmem:[%s3029 + $0x22] sm:$0xff]
      %v4491 = vld [vmem:[%s3029 + $0x32] sm:$0xff]
      %v4492 = vld [vmem:[%s3029 + $0x3a] sm:$0xff]
      %v4493 = vld [vmem:[%s3029 + $0x4a] sm:$0xff]
      %v4494 = vld [vmem:[%s3029 + $0x52] sm:$0xff]
      %v4495 = vld [vmem:[%s3029 + $0x62] sm:$0xff]
      %v4496 = vld [vmem:[%s3029 + $0x6a] sm:$0xff]
      %v4497 = vld [vmem:[%s3029 + $0x7a] sm:$0xff]
      %v4498 = vld [vmem:[%s3029 + $0x82] sm:$0xff]
      %v4499 = vld [vmem:[%s3029 + $0x92] sm:$0xff]
      %v4500 = vld [vmem:[%s3029 + $0x9a] sm:$0xff]
      %v4501 = vld [vmem:[%s3029 + $0xaa] sm:$0xff]
      %v4502 = vld [vmem:[%s3029 + $0xb2] sm:$0xff]
      %v4503 = vld [vmem:[%s3029 + $0xc2] sm:$0xff]
      %v4504 = vld [vmem:[%s3029 + $0xca] sm:$0xff]
      %v4505 = vld [vmem:[%s3029 + $0xda] sm:$0xff]
      %v4506 = vld [vmem:[%s3029 + $0xe2] sm:$0xff]
      %v4507 = vld [vmem:[%s3029 + $0xf2] sm:$0xff]
      %v4508 = vld [vmem:[%s3029 + $0xfa] sm:$0xff]
      %v4509 = vld [vmem:[%s3029 + $0x10a] sm:$0xff]
      %v4510 = vld [vmem:[%s3029 + $0x112] sm:$0xff]
      %v4511 = vld [vmem:[%s3029 + $0x122] sm:$0xff]
      %v4512 = vld [vmem:[%s3029 + $0x12a] sm:$0xff]
      %v4513 = vld [vmem:[%s3029 + $0x13a] sm:$0xff]
      %v4514 = vld [vmem:[%s3029 + $0x142] sm:$0xff]
      %v4515 = vld [vmem:[%s3029 + $0x152] sm:$0xff]
      %v4516 = vld [vmem:[%s3029 + $0x15a] sm:$0xff]
      %v4517 = vld [vmem:[%s3029 + $0x16a] sm:$0xff]
      %v4518 = vld [vmem:[%s3029 + $0x172] sm:$0xff]
      %v4519 = vpack.c.bf16 %v4488, %v4487
      %v4520 = vpack.c.bf16 %v4490, %v4489
      %v4521 = vpack.c.bf16 %v4492, %v4491
      %v4522 = vpack.c.bf16 %v4494, %v4493
      %v4523 = vpack.c.bf16 %v4496, %v4495
      %v4524 = vpack.c.bf16 %v4498, %v4497
      %v4525 = vpack.c.bf16 %v4500, %v4499
      %v4526 = vpack.c.bf16 %v4502, %v4501
      %v4527 = vpack.c.bf16 %v4504, %v4503
      %v4528 = vpack.c.bf16 %v4506, %v4505
      %v4529 = vpack.c.bf16 %v4508, %v4507
      %v4530 = vpack.c.bf16 %v4510, %v4509
      %v4531 = vpack.c.bf16 %v4512, %v4511
      %v4532 = vpack.c.bf16 %v4514, %v4513
      %v4533 = vpack.c.bf16 %v4516, %v4515
      %v4534 = vpack.c.bf16 %v4518, %v4517
      %s4535 = scalar_lea.vmem %s3, 320
      %v4536 = vld [vmem:[%s4535] sm:$0xf]
      %v4537 = vld [vmem:[%s4535 + $0x4] sm:$0xf]
      %v4538 = vld [vmem:[%s4535 + $0x8] sm:$0xf]
      %v4539 = vld [vmem:[%s4535 + $0xc] sm:$0xf]
      %v4540 = vld [vmem:[%s4535 + $0x10] sm:$0xf]
      %v4541 = vld [vmem:[%s4535 + $0x14] sm:$0xf]
      %v4542 = vld [vmem:[%s4535 + $0x18] sm:$0xf]
      %v4543 = vld [vmem:[%s4535 + $0x1c] sm:$0xf]
      %v4544 = vld [vmem:[%s4535 + $0x20] sm:$0xf]
      %v4545 = vld [vmem:[%s4535 + $0x24] sm:$0xf]
      %v4546 = vld [vmem:[%s4535 + $0x28] sm:$0xf]
      %v4547 = vld [vmem:[%s4535 + $0x2c] sm:$0xf]
      %v4548 = vld [vmem:[%s4535 + $0x30] sm:$0xf]
      %v4549 = vld [vmem:[%s4535 + $0x34] sm:$0xf]
      %v4550 = vld [vmem:[%s4535 + $0x38] sm:$0xf]
      %v4551 = vld [vmem:[%s4535 + $0x3c] sm:$0xf]
      %v4568 = vunpack.c.l.b16 %v4536
      %v4569 = vunpack.c.l.b16 %v4537
      %v4570 = vunpack.c.l.b16 %v4538
      %v4571 = vunpack.c.l.b16 %v4539
      %v4572 = vunpack.c.l.b16 %v4540
      %v4573 = vunpack.c.l.b16 %v4541
      %v4574 = vunpack.c.l.b16 %v4542
      %v4575 = vunpack.c.l.b16 %v4543
      %v4576 = vunpack.c.l.b16 %v4544
      %v4577 = vunpack.c.l.b16 %v4545
      %v4578 = vunpack.c.l.b16 %v4546
      %v4579 = vunpack.c.l.b16 %v4547
      %v4580 = vunpack.c.l.b16 %v4548
      %v4581 = vunpack.c.l.b16 %v4549
      %v4582 = vunpack.c.l.b16 %v4550
      %v4583 = vunpack.c.l.b16 %v4551
      %v4584 = vpack.c.b16 %v4569, %v4568
      %v4585 = vpack.c.b16 %v4571, %v4570
      %v4586 = vpack.c.b16 %v4573, %v4572
      %v4587 = vpack.c.b16 %v4575, %v4574
      %v4588 = vpack.c.b16 %v4577, %v4576
      %v4589 = vpack.c.b16 %v4579, %v4578
      %v4590 = vpack.c.b16 %v4581, %v4580
      %v4591 = vpack.c.b16 %v4583, %v4582
      %4600 = vmatpush.bf16.msra.mxu0 %v4591
      %4601 = vmatpush.bf16.msra.mxu0 %v4590
      %4602 = vmatpush.bf16.msra.mxu0 %v4589
      %4603 = vmatpush.bf16.msra.mxu0 %v4588
      %4604 = vmatpush.bf16.msra.mxu0 %v4587
      %4605 = vmatpush.bf16.msra.mxu0 %v4586
      %4606 = vmatpush.bf16.msra.mxu0 %v4585
      %4607 = vmatpush.bf16.msra.mxu0 %v4584
      %4608 = vmatmul.bf16.gmra.mxu0 %v4519
      %v4609 = vpop.f32.mrf.mxu0
      %v4610 = vadd.f32 0.0, %v4609
      %v4611 = vpop.f32.mrf.mxu0
      %v4612 = vadd.f32 0.0, %v4611
      %4613 = vmatmul.bf16.gmra.mxu0 %v4520
      %v4614 = vpop.f32.mrf.mxu0
      %v4615 = vadd.f32 0.0, %v4614
      %v4616 = vpop.f32.mrf.mxu0
      %v4617 = vadd.f32 0.0, %v4616
      %4618 = vmatmul.bf16.gmra.mxu0 %v4521
      %v4619 = vpop.f32.mrf.mxu0
      %v4620 = vadd.f32 0.0, %v4619
      %v4621 = vpop.f32.mrf.mxu0
      %v4622 = vadd.f32 0.0, %v4621
      %4623 = vmatmul.bf16.gmra.mxu0 %v4522
      %v4624 = vpop.f32.mrf.mxu0
      %v4625 = vadd.f32 0.0, %v4624
      %v4626 = vpop.f32.mrf.mxu0
      %v4627 = vadd.f32 0.0, %v4626
      %4628 = vmatmul.bf16.gmra.mxu0 %v4523
      %v4629 = vpop.f32.mrf.mxu0
      %v4630 = vadd.f32 0.0, %v4629
      %v4631 = vpop.f32.mrf.mxu0
      %v4632 = vadd.f32 0.0, %v4631
      %4633 = vmatmul.bf16.gmra.mxu0 %v4524
      %v4634 = vpop.f32.mrf.mxu0
      %v4635 = vadd.f32 0.0, %v4634
      %v4636 = vpop.f32.mrf.mxu0
      %v4637 = vadd.f32 0.0, %v4636
      %4638 = vmatmul.bf16.gmra.mxu0 %v4525
      %v4639 = vpop.f32.mrf.mxu0
      %v4640 = vadd.f32 0.0, %v4639
      %v4641 = vpop.f32.mrf.mxu0
      %v4642 = vadd.f32 0.0, %v4641
      %4643 = vmatmul.bf16.gmra.mxu0 %v4526
      %v4644 = vpop.f32.mrf.mxu0
      %v4645 = vadd.f32 0.0, %v4644
      %v4646 = vpop.f32.mrf.mxu0
      %v4647 = vadd.f32 0.0, %v4646
      %4648 = vmatmul.bf16.gmra.mxu0 %v4527
      %v4649 = vpop.f32.mrf.mxu0
      %v4650 = vadd.f32 0.0, %v4649
      %v4651 = vpop.f32.mrf.mxu0
      %v4652 = vadd.f32 0.0, %v4651
      %4653 = vmatmul.bf16.gmra.mxu0 %v4528
      %v4654 = vpop.f32.mrf.mxu0
      %v4655 = vadd.f32 0.0, %v4654
      %v4656 = vpop.f32.mrf.mxu0
      %v4657 = vadd.f32 0.0, %v4656
      %4658 = vmatmul.bf16.gmra.mxu0 %v4529
      %v4659 = vpop.f32.mrf.mxu0
      %v4660 = vadd.f32 0.0, %v4659
      %v4661 = vpop.f32.mrf.mxu0
      %v4662 = vadd.f32 0.0, %v4661
      %4663 = vmatmul.bf16.gmra.mxu0 %v4530
      %v4664 = vpop.f32.mrf.mxu0
      %v4665 = vadd.f32 0.0, %v4664
      %v4666 = vpop.f32.mrf.mxu0
      %v4667 = vadd.f32 0.0, %v4666
      %4668 = vmatmul.bf16.gmra.mxu0 %v4531
      %v4669 = vpop.f32.mrf.mxu0
      %v4670 = vadd.f32 0.0, %v4669
      %v4671 = vpop.f32.mrf.mxu0
      %v4672 = vadd.f32 0.0, %v4671
      %4673 = vmatmul.bf16.gmra.mxu0 %v4532
      %v4674 = vpop.f32.mrf.mxu0
      %v4675 = vadd.f32 0.0, %v4674
      %v4676 = vpop.f32.mrf.mxu0
      %v4677 = vadd.f32 0.0, %v4676
      %4678 = vmatmul.bf16.gmra.mxu0 %v4533
      %v4679 = vpop.f32.mrf.mxu0
      %v4680 = vadd.f32 0.0, %v4679
      %v4681 = vpop.f32.mrf.mxu0
      %v4682 = vadd.f32 0.0, %v4681
      %4683 = vmatmul.bf16.gmra.mxu0 %v4534
      %v4684 = vpop.f32.mrf.mxu0
      %v4685 = vadd.f32 0.0, %v4684
      %v4686 = vpop.f32.mrf.mxu0
      %v4687 = vadd.f32 0.0, %v4686
      %4688 = vdwg.mxu0
      %v4689 = vld [vmem:[#allocation4] sm:$0xff]
      %v4690 = vld [vmem:[#allocation4 + $0x8] sm:$0xff]
      %v4691 = vld [vmem:[#allocation4 + $0x10] sm:$0xff]
      %v4692 = vld [vmem:[#allocation4 + $0x18] sm:$0xff]
      %v4693 = vld [vmem:[#allocation4 + $0x20] sm:$0xff]
      %v4694 = vld [vmem:[#allocation4 + $0x28] sm:$0xff]
      %v4695 = vld [vmem:[#allocation4 + $0x30] sm:$0xff]
      %v4696 = vld [vmem:[#allocation4 + $0x38] sm:$0xff]
      %v4697 = vld [vmem:[#allocation4 + $0x40] sm:$0xff]
      %v4698 = vld [vmem:[#allocation4 + $0x48] sm:$0xff]
      %v4699 = vld [vmem:[#allocation4 + $0x50] sm:$0xff]
      %v4700 = vld [vmem:[#allocation4 + $0x58] sm:$0xff]
      %v4701 = vld [vmem:[#allocation4 + $0x60] sm:$0xff]
      %v4702 = vld [vmem:[#allocation4 + $0x68] sm:$0xff]
      %v4703 = vld [vmem:[#allocation4 + $0x70] sm:$0xff]
      %v4704 = vld [vmem:[#allocation4 + $0x78] sm:$0xff]
      %v4705 = vld [vmem:[#allocation4 + $0x80] sm:$0xff]
      %v4706 = vld [vmem:[#allocation4 + $0x88] sm:$0xff]
      %v4707 = vld [vmem:[#allocation4 + $0x90] sm:$0xff]
      %v4708 = vld [vmem:[#allocation4 + $0x98] sm:$0xff]
      %v4709 = vld [vmem:[#allocation4 + $0xa0] sm:$0xff]
      %v4710 = vld [vmem:[#allocation4 + $0xa8] sm:$0xff]
      %v4711 = vld [vmem:[#allocation4 + $0xb0] sm:$0xff]
      %v4712 = vld [vmem:[#allocation4 + $0xb8] sm:$0xff]
      %v4713 = vld [vmem:[#allocation4 + $0xc0] sm:$0xff]
      %v4714 = vld [vmem:[#allocation4 + $0xc8] sm:$0xff]
      %v4715 = vld [vmem:[#allocation4 + $0xd0] sm:$0xff]
      %v4716 = vld [vmem:[#allocation4 + $0xd8] sm:$0xff]
      %v4717 = vld [vmem:[#allocation4 + $0xe0] sm:$0xff]
      %v4718 = vld [vmem:[#allocation4 + $0xe8] sm:$0xff]
      %v4719 = vld [vmem:[#allocation4 + $0xf0] sm:$0xff]
      %v4720 = vld [vmem:[#allocation4 + $0xf8] sm:$0xff]
      %v4721 = vadd.f32 %v4689, %v4610
      %v4722 = vadd.f32 %v4690, %v4612
      %v4723 = vadd.f32 %v4691, %v4615
      %v4724 = vadd.f32 %v4692, %v4617
      %v4725 = vadd.f32 %v4693, %v4620
      %v4726 = vadd.f32 %v4694, %v4622
      %v4727 = vadd.f32 %v4695, %v4625
      %v4728 = vadd.f32 %v4696, %v4627
      %v4729 = vadd.f32 %v4697, %v4630
      %v4730 = vadd.f32 %v4698, %v4632
      %v4731 = vadd.f32 %v4699, %v4635
      %v4732 = vadd.f32 %v4700, %v4637
      %v4733 = vadd.f32 %v4701, %v4640
      %v4734 = vadd.f32 %v4702, %v4642
      %v4735 = vadd.f32 %v4703, %v4645
      %v4736 = vadd.f32 %v4704, %v4647
      %v4737 = vadd.f32 %v4705, %v4650
      %v4738 = vadd.f32 %v4706, %v4652
      %v4739 = vadd.f32 %v4707, %v4655
      %v4740 = vadd.f32 %v4708, %v4657
      %v4741 = vadd.f32 %v4709, %v4660
      %v4742 = vadd.f32 %v4710, %v4662
      %v4743 = vadd.f32 %v4711, %v4665
      %v4744 = vadd.f32 %v4712, %v4667
      %v4745 = vadd.f32 %v4713, %v4670
      %v4746 = vadd.f32 %v4714, %v4672
      %v4747 = vadd.f32 %v4715, %v4675
      %v4748 = vadd.f32 %v4716, %v4677
      %v4749 = vadd.f32 %v4717, %v4680
      %v4750 = vadd.f32 %v4718, %v4682
      %v4751 = vadd.f32 %v4719, %v4685
      %v4752 = vadd.f32 %v4720, %v4687
      %4753 = vst [vmem:[#allocation4] sm:$0xff] %v4721
      %4754 = vst [vmem:[#allocation4 + $0x8] sm:$0xff] %v4722
      %4755 = vst [vmem:[#allocation4 + $0x10] sm:$0xff] %v4723
      %4756 = vst [vmem:[#allocation4 + $0x18] sm:$0xff] %v4724
      %4757 = vst [vmem:[#allocation4 + $0x20] sm:$0xff] %v4725
      %4758 = vst [vmem:[#allocation4 + $0x28] sm:$0xff] %v4726
      %4759 = vst [vmem:[#allocation4 + $0x30] sm:$0xff] %v4727
      %4760 = vst [vmem:[#allocation4 + $0x38] sm:$0xff] %v4728
      %4761 = vst [vmem:[#allocation4 + $0x40] sm:$0xff] %v4729
      %4762 = vst [vmem:[#allocation4 + $0x48] sm:$0xff] %v4730
      %4763 = vst [vmem:[#allocation4 + $0x50] sm:$0xff] %v4731
      %4764 = vst [vmem:[#allocation4 + $0x58] sm:$0xff] %v4732
      %4765 = vst [vmem:[#allocation4 + $0x60] sm:$0xff] %v4733
      %4766 = vst [vmem:[#allocation4 + $0x68] sm:$0xff] %v4734
      %4767 = vst [vmem:[#allocation4 + $0x70] sm:$0xff] %v4735
      %4768 = vst [vmem:[#allocation4 + $0x78] sm:$0xff] %v4736
      %4769 = vst [vmem:[#allocation4 + $0x80] sm:$0xff] %v4737
      %4770 = vst [vmem:[#allocation4 + $0x88] sm:$0xff] %v4738
      %4771 = vst [vmem:[#allocation4 + $0x90] sm:$0xff] %v4739
      %4772 = vst [vmem:[#allocation4 + $0x98] sm:$0xff] %v4740
      %4773 = vst [vmem:[#allocation4 + $0xa0] sm:$0xff] %v4741
      %4774 = vst [vmem:[#allocation4 + $0xa8] sm:$0xff] %v4742
      %4775 = vst [vmem:[#allocation4 + $0xb0] sm:$0xff] %v4743
      %4776 = vst [vmem:[#allocation4 + $0xb8] sm:$0xff] %v4744
      %4777 = vst [vmem:[#allocation4 + $0xc0] sm:$0xff] %v4745
      %4778 = vst [vmem:[#allocation4 + $0xc8] sm:$0xff] %v4746
      %4779 = vst [vmem:[#allocation4 + $0xd0] sm:$0xff] %v4747
      %4780 = vst [vmem:[#allocation4 + $0xd8] sm:$0xff] %v4748
      %4781 = vst [vmem:[#allocation4 + $0xe0] sm:$0xff] %v4749
      %4782 = vst [vmem:[#allocation4 + $0xe8] sm:$0xff] %v4750
      %4783 = vst [vmem:[#allocation4 + $0xf0] sm:$0xff] %v4751
      %4784 = vst [vmem:[#allocation4 + $0xf8] sm:$0xff] %v4752
      %s4785 = scalar_lea.vmem [#allocation2], 48
      %v4786 = vld [vmem:[%s4785] sm:$0xff]
      %v4787 = vld [vmem:[%s4785 + $0x8] sm:$0xff]
      %v4788 = vld [vmem:[%s4785 + $0x18] sm:$0xff]
      %v4789 = vld [vmem:[%s4785 + $0x20] sm:$0xff]
      %v4790 = vld [vmem:[%s4785 + $0x30] sm:$0xff]
      %v4791 = vld [vmem:[%s4785 + $0x38] sm:$0xff]
      %v4792 = vld [vmem:[%s4785 + $0x48] sm:$0xff]
      %v4793 = vld [vmem:[%s4785 + $0x50] sm:$0xff]
      %v4794 = vld [vmem:[%s4785 + $0x60] sm:$0xff]
      %v4795 = vld [vmem:[%s4785 + $0x68] sm:$0xff]
      %v4796 = vld [vmem:[%s4785 + $0x78] sm:$0xff]
      %v4797 = vld [vmem:[%s4785 + $0x80] sm:$0xff]
      %v4798 = vld [vmem:[%s4785 + $0x90] sm:$0xff]
      %v4799 = vld [vmem:[%s4785 + $0x98] sm:$0xff]
      %v4800 = vld [vmem:[%s4785 + $0xa8] sm:$0xff]
      %v4801 = vld [vmem:[%s4785 + $0xb0] sm:$0xff]
      %v4802 = vld [vmem:[%s4785 + $0xc0] sm:$0xff]
      %v4803 = vld [vmem:[%s4785 + $0xc8] sm:$0xff]
      %v4804 = vld [vmem:[%s4785 + $0xd8] sm:$0xff]
      %v4805 = vld [vmem:[%s4785 + $0xe0] sm:$0xff]
      %v4806 = vld [vmem:[%s4785 + $0xf0] sm:$0xff]
      %v4807 = vld [vmem:[%s4785 + $0xf8] sm:$0xff]
      %v4808 = vld [vmem:[%s4785 + $0x108] sm:$0xff]
      %v4809 = vld [vmem:[%s4785 + $0x110] sm:$0xff]
      %v4810 = vld [vmem:[%s4785 + $0x120] sm:$0xff]
      %v4811 = vld [vmem:[%s4785 + $0x128] sm:$0xff]
      %v4812 = vld [vmem:[%s4785 + $0x138] sm:$0xff]
      %v4813 = vld [vmem:[%s4785 + $0x140] sm:$0xff]
      %v4814 = vld [vmem:[%s4785 + $0x150] sm:$0xff]
      %v4815 = vld [vmem:[%s4785 + $0x158] sm:$0xff]
      %v4816 = vld [vmem:[%s4785 + $0x168] sm:$0xff]
      %v4817 = vld [vmem:[%s4785 + $0x170] sm:$0xff]
      %v4818 = vpack.c.bf16 %v4787, %v4786
      %v4819 = vpack.c.bf16 %v4789, %v4788
      %v4820 = vpack.c.bf16 %v4791, %v4790
      %v4821 = vpack.c.bf16 %v4793, %v4792
      %v4822 = vpack.c.bf16 %v4795, %v4794
      %v4823 = vpack.c.bf16 %v4797, %v4796
      %v4824 = vpack.c.bf16 %v4799, %v4798
      %v4825 = vpack.c.bf16 %v4801, %v4800
      %v4826 = vpack.c.bf16 %v4803, %v4802
      %v4827 = vpack.c.bf16 %v4805, %v4804
      %v4828 = vpack.c.bf16 %v4807, %v4806
      %v4829 = vpack.c.bf16 %v4809, %v4808
      %v4830 = vpack.c.bf16 %v4811, %v4810
      %v4831 = vpack.c.bf16 %v4813, %v4812
      %v4832 = vpack.c.bf16 %v4815, %v4814
      %v4833 = vpack.c.bf16 %v4817, %v4816
      %s4834 = scalar_lea.vmem %s3, 384
      %v4835 = vld [vmem:[%s4834] sm:$0xf]
      %v4836 = vld [vmem:[%s4834 + $0x4] sm:$0xf]
      %v4837 = vld [vmem:[%s4834 + $0x8] sm:$0xf]
      %v4838 = vld [vmem:[%s4834 + $0xc] sm:$0xf]
      %v4839 = vld [vmem:[%s4834 + $0x10] sm:$0xf]
      %v4840 = vld [vmem:[%s4834 + $0x14] sm:$0xf]
      %v4841 = vld [vmem:[%s4834 + $0x18] sm:$0xf]
      %v4842 = vld [vmem:[%s4834 + $0x1c] sm:$0xf]
      %v4843 = vld [vmem:[%s4834 + $0x20] sm:$0xf]
      %v4844 = vld [vmem:[%s4834 + $0x24] sm:$0xf]
      %v4845 = vld [vmem:[%s4834 + $0x28] sm:$0xf]
      %v4846 = vld [vmem:[%s4834 + $0x2c] sm:$0xf]
      %v4847 = vld [vmem:[%s4834 + $0x30] sm:$0xf]
      %v4848 = vld [vmem:[%s4834 + $0x34] sm:$0xf]
      %v4849 = vld [vmem:[%s4834 + $0x38] sm:$0xf]
      %v4850 = vld [vmem:[%s4834 + $0x3c] sm:$0xf]
      %v4867 = vunpack.c.l.b16 %v4835
      %v4868 = vunpack.c.l.b16 %v4836
      %v4869 = vunpack.c.l.b16 %v4837
      %v4870 = vunpack.c.l.b16 %v4838
      %v4871 = vunpack.c.l.b16 %v4839
      %v4872 = vunpack.c.l.b16 %v4840
      %v4873 = vunpack.c.l.b16 %v4841
      %v4874 = vunpack.c.l.b16 %v4842
      %v4875 = vunpack.c.l.b16 %v4843
      %v4876 = vunpack.c.l.b16 %v4844
      %v4877 = vunpack.c.l.b16 %v4845
      %v4878 = vunpack.c.l.b16 %v4846
      %v4879 = vunpack.c.l.b16 %v4847
      %v4880 = vunpack.c.l.b16 %v4848
      %v4881 = vunpack.c.l.b16 %v4849
      %v4882 = vunpack.c.l.b16 %v4850
      %v4883 = vpack.c.b16 %v4868, %v4867
      %v4884 = vpack.c.b16 %v4870, %v4869
      %v4885 = vpack.c.b16 %v4872, %v4871
      %v4886 = vpack.c.b16 %v4874, %v4873
      %v4887 = vpack.c.b16 %v4876, %v4875
      %v4888 = vpack.c.b16 %v4878, %v4877
      %v4889 = vpack.c.b16 %v4880, %v4879
      %v4890 = vpack.c.b16 %v4882, %v4881
      %4899 = vmatpush.bf16.msra.mxu0 %v4890
      %4900 = vmatpush.bf16.msra.mxu0 %v4889
      %4901 = vmatpush.bf16.msra.mxu0 %v4888
      %4902 = vmatpush.bf16.msra.mxu0 %v4887
      %4903 = vmatpush.bf16.msra.mxu0 %v4886
      %4904 = vmatpush.bf16.msra.mxu0 %v4885
      %4905 = vmatpush.bf16.msra.mxu0 %v4884
      %4906 = vmatpush.bf16.msra.mxu0 %v4883
      %4907 = vmatmul.bf16.gmra.mxu0 %v4818
      %v4908 = vpop.f32.mrf.mxu0
      %v4909 = vadd.f32 0.0, %v4908
      %v4910 = vpop.f32.mrf.mxu0
      %v4911 = vadd.f32 0.0, %v4910
      %4912 = vmatmul.bf16.gmra.mxu0 %v4819
      %v4913 = vpop.f32.mrf.mxu0
      %v4914 = vadd.f32 0.0, %v4913
      %v4915 = vpop.f32.mrf.mxu0
      %v4916 = vadd.f32 0.0, %v4915
      %4917 = vmatmul.bf16.gmra.mxu0 %v4820
      %v4918 = vpop.f32.mrf.mxu0
      %v4919 = vadd.f32 0.0, %v4918
      %v4920 = vpop.f32.mrf.mxu0
      %v4921 = vadd.f32 0.0, %v4920
      %4922 = vmatmul.bf16.gmra.mxu0 %v4821
      %v4923 = vpop.f32.mrf.mxu0
      %v4924 = vadd.f32 0.0, %v4923
      %v4925 = vpop.f32.mrf.mxu0
      %v4926 = vadd.f32 0.0, %v4925
      %4927 = vmatmul.bf16.gmra.mxu0 %v4822
      %v4928 = vpop.f32.mrf.mxu0
      %v4929 = vadd.f32 0.0, %v4928
      %v4930 = vpop.f32.mrf.mxu0
      %v4931 = vadd.f32 0.0, %v4930
      %4932 = vmatmul.bf16.gmra.mxu0 %v4823
      %v4933 = vpop.f32.mrf.mxu0
      %v4934 = vadd.f32 0.0, %v4933
      %v4935 = vpop.f32.mrf.mxu0
      %v4936 = vadd.f32 0.0, %v4935
      %4937 = vmatmul.bf16.gmra.mxu0 %v4824
      %v4938 = vpop.f32.mrf.mxu0
      %v4939 = vadd.f32 0.0, %v4938
      %v4940 = vpop.f32.mrf.mxu0
      %v4941 = vadd.f32 0.0, %v4940
      %4942 = vmatmul.bf16.gmra.mxu0 %v4825
      %v4943 = vpop.f32.mrf.mxu0
      %v4944 = vadd.f32 0.0, %v4943
      %v4945 = vpop.f32.mrf.mxu0
      %v4946 = vadd.f32 0.0, %v4945
      %4947 = vmatmul.bf16.gmra.mxu0 %v4826
      %v4948 = vpop.f32.mrf.mxu0
      %v4949 = vadd.f32 0.0, %v4948
      %v4950 = vpop.f32.mrf.mxu0
      %v4951 = vadd.f32 0.0, %v4950
      %4952 = vmatmul.bf16.gmra.mxu0 %v4827
      %v4953 = vpop.f32.mrf.mxu0
      %v4954 = vadd.f32 0.0, %v4953
      %v4955 = vpop.f32.mrf.mxu0
      %v4956 = vadd.f32 0.0, %v4955
      %4957 = vmatmul.bf16.gmra.mxu0 %v4828
      %v4958 = vpop.f32.mrf.mxu0
      %v4959 = vadd.f32 0.0, %v4958
      %v4960 = vpop.f32.mrf.mxu0
      %v4961 = vadd.f32 0.0, %v4960
      %4962 = vmatmul.bf16.gmra.mxu0 %v4829
      %v4963 = vpop.f32.mrf.mxu0
      %v4964 = vadd.f32 0.0, %v4963
      %v4965 = vpop.f32.mrf.mxu0
      %v4966 = vadd.f32 0.0, %v4965
      %4967 = vmatmul.bf16.gmra.mxu0 %v4830
      %v4968 = vpop.f32.mrf.mxu0
      %v4969 = vadd.f32 0.0, %v4968
      %v4970 = vpop.f32.mrf.mxu0
      %v4971 = vadd.f32 0.0, %v4970
      %4972 = vmatmul.bf16.gmra.mxu0 %v4831
      %v4973 = vpop.f32.mrf.mxu0
      %v4974 = vadd.f32 0.0, %v4973
      %v4975 = vpop.f32.mrf.mxu0
      %v4976 = vadd.f32 0.0, %v4975
      %4977 = vmatmul.bf16.gmra.mxu0 %v4832
      %v4978 = vpop.f32.mrf.mxu0
      %v4979 = vadd.f32 0.0, %v4978
      %v4980 = vpop.f32.mrf.mxu0
      %v4981 = vadd.f32 0.0, %v4980
      %4982 = vmatmul.bf16.gmra.mxu0 %v4833
      %v4983 = vpop.f32.mrf.mxu0
      %v4984 = vadd.f32 0.0, %v4983
      %v4985 = vpop.f32.mrf.mxu0
      %v4986 = vadd.f32 0.0, %v4985
      %4987 = vdwg.mxu0
      %v4988 = vld [vmem:[#allocation4] sm:$0xff]
      %v4989 = vld [vmem:[#allocation4 + $0x8] sm:$0xff]
      %v4990 = vld [vmem:[#allocation4 + $0x10] sm:$0xff]
      %v4991 = vld [vmem:[#allocation4 + $0x18] sm:$0xff]
      %v4992 = vld [vmem:[#allocation4 + $0x20] sm:$0xff]
      %v4993 = vld [vmem:[#allocation4 + $0x28] sm:$0xff]
      %v4994 = vld [vmem:[#allocation4 + $0x30] sm:$0xff]
      %v4995 = vld [vmem:[#allocation4 + $0x38] sm:$0xff]
      %v4996 = vld [vmem:[#allocation4 + $0x40] sm:$0xff]
      %v4997 = vld [vmem:[#allocation4 + $0x48] sm:$0xff]
      %v4998 = vld [vmem:[#allocation4 + $0x50] sm:$0xff]
      %v4999 = vld [vmem:[#allocation4 + $0x58] sm:$0xff]
      %v5000 = vld [vmem:[#allocation4 + $0x60] sm:$0xff]
      %v5001 = vld [vmem:[#allocation4 + $0x68] sm:$0xff]
      %v5002 = vld [vmem:[#allocation4 + $0x70] sm:$0xff]
      %v5003 = vld [vmem:[#allocation4 + $0x78] sm:$0xff]
      %v5004 = vld [vmem:[#allocation4 + $0x80] sm:$0xff]
      %v5005 = vld [vmem:[#allocation4 + $0x88] sm:$0xff]
      %v5006 = vld [vmem:[#allocation4 + $0x90] sm:$0xff]
      %v5007 = vld [vmem:[#allocation4 + $0x98] sm:$0xff]
      %v5008 = vld [vmem:[#allocation4 + $0xa0] sm:$0xff]
      %v5009 = vld [vmem:[#allocation4 + $0xa8] sm:$0xff]
      %v5010 = vld [vmem:[#allocation4 + $0xb0] sm:$0xff]
      %v5011 = vld [vmem:[#allocation4 + $0xb8] sm:$0xff]
      %v5012 = vld [vmem:[#allocation4 + $0xc0] sm:$0xff]
      %v5013 = vld [vmem:[#allocation4 + $0xc8] sm:$0xff]
      %v5014 = vld [vmem:[#allocation4 + $0xd0] sm:$0xff]
      %v5015 = vld [vmem:[#allocation4 + $0xd8] sm:$0xff]
      %v5016 = vld [vmem:[#allocation4 + $0xe0] sm:$0xff]
      %v5017 = vld [vmem:[#allocation4 + $0xe8] sm:$0xff]
      %v5018 = vld [vmem:[#allocation4 + $0xf0] sm:$0xff]
      %v5019 = vld [vmem:[#allocation4 + $0xf8] sm:$0xff]
      %v5020 = vadd.f32 %v4988, %v4909
      %v5021 = vadd.f32 %v4989, %v4911
      %v5022 = vadd.f32 %v4990, %v4914
      %v5023 = vadd.f32 %v4991, %v4916
      %v5024 = vadd.f32 %v4992, %v4919
      %v5025 = vadd.f32 %v4993, %v4921
      %v5026 = vadd.f32 %v4994, %v4924
      %v5027 = vadd.f32 %v4995, %v4926
      %v5028 = vadd.f32 %v4996, %v4929
      %v5029 = vadd.f32 %v4997, %v4931
      %v5030 = vadd.f32 %v4998, %v4934
      %v5031 = vadd.f32 %v4999, %v4936
      %v5032 = vadd.f32 %v5000, %v4939
      %v5033 = vadd.f32 %v5001, %v4941
      %v5034 = vadd.f32 %v5002, %v4944
      %v5035 = vadd.f32 %v5003, %v4946
      %v5036 = vadd.f32 %v5004, %v4949
      %v5037 = vadd.f32 %v5005, %v4951
      %v5038 = vadd.f32 %v5006, %v4954
      %v5039 = vadd.f32 %v5007, %v4956
      %v5040 = vadd.f32 %v5008, %v4959
      %v5041 = vadd.f32 %v5009, %v4961
      %v5042 = vadd.f32 %v5010, %v4964
      %v5043 = vadd.f32 %v5011, %v4966
      %v5044 = vadd.f32 %v5012, %v4969
      %v5045 = vadd.f32 %v5013, %v4971
      %v5046 = vadd.f32 %v5014, %v4974
      %v5047 = vadd.f32 %v5015, %v4976
      %v5048 = vadd.f32 %v5016, %v4979
      %v5049 = vadd.f32 %v5017, %v4981
      %v5050 = vadd.f32 %v5018, %v4984
      %v5051 = vadd.f32 %v5019, %v4986
      %5052 = vst [vmem:[#allocation4] sm:$0xff] %v5020
      %5053 = vst [vmem:[#allocation4 + $0x8] sm:$0xff] %v5021
      %5054 = vst [vmem:[#allocation4 + $0x10] sm:$0xff] %v5022
      %5055 = vst [vmem:[#allocation4 + $0x18] sm:$0xff] %v5023
      %5056 = vst [vmem:[#allocation4 + $0x20] sm:$0xff] %v5024
      %5057 = vst [vmem:[#allocation4 + $0x28] sm:$0xff] %v5025
      %5058 = vst [vmem:[#allocation4 + $0x30] sm:$0xff] %v5026
      %5059 = vst [vmem:[#allocation4 + $0x38] sm:$0xff] %v5027
      %5060 = vst [vmem:[#allocation4 + $0x40] sm:$0xff] %v5028
      %5061 = vst [vmem:[#allocation4 + $0x48] sm:$0xff] %v5029
      %5062 = vst [vmem:[#allocation4 + $0x50] sm:$0xff] %v5030
      %5063 = vst [vmem:[#allocation4 + $0x58] sm:$0xff] %v5031
      %5064 = vst [vmem:[#allocation4 + $0x60] sm:$0xff] %v5032
      %5065 = vst [vmem:[#allocation4 + $0x68] sm:$0xff] %v5033
      %5066 = vst [vmem:[#allocation4 + $0x70] sm:$0xff] %v5034
      %5067 = vst [vmem:[#allocation4 + $0x78] sm:$0xff] %v5035
      %5068 = vst [vmem:[#allocation4 + $0x80] sm:$0xff] %v5036
      %5069 = vst [vmem:[#allocation4 + $0x88] sm:$0xff] %v5037
      %5070 = vst [vmem:[#allocation4 + $0x90] sm:$0xff] %v5038
      %5071 = vst [vmem:[#allocation4 + $0x98] sm:$0xff] %v5039
      %5072 = vst [vmem:[#allocation4 + $0xa0] sm:$0xff] %v5040
      %5073 = vst [vmem:[#allocation4 + $0xa8] sm:$0xff] %v5041
      %5074 = vst [vmem:[#allocation4 + $0xb0] sm:$0xff] %v5042
      %5075 = vst [vmem:[#allocation4 + $0xb8] sm:$0xff] %v5043
      %5076 = vst [vmem:[#allocation4 + $0xc0] sm:$0xff] %v5044
      %5077 = vst [vmem:[#allocation4 + $0xc8] sm:$0xff] %v5045
      %5078 = vst [vmem:[#allocation4 + $0xd0] sm:$0xff] %v5046
      %5079 = vst [vmem:[#allocation4 + $0xd8] sm:$0xff] %v5047
      %5080 = vst [vmem:[#allocation4 + $0xe0] sm:$0xff] %v5048
      %5081 = vst [vmem:[#allocation4 + $0xe8] sm:$0xff] %v5049
      %5082 = vst [vmem:[#allocation4 + $0xf0] sm:$0xff] %v5050
      %5083 = vst [vmem:[#allocation4 + $0xf8] sm:$0xff] %v5051
      %v5084 = vld [vmem:[%s4785 + $0x1] sm:$0xff]
      %v5085 = vld [vmem:[%s4785 + $0x9] sm:$0xff]
      %v5086 = vld [vmem:[%s4785 + $0x19] sm:$0xff]
      %v5087 = vld [vmem:[%s4785 + $0x21] sm:$0xff]
      %v5088 = vld [vmem:[%s4785 + $0x31] sm:$0xff]
      %v5089 = vld [vmem:[%s4785 + $0x39] sm:$0xff]
      %v5090 = vld [vmem:[%s4785 + $0x49] sm:$0xff]
      %v5091 = vld [vmem:[%s4785 + $0x51] sm:$0xff]
      %v5092 = vld [vmem:[%s4785 + $0x61] sm:$0xff]
      %v5093 = vld [vmem:[%s4785 + $0x69] sm:$0xff]
      %v5094 = vld [vmem:[%s4785 + $0x79] sm:$0xff]
      %v5095 = vld [vmem:[%s4785 + $0x81] sm:$0xff]
      %v5096 = vld [vmem:[%s4785 + $0x91] sm:$0xff]
      %v5097 = vld [vmem:[%s4785 + $0x99] sm:$0xff]
      %v5098 = vld [vmem:[%s4785 + $0xa9] sm:$0xff]
      %v5099 = vld [vmem:[%s4785 + $0xb1] sm:$0xff]
      %v5100 = vld [vmem:[%s4785 + $0xc1] sm:$0xff]
      %v5101 = vld [vmem:[%s4785 + $0xc9] sm:$0xff]
      %v5102 = vld [vmem:[%s4785 + $0xd9] sm:$0xff]
      %v5103 = vld [vmem:[%s4785 + $0xe1] sm:$0xff]
      %v5104 = vld [vmem:[%s4785 + $0xf1] sm:$0xff]
      %v5105 = vld [vmem:[%s4785 + $0xf9] sm:$0xff]
      %v5106 = vld [vmem:[%s4785 + $0x109] sm:$0xff]
      %v5107 = vld [vmem:[%s4785 + $0x111] sm:$0xff]
      %v5108 = vld [vmem:[%s4785 + $0x121] sm:$0xff]
      %v5109 = vld [vmem:[%s4785 + $0x129] sm:$0xff]
      %v5110 = vld [vmem:[%s4785 + $0x139] sm:$0xff]
      %v5111 = vld [vmem:[%s4785 + $0x141] sm:$0xff]
      %v5112 = vld [vmem:[%s4785 + $0x151] sm:$0xff]
      %v5113 = vld [vmem:[%s4785 + $0x159] sm:$0xff]
      %v5114 = vld [vmem:[%s4785 + $0x169] sm:$0xff]
      %v5115 = vld [vmem:[%s4785 + $0x171] sm:$0xff]
      %v5116 = vpack.c.bf16 %v5085, %v5084
      %v5117 = vpack.c.bf16 %v5087, %v5086
      %v5118 = vpack.c.bf16 %v5089, %v5088
      %v5119 = vpack.c.bf16 %v5091, %v5090
      %v5120 = vpack.c.bf16 %v5093, %v5092
      %v5121 = vpack.c.bf16 %v5095, %v5094
      %v5122 = vpack.c.bf16 %v5097, %v5096
      %v5123 = vpack.c.bf16 %v5099, %v5098
      %v5124 = vpack.c.bf16 %v5101, %v5100
      %v5125 = vpack.c.bf16 %v5103, %v5102
      %v5126 = vpack.c.bf16 %v5105, %v5104
      %v5127 = vpack.c.bf16 %v5107, %v5106
      %v5128 = vpack.c.bf16 %v5109, %v5108
      %v5129 = vpack.c.bf16 %v5111, %v5110
      %v5130 = vpack.c.bf16 %v5113, %v5112
      %v5131 = vpack.c.bf16 %v5115, %v5114
      %s5132 = scalar_lea.vmem %s3, 448
      %v5133 = vld [vmem:[%s5132] sm:$0xf]
      %v5134 = vld [vmem:[%s5132 + $0x4] sm:$0xf]
      %v5135 = vld [vmem:[%s5132 + $0x8] sm:$0xf]
      %v5136 = vld [vmem:[%s5132 + $0xc] sm:$0xf]
      %v5137 = vld [vmem:[%s5132 + $0x10] sm:$0xf]
      %v5138 = vld [vmem:[%s5132 + $0x14] sm:$0xf]
      %v5139 = vld [vmem:[%s5132 + $0x18] sm:$0xf]
      %v5140 = vld [vmem:[%s5132 + $0x1c] sm:$0xf]
      %v5141 = vld [vmem:[%s5132 + $0x20] sm:$0xf]
      %v5142 = vld [vmem:[%s5132 + $0x24] sm:$0xf]
      %v5143 = vld [vmem:[%s5132 + $0x28] sm:$0xf]
      %v5144 = vld [vmem:[%s5132 + $0x2c] sm:$0xf]
      %v5145 = vld [vmem:[%s5132 + $0x30] sm:$0xf]
      %v5146 = vld [vmem:[%s5132 + $0x34] sm:$0xf]
      %v5147 = vld [vmem:[%s5132 + $0x38] sm:$0xf]
      %v5148 = vld [vmem:[%s5132 + $0x3c] sm:$0xf]
      %v5165 = vunpack.c.l.b16 %v5133
      %v5166 = vunpack.c.l.b16 %v5134
      %v5167 = vunpack.c.l.b16 %v5135
      %v5168 = vunpack.c.l.b16 %v5136
      %v5169 = vunpack.c.l.b16 %v5137
      %v5170 = vunpack.c.l.b16 %v5138
      %v5171 = vunpack.c.l.b16 %v5139
      %v5172 = vunpack.c.l.b16 %v5140
      %v5173 = vunpack.c.l.b16 %v5141
      %v5174 = vunpack.c.l.b16 %v5142
      %v5175 = vunpack.c.l.b16 %v5143
      %v5176 = vunpack.c.l.b16 %v5144
      %v5177 = vunpack.c.l.b16 %v5145
      %v5178 = vunpack.c.l.b16 %v5146
      %v5179 = vunpack.c.l.b16 %v5147
      %v5180 = vunpack.c.l.b16 %v5148
      %v5181 = vpack.c.b16 %v5166, %v5165
      %v5182 = vpack.c.b16 %v5168, %v5167
      %v5183 = vpack.c.b16 %v5170, %v5169
      %v5184 = vpack.c.b16 %v5172, %v5171
      %v5185 = vpack.c.b16 %v5174, %v5173
      %v5186 = vpack.c.b16 %v5176, %v5175
      %v5187 = vpack.c.b16 %v5178, %v5177
      %v5188 = vpack.c.b16 %v5180, %v5179
      %5197 = vmatpush.bf16.msra.mxu0 %v5188
      %5198 = vmatpush.bf16.msra.mxu0 %v5187
      %5199 = vmatpush.bf16.msra.mxu0 %v5186
      %5200 = vmatpush.bf16.msra.mxu0 %v5185
      %5201 = vmatpush.bf16.msra.mxu0 %v5184
      %5202 = vmatpush.bf16.msra.mxu0 %v5183
      %5203 = vmatpush.bf16.msra.mxu0 %v5182
      %5204 = vmatpush.bf16.msra.mxu0 %v5181
      %5205 = vmatmul.bf16.gmra.mxu0 %v5116
      %v5206 = vpop.f32.mrf.mxu0
      %v5207 = vadd.f32 0.0, %v5206
      %v5208 = vpop.f32.mrf.mxu0
      %v5209 = vadd.f32 0.0, %v5208
      %5210 = vmatmul.bf16.gmra.mxu0 %v5117
      %v5211 = vpop.f32.mrf.mxu0
      %v5212 = vadd.f32 0.0, %v5211
      %v5213 = vpop.f32.mrf.mxu0
      %v5214 = vadd.f32 0.0, %v5213
      %5215 = vmatmul.bf16.gmra.mxu0 %v5118
      %v5216 = vpop.f32.mrf.mxu0
      %v5217 = vadd.f32 0.0, %v5216
      %v5218 = vpop.f32.mrf.mxu0
      %v5219 = vadd.f32 0.0, %v5218
      %5220 = vmatmul.bf16.gmra.mxu0 %v5119
      %v5221 = vpop.f32.mrf.mxu0
      %v5222 = vadd.f32 0.0, %v5221
      %v5223 = vpop.f32.mrf.mxu0
      %v5224 = vadd.f32 0.0, %v5223
      %5225 = vmatmul.bf16.gmra.mxu0 %v5120
      %v5226 = vpop.f32.mrf.mxu0
      %v5227 = vadd.f32 0.0, %v5226
      %v5228 = vpop.f32.mrf.mxu0
      %v5229 = vadd.f32 0.0, %v5228
      %5230 = vmatmul.bf16.gmra.mxu0 %v5121
      %v5231 = vpop.f32.mrf.mxu0
      %v5232 = vadd.f32 0.0, %v5231
      %v5233 = vpop.f32.mrf.mxu0
      %v5234 = vadd.f32 0.0, %v5233
      %5235 = vmatmul.bf16.gmra.mxu0 %v5122
      %v5236 = vpop.f32.mrf.mxu0
      %v5237 = vadd.f32 0.0, %v5236
      %v5238 = vpop.f32.mrf.mxu0
      %v5239 = vadd.f32 0.0, %v5238
      %5240 = vmatmul.bf16.gmra.mxu0 %v5123
      %v5241 = vpop.f32.mrf.mxu0
      %v5242 = vadd.f32 0.0, %v5241
      %v5243 = vpop.f32.mrf.mxu0
      %v5244 = vadd.f32 0.0, %v5243
      %5245 = vmatmul.bf16.gmra.mxu0 %v5124
      %v5246 = vpop.f32.mrf.mxu0
      %v5247 = vadd.f32 0.0, %v5246
      %v5248 = vpop.f32.mrf.mxu0
      %v5249 = vadd.f32 0.0, %v5248
      %5250 = vmatmul.bf16.gmra.mxu0 %v5125
      %v5251 = vpop.f32.mrf.mxu0
      %v5252 = vadd.f32 0.0, %v5251
      %v5253 = vpop.f32.mrf.mxu0
      %v5254 = vadd.f32 0.0, %v5253
      %5255 = vmatmul.bf16.gmra.mxu0 %v5126
      %v5256 = vpop.f32.mrf.mxu0
      %v5257 = vadd.f32 0.0, %v5256
      %v5258 = vpop.f32.mrf.mxu0
      %v5259 = vadd.f32 0.0, %v5258
      %5260 = vmatmul.bf16.gmra.mxu0 %v5127
      %v5261 = vpop.f32.mrf.mxu0
      %v5262 = vadd.f32 0.0, %v5261
      %v5263 = vpop.f32.mrf.mxu0
      %v5264 = vadd.f32 0.0, %v5263
      %5265 = vmatmul.bf16.gmra.mxu0 %v5128
      %v5266 = vpop.f32.mrf.mxu0
      %v5267 = vadd.f32 0.0, %v5266
      %v5268 = vpop.f32.mrf.mxu0
      %v5269 = vadd.f32 0.0, %v5268
      %5270 = vmatmul.bf16.gmra.mxu0 %v5129
      %v5271 = vpop.f32.mrf.mxu0
      %v5272 = vadd.f32 0.0, %v5271
      %v5273 = vpop.f32.mrf.mxu0
      %v5274 = vadd.f32 0.0, %v5273
      %5275 = vmatmul.bf16.gmra.mxu0 %v5130
      %v5276 = vpop.f32.mrf.mxu0
      %v5277 = vadd.f32 0.0, %v5276
      %v5278 = vpop.f32.mrf.mxu0
      %v5279 = vadd.f32 0.0, %v5278
      %5280 = vmatmul.bf16.gmra.mxu0 %v5131
      %v5281 = vpop.f32.mrf.mxu0
      %v5282 = vadd.f32 0.0, %v5281
      %v5283 = vpop.f32.mrf.mxu0
      %v5284 = vadd.f32 0.0, %v5283
      %5285 = vdwg.mxu0
      %v5286 = vld [vmem:[#allocation4] sm:$0xff]
      %v5287 = vld [vmem:[#allocation4 + $0x8] sm:$0xff]
      %v5288 = vld [vmem:[#allocation4 + $0x10] sm:$0xff]
      %v5289 = vld [vmem:[#allocation4 + $0x18] sm:$0xff]
      %v5290 = vld [vmem:[#allocation4 + $0x20] sm:$0xff]
      %v5291 = vld [vmem:[#allocation4 + $0x28] sm:$0xff]
      %v5292 = vld [vmem:[#allocation4 + $0x30] sm:$0xff]
      %v5293 = vld [vmem:[#allocation4 + $0x38] sm:$0xff]
      %v5294 = vld [vmem:[#allocation4 + $0x40] sm:$0xff]
      %v5295 = vld [vmem:[#allocation4 + $0x48] sm:$0xff]
      %v5296 = vld [vmem:[#allocation4 + $0x50] sm:$0xff]
      %v5297 = vld [vmem:[#allocation4 + $0x58] sm:$0xff]
      %v5298 = vld [vmem:[#allocation4 + $0x60] sm:$0xff]
      %v5299 = vld [vmem:[#allocation4 + $0x68] sm:$0xff]
      %v5300 = vld [vmem:[#allocation4 + $0x70] sm:$0xff]
      %v5301 = vld [vmem:[#allocation4 + $0x78] sm:$0xff]
      %v5302 = vld [vmem:[#allocation4 + $0x80] sm:$0xff]
      %v5303 = vld [vmem:[#allocation4 + $0x88] sm:$0xff]
      %v5304 = vld [vmem:[#allocation4 + $0x90] sm:$0xff]
      %v5305 = vld [vmem:[#allocation4 + $0x98] sm:$0xff]
      %v5306 = vld [vmem:[#allocation4 + $0xa0] sm:$0xff]
      %v5307 = vld [vmem:[#allocation4 + $0xa8] sm:$0xff]
      %v5308 = vld [vmem:[#allocation4 + $0xb0] sm:$0xff]
      %v5309 = vld [vmem:[#allocation4 + $0xb8] sm:$0xff]
      %v5310 = vld [vmem:[#allocation4 + $0xc0] sm:$0xff]
      %v5311 = vld [vmem:[#allocation4 + $0xc8] sm:$0xff]
      %v5312 = vld [vmem:[#allocation4 + $0xd0] sm:$0xff]
      %v5313 = vld [vmem:[#allocation4 + $0xd8] sm:$0xff]
      %v5314 = vld [vmem:[#allocation4 + $0xe0] sm:$0xff]
      %v5315 = vld [vmem:[#allocation4 + $0xe8] sm:$0xff]
      %v5316 = vld [vmem:[#allocation4 + $0xf0] sm:$0xff]
      %v5317 = vld [vmem:[#allocation4 + $0xf8] sm:$0xff]
      %v5318 = vadd.f32 %v5286, %v5207
      %v5319 = vadd.f32 %v5287, %v5209
      %v5320 = vadd.f32 %v5288, %v5212
      %v5321 = vadd.f32 %v5289, %v5214
      %v5322 = vadd.f32 %v5290, %v5217
      %v5323 = vadd.f32 %v5291, %v5219
      %v5324 = vadd.f32 %v5292, %v5222
      %v5325 = vadd.f32 %v5293, %v5224
      %v5326 = vadd.f32 %v5294, %v5227
      %v5327 = vadd.f32 %v5295, %v5229
      %v5328 = vadd.f32 %v5296, %v5232
      %v5329 = vadd.f32 %v5297, %v5234
      %v5330 = vadd.f32 %v5298, %v5237
      %v5331 = vadd.f32 %v5299, %v5239
      %v5332 = vadd.f32 %v5300, %v5242
      %v5333 = vadd.f32 %v5301, %v5244
      %v5334 = vadd.f32 %v5302, %v5247
      %v5335 = vadd.f32 %v5303, %v5249
      %v5336 = vadd.f32 %v5304, %v5252
      %v5337 = vadd.f32 %v5305, %v5254
      %v5338 = vadd.f32 %v5306, %v5257
      %v5339 = vadd.f32 %v5307, %v5259
      %v5340 = vadd.f32 %v5308, %v5262
      %v5341 = vadd.f32 %v5309, %v5264
      %v5342 = vadd.f32 %v5310, %v5267
      %v5343 = vadd.f32 %v5311, %v5269
      %v5344 = vadd.f32 %v5312, %v5272
      %v5345 = vadd.f32 %v5313, %v5274
      %v5346 = vadd.f32 %v5314, %v5277
      %v5347 = vadd.f32 %v5315, %v5279
      %v5348 = vadd.f32 %v5316, %v5282
      %v5349 = vadd.f32 %v5317, %v5284
      %5350 = vst [vmem:[#allocation4] sm:$0xff] %v5318
      %5351 = vst [vmem:[#allocation4 + $0x8] sm:$0xff] %v5319
      %5352 = vst [vmem:[#allocation4 + $0x10] sm:$0xff] %v5320
      %5353 = vst [vmem:[#allocation4 + $0x18] sm:$0xff] %v5321
      %5354 = vst [vmem:[#allocation4 + $0x20] sm:$0xff] %v5322
      %5355 = vst [vmem:[#allocation4 + $0x28] sm:$0xff] %v5323
      %5356 = vst [vmem:[#allocation4 + $0x30] sm:$0xff] %v5324
      %5357 = vst [vmem:[#allocation4 + $0x38] sm:$0xff] %v5325
      %5358 = vst [vmem:[#allocation4 + $0x40] sm:$0xff] %v5326
      %5359 = vst [vmem:[#allocation4 + $0x48] sm:$0xff] %v5327
      %5360 = vst [vmem:[#allocation4 + $0x50] sm:$0xff] %v5328
      %5361 = vst [vmem:[#allocation4 + $0x58] sm:$0xff] %v5329
      %5362 = vst [vmem:[#allocation4 + $0x60] sm:$0xff] %v5330
      %5363 = vst [vmem:[#allocation4 + $0x68] sm:$0xff] %v5331
      %5364 = vst [vmem:[#allocation4 + $0x70] sm:$0xff] %v5332
      %5365 = vst [vmem:[#allocation4 + $0x78] sm:$0xff] %v5333
      %5366 = vst [vmem:[#allocation4 + $0x80] sm:$0xff] %v5334
      %5367 = vst [vmem:[#allocation4 + $0x88] sm:$0xff] %v5335
      %5368 = vst [vmem:[#allocation4 + $0x90] sm:$0xff] %v5336
      %5369 = vst [vmem:[#allocation4 + $0x98] sm:$0xff] %v5337
      %5370 = vst [vmem:[#allocation4 + $0xa0] sm:$0xff] %v5338
      %5371 = vst [vmem:[#allocation4 + $0xa8] sm:$0xff] %v5339
      %5372 = vst [vmem:[#allocation4 + $0xb0] sm:$0xff] %v5340
      %5373 = vst [vmem:[#allocation4 + $0xb8] sm:$0xff] %v5341
      %5374 = vst [vmem:[#allocation4 + $0xc0] sm:$0xff] %v5342
      %5375 = vst [vmem:[#allocation4 + $0xc8] sm:$0xff] %v5343
      %5376 = vst [vmem:[#allocation4 + $0xd0] sm:$0xff] %v5344
      %5377 = vst [vmem:[#allocation4 + $0xd8] sm:$0xff] %v5345
      %5378 = vst [vmem:[#allocation4 + $0xe0] sm:$0xff] %v5346
      %5379 = vst [vmem:[#allocation4 + $0xe8] sm:$0xff] %v5347
      %5380 = vst [vmem:[#allocation4 + $0xf0] sm:$0xff] %v5348
      %5381 = vst [vmem:[#allocation4 + $0xf8] sm:$0xff] %v5349
      %v5382 = vld [vmem:[%s4785 + $0x2] sm:$0xff]
      %v5383 = vld [vmem:[%s4785 + $0xa] sm:$0xff]
      %v5384 = vld [vmem:[%s4785 + $0x1a] sm:$0xff]
      %v5385 = vld [vmem:[%s4785 + $0x22] sm:$0xff]
      %v5386 = vld [vmem:[%s4785 + $0x32] sm:$0xff]
      %v5387 = vld [vmem:[%s4785 + $0x3a] sm:$0xff]
      %v5388 = vld [vmem:[%s4785 + $0x4a] sm:$0xff]
      %v5389 = vld [vmem:[%s4785 + $0x52] sm:$0xff]
      %v5390 = vld [vmem:[%s4785 + $0x62] sm:$0xff]
      %v5391 = vld [vmem:[%s4785 + $0x6a] sm:$0xff]
      %v5392 = vld [vmem:[%s4785 + $0x7a] sm:$0xff]
      %v5393 = vld [vmem:[%s4785 + $0x82] sm:$0xff]
      %v5394 = vld [vmem:[%s4785 + $0x92] sm:$0xff]
      %v5395 = vld [vmem:[%s4785 + $0x9a] sm:$0xff]
      %v5396 = vld [vmem:[%s4785 + $0xaa] sm:$0xff]
      %v5397 = vld [vmem:[%s4785 + $0xb2] sm:$0xff]
      %v5398 = vld [vmem:[%s4785 + $0xc2] sm:$0xff]
      %v5399 = vld [vmem:[%s4785 + $0xca] sm:$0xff]
      %v5400 = vld [vmem:[%s4785 + $0xda] sm:$0xff]
      %v5401 = vld [vmem:[%s4785 + $0xe2] sm:$0xff]
      %v5402 = vld [vmem:[%s4785 + $0xf2] sm:$0xff]
      %v5403 = vld [vmem:[%s4785 + $0xfa] sm:$0xff]
      %v5404 = vld [vmem:[%s4785 + $0x10a] sm:$0xff]
      %v5405 = vld [vmem:[%s4785 + $0x112] sm:$0xff]
      %v5406 = vld [vmem:[%s4785 + $0x122] sm:$0xff]
      %v5407 = vld [vmem:[%s4785 + $0x12a] sm:$0xff]
      %v5408 = vld [vmem:[%s4785 + $0x13a] sm:$0xff]
      %v5409 = vld [vmem:[%s4785 + $0x142] sm:$0xff]
      %v5410 = vld [vmem:[%s4785 + $0x152] sm:$0xff]
      %v5411 = vld [vmem:[%s4785 + $0x15a] sm:$0xff]
      %v5412 = vld [vmem:[%s4785 + $0x16a] sm:$0xff]
      %v5413 = vld [vmem:[%s4785 + $0x172] sm:$0xff]
      %v5414 = vpack.c.bf16 %v5383, %v5382
      %v5415 = vpack.c.bf16 %v5385, %v5384
      %v5416 = vpack.c.bf16 %v5387, %v5386
      %v5417 = vpack.c.bf16 %v5389, %v5388
      %v5418 = vpack.c.bf16 %v5391, %v5390
      %v5419 = vpack.c.bf16 %v5393, %v5392
      %v5420 = vpack.c.bf16 %v5395, %v5394
      %v5421 = vpack.c.bf16 %v5397, %v5396
      %v5422 = vpack.c.bf16 %v5399, %v5398
      %v5423 = vpack.c.bf16 %v5401, %v5400
      %v5424 = vpack.c.bf16 %v5403, %v5402
      %v5425 = vpack.c.bf16 %v5405, %v5404
      %v5426 = vpack.c.bf16 %v5407, %v5406
      %v5427 = vpack.c.bf16 %v5409, %v5408
      %v5428 = vpack.c.bf16 %v5411, %v5410
      %v5429 = vpack.c.bf16 %v5413, %v5412
      %s5430 = scalar_lea.vmem %s3, 512
      %v5431 = vld [vmem:[%s5430] sm:$0xf]
      %v5432 = vld [vmem:[%s5430 + $0x4] sm:$0xf]
      %v5433 = vld [vmem:[%s5430 + $0x8] sm:$0xf]
      %v5434 = vld [vmem:[%s5430 + $0xc] sm:$0xf]
      %v5435 = vld [vmem:[%s5430 + $0x10] sm:$0xf]
      %v5436 = vld [vmem:[%s5430 + $0x14] sm:$0xf]
      %v5437 = vld [vmem:[%s5430 + $0x18] sm:$0xf]
      %v5438 = vld [vmem:[%s5430 + $0x1c] sm:$0xf]
      %v5439 = vld [vmem:[%s5430 + $0x20] sm:$0xf]
      %v5440 = vld [vmem:[%s5430 + $0x24] sm:$0xf]
      %v5441 = vld [vmem:[%s5430 + $0x28] sm:$0xf]
      %v5442 = vld [vmem:[%s5430 + $0x2c] sm:$0xf]
      %v5443 = vld [vmem:[%s5430 + $0x30] sm:$0xf]
      %v5444 = vld [vmem:[%s5430 + $0x34] sm:$0xf]
      %v5445 = vld [vmem:[%s5430 + $0x38] sm:$0xf]
      %v5446 = vld [vmem:[%s5430 + $0x3c] sm:$0xf]
      %v5463 = vunpack.c.l.b16 %v5431
      %v5464 = vunpack.c.l.b16 %v5432
      %v5465 = vunpack.c.l.b16 %v5433
      %v5466 = vunpack.c.l.b16 %v5434
      %v5467 = vunpack.c.l.b16 %v5435
      %v5468 = vunpack.c.l.b16 %v5436
      %v5469 = vunpack.c.l.b16 %v5437
      %v5470 = vunpack.c.l.b16 %v5438
      %v5471 = vunpack.c.l.b16 %v5439
      %v5472 = vunpack.c.l.b16 %v5440
      %v5473 = vunpack.c.l.b16 %v5441
      %v5474 = vunpack.c.l.b16 %v5442
      %v5475 = vunpack.c.l.b16 %v5443
      %v5476 = vunpack.c.l.b16 %v5444
      %v5477 = vunpack.c.l.b16 %v5445
      %v5478 = vunpack.c.l.b16 %v5446
      %v5479 = vpack.c.b16 %v5464, %v5463
      %v5480 = vpack.c.b16 %v5466, %v5465
      %v5481 = vpack.c.b16 %v5468, %v5467
      %v5482 = vpack.c.b16 %v5470, %v5469
      %v5483 = vpack.c.b16 %v5472, %v5471
      %v5484 = vpack.c.b16 %v5474, %v5473
      %v5485 = vpack.c.b16 %v5476, %v5475
      %v5486 = vpack.c.b16 %v5478, %v5477
      %5495 = vmatpush.bf16.msra.mxu0 %v5486
      %5496 = vmatpush.bf16.msra.mxu0 %v5485
      %5497 = vmatpush.bf16.msra.mxu0 %v5484
      %5498 = vmatpush.bf16.msra.mxu0 %v5483
      %5499 = vmatpush.bf16.msra.mxu0 %v5482
      %5500 = vmatpush.bf16.msra.mxu0 %v5481
      %5501 = vmatpush.bf16.msra.mxu0 %v5480
      %5502 = vmatpush.bf16.msra.mxu0 %v5479
      %5503 = vmatmul.bf16.gmra.mxu0 %v5414
      %v5504 = vpop.f32.mrf.mxu0
      %v5505 = vadd.f32 0.0, %v5504
      %v5506 = vpop.f32.mrf.mxu0
      %v5507 = vadd.f32 0.0, %v5506
      %5508 = vmatmul.bf16.gmra.mxu0 %v5415
      %v5509 = vpop.f32.mrf.mxu0
      %v5510 = vadd.f32 0.0, %v5509
      %v5511 = vpop.f32.mrf.mxu0
      %v5512 = vadd.f32 0.0, %v5511
      %5513 = vmatmul.bf16.gmra.mxu0 %v5416
      %v5514 = vpop.f32.mrf.mxu0
      %v5515 = vadd.f32 0.0, %v5514
      %v5516 = vpop.f32.mrf.mxu0
      %v5517 = vadd.f32 0.0, %v5516
      %5518 = vmatmul.bf16.gmra.mxu0 %v5417
      %v5519 = vpop.f32.mrf.mxu0
      %v5520 = vadd.f32 0.0, %v5519
      %v5521 = vpop.f32.mrf.mxu0
      %v5522 = vadd.f32 0.0, %v5521
      %5523 = vmatmul.bf16.gmra.mxu0 %v5418
      %v5524 = vpop.f32.mrf.mxu0
      %v5525 = vadd.f32 0.0, %v5524
      %v5526 = vpop.f32.mrf.mxu0
      %v5527 = vadd.f32 0.0, %v5526
      %5528 = vmatmul.bf16.gmra.mxu0 %v5419
      %v5529 = vpop.f32.mrf.mxu0
      %v5530 = vadd.f32 0.0, %v5529
      %v5531 = vpop.f32.mrf.mxu0
      %v5532 = vadd.f32 0.0, %v5531
      %5533 = vmatmul.bf16.gmra.mxu0 %v5420
      %v5534 = vpop.f32.mrf.mxu0
      %v5535 = vadd.f32 0.0, %v5534
      %v5536 = vpop.f32.mrf.mxu0
      %v5537 = vadd.f32 0.0, %v5536
      %5538 = vmatmul.bf16.gmra.mxu0 %v5421
      %v5539 = vpop.f32.mrf.mxu0
      %v5540 = vadd.f32 0.0, %v5539
      %v5541 = vpop.f32.mrf.mxu0
      %v5542 = vadd.f32 0.0, %v5541
      %5543 = vmatmul.bf16.gmra.mxu0 %v5422
      %v5544 = vpop.f32.mrf.mxu0
      %v5545 = vadd.f32 0.0, %v5544
      %v5546 = vpop.f32.mrf.mxu0
      %v5547 = vadd.f32 0.0, %v5546
      %5548 = vmatmul.bf16.gmra.mxu0 %v5423
      %v5549 = vpop.f32.mrf.mxu0
      %v5550 = vadd.f32 0.0, %v5549
      %v5551 = vpop.f32.mrf.mxu0
      %v5552 = vadd.f32 0.0, %v5551
      %5553 = vmatmul.bf16.gmra.mxu0 %v5424
      %v5554 = vpop.f32.mrf.mxu0
      %v5555 = vadd.f32 0.0, %v5554
      %v5556 = vpop.f32.mrf.mxu0
      %v5557 = vadd.f32 0.0, %v5556
      %5558 = vmatmul.bf16.gmra.mxu0 %v5425
      %v5559 = vpop.f32.mrf.mxu0
      %v5560 = vadd.f32 0.0, %v5559
      %v5561 = vpop.f32.mrf.mxu0
      %v5562 = vadd.f32 0.0, %v5561
      %5563 = vmatmul.bf16.gmra.mxu0 %v5426
      %v5564 = vpop.f32.mrf.mxu0
      %v5565 = vadd.f32 0.0, %v5564
      %v5566 = vpop.f32.mrf.mxu0
      %v5567 = vadd.f32 0.0, %v5566
      %5568 = vmatmul.bf16.gmra.mxu0 %v5427
      %v5569 = vpop.f32.mrf.mxu0
      %v5570 = vadd.f32 0.0, %v5569
      %v5571 = vpop.f32.mrf.mxu0
      %v5572 = vadd.f32 0.0, %v5571
      %5573 = vmatmul.bf16.gmra.mxu0 %v5428
      %v5574 = vpop.f32.mrf.mxu0
      %v5575 = vadd.f32 0.0, %v5574
      %v5576 = vpop.f32.mrf.mxu0
      %v5577 = vadd.f32 0.0, %v5576
      %5578 = vmatmul.bf16.gmra.mxu0 %v5429
      %v5579 = vpop.f32.mrf.mxu0
      %v5580 = vadd.f32 0.0, %v5579
      %v5581 = vpop.f32.mrf.mxu0
      %v5582 = vadd.f32 0.0, %v5581
      %5583 = vdwg.mxu0
      %v5584 = vld [vmem:[#allocation4] sm:$0xff]
      %v5585 = vld [vmem:[#allocation4 + $0x8] sm:$0xff]
      %v5586 = vld [vmem:[#allocation4 + $0x10] sm:$0xff]
      %v5587 = vld [vmem:[#allocation4 + $0x18] sm:$0xff]
      %v5588 = vld [vmem:[#allocation4 + $0x20] sm:$0xff]
      %v5589 = vld [vmem:[#allocation4 + $0x28] sm:$0xff]
      %v5590 = vld [vmem:[#allocation4 + $0x30] sm:$0xff]
      %v5591 = vld [vmem:[#allocation4 + $0x38] sm:$0xff]
      %v5592 = vld [vmem:[#allocation4 + $0x40] sm:$0xff]
      %v5593 = vld [vmem:[#allocation4 + $0x48] sm:$0xff]
      %v5594 = vld [vmem:[#allocation4 + $0x50] sm:$0xff]
      %v5595 = vld [vmem:[#allocation4 + $0x58] sm:$0xff]
      %v5596 = vld [vmem:[#allocation4 + $0x60] sm:$0xff]
      %v5597 = vld [vmem:[#allocation4 + $0x68] sm:$0xff]
      %v5598 = vld [vmem:[#allocation4 + $0x70] sm:$0xff]
      %v5599 = vld [vmem:[#allocation4 + $0x78] sm:$0xff]
      %v5600 = vld [vmem:[#allocation4 + $0x80] sm:$0xff]
      %v5601 = vld [vmem:[#allocation4 + $0x88] sm:$0xff]
      %v5602 = vld [vmem:[#allocation4 + $0x90] sm:$0xff]
      %v5603 = vld [vmem:[#allocation4 + $0x98] sm:$0xff]
      %v5604 = vld [vmem:[#allocation4 + $0xa0] sm:$0xff]
      %v5605 = vld [vmem:[#allocation4 + $0xa8] sm:$0xff]
      %v5606 = vld [vmem:[#allocation4 + $0xb0] sm:$0xff]
      %v5607 = vld [vmem:[#allocation4 + $0xb8] sm:$0xff]
      %v5608 = vld [vmem:[#allocation4 + $0xc0] sm:$0xff]
      %v5609 = vld [vmem:[#allocation4 + $0xc8] sm:$0xff]
      %v5610 = vld [vmem:[#allocation4 + $0xd0] sm:$0xff]
      %v5611 = vld [vmem:[#allocation4 + $0xd8] sm:$0xff]
      %v5612 = vld [vmem:[#allocation4 + $0xe0] sm:$0xff]
      %v5613 = vld [vmem:[#allocation4 + $0xe8] sm:$0xff]
      %v5614 = vld [vmem:[#allocation4 + $0xf0] sm:$0xff]
      %v5615 = vld [vmem:[#allocation4 + $0xf8] sm:$0xff]
      %v5616 = vadd.f32 %v5584, %v5505
      %v5617 = vadd.f32 %v5585, %v5507
      %v5618 = vadd.f32 %v5586, %v5510
      %v5619 = vadd.f32 %v5587, %v5512
      %v5620 = vadd.f32 %v5588, %v5515
      %v5621 = vadd.f32 %v5589, %v5517
      %v5622 = vadd.f32 %v5590, %v5520
      %v5623 = vadd.f32 %v5591, %v5522
      %v5624 = vadd.f32 %v5592, %v5525
      %v5625 = vadd.f32 %v5593, %v5527
      %v5626 = vadd.f32 %v5594, %v5530
      %v5627 = vadd.f32 %v5595, %v5532
      %v5628 = vadd.f32 %v5596, %v5535
      %v5629 = vadd.f32 %v5597, %v5537
      %v5630 = vadd.f32 %v5598, %v5540
      %v5631 = vadd.f32 %v5599, %v5542
      %v5632 = vadd.f32 %v5600, %v5545
      %v5633 = vadd.f32 %v5601, %v5547
      %v5634 = vadd.f32 %v5602, %v5550
      %v5635 = vadd.f32 %v5603, %v5552
      %v5636 = vadd.f32 %v5604, %v5555
      %v5637 = vadd.f32 %v5605, %v5557
      %v5638 = vadd.f32 %v5606, %v5560
      %v5639 = vadd.f32 %v5607, %v5562
      %v5640 = vadd.f32 %v5608, %v5565
      %v5641 = vadd.f32 %v5609, %v5567
      %v5642 = vadd.f32 %v5610, %v5570
      %v5643 = vadd.f32 %v5611, %v5572
      %v5644 = vadd.f32 %v5612, %v5575
      %v5645 = vadd.f32 %v5613, %v5577
      %v5646 = vadd.f32 %v5614, %v5580
      %v5647 = vadd.f32 %v5615, %v5582
      %5648 = vst [vmem:[#allocation4] sm:$0xff] %v5616
      %5649 = vst [vmem:[#allocation4 + $0x8] sm:$0xff] %v5617
      %5650 = vst [vmem:[#allocation4 + $0x10] sm:$0xff] %v5618
      %5651 = vst [vmem:[#allocation4 + $0x18] sm:$0xff] %v5619
      %5652 = vst [vmem:[#allocation4 + $0x20] sm:$0xff] %v5620
      %5653 = vst [vmem:[#allocation4 + $0x28] sm:$0xff] %v5621
      %5654 = vst [vmem:[#allocation4 + $0x30] sm:$0xff] %v5622
      %5655 = vst [vmem:[#allocation4 + $0x38] sm:$0xff] %v5623
      %5656 = vst [vmem:[#allocation4 + $0x40] sm:$0xff] %v5624
      %5657 = vst [vmem:[#allocation4 + $0x48] sm:$0xff] %v5625
      %5658 = vst [vmem:[#allocation4 + $0x50] sm:$0xff] %v5626
      %5659 = vst [vmem:[#allocation4 + $0x58] sm:$0xff] %v5627
      %5660 = vst [vmem:[#allocation4 + $0x60] sm:$0xff] %v5628
      %5661 = vst [vmem:[#allocation4 + $0x68] sm:$0xff] %v5629
      %5662 = vst [vmem:[#allocation4 + $0x70] sm:$0xff] %v5630
      %5663 = vst [vmem:[#allocation4 + $0x78] sm:$0xff] %v5631
      %5664 = vst [vmem:[#allocation4 + $0x80] sm:$0xff] %v5632
      %5665 = vst [vmem:[#allocation4 + $0x88] sm:$0xff] %v5633
      %5666 = vst [vmem:[#allocation4 + $0x90] sm:$0xff] %v5634
      %5667 = vst [vmem:[#allocation4 + $0x98] sm:$0xff] %v5635
      %5668 = vst [vmem:[#allocation4 + $0xa0] sm:$0xff] %v5636
      %5669 = vst [vmem:[#allocation4 + $0xa8] sm:$0xff] %v5637
      %5670 = vst [vmem:[#allocation4 + $0xb0] sm:$0xff] %v5638
      %5671 = vst [vmem:[#allocation4 + $0xb8] sm:$0xff] %v5639
      %5672 = vst [vmem:[#allocation4 + $0xc0] sm:$0xff] %v5640
      %5673 = vst [vmem:[#allocation4 + $0xc8] sm:$0xff] %v5641
      %5674 = vst [vmem:[#allocation4 + $0xd0] sm:$0xff] %v5642
      %5675 = vst [vmem:[#allocation4 + $0xd8] sm:$0xff] %v5643
      %5676 = vst [vmem:[#allocation4 + $0xe0] sm:$0xff] %v5644
      %5677 = vst [vmem:[#allocation4 + $0xe8] sm:$0xff] %v5645
      %5678 = vst [vmem:[#allocation4 + $0xf0] sm:$0xff] %v5646
      %5679 = vst [vmem:[#allocation4 + $0xf8] sm:$0xff] %v5647
      %v5680 = vld [vmem:[%s4] sm:$0x3]
      %v5681 = vld [vmem:[#allocation4] sm:$0xff]
      %v5682 = vld [vmem:[#allocation4 + $0x8] sm:$0xff]
      %v5683 = vld [vmem:[#allocation4 + $0x10] sm:$0xff]
      %v5684 = vld [vmem:[#allocation4 + $0x18] sm:$0xff]
      %v5685 = vld [vmem:[#allocation4 + $0x20] sm:$0xff]
      %v5686 = vld [vmem:[#allocation4 + $0x28] sm:$0xff]
      %v5687 = vld [vmem:[#allocation4 + $0x30] sm:$0xff]
      %v5688 = vld [vmem:[#allocation4 + $0x38] sm:$0xff]
      %v5689 = vld [vmem:[#allocation4 + $0x40] sm:$0xff]
      %v5690 = vld [vmem:[#allocation4 + $0x48] sm:$0xff]
      %v5691 = vld [vmem:[#allocation4 + $0x50] sm:$0xff]
      %v5692 = vld [vmem:[#allocation4 + $0x58] sm:$0xff]
      %v5693 = vld [vmem:[#allocation4 + $0x60] sm:$0xff]
      %v5694 = vld [vmem:[#allocation4 + $0x68] sm:$0xff]
      %v5695 = vld [vmem:[#allocation4 + $0x70] sm:$0xff]
      %v5696 = vld [vmem:[#allocation4 + $0x78] sm:$0xff]
      %v5697 = vld [vmem:[#allocation4 + $0x80] sm:$0xff]
      %v5698 = vld [vmem:[#allocation4 + $0x88] sm:$0xff]
      %v5699 = vld [vmem:[#allocation4 + $0x90] sm:$0xff]
      %v5700 = vld [vmem:[#allocation4 + $0x98] sm:$0xff]
      %v5701 = vld [vmem:[#allocation4 + $0xa0] sm:$0xff]
      %v5702 = vld [vmem:[#allocation4 + $0xa8] sm:$0xff]
      %v5703 = vld [vmem:[#allocation4 + $0xb0] sm:$0xff]
      %v5704 = vld [vmem:[#allocation4 + $0xb8] sm:$0xff]
      %v5705 = vld [vmem:[#allocation4 + $0xc0] sm:$0xff]
      %v5706 = vld [vmem:[#allocation4 + $0xc8] sm:$0xff]
      %v5707 = vld [vmem:[#allocation4 + $0xd0] sm:$0xff]
      %v5708 = vld [vmem:[#allocation4 + $0xd8] sm:$0xff]
      %v5709 = vld [vmem:[#allocation4 + $0xe0] sm:$0xff]
      %v5710 = vld [vmem:[#allocation4 + $0xe8] sm:$0xff]
      %v5711 = vld [vmem:[#allocation4 + $0xf0] sm:$0xff]
      %v5712 = vld [vmem:[#allocation4 + $0xf8] sm:$0xff]
      %v5713 = vperm.slane %v5680, 0
      %v5714 = vmul.f32 %v5681, %v5713
      %v5715 = vmul.f32 %v5682, %v5713
      %v5716 = vmul.f32 %v5683, %v5713
      %v5717 = vmul.f32 %v5684, %v5713
      %v5718 = vmul.f32 %v5685, %v5713
      %v5719 = vmul.f32 %v5686, %v5713
      %v5720 = vmul.f32 %v5687, %v5713
      %v5721 = vmul.f32 %v5688, %v5713
      %v5722 = vmul.f32 %v5689, %v5713
      %v5723 = vmul.f32 %v5690, %v5713
      %v5724 = vmul.f32 %v5691, %v5713
      %v5725 = vmul.f32 %v5692, %v5713
      %v5726 = vmul.f32 %v5693, %v5713
      %v5727 = vmul.f32 %v5694, %v5713
      %v5728 = vmul.f32 %v5695, %v5713
      %v5729 = vmul.f32 %v5696, %v5713
      %v5730 = vmul.f32 %v5697, %v5713
      %v5731 = vmul.f32 %v5698, %v5713
      %v5732 = vmul.f32 %v5699, %v5713
      %v5733 = vmul.f32 %v5700, %v5713
      %v5734 = vmul.f32 %v5701, %v5713
      %v5735 = vmul.f32 %v5702, %v5713
      %v5736 = vmul.f32 %v5703, %v5713
      %v5737 = vmul.f32 %v5704, %v5713
      %v5738 = vmul.f32 %v5705, %v5713
      %v5739 = vmul.f32 %v5706, %v5713
      %v5740 = vmul.f32 %v5707, %v5713
      %v5741 = vmul.f32 %v5708, %v5713
      %v5742 = vmul.f32 %v5709, %v5713
      %v5743 = vmul.f32 %v5710, %v5713
      %v5744 = vmul.f32 %v5711, %v5713
      %v5745 = vmul.f32 %v5712, %v5713
      %v5746 = vperm.slane %v5680, 1
      %v5747 = vadd.f32 %v5714, %v5746
      %v5748 = vadd.f32 %v5715, %v5746
      %v5749 = vadd.f32 %v5716, %v5746
      %v5750 = vadd.f32 %v5717, %v5746
      %v5751 = vadd.f32 %v5718, %v5746
      %v5752 = vadd.f32 %v5719, %v5746
      %v5753 = vadd.f32 %v5720, %v5746
      %v5754 = vadd.f32 %v5721, %v5746
      %v5755 = vadd.f32 %v5722, %v5746
      %v5756 = vadd.f32 %v5723, %v5746
      %v5757 = vadd.f32 %v5724, %v5746
      %v5758 = vadd.f32 %v5725, %v5746
      %v5759 = vadd.f32 %v5726, %v5746
      %v5760 = vadd.f32 %v5727, %v5746
      %v5761 = vadd.f32 %v5728, %v5746
      %v5762 = vadd.f32 %v5729, %v5746
      %v5763 = vadd.f32 %v5730, %v5746
      %v5764 = vadd.f32 %v5731, %v5746
      %v5765 = vadd.f32 %v5732, %v5746
      %v5766 = vadd.f32 %v5733, %v5746
      %v5767 = vadd.f32 %v5734, %v5746
      %v5768 = vadd.f32 %v5735, %v5746
      %v5769 = vadd.f32 %v5736, %v5746
      %v5770 = vadd.f32 %v5737, %v5746
      %v5771 = vadd.f32 %v5738, %v5746
      %v5772 = vadd.f32 %v5739, %v5746
      %v5773 = vadd.f32 %v5740, %v5746
      %v5774 = vadd.f32 %v5741, %v5746
      %v5775 = vadd.f32 %v5742, %v5746
      %v5776 = vadd.f32 %v5743, %v5746
      %v5777 = vadd.f32 %v5744, %v5746
      %v5778 = vadd.f32 %v5745, %v5746
      %v5779 = vld [vmem:[%s1054 + $0x1] sm:$0xff]
      %v5780 = vld [vmem:[%s1054 + $0x9] sm:$0xff]
      %v5781 = vld [vmem:[%s1054 + $0x19] sm:$0xff]
      %v5782 = vld [vmem:[%s1054 + $0x21] sm:$0xff]
      %v5783 = vld [vmem:[%s1054 + $0x31] sm:$0xff]
      %v5784 = vld [vmem:[%s1054 + $0x39] sm:$0xff]
      %v5785 = vld [vmem:[%s1054 + $0x49] sm:$0xff]
      %v5786 = vld [vmem:[%s1054 + $0x51] sm:$0xff]
      %v5787 = vld [vmem:[%s1054 + $0x61] sm:$0xff]
      %v5788 = vld [vmem:[%s1054 + $0x69] sm:$0xff]
      %v5789 = vld [vmem:[%s1054 + $0x79] sm:$0xff]
      %v5790 = vld [vmem:[%s1054 + $0x81] sm:$0xff]
      %v5791 = vld [vmem:[%s1054 + $0x91] sm:$0xff]
      %v5792 = vld [vmem:[%s1054 + $0x99] sm:$0xff]
      %v5793 = vld [vmem:[%s1054 + $0xa9] sm:$0xff]
      %v5794 = vld [vmem:[%s1054 + $0xb1] sm:$0xff]
      %v5795 = vld [vmem:[%s1054 + $0xc1] sm:$0xff]
      %v5796 = vld [vmem:[%s1054 + $0xc9] sm:$0xff]
      %v5797 = vld [vmem:[%s1054 + $0xd9] sm:$0xff]
      %v5798 = vld [vmem:[%s1054 + $0xe1] sm:$0xff]
      %v5799 = vld [vmem:[%s1054 + $0xf1] sm:$0xff]
      %v5800 = vld [vmem:[%s1054 + $0xf9] sm:$0xff]
      %v5801 = vld [vmem:[%s1054 + $0x109] sm:$0xff]
      %v5802 = vld [vmem:[%s1054 + $0x111] sm:$0xff]
      %v5803 = vld [vmem:[%s1054 + $0x121] sm:$0xff]
      %v5804 = vld [vmem:[%s1054 + $0x129] sm:$0xff]
      %v5805 = vld [vmem:[%s1054 + $0x139] sm:$0xff]
      %v5806 = vld [vmem:[%s1054 + $0x141] sm:$0xff]
      %v5807 = vld [vmem:[%s1054 + $0x151] sm:$0xff]
      %v5808 = vld [vmem:[%s1054 + $0x159] sm:$0xff]
      %v5809 = vld [vmem:[%s1054 + $0x169] sm:$0xff]
      %v5810 = vld [vmem:[%s1054 + $0x171] sm:$0xff]
      %v5811 = vadd.f32 %v5747, %v5779
      %v5812 = vadd.f32 %v5748, %v5780
      %v5813 = vadd.f32 %v5749, %v5781
      %v5814 = vadd.f32 %v5750, %v5782
      %v5815 = vadd.f32 %v5751, %v5783
      %v5816 = vadd.f32 %v5752, %v5784
      %v5817 = vadd.f32 %v5753, %v5785
      %v5818 = vadd.f32 %v5754, %v5786
      %v5819 = vadd.f32 %v5755, %v5787
      %v5820 = vadd.f32 %v5756, %v5788
      %v5821 = vadd.f32 %v5757, %v5789
      %v5822 = vadd.f32 %v5758, %v5790
      %v5823 = vadd.f32 %v5759, %v5791
      %v5824 = vadd.f32 %v5760, %v5792
      %v5825 = vadd.f32 %v5761, %v5793
      %v5826 = vadd.f32 %v5762, %v5794
      %v5827 = vadd.f32 %v5763, %v5795
      %v5828 = vadd.f32 %v5764, %v5796
      %v5829 = vadd.f32 %v5765, %v5797
      %v5830 = vadd.f32 %v5766, %v5798
      %v5831 = vadd.f32 %v5767, %v5799
      %v5832 = vadd.f32 %v5768, %v5800
      %v5833 = vadd.f32 %v5769, %v5801
      %v5834 = vadd.f32 %v5770, %v5802
      %v5835 = vadd.f32 %v5771, %v5803
      %v5836 = vadd.f32 %v5772, %v5804
      %v5837 = vadd.f32 %v5773, %v5805
      %v5838 = vadd.f32 %v5774, %v5806
      %v5839 = vadd.f32 %v5775, %v5807
      %v5840 = vadd.f32 %v5776, %v5808
      %v5841 = vadd.f32 %v5777, %v5809
      %v5842 = vadd.f32 %v5778, %v5810
      %v5843 = vmax.f32 %v5811, 0.0
      %v5844 = vmax.f32 %v5812, 0.0
      %v5845 = vmax.f32 %v5813, 0.0
      %v5846 = vmax.f32 %v5814, 0.0
      %v5847 = vmax.f32 %v5815, 0.0
      %v5848 = vmax.f32 %v5816, 0.0
      %v5849 = vmax.f32 %v5817, 0.0
      %v5850 = vmax.f32 %v5818, 0.0
      %v5851 = vmax.f32 %v5819, 0.0
      %v5852 = vmax.f32 %v5820, 0.0
      %v5853 = vmax.f32 %v5821, 0.0
      %v5854 = vmax.f32 %v5822, 0.0
      %v5855 = vmax.f32 %v5823, 0.0
      %v5856 = vmax.f32 %v5824, 0.0
      %v5857 = vmax.f32 %v5825, 0.0
      %v5858 = vmax.f32 %v5826, 0.0
      %v5859 = vmax.f32 %v5827, 0.0
      %v5860 = vmax.f32 %v5828, 0.0
      %v5861 = vmax.f32 %v5829, 0.0
      %v5862 = vmax.f32 %v5830, 0.0
      %v5863 = vmax.f32 %v5831, 0.0
      %v5864 = vmax.f32 %v5832, 0.0
      %v5865 = vmax.f32 %v5833, 0.0
      %v5866 = vmax.f32 %v5834, 0.0
      %v5867 = vmax.f32 %v5835, 0.0
      %v5868 = vmax.f32 %v5836, 0.0
      %v5869 = vmax.f32 %v5837, 0.0
      %v5870 = vmax.f32 %v5838, 0.0
      %v5871 = vmax.f32 %v5839, 0.0
      %v5872 = vmax.f32 %v5840, 0.0
      %v5873 = vmax.f32 %v5841, 0.0
      %v5874 = vmax.f32 %v5842, 0.0
      %5875 = vst [vmem:[%s224] sm:$0xff] %v5843
      %5876 = vst [vmem:[%s224 + $0x8] sm:$0xff] %v5844
      %5877 = vst [vmem:[%s224 + $0x10] sm:$0xff] %v5845
      %5878 = vst [vmem:[%s224 + $0x18] sm:$0xff] %v5846
      %5879 = vst [vmem:[%s224 + $0x20] sm:$0xff] %v5847
      %5880 = vst [vmem:[%s224 + $0x28] sm:$0xff] %v5848
      %5881 = vst [vmem:[%s224 + $0x30] sm:$0xff] %v5849
      %5882 = vst [vmem:[%s224 + $0x38] sm:$0xff] %v5850
      %5883 = vst [vmem:[%s224 + $0x40] sm:$0xff] %v5851
      %5884 = vst [vmem:[%s224 + $0x48] sm:$0xff] %v5852
      %5885 = vst [vmem:[%s224 + $0x50] sm:$0xff] %v5853
      %5886 = vst [vmem:[%s224 + $0x58] sm:$0xff] %v5854
      %5887 = vst [vmem:[%s224 + $0x60] sm:$0xff] %v5855
      %5888 = vst [vmem:[%s224 + $0x68] sm:$0xff] %v5856
      %5889 = vst [vmem:[%s224 + $0x70] sm:$0xff] %v5857
      %5890 = vst [vmem:[%s224 + $0x78] sm:$0xff] %v5858
      %5891 = vst [vmem:[%s224 + $0x80] sm:$0xff] %v5859
      %5892 = vst [vmem:[%s224 + $0x88] sm:$0xff] %v5860
      %5893 = vst [vmem:[%s224 + $0x90] sm:$0xff] %v5861
      %5894 = vst [vmem:[%s224 + $0x98] sm:$0xff] %v5862
      %5895 = vst [vmem:[%s224 + $0xa0] sm:$0xff] %v5863
      %5896 = vst [vmem:[%s224 + $0xa8] sm:$0xff] %v5864
      %5897 = vst [vmem:[%s224 + $0xb0] sm:$0xff] %v5865
      %5898 = vst [vmem:[%s224 + $0xb8] sm:$0xff] %v5866
      %5899 = vst [vmem:[%s224 + $0xc0] sm:$0xff] %v5867
      %5900 = vst [vmem:[%s224 + $0xc8] sm:$0xff] %v5868
      %5901 = vst [vmem:[%s224 + $0xd0] sm:$0xff] %v5869
      %5902 = vst [vmem:[%s224 + $0xd8] sm:$0xff] %v5870
      %5903 = vst [vmem:[%s224 + $0xe0] sm:$0xff] %v5871
      %5904 = vst [vmem:[%s224 + $0xe8] sm:$0xff] %v5872
      %5905 = vst [vmem:[%s224 + $0xf0] sm:$0xff] %v5873
      %5906 = vst [vmem:[%s224 + $0xf8] sm:$0xff] %v5874
      %p5907 = scmp.lt.s32.totalorder %s16, 1
      %s5908 = scalar_select %p5907, %s16, 1
      %s5909 = smul.addr %s5908, 32
      %s5910 = smul.addr %s5909, 8
      %s5911 = scalar_lea.vmem %s5, %s5910
      // Predicated region
      $region41: #{basic_block_forward.1} parent=39 // pred_check
        %p5912 = pneg %p144
      $region42: #{basic_block_forward.1} parent=39 // pred_check_branch
        %5914 = sbr.rel (%p5912) target = $region44
      $region43: #{basic_block_forward.1} parent=39 // pred_region
        _
      $region44: #{basic_block_forward.1} parent=39 // pred_fallthru
        _
    $region40: #{basic_block_forward.1} parent=5 // pred_fallthru
      _
    %p5915 = scmp.le.s32.totalorder 2, %s11
    // Predicated region
    $region45: #{basic_block_forward.1} parent=5 // pred_check
      %p5916 = pneg %p5915
    $region46: #{basic_block_forward.1} parent=5 // pred_check_branch
      %5918 = sbr.rel (%p5916) target = $region48
    $region47: #{basic_block_forward.1} parent=5 // pred_region
      %s5919 = ssub.s32 %s11, 2
      // Predicated region
      $region49: #{basic_block_forward.1} parent=47 // pred_check
        %p5920 = pneg %p150
      $region50: #{basic_block_forward.1} parent=47 // pred_check_branch
        %5922 = sbr.rel (%p5920) target = $region52
      $region51: #{basic_block_forward.1} parent=47 // pred_region
        %p5923 = scmp.lt.s32.totalorder %s17, 1
        %s5924 = scalar_select %p5923, %s17, 1
        %s5925 = smul.addr %s5924, 32
        %s5926 = smul.addr %s5925, 8
        %s5927 = scalar_lea.vmem %s5, %s5926
      $region52: #{basic_block_forward.1} parent=47 // pred_fallthru
        _
    $region48: #{basic_block_forward.1} parent=5 // pred_fallthru
      _
  $region6: #{basic_block_forward.1} parent=0 // loop_footer
    %s15 = sadd.s32 1, %s11
  $region7: #{basic_block_forward.1} parent=0 // loop_footer_branch
    %10 = sbr.rel target = $region3
  $region8: #{basic_block_forward.1} parent=0 // loop_exit
    _

</llo_original>
